<compile_context>
chip_gen: v7x
topology: tpu7x:2x2x1
jax: 0.10.0
libtpu: 0.0.40
codegen_flags: <defaults>
</compile_context>

<pallas_src>
import jax
import jax.numpy as jnp
from jax import lax
from jax.experimental import pallas as pl
from jax.experimental.pallas import tpu as pltpu


CPAD = 128          # lane-dense padded output-channel count for conv / FC layers
OUT_PAD = 256       # lane-dense padded width of the reasoning output (sliced to 200)
NEG_INF = -1e9      # logit pad so the 128-lane softmax makes padded-class probs exactly 0


# -----------------------------------------------------------------------------
# Pallas kernels
# -----------------------------------------------------------------------------

def _conv_pool_relu_kernel(x_ref, w_ref, b_ref, o_ref):
    """x_ref: (bm, 4*K) bf16 — im2col patches of the four 2x2-pool corners
    concatenated along K.  w_ref: (4*K, 512) bf16 block-diagonal weights
    (corner c maps to lanes [c*128,(c+1)*128)).  b_ref: (1,128) f32.
    o_ref: (bm, 128) bf16.  relu(maxpool2x2(conv(x)) + b), lane-dense."""
    y = jnp.dot(x_ref[...], w_ref[...], preferred_element_type=jnp.float32)  # (bm, 512)
    m = jnp.maximum(jnp.maximum(y[:, 0:CPAD], y[:, CPAD:2 * CPAD]),
                    jnp.maximum(y[:, 2 * CPAD:3 * CPAD], y[:, 3 * CPAD:4 * CPAD]))
    o_ref[...] = jnp.maximum(m + b_ref[...], 0.0).astype(o_ref.dtype)


def _mlp_reason_kernel(x_ref, w1_ref, b1_ref, w2_ref, b2_ref, w3_ref, b3_ref,
                       s10_ref, t10_ref, add10_ref, s19_ref, t19_ref, mixc_ref,
                       o_ref):
    """Fused classifier (Linear 256->120->84->10 + softmax) and exact Scallop
    "sum" marginalization for one batch block.  x_ref rows are slot-major:
    6 digit slots x bm examples, with bm a multiple of 16 so every sublane
    slice / bf16 repack is aligned."""
    bm = x_ref.shape[0] // 6

    # ---- MLP: bf16 MXU operands, f32 accumulation / f32 elementwise ----
    x = x_ref[...]                                                      # (6*bm, 256) bf16
    h = jnp.maximum(
        jnp.dot(x, w1_ref[...], preferred_element_type=jnp.float32) + b1_ref[...], 0.0)
    h = jnp.maximum(
        jnp.dot(h.astype(jnp.bfloat16), w2_ref[...],
                preferred_element_type=jnp.float32) + b2_ref[...], 0.0)
    logits = jnp.dot(h.astype(jnp.bfloat16), w3_ref[...],
                     preferred_element_type=jnp.float32) + b3_ref[...]

    # ---- softmax; padded classes have logit -1e9 => exp underflows to exactly 0,
    # so the 128-row zero-padded selection matrices below are exact.
    mx = jnp.max(logits, axis=-1, keepdims=True)
    e = jnp.exp(logits - mx)
    probs = e * pl.reciprocal(jnp.sum(e, axis=-1, keepdims=True), approx=True)

    # ---- exact marginalization of sum = 100(a+d) + 10(b+e) + (c+f) ----
    # Batched: slots {0,1,2} vs {3,4,5} stacked to 3*bm rows => one set of
    # three selection matmuls instead of nine; all selector matmuls run bf16.
    pb = probs.astype(jnp.bfloat16)                                     # (6*bm, 128)
    u = pb[0:3 * bm]                       # digits a, b, c
    v = pb[3 * bm:6 * bm]                  # digits d, e, f
    prod = (jnp.dot(u, s10_ref[...], preferred_element_type=jnp.float32) *
            jnp.dot(v, t10_ref[...], preferred_element_type=jnp.float32))   # (3*bm, 100)
    sums = jnp.dot(prod.astype(jnp.bfloat16), add10_ref[...],
                   preferred_element_type=jnp.float32)                       # (3*bm, 19)
    h_sum = sums[0:bm]                     # P(a+d = .)
    t_sum = sums[bm:2 * bm]                # P(b+e = .)
    o_sum = sums[2 * bm:3 * bm]            # P(c+f = .)

    # pq  = P(10*(b+e) + (c+f) = j) over 256 lanes; pqs = same shifted by +100
    # (masked to j<200).  mix / mix_shift are fused into one (361,512) matmul.
    prod2 = (jnp.dot(t_sum.astype(jnp.bfloat16), s19_ref[...],
                     preferred_element_type=jnp.float32) *
             jnp.dot(o_sum.astype(jnp.bfloat16), t19_ref[...],
                     preferred_element_type=jnp.float32))                     # (bm, 361)
    pq2 = jnp.dot(prod2.astype(jnp.bfloat16), mixc_ref[...],
                  preferred_element_type=jnp.float32)                         # (bm, 512)

    # out[b, s] = P(a+d=0)*pq[b,s] + P(a+d=1)*pq[b,s-100]   (a+d>=2 => sum>=200)
    o_ref[...] = (h_sum[:, 0:1] * pq2[:, 0:OUT_PAD] +
                  h_sum[:, 1:2] * pq2[:, OUT_PAD:2 * OUT_PAD])


# -----------------------------------------------------------------------------
# pallas_call wrappers
# -----------------------------------------------------------------------------

def _pick_block_rows(m, target=1024):
    """Largest divisor of m that is a multiple of 16 (bf16 sublane packing),
    <= target, and yields >= 2 grid steps (keeps both v7x TensorCores busy even
    at toy sizes).  Falls back to one full block."""
    hi = min(target, m // 2)
    bm = hi - hi % 16
    while bm >= 16:
        if m % bm == 0:
            return bm
        bm -= 16
    return m


def _pick_tail_rows(bpad, target=128):
    """Per-block example count for the fused tail kernel (bpad is a multiple
    of 16, so 16 always works)."""
    hi = min(target, max(bpad // 2, 16))
    bm = hi - hi % 16
    while bm >= 16:
        if bpad % bm == 0:
            return bm
        bm -= 16
    return bpad


def conv_pool_relu(cols, w_bd, b_pad):
    m, k4 = cols.shape
    bm = _pick_block_rows(m)
    return pl.pallas_call(
        _conv_pool_relu_kernel,
        out_shape=jax.ShapeDtypeStruct((m, CPAD), jnp.bfloat16),
        grid=(m // bm,),
        in_specs=[
            pl.BlockSpec((bm, k4), lambda i: (i, 0)),
            pl.BlockSpec(w_bd.shape, lambda i: (0, 0)),
            pl.BlockSpec(b_pad.shape, lambda i: (0, 0)),
        ],
        out_specs=pl.BlockSpec((bm, CPAD), lambda i: (i, 0)),
        compiler_params=pltpu.CompilerParams(dimension_semantics=("parallel",)),
    )(cols, w_bd, b_pad)


def mlp_softmax_reason(featp, packed, consts, bpad, bm_b):
    nblk = bpad // bm_b
    rows = 6 * bm_b
    others = (packed["fc1_w"], packed["fc1_b"], packed["fc2_w"], packed["fc2_b"],
              packed["fc3_w"], packed["fc3_b"]) + tuple(consts)
    return pl.pallas_call(
        _mlp_reason_kernel,
        out_shape=jax.ShapeDtypeStruct((bpad, OUT_PAD), jnp.float32),
        grid=(nblk,),
        in_specs=[pl.BlockSpec((rows, 256), lambda i: (i, 0))]
                 + [pl.BlockSpec(a.shape, lambda i: (0, 0)) for a in others],
        out_specs=pl.BlockSpec((bm_b, OUT_PAD), lambda i: (i, 0)),
        compiler_params=pltpu.CompilerParams(dimension_semantics=("parallel",)),
    )(featp, *others)


# -----------------------------------------------------------------------------
# Glue: channels-last pooled im2col, constants, parameter packing
# -----------------------------------------------------------------------------

def _im2col_pooled_nhwc(x, ksize=5):
    """x: (N, H, W, C) -> (N*Hp*Wp, 4*KH*KW*C): the flattened valid-conv patch
    for each of the 4 positions of a 2x2 max-pool window, concatenated along K
    in (corner, kh, kw, c) order (matching the block-diagonal weights)."""
    n, h, w, c = x.shape
    hp, wp = (h - ksize + 1) // 2, (w - ksize + 1) // 2
    corners = []
    for dy in range(2):
        for dx in range(2):
            patches = []
            for kh in range(ksize):
                for kw in range(ksize):
                    patches.append(
                        x[:, dy + kh: dy + kh + 2 * hp: 2,
                             dx + kw: dx + kw + 2 * wp: 2, :])        # (n, hp, wp, c)
            p = jnp.stack(patches, axis=3)                            # (n, hp, wp, kk, c)
            corners.append(p.reshape(n * hp * wp, ksize * ksize * c))
    return jnp.concatenate(corners, axis=1), (n, hp, wp)


def make_reasoning_constants():
    """bf16 0/1 spread / collect matrices so every contraction in the reasoning
    kernel is a single-pass bf16 MXU matmul.  s10/t10 are zero-padded to 128
    rows (padded-class probabilities are exactly 0, so this is exact); the two
    final collectors are concatenated into one 512-lane matrix."""
    i100 = jnp.arange(100)
    s10 = (i100[None, :] // 10 == jnp.arange(10)[:, None]).astype(jnp.float32)
    t10 = (i100[None, :] % 10 == jnp.arange(10)[:, None]).astype(jnp.float32)
    add10 = ((i100[:, None] // 10 + i100[:, None] % 10)
             == jnp.arange(19)[None, :]).astype(jnp.float32)
    i361 = jnp.arange(361)
    s19 = (i361[None, :] // 19 == jnp.arange(19)[:, None]).astype(jnp.float32)
    t19 = (i361[None, :] % 19 == jnp.arange(19)[:, None]).astype(jnp.float32)
    val = 10 * (i361[:, None] // 19) + i361[:, None] % 19              # (361, 1)
    j = jnp.arange(OUT_PAD)[None, :]
    mix = (val == j).astype(jnp.float32)                               # (361, 256)
    mix_shift = ((val + 100 == j) & (j < 200)).astype(jnp.float32)     # (361, 256)
    mixc = jnp.concatenate([mix, mix_shift], axis=1)                   # (361, 512)

    def pad_rows(a):
        return jnp.zeros((CPAD, a.shape[1]), a.dtype).at[:a.shape[0]].set(a)

    bf = lambda a: a.astype(jnp.bfloat16)
    return (bf(pad_rows(s10)), bf(pad_rows(t10)), bf(add10),
            bf(s19), bf(t19), bf(mixc))


def _pad2(w, rows, cols):
    out = jnp.zeros((rows, cols), w.dtype)
    return out.at[: w.shape[0], : w.shape[1]].set(w)


def _block_diag_conv_w(w_oihw):
    """Torch (O, I, KH, KW) conv weight -> (4*K, 512) bf16 block-diagonal
    im2col weight: pool corner c uses rows [c*K,(c+1)*K) and lanes
    [c*128, c*128+O); everything else is zero."""
    o, i, kh, kw = w_oihw.shape
    k = kh * kw * i
    wm = jnp.transpose(w_oihw, (2, 3, 1, 0)).reshape(k, o)             # (kh,kw,c) rows
    out = jnp.zeros((4 * k, 4 * CPAD), jnp.float32)
    for corner in range(4):
        out = out.at[corner * k:(corner + 1) * k,
                     corner * CPAD:corner * CPAD + o].set(wm)
    return out.astype(jnp.bfloat16)


def pack_params(params):
    """One-time (outside the hot path) permutation / zero-padding of the torch
    layout parameters.  fc1's input columns are permuted from torch's (c,h,w)
    flatten to the kernel's channels-last (h,w,c) flatten."""
    f1 = params["fc1_w"].reshape(120, 16, 4, 4).transpose(2, 3, 1, 0).reshape(256, 120)
    f2 = params["fc2_w"].T
    f3 = params["fc3_w"].T
    fb3 = jnp.full((1, CPAD), NEG_INF, jnp.float32).at[0, :10].set(params["fc3_b"])
    return dict(
        conv1_w=_block_diag_conv_w(params["conv1_w"]),
        conv1_b=_pad2(params["conv1_b"][None, :], 1, CPAD),
        conv2_w=_block_diag_conv_w(params["conv2_w"]),
        conv2_b=_pad2(params["conv2_b"][None, :], 1, CPAD),
        fc1_w=_pad2(f1, 256, CPAD).astype(jnp.bfloat16),
        fc1_b=_pad2(params["fc1_b"][None, :], 1, CPAD),
        fc2_w=_pad2(f2, CPAD, CPAD).astype(jnp.bfloat16),
        fc2_b=_pad2(params["fc2_b"][None, :], 1, CPAD),
        fc3_w=_pad2(f3, CPAD, CPAD).astype(jnp.bfloat16),
        fc3_b=fb3,
    )


def init_params(key):
    ks = jax.random.split(key, 10)

    def w(k, shape, scale=0.1):
        return scale * jax.random.normal(k, shape, dtype=jnp.float32)

    return dict(
        conv1_w=w(ks[0], (6, 1, 5, 5)),  conv1_b=w(ks[1], (6,), 0.05),
        conv2_w=w(ks[2], (16, 6, 5, 5)), conv2_b=w(ks[3], (16,), 0.05),
        fc1_w=w(ks[4], (120, 256)),      fc1_b=w(ks[5], (120,), 0.05),
        fc2_w=w(ks[6], (84, 120)),       fc2_b=w(ks[7], (84,), 0.05),
        fc3_w=w(ks[8], (10, 84)),        fc3_b=w(ks[9], (10,), 0.05),
    )


# -----------------------------------------------------------------------------
# Full forward (Pallas path) and pure-JAX reference
# -----------------------------------------------------------------------------

@jax.jit
def mnist_sum_double2_forward(x, packed, consts):
    n = x.shape[0]                     # 6 * batch MNIST images, slot-major
    batch = n // 6
    # NHWC (C=1: free reshape); cast to bf16 BEFORE patch expansion.
    x = x.reshape(n, 28, 28, 1).astype(jnp.bfloat16)

    # conv1 (1->6) + maxpool2x2 + relu  (lane-dense bf16 128-channel output)
    cols1, (_, hp, wp) = _im2col_pooled_nhwc(x, 5)
    y = conv_pool_relu(cols1, packed["conv1_w"], packed["conv1_b"])
    y = y[:, :6].reshape(n, hp, wp, 6)                          # stay NHWC

    # conv2 (6->16) + maxpool2x2 + relu
    cols2, (_, hp, wp) = _im2col_pooled_nhwc(y, 5)
    y = conv_pool_relu(cols2, packed["conv2_w"], packed["conv2_b"])
    feat = y[:, :16].reshape(n, 16 * hp * wp)                   # (h, w, c) flatten, bf16

    # Arrange rows block-major: each grid block of the tail kernel is a
    # contiguous (6*bm_b, 256) slab covering bm_b whole examples (slot-major
    # inside the block).  bpad is a multiple of 16 for clean bf16 packing.
    bpad = ((batch + 15) // 16) * 16
    bm_b = _pick_tail_rows(bpad)
    nblk = bpad // bm_b
    featp = jnp.pad(feat.reshape(6, batch, 256),
                    ((0, 0), (0, bpad - batch), (0, 0)))
    featp = featp.reshape(6, nblk, bm_b, 256).transpose(1, 0, 2, 3)
    featp = featp.reshape(nblk * 6 * bm_b, 256)

    out = mlp_softmax_reason(featp, packed, consts, bpad, bm_b)
    return out[:batch, :200]


def reference_forward(x, params):
    """Pure-JAX f32 reference: LeNet-ish encoder/classifier + exact
    marginalization of the Scallop 'sum' program over output_mapping range(200)."""
    x = x.reshape(-1, 1, 28, 28).astype(jnp.float32)
    dn = ("NCHW", "OIHW", "NCHW")
    y = lax.conv_general_dilated(x, params["conv1_w"], (1, 1), "VALID",
                                 dimension_numbers=dn)
    y = y + params["conv1_b"][None, :, None, None]
    y = lax.reduce_window(y, -jnp.inf, lax.max, (1, 1, 2, 2), (1, 1, 2, 2), "VALID")
    y = jnp.maximum(y, 0.0)
    y = lax.conv_general_dilated(y, params["conv2_w"], (1, 1), "VALID",
                                 dimension_numbers=dn)
    y = y + params["conv2_b"][None, :, None, None]
    y = lax.reduce_window(y, -jnp.inf, lax.max, (1, 1, 2, 2), (1, 1, 2, 2), "VALID")
    y = jnp.maximum(y, 0.0)
    y = y.reshape(y.shape[0], -1)
    y = jnp.maximum(y @ params["fc1_w"].T + params["fc1_b"], 0.0)
    y = jnp.maximum(y @ params["fc2_w"].T + params["fc2_b"], 0.0)
    probs = jax.nn.softmax(y @ params["fc3_w"].T + params["fc3_b"], axis=1)
    p = probs.reshape(6, -1, 10)
    d1 = jnp.einsum("bi,bj,bk->bijk", p[0], p[1], p[2]).reshape(p.shape[1], 1000)
    d2 = jnp.einsum("bi,bj,bk->bijk", p[3], p[4], p[5]).reshape(p.shape[1], 1000)
    full = jax.vmap(lambda u, v: jnp.convolve(u, v))(d1, d2)   # (B, 1999)
    return full[:, :200]


if __name__ == "__main__":
    key = jax.random.PRNGKey(0)
    pkey, xkey = jax.random.split(key)
    params = init_params(pkey)
    packed = pack_params(params)
    consts = make_reasoning_constants()

    batch = 2                                    # 6 MNIST digits per example
    x = jax.random.normal(xkey, (6 * batch, 1, 28, 28), dtype=jnp.float32)

    out = jax.block_until_ready(mnist_sum_double2_forward(x, packed, consts))
    assert out.shape == (batch, 200), out.shape

    ref = jax.block_until_ready(jax.jit(reference_forward)(x, params))
    # bf16 MXU operands / bf16 activation stores / bf16 selection matmuls and
    # the approx softmax reciprocal widen the tolerance vs the f32 reference.
    max_err = float(jnp.max(jnp.abs(out - ref)))
    assert jnp.allclose(out, ref, rtol=1e-1, atol=1e-3), max_err

    print("KERNEL_OK")
</pallas_src>

<mosaic_0001>
module attributes {stable_mosaic.version = 11 : i64} {
  func.func @_conv_pool_relu_kernel(%arg0: i32, %arg1: memref<864x100xbf16, #tpu.memory_space<vmem>>, %arg2: memref<100x512xbf16, #tpu.memory_space<vmem>>, %arg3: memref<1x128xf32, #tpu.memory_space<vmem>>, %arg4: memref<864x128xbf16, #tpu.memory_space<vmem>>) attributes {dimension_semantics = [#tpu.dimension_semantics<parallel>], iteration_bounds = array<i64: 2>, scalar_prefetch = 0 : i64, scratch_operands = 0 : i64, tpu.core_type = #tpu.core_type<tc>, window_params = [{transform_indices = @transform_0, window_bounds = array<i64: 864, 100>}, {pipeline_mode = #tpu.pipeline_mode<synchronous>, transform_indices = @transform_1, window_bounds = array<i64: 100, 512>}, {pipeline_mode = #tpu.pipeline_mode<synchronous>, transform_indices = @transform_2, window_bounds = array<i64: 1, 128>}, {transform_indices = @transform_3, window_bounds = array<i64: 864, 128>}]} {
    %c0 = arith.constant 0 : index
    %c0_0 = arith.constant 0 : index
    %0 = vector.load %arg1[%c0, %c0_0] : memref<864x100xbf16, #tpu.memory_space<vmem>>, vector<864x100xbf16>
    %c0_1 = arith.constant 0 : index
    %c0_2 = arith.constant 0 : index
    %1 = vector.load %arg2[%c0_1, %c0_2] : memref<100x512xbf16, #tpu.memory_space<vmem>>, vector<100x512xbf16>
    %cst = arith.constant dense<0.000000e+00> : vector<864x512xf32>
    %2 = tpu.matmul %0, %1, %cst {dimension_numbers = #tpu.dot_dimension_numbers<[1], [0], [0], [1], [0, 0, 1, 1], [], []>} : vector<864x100xbf16>, vector<100x512xbf16>, vector<864x512xf32> -> vector<864x512xf32>
    %3 = vector.extract_strided_slice %2 {offsets = [0, 0], sizes = [864, 128], strides = [1, 1]} : vector<864x512xf32> to vector<864x128xf32>
    %4 = vector.extract_strided_slice %2 {offsets = [0, 128], sizes = [864, 128], strides = [1, 1]} : vector<864x512xf32> to vector<864x128xf32>
    %5 = arith.maximumf %3, %4 : vector<864x128xf32>
    %6 = vector.extract_strided_slice %2 {offsets = [0, 256], sizes = [864, 128], strides = [1, 1]} : vector<864x512xf32> to vector<864x128xf32>
    %7 = vector.extract_strided_slice %2 {offsets = [0, 384], sizes = [864, 128], strides = [1, 1]} : vector<864x512xf32> to vector<864x128xf32>
    %8 = arith.maximumf %6, %7 : vector<864x128xf32>
    %9 = arith.maximumf %5, %8 : vector<864x128xf32>
    %c0_3 = arith.constant 0 : index
    %c0_4 = arith.constant 0 : index
    %10 = vector.load %arg3[%c0_3, %c0_4] : memref<1x128xf32, #tpu.memory_space<vmem>>, vector<1x128xf32>
    %11 = vector.broadcast %10 : vector<1x128xf32> to vector<864x128xf32>
    %12 = arith.addf %9, %11 : vector<864x128xf32>
    %cst_5 = arith.constant 0.000000e+00 : f32
    %13 = vector.broadcast %cst_5 : f32 to vector<864x128xf32>
    %14 = arith.maximumf %12, %13 : vector<864x128xf32>
    %15 = arith.truncf %14 : vector<864x128xf32> to vector<864x128xbf16>
    %c0_6 = arith.constant 0 : index
    %c0_7 = arith.constant 0 : index
    %16 = vector.load %arg4[%c0_6, %c0_7] : memref<864x128xbf16, #tpu.memory_space<vmem>>, vector<864x128xbf16>
    tpu.vector_store %arg4[%c0_6, %c0_7], %15 {strides = array<i32>} : memref<864x128xbf16, #tpu.memory_space<vmem>>, vector<864x128xbf16>,
    return
  }
  func.func @transform_0(%arg0: i32) -> (i32, i32) {
    %c0_i32 = arith.constant 0 : i32
    %c0_i32_0 = arith.constant 0 : i32
    return %arg0, %c0_i32 : i32, i32
  }
  func.func @transform_1(%arg0: i32) -> (i32, i32) {
    %c0_i32 = arith.constant 0 : i32
    %c0_i32_0 = arith.constant 0 : i32
    %c0_i32_1 = arith.constant 0 : i32
    return %c0_i32, %c0_i32_0 : i32, i32
  }
  func.func @transform_2(%arg0: i32) -> (i32, i32) {
    %c0_i32 = arith.constant 0 : i32
    %c0_i32_0 = arith.constant 0 : i32
    %c0_i32_1 = arith.constant 0 : i32
    return %c0_i32, %c0_i32_0 : i32, i32
  }
  func.func @transform_3(%arg0: i32) -> (i32, i32) {
    %c0_i32 = arith.constant 0 : i32
    %c0_i32_0 = arith.constant 0 : i32
    return %arg0, %c0_i32 : i32, i32
  }
}

module attributes {stable_mosaic.version = 11 : i64} {
  func.func @_conv_pool_relu_kernel(%arg0: i32, %arg1: memref<96x600xbf16, #tpu.memory_space<vmem>>, %arg2: memref<600x512xbf16, #tpu.memory_space<vmem>>, %arg3: memref<1x128xf32, #tpu.memory_space<vmem>>, %arg4: memref<96x128xbf16, #tpu.memory_space<vmem>>) attributes {dimension_semantics = [#tpu.dimension_semantics<parallel>], iteration_bounds = array<i64: 2>, scalar_prefetch = 0 : i64, scratch_operands = 0 : i64, tpu.core_type = #tpu.core_type<tc>, window_params = [{transform_indices = @transform_0, window_bounds = array<i64: 96, 600>}, {pipeline_mode = #tpu.pipeline_mode<synchronous>, transform_indices = @transform_1, window_bounds = array<i64: 600, 512>}, {pipeline_mode = #tpu.pipeline_mode<synchronous>, transform_indices = @transform_2, window_bounds = array<i64: 1, 128>}, {transform_indices = @transform_3, window_bounds = array<i64: 96, 128>}]} {
    %c0 = arith.constant 0 : index
    %c0_0 = arith.constant 0 : index
    %0 = vector.load %arg1[%c0, %c0_0] : memref<96x600xbf16, #tpu.memory_space<vmem>>, vector<96x600xbf16>
    %c0_1 = arith.constant 0 : index
    %c0_2 = arith.constant 0 : index
    %1 = vector.load %arg2[%c0_1, %c0_2] : memref<600x512xbf16, #tpu.memory_space<vmem>>, vector<600x512xbf16>
    %cst = arith.constant dense<0.000000e+00> : vector<96x512xf32>
    %2 = tpu.matmul %0, %1, %cst {dimension_numbers = #tpu.dot_dimension_numbers<[1], [0], [0], [1], [0, 0, 1, 1], [], []>} : vector<96x600xbf16>, vector<600x512xbf16>, vector<96x512xf32> -> vector<96x512xf32>
    %3 = vector.extract_strided_slice %2 {offsets = [0, 0], sizes = [96, 128], strides = [1, 1]} : vector<96x512xf32> to vector<96x128xf32>
    %4 = vector.extract_strided_slice %2 {offsets = [0, 128], sizes = [96, 128], strides = [1, 1]} : vector<96x512xf32> to vector<96x128xf32>
    %5 = arith.maximumf %3, %4 : vector<96x128xf32>
    %6 = vector.extract_strided_slice %2 {offsets = [0, 256], sizes = [96, 128], strides = [1, 1]} : vector<96x512xf32> to vector<96x128xf32>
    %7 = vector.extract_strided_slice %2 {offsets = [0, 384], sizes = [96, 128], strides = [1, 1]} : vector<96x512xf32> to vector<96x128xf32>
    %8 = arith.maximumf %6, %7 : vector<96x128xf32>
    %9 = arith.maximumf %5, %8 : vector<96x128xf32>
    %c0_3 = arith.constant 0 : index
    %c0_4 = arith.constant 0 : index
    %10 = vector.load %arg3[%c0_3, %c0_4] : memref<1x128xf32, #tpu.memory_space<vmem>>, vector<1x128xf32>
    %11 = vector.broadcast %10 : vector<1x128xf32> to vector<96x128xf32>
    %12 = arith.addf %9, %11 : vector<96x128xf32>
    %cst_5 = arith.constant 0.000000e+00 : f32
    %13 = vector.broadcast %cst_5 : f32 to vector<96x128xf32>
    %14 = arith.maximumf %12, %13 : vector<96x128xf32>
    %15 = arith.truncf %14 : vector<96x128xf32> to vector<96x128xbf16>
    %c0_6 = arith.constant 0 : index
    %c0_7 = arith.constant 0 : index
    %16 = vector.load %arg4[%c0_6, %c0_7] : memref<96x128xbf16, #tpu.memory_space<vmem>>, vector<96x128xbf16>
    tpu.vector_store %arg4[%c0_6, %c0_7], %15 {strides = array<i32>} : memref<96x128xbf16, #tpu.memory_space<vmem>>, vector<96x128xbf16>,
    return
  }
  func.func @transform_0(%arg0: i32) -> (i32, i32) {
    %c0_i32 = arith.constant 0 : i32
    %c0_i32_0 = arith.constant 0 : i32
    return %arg0, %c0_i32 : i32, i32
  }
  func.func @transform_1(%arg0: i32) -> (i32, i32) {
    %c0_i32 = arith.constant 0 : i32
    %c0_i32_0 = arith.constant 0 : i32
    %c0_i32_1 = arith.constant 0 : i32
    return %c0_i32, %c0_i32_0 : i32, i32
  }
  func.func @transform_2(%arg0: i32) -> (i32, i32) {
    %c0_i32 = arith.constant 0 : i32
    %c0_i32_0 = arith.constant 0 : i32
    %c0_i32_1 = arith.constant 0 : i32
    return %c0_i32, %c0_i32_0 : i32, i32
  }
  func.func @transform_3(%arg0: i32) -> (i32, i32) {
    %c0_i32 = arith.constant 0 : i32
    %c0_i32_0 = arith.constant 0 : i32
    return %arg0, %c0_i32 : i32, i32
  }
}

module attributes {stable_mosaic.version = 11 : i64} {
  func.func @_mlp_reason_kernel(%arg0: i32, %arg1: memref<96x256xbf16, #tpu.memory_space<vmem>>, %arg2: memref<256x128xbf16, #tpu.memory_space<vmem>>, %arg3: memref<1x128xf32, #tpu.memory_space<vmem>>, %arg4: memref<128x128xbf16, #tpu.memory_space<vmem>>, %arg5: memref<1x128xf32, #tpu.memory_space<vmem>>, %arg6: memref<128x128xbf16, #tpu.memory_space<vmem>>, %arg7: memref<1x128xf32, #tpu.memory_space<vmem>>, %arg8: memref<128x100xbf16, #tpu.memory_space<vmem>>, %arg9: memref<128x100xbf16, #tpu.memory_space<vmem>>, %arg10: memref<100x19xbf16, #tpu.memory_space<vmem>>, %arg11: memref<19x361xbf16, #tpu.memory_space<vmem>>, %arg12: memref<19x361xbf16, #tpu.memory_space<vmem>>, %arg13: memref<361x512xbf16, #tpu.memory_space<vmem>>, %arg14: memref<16x256xf32, #tpu.memory_space<vmem>>) attributes {dimension_semantics = [#tpu.dimension_semantics<parallel>], iteration_bounds = array<i64: 1>, scalar_prefetch = 0 : i64, scratch_operands = 0 : i64, tpu.core_type = #tpu.core_type<tc>, window_params = [{transform_indices = @transform_0, window_bounds = array<i64: 96, 256>}, {pipeline_mode = #tpu.pipeline_mode<synchronous>, transform_indices = @transform_1, window_bounds = array<i64: 256, 128>}, {pipeline_mode = #tpu.pipeline_mode<synchronous>, transform_indices = @transform_2, window_bounds = array<i64: 1, 128>}, {pipeline_mode = #tpu.pipeline_mode<synchronous>, transform_indices = @transform_3, window_bounds = array<i64: 128, 128>}, {pipeline_mode = #tpu.pipeline_mode<synchronous>, transform_indices = @transform_4, window_bounds = array<i64: 1, 128>}, {pipeline_mode = #tpu.pipeline_mode<synchronous>, transform_indices = @transform_5, window_bounds = array<i64: 128, 128>}, {pipeline_mode = #tpu.pipeline_mode<synchronous>, transform_indices = @transform_6, window_bounds = array<i64: 1, 128>}, {pipeline_mode = #tpu.pipeline_mode<synchronous>, transform_indices = @transform_7, window_bounds = array<i64: 128, 100>}, {pipeline_mode = #tpu.pipeline_mode<synchronous>, transform_indices = @transform_8, window_bounds = array<i64: 128, 100>}, {pipeline_mode = #tpu.pipeline_mode<synchronous>, transform_indices = @transform_9, window_bounds = array<i64: 100, 19>}, {pipeline_mode = #tpu.pipeline_mode<synchronous>, transform_indices = @transform_10, window_bounds = array<i64: 19, 361>}, {pipeline_mode = #tpu.pipeline_mode<synchronous>, transform_indices = @transform_11, window_bounds = array<i64: 19, 361>}, {pipeline_mode = #tpu.pipeline_mode<synchronous>, transform_indices = @transform_12, window_bounds = array<i64: 361, 512>}, {transform_indices = @transform_13, window_bounds = array<i64: 16, 256>}]} {
    %c0 = arith.constant 0 : index
    %c0_0 = arith.constant 0 : index
    %0 = vector.load %arg1[%c0, %c0_0] : memref<96x256xbf16, #tpu.memory_space<vmem>>, vector<96x256xbf16>
    %c0_1 = arith.constant 0 : index
    %c0_2 = arith.constant 0 : index
    %1 = vector.load %arg2[%c0_1, %c0_2] : memref<256x128xbf16, #tpu.memory_space<vmem>>, vector<256x128xbf16>
    %cst = arith.constant dense<0.000000e+00> : vector<96x128xf32>
    %2 = tpu.matmul %0, %1, %cst {dimension_numbers = #tpu.dot_dimension_numbers<[1], [0], [0], [1], [0, 0, 1, 1], [], []>} : vector<96x256xbf16>, vector<256x128xbf16>, vector<96x128xf32> -> vector<96x128xf32>
    %c0_3 = arith.constant 0 : index
    %c0_4 = arith.constant 0 : index
    %3 = vector.load %arg3[%c0_3, %c0_4] : memref<1x128xf32, #tpu.memory_space<vmem>>, vector<1x128xf32>
    %4 = vector.broadcast %3 : vector<1x128xf32> to vector<96x128xf32>
    %5 = arith.addf %2, %4 : vector<96x128xf32>
    %cst_5 = arith.constant 0.000000e+00 : f32
    %6 = vector.broadcast %cst_5 : f32 to vector<96x128xf32>
    %7 = arith.maximumf %5, %6 : vector<96x128xf32>
    %8 = arith.truncf %7 : vector<96x128xf32> to vector<96x128xbf16>
    %c0_6 = arith.constant 0 : index
    %c0_7 = arith.constant 0 : index
    %9 = vector.load %arg4[%c0_6, %c0_7] : memref<128x128xbf16, #tpu.memory_space<vmem>>, vector<128x128xbf16>
    %cst_8 = arith.constant dense<0.000000e+00> : vector<96x128xf32>
    %10 = tpu.matmul %8, %9, %cst_8 {dimension_numbers = #tpu.dot_dimension_numbers<[1], [0], [0], [1], [0, 0, 1, 1], [], []>} : vector<96x128xbf16>, vector<128x128xbf16>, vector<96x128xf32> -> vector<96x128xf32>
    %c0_9 = arith.constant 0 : index
    %c0_10 = arith.constant 0 : index
    %11 = vector.load %arg5[%c0_9, %c0_10] : memref<1x128xf32, #tpu.memory_space<vmem>>, vector<1x128xf32>
    %12 = vector.broadcast %11 : vector<1x128xf32> to vector<96x128xf32>
    %13 = arith.addf %10, %12 : vector<96x128xf32>
    %cst_11 = arith.constant 0.000000e+00 : f32
    %14 = vector.broadcast %cst_11 : f32 to vector<96x128xf32>
    %15 = arith.maximumf %13, %14 : vector<96x128xf32>
    %16 = arith.truncf %15 : vector<96x128xf32> to vector<96x128xbf16>
    %c0_12 = arith.constant 0 : index
    %c0_13 = arith.constant 0 : index
    %17 = vector.load %arg6[%c0_12, %c0_13] : memref<128x128xbf16, #tpu.memory_space<vmem>>, vector<128x128xbf16>
    %cst_14 = arith.constant dense<0.000000e+00> : vector<96x128xf32>
    %18 = tpu.matmul %16, %17, %cst_14 {dimension_numbers = #tpu.dot_dimension_numbers<[1], [0], [0], [1], [0, 0, 1, 1], [], []>} : vector<96x128xbf16>, vector<128x128xbf16>, vector<96x128xf32> -> vector<96x128xf32>
    %c0_15 = arith.constant 0 : index
    %c0_16 = arith.constant 0 : index
    %19 = vector.load %arg7[%c0_15, %c0_16] : memref<1x128xf32, #tpu.memory_space<vmem>>, vector<1x128xf32>
    %20 = vector.broadcast %19 : vector<1x128xf32> to vector<96x128xf32>
    %21 = arith.addf %18, %20 : vector<96x128xf32>
    %cst_17 = arith.constant dense<0xFF800000> : vector<96xf32>
    %22 = vector.multi_reduction <maximumf>, %21, %cst_17 [1] : vector<96x128xf32> to vector<96xf32>
    %23 = vector.shape_cast %22 : vector<96xf32> to vector<96x1xf32>
    %24 = vector.broadcast %23 : vector<96x1xf32> to vector<96x128xf32>
    %25 = arith.subf %21, %24 : vector<96x128xf32>
    %26 = math.exp %25 : vector<96x128xf32>
    %cst_18 = arith.constant dense<0.000000e+00> : vector<96xf32>
    %27 = vector.multi_reduction <add>, %26, %cst_18 [1] : vector<96x128xf32> to vector<96xf32>
    %28 = vector.shape_cast %27 : vector<96xf32> to vector<96x1xf32>
    %29 = tpu.reciprocal %28 {approx = true} : vector<96x1xf32> -> vector<96x1xf32>
    %30 = vector.broadcast %29 : vector<96x1xf32> to vector<96x128xf32>
    %31 = arith.mulf %26, %30 : vector<96x128xf32>
    %32 = arith.truncf %31 : vector<96x128xf32> to vector<96x128xbf16>
    %33 = vector.extract_strided_slice %32 {offsets = [0, 0], sizes = [48, 128], strides = [1, 1]} : vector<96x128xbf16> to vector<48x128xbf16>
    %34 = vector.extract_strided_slice %32 {offsets = [48, 0], sizes = [48, 128], strides = [1, 1]} : vector<96x128xbf16> to vector<48x128xbf16>
    %c0_19 = arith.constant 0 : index
    %c0_20 = arith.constant 0 : index
    %35 = vector.load %arg8[%c0_19, %c0_20] : memref<128x100xbf16, #tpu.memory_space<vmem>>, vector<128x100xbf16>
    %cst_21 = arith.constant dense<0.000000e+00> : vector<48x100xf32>
    %36 = tpu.matmul %33, %35, %cst_21 {dimension_numbers = #tpu.dot_dimension_numbers<[1], [0], [0], [1], [0, 0, 1, 1], [], []>} : vector<48x128xbf16>, vector<128x100xbf16>, vector<48x100xf32> -> vector<48x100xf32>
    %c0_22 = arith.constant 0 : index
    %c0_23 = arith.constant 0 : index
    %37 = vector.load %arg9[%c0_22, %c0_23] : memref<128x100xbf16, #tpu.memory_space<vmem>>, vector<128x100xbf16>
    %cst_24 = arith.constant dense<0.000000e+00> : vector<48x100xf32>
    %38 = tpu.matmul %34, %37, %cst_24 {dimension_numbers = #tpu.dot_dimension_numbers<[1], [0], [0], [1], [0, 0, 1, 1], [], []>} : vector<48x128xbf16>, vector<128x100xbf16>, vector<48x100xf32> -> vector<48x100xf32>
    %39 = arith.mulf %36, %38 : vector<48x100xf32>
    %40 = arith.truncf %39 : vector<48x100xf32> to vector<48x100xbf16>
    %c0_25 = arith.constant 0 : index
    %c0_26 = arith.constant 0 : index
    %41 = vector.load %arg10[%c0_25, %c0_26] : memref<100x19xbf16, #tpu.memory_space<vmem>>, vector<100x19xbf16>
    %cst_27 = arith.constant dense<0.000000e+00> : vector<48x19xf32>
    %42 = tpu.matmul %40, %41, %cst_27 {dimension_numbers = #tpu.dot_dimension_numbers<[1], [0], [0], [1], [0, 0, 1, 1], [], []>} : vector<48x100xbf16>, vector<100x19xbf16>, vector<48x19xf32> -> vector<48x19xf32>
    %43 = vector.extract_strided_slice %42 {offsets = [0, 0], sizes = [16, 19], strides = [1, 1]} : vector<48x19xf32> to vector<16x19xf32>
    %44 = vector.extract_strided_slice %42 {offsets = [16, 0], sizes = [16, 19], strides = [1, 1]} : vector<48x19xf32> to vector<16x19xf32>
    %45 = vector.extract_strided_slice %42 {offsets = [32, 0], sizes = [16, 19], strides = [1, 1]} : vector<48x19xf32> to vector<16x19xf32>
    %46 = arith.truncf %44 : vector<16x19xf32> to vector<16x19xbf16>
    %c0_28 = arith.constant 0 : index
    %c0_29 = arith.constant 0 : index
    %47 = vector.load %arg11[%c0_28, %c0_29] : memref<19x361xbf16, #tpu.memory_space<vmem>>, vector<19x361xbf16>
    %cst_30 = arith.constant dense<0.000000e+00> : vector<16x361xf32>
    %48 = tpu.matmul %46, %47, %cst_30 {dimension_numbers = #tpu.dot_dimension_numbers<[1], [0], [0], [1], [0, 0, 1, 1], [], []>} : vector<16x19xbf16>, vector<19x361xbf16>, vector<16x361xf32> -> vector<16x361xf32>
    %49 = arith.truncf %45 : vector<16x19xf32> to vector<16x19xbf16>
    %c0_31 = arith.constant 0 : index
    %c0_32 = arith.constant 0 : index
    %50 = vector.load %arg12[%c0_31, %c0_32] : memref<19x361xbf16, #tpu.memory_space<vmem>>, vector<19x361xbf16>
    %cst_33 = arith.constant dense<0.000000e+00> : vector<16x361xf32>
    %51 = tpu.matmul %49, %50, %cst_33 {dimension_numbers = #tpu.dot_dimension_numbers<[1], [0], [0], [1], [0, 0, 1, 1], [], []>} : vector<16x19xbf16>, vector<19x361xbf16>, vector<16x361xf32> -> vector<16x361xf32>
    %52 = arith.mulf %48, %51 : vector<16x361xf32>
    %53 = arith.truncf %52 : vector<16x361xf32> to vector<16x361xbf16>
    %c0_34 = arith.constant 0 : index
    %c0_35 = arith.constant 0 : index
    %54 = vector.load %arg13[%c0_34, %c0_35] : memref<361x512xbf16, #tpu.memory_space<vmem>>, vector<361x512xbf16>
    %cst_36 = arith.constant dense<0.000000e+00> : vector<16x512xf32>
    %55 = tpu.matmul %53, %54, %cst_36 {dimension_numbers = #tpu.dot_dimension_numbers<[1], [0], [0], [1], [0, 0, 1, 1], [], []>} : vector<16x361xbf16>, vector<361x512xbf16>, vector<16x512xf32> -> vector<16x512xf32>
    %56 = vector.extract_strided_slice %43 {offsets = [0, 0], sizes = [16, 1], strides = [1, 1]} : vector<16x19xf32> to vector<16x1xf32>
    %57 = vector.extract_strided_slice %55 {offsets = [0, 0], sizes = [16, 256], strides = [1, 1]} : vector<16x512xf32> to vector<16x256xf32>
    %58 = vector.broadcast %56 : vector<16x1xf32> to vector<16x256xf32>
    %59 = arith.mulf %58, %57 : vector<16x256xf32>
    %60 = vector.extract_strided_slice %43 {offsets = [0, 1], sizes = [16, 1], strides = [1, 1]} : vector<16x19xf32> to vector<16x1xf32>
    %61 = vector.extract_strided_slice %55 {offsets = [0, 256], sizes = [16, 256], strides = [1, 1]} : vector<16x512xf32> to vector<16x256xf32>
    %62 = vector.broadcast %60 : vector<16x1xf32> to vector<16x256xf32>
    %63 = arith.mulf %62, %61 : vector<16x256xf32>
    %64 = arith.addf %59, %63 : vector<16x256xf32>
    %c0_37 = arith.constant 0 : index
    %c0_38 = arith.constant 0 : index
    %65 = vector.load %arg14[%c0_37, %c0_38] : memref<16x256xf32, #tpu.memory_space<vmem>>, vector<16x256xf32>
    tpu.vector_store %arg14[%c0_37, %c0_38], %64 {strides = array<i32>} : memref<16x256xf32, #tpu.memory_space<vmem>>, vector<16x256xf32>,
    return
  }
  func.func @transform_0(%arg0: i32) -> (i32, i32) {
    %c0_i32 = arith.constant 0 : i32
    %c0_i32_0 = arith.constant 0 : i32
    return %arg0, %c0_i32 : i32, i32
  }
  func.func @transform_1(%arg0: i32) -> (i32, i32) {
    %c0_i32 = arith.constant 0 : i32
    %c0_i32_0 = arith.constant 0 : i32
    %c0_i32_1 = arith.constant 0 : i32
    return %c0_i32, %c0_i32_0 : i32, i32
  }
  func.func @transform_2(%arg0: i32) -> (i32, i32) {
    %c0_i32 = arith.constant 0 : i32
    %c0_i32_0 = arith.constant 0 : i32
    %c0_i32_1 = arith.constant 0 : i32
    return %c0_i32, %c0_i32_0 : i32, i32
  }
  func.func @transform_3(%arg0: i32) -> (i32, i32) {
    %c0_i32 = arith.constant 0 : i32
    %c0_i32_0 = arith.constant 0 : i32
    %c0_i32_1 = arith.constant 0 : i32
    return %c0_i32, %c0_i32_0 : i32, i32
  }
  func.func @transform_4(%arg0: i32) -> (i32, i32) {
    %c0_i32 = arith.constant 0 : i32
    %c0_i32_0 = arith.constant 0 : i32
    %c0_i32_1 = arith.constant 0 : i32
    return %c0_i32, %c0_i32_0 : i32, i32
  }
  func.func @transform_5(%arg0: i32) -> (i32, i32) {
    %c0_i32 = arith.constant 0 : i32
    %c0_i32_0 = arith.constant 0 : i32
    %c0_i32_1 = arith.constant 0 : i32
    return %c0_i32, %c0_i32_0 : i32, i32
  }
  func.func @transform_6(%arg0: i32) -> (i32, i32) {
    %c0_i32 = arith.constant 0 : i32
    %c0_i32_0 = arith.constant 0 : i32
    %c0_i32_1 = arith.constant 0 : i32
    return %c0_i32, %c0_i32_0 : i32, i32
  }
  func.func @transform_7(%arg0: i32) -> (i32, i32) {
    %c0_i32 = arith.constant 0 : i32
    %c0_i32_0 = arith.constant 0 : i32
    %c0_i32_1 = arith.constant 0 : i32
    return %c0_i32, %c0_i32_0 : i32, i32
  }
  func.func @transform_8(%arg0: i32) -> (i32, i32) {
    %c0_i32 = arith.constant 0 : i32
    %c0_i32_0 = arith.constant 0 : i32
    %c0_i32_1 = arith.constant 0 : i32
    return %c0_i32, %c0_i32_0 : i32, i32
  }
  func.func @transform_9(%arg0: i32) -> (i32, i32) {
    %c0_i32 = arith.constant 0 : i32
    %c0_i32_0 = arith.constant 0 : i32
    %c0_i32_1 = arith.constant 0 : i32
    return %c0_i32, %c0_i32_0 : i32, i32
  }
  func.func @transform_10(%arg0: i32) -> (i32, i32) {
    %c0_i32 = arith.constant 0 : i32
    %c0_i32_0 = arith.constant 0 : i32
    %c0_i32_1 = arith.constant 0 : i32
    return %c0_i32, %c0_i32_0 : i32, i32
  }
  func.func @transform_11(%arg0: i32) -> (i32, i32) {
    %c0_i32 = arith.constant 0 : i32
    %c0_i32_0 = arith.constant 0 : i32
    %c0_i32_1 = arith.constant 0 : i32
    return %c0_i32, %c0_i32_0 : i32, i32
  }
  func.func @transform_12(%arg0: i32) -> (i32, i32) {
    %c0_i32 = arith.constant 0 : i32
    %c0_i32_0 = arith.constant 0 : i32
    %c0_i32_1 = arith.constant 0 : i32
    return %c0_i32, %c0_i32_0 : i32, i32
  }
  func.func @transform_13(%arg0: i32) -> (i32, i32) {
    %c0_i32 = arith.constant 0 : i32
    %c0_i32_0 = arith.constant 0 : i32
    return %arg0, %c0_i32 : i32, i32
  }
}

</mosaic_0001>

<llo_original>
// kernel: mnist_sum_double2_forward.3
$region0: #{mnist_sum_double2_forward.3}
  #allocation0 [shape = 'u32[]', space=smem, size = 0x4, offset = 0x4, fixed_abs, tag = 'smem constant byte address 0x4 - core index']
  #allocation1 [shape = 'u32[144,128]{1,0:T(1,128)}', space=vmem, size = 0x12000, scoped, tag = 'internal scratch']
  %s0 = inlined_call_operand.vmem [shape: bf16[1728,100], index: 0, kind: input, shape index: {}]
  %s1 = inlined_call_operand.vmem [shape: bf16[100,512], index: 1, kind: input, shape index: {}]
  %s2 = inlined_call_operand.vmem [shape: f32[1,128], index: 2, kind: input, shape index: {}]
  %s3 = inlined_call_operand.vmem [shape: bf16[1728,128], index: 3, kind: output, shape index: {}]
  %s4 = sld [smem:[#allocation0]]
  $region45: #{mnist_sum_double2_forward.3} parent=0
    _
  %s6 = ssub.s32 1, %s4
  %s7 = scalar_select 0, %s6, %s4
  loop: start=0, step=1, limit=4
  $region2: #{mnist_sum_double2_forward.3} parent=0 // loop_pre_header
    _
  $region3: #{mnist_sum_double2_forward.3} parent=0 // loop_header
    %s9 = sphi 0, %s13
    %p10 = scmp.ge.s32.totalorder %s9, 4
    %s19 = sphi 0, %s21
    %s22 = sphi 0, %s19
    %s23 = sphi 0, %s22
    %s39 = sphi 0, %s23
    %s43 = sphi 0, %s43
    %s45 = sphi 0, %s43
    %s46 = sphi 0, %s45
    %s60 = sphi 0, %s46
    %s64 = sphi 0, %s64
    %s66 = sphi 0, %s64
    %s67 = sphi 0, %s66
    %s81 = sphi 0, %s67
    %s87 = sphi 0, %s89
    %s90 = sphi 0, %s87
    %s91 = sphi 0, %s90
    %s107 = sphi 0, %s91
  $region4: #{mnist_sum_double2_forward.3} parent=0 // loop_header_branch
    %12 = sbr.rel (%p10) target = $region8
  $region5: #{mnist_sum_double2_forward.3} parent=0 // loop_body
    %s14 = ssub.s32 %s9, 1
    %s15 = ssub.s32 %s9, 2
    %s16 = sadd.s32 %s9, 1
    %s17 = ssub.s32 %s9, %s16
    %p18 = scmp.eq.s32.totalorder %s17, 0
    %s20 = sadd.s32 %s19, 1
    %s21 = scalar_select %p18, %s19, %s20
    %p24 = pneg %p18
    %p25 = scmp.eq.s32.totalorder %s9, 1
    %p26 = por %p24, %p25
    %p27 = scmp.ne.s32.totalorder %s19, %s22
    %p28 = scmp.eq.s32.totalorder %s9, 0
    %p29 = por %p27, %p28
    %p30 = scmp.ne.s32.totalorder %s19, %s22
    %p31 = scmp.eq.s32.totalorder %s14, 1
    %p32 = por %p30, %p31
    %p33 = scmp.ne.s32.totalorder %s22, %s23
    %p34 = scmp.eq.s32.totalorder %s14, 0
    %p35 = por %p33, %p34
    %p36 = scmp.ne.s32.totalorder %s22, %s23
    %p37 = scmp.eq.s32.totalorder %s15, 1
    %p38 = por %p36, %p37
    %p40 = scmp.ne.s32.totalorder %s23, %s39
    %p41 = scmp.eq.s32.totalorder %s15, 0
    %p42 = por %p40, %p41
    %s44 = sadd.s32 %s43, 1
    %p47 = scmp.eq.s32.totalorder %s9, 1
    %p48 = scmp.ne.s32.totalorder %s43, %s45
    %p49 = scmp.eq.s32.totalorder %s9, 0
    %p50 = por %p48, %p49
    %p51 = scmp.ne.s32.totalorder %s43, %s45
    %p52 = scmp.eq.s32.totalorder %s14, 1
    %p53 = por %p51, %p52
    %p54 = scmp.ne.s32.totalorder %s45, %s46
    %p55 = scmp.eq.s32.totalorder %s14, 0
    %p56 = por %p54, %p55
    %p57 = scmp.ne.s32.totalorder %s45, %s46
    %p58 = scmp.eq.s32.totalorder %s15, 1
    %p59 = por %p57, %p58
    %p61 = scmp.ne.s32.totalorder %s46, %s60
    %p62 = scmp.eq.s32.totalorder %s15, 0
    %p63 = por %p61, %p62
    %s65 = sadd.s32 %s64, 1
    %p68 = scmp.eq.s32.totalorder %s9, 1
    %p69 = scmp.ne.s32.totalorder %s64, %s66
    %p70 = scmp.eq.s32.totalorder %s9, 0
    %p71 = por %p69, %p70
    %p72 = scmp.ne.s32.totalorder %s64, %s66
    %p73 = scmp.eq.s32.totalorder %s14, 1
    %p74 = por %p72, %p73
    %p75 = scmp.ne.s32.totalorder %s66, %s67
    %p76 = scmp.eq.s32.totalorder %s14, 0
    %p77 = por %p75, %p76
    %p78 = scmp.ne.s32.totalorder %s66, %s67
    %p79 = scmp.eq.s32.totalorder %s15, 1
    %p80 = por %p78, %p79
    %p82 = scmp.ne.s32.totalorder %s67, %s81
    %p83 = scmp.eq.s32.totalorder %s15, 0
    %p84 = por %p82, %p83
    %s85 = ssub.s32 %s9, %s16
    %p86 = scmp.eq.s32.totalorder %s85, 0
    %s88 = sadd.s32 %s87, 1
    %s89 = scalar_select %p86, %s87, %s88
    %p92 = pneg %p86
    %p93 = scmp.eq.s32.totalorder %s9, 1
    %p94 = por %p92, %p93
    %p95 = scmp.ne.s32.totalorder %s87, %s90
    %p96 = scmp.eq.s32.totalorder %s9, 0
    %p97 = por %p95, %p96
    %p98 = scmp.ne.s32.totalorder %s87, %s90
    %p99 = scmp.eq.s32.totalorder %s14, 1
    %p100 = por %p98, %p99
    %p101 = scmp.ne.s32.totalorder %s90, %s91
    %p102 = scmp.eq.s32.totalorder %s14, 0
    %p103 = por %p101, %p102
    %p104 = scmp.ne.s32.totalorder %s90, %s91
    %p105 = scmp.eq.s32.totalorder %s15, 1
    %p106 = por %p104, %p105
    %p108 = scmp.ne.s32.totalorder %s91, %s107
    %p109 = scmp.eq.s32.totalorder %s15, 0
    %p110 = por %p108, %p109
    %p111 = scmp.le.s32.totalorder 1, %s9
    %p112 = scmp.lt.s32.totalorder %s9, 3
    %p113 = pnand %p111, %p112
    %p114 = pneg %p113
    // Predicated region
    $region9: #{mnist_sum_double2_forward.3} parent=5 // pred_check
      _
    $region10: #{mnist_sum_double2_forward.3} parent=5 // pred_check_branch
      %116 = sbr.rel (%p113) target = $region12
    $region11: #{mnist_sum_double2_forward.3} parent=5 // pred_region
      %s117 = ssub.s32 %s9, 1
      // Predicated region
      $region13: #{mnist_sum_double2_forward.3} parent=11 // pred_check
        %p118 = pneg %p56
      $region14: #{mnist_sum_double2_forward.3} parent=11 // pred_check_branch
        %120 = sbr.rel (%p118) target = $region16
      $region15: #{mnist_sum_double2_forward.3} parent=11 // pred_region
        _
      $region16: #{mnist_sum_double2_forward.3} parent=11 // pred_fallthru
        _
      // Predicated region
      $region17: #{mnist_sum_double2_forward.3} parent=11 // pred_check
        %p121 = pneg %p77
      $region18: #{mnist_sum_double2_forward.3} parent=11 // pred_check_branch
        %123 = sbr.rel (%p121) target = $region20
      $region19: #{mnist_sum_double2_forward.3} parent=11 // pred_region
        _
      $region20: #{mnist_sum_double2_forward.3} parent=11 // pred_fallthru
        _
    $region12: #{mnist_sum_double2_forward.3} parent=5 // pred_fallthru
      _
    %p124 = scmp.lt.s32.totalorder %s9, 2
    // Predicated region
    $region21: #{mnist_sum_double2_forward.3} parent=5 // pred_check
      %p125 = pneg %p124
    $region22: #{mnist_sum_double2_forward.3} parent=5 // pred_check_branch
      %127 = sbr.rel (%p125) target = $region24
    $region23: #{mnist_sum_double2_forward.3} parent=5 // pred_region
      // Predicated region
      $region25: #{mnist_sum_double2_forward.3} parent=23 // pred_check
        %p128 = pneg %p29
      $region26: #{mnist_sum_double2_forward.3} parent=23 // pred_check_branch
        %130 = sbr.rel (%p128) target = $region28
      $region27: #{mnist_sum_double2_forward.3} parent=23 // pred_region
        %s131 = smul.u32 108, %s9
        %p132 = scmp.lt.s32.totalorder %s131, 215
        %s133 = scalar_select %p132, %s131, 215
        %s134 = smul.addr %s133, 4
        %s135 = scalar_lea.vmem %s0, %s134
        %s136 = smul.u32 108, %s9
      $region28: #{mnist_sum_double2_forward.3} parent=23 // pred_fallthru
        _
    $region24: #{mnist_sum_double2_forward.3} parent=5 // pred_fallthru
      _
    %p137 = scmp.le.s32.totalorder 1, %s9
    %p138 = scmp.lt.s32.totalorder %s9, 3
    %p139 = pnand %p137, %p138
    %p140 = pneg %p139
    // Predicated region
    $region29: #{mnist_sum_double2_forward.3} parent=5 // pred_check
      _
    $region30: #{mnist_sum_double2_forward.3} parent=5 // pred_check_branch
      %142 = sbr.rel (%p139) target = $region32
    $region31: #{mnist_sum_double2_forward.3} parent=5 // pred_region
      %s143 = ssub.s32 %s9, 1
      %s144 = smul.u32 108, %s14
      %p145 = scmp.lt.s32.totalorder %s144, 215
      %s146 = scalar_select %p145, %s144, 215
      %s147 = smul.addr %s146, 4
      %s148 = scalar_lea.vmem %s0, %s147
      %p149 = pneg %p35
      %p150 = pneg %p32
      %p151 = pneg %p56
      %p152 = pneg %p53
      %p153 = pneg %p77
      %p154 = pneg %p74
      %p155 = pneg %p103
      %p156 = pneg %p100
      %s157 = smul.u32 108, %s14
      %p158 = scmp.lt.s32.totalorder %s157, 215
      %s159 = scalar_select %p158, %s157, 215
      %s160 = smul.addr %s159, 4
      %s161 = scalar_lea.vmem %s3, %s160
      %s162 = smul.u32 108, %s14
      %p163 = scmp.lt.s32.totalorder %s162, 215
      %s164 = scalar_select %p163, %s162, 215
      %s165 = smul.addr %s164, 4
      %s166 = scalar_lea.vmem %s0, %s165
      %s167 = smul.u32 108, %s14
      %s168 = smul.u32 108, %s14
      %p169 = scmp.lt.s32.totalorder %s168, 215
      %s170 = scalar_select %p169, %s168, 215
      %s171 = smul.addr %s170, 4
      %s172 = scalar_lea.vmem %s3, %s171
      %s173 = smul.u32 108, %s14
      %v175 = vld [vmem:[%s166] sm:$0xf]
      %v176 = vld [vmem:[%s166 + $0x4] sm:$0xf]
      %v177 = vld [vmem:[%s166 + $0x8] sm:$0xf]
      %v178 = vld [vmem:[%s166 + $0xc] sm:$0xf]
      %v179 = vld [vmem:[%s166 + $0x10] sm:$0xf]
      %v180 = vld [vmem:[%s166 + $0x14] sm:$0xf]
      %v181 = vld [vmem:[%s166 + $0x18] sm:$0xf]
      %v182 = vld [vmem:[%s166 + $0x1c] sm:$0xf]
      %v183 = vld [vmem:[%s166 + $0x20] sm:$0xf]
      %v184 = vld [vmem:[%s166 + $0x24] sm:$0xf]
      %v185 = vld [vmem:[%s166 + $0x28] sm:$0xf]
      %v186 = vld [vmem:[%s166 + $0x2c] sm:$0xf]
      %v187 = vld [vmem:[%s166 + $0x30] sm:$0xf]
      %v188 = vld [vmem:[%s166 + $0x34] sm:$0xf]
      %v189 = vld [vmem:[%s166 + $0x38] sm:$0xf]
      %v190 = vld [vmem:[%s166 + $0x3c] sm:$0xf]
      %v191 = vld [vmem:[%s166 + $0x40] sm:$0xf]
      %v192 = vld [vmem:[%s166 + $0x44] sm:$0xf]
      %v193 = vld [vmem:[%s166 + $0x48] sm:$0xf]
      %v194 = vld [vmem:[%s166 + $0x4c] sm:$0xf]
      %v195 = vld [vmem:[%s166 + $0x50] sm:$0xf]
      %v196 = vld [vmem:[%s166 + $0x54] sm:$0xf]
      %v197 = vld [vmem:[%s166 + $0x58] sm:$0xf]
      %v198 = vld [vmem:[%s166 + $0x5c] sm:$0xf]
      %v199 = vld [vmem:[%s166 + $0x60] sm:$0xf]
      %v200 = vld [vmem:[%s166 + $0x64] sm:$0xf]
      %v201 = vld [vmem:[%s166 + $0x68] sm:$0xf]
      %v202 = vld [vmem:[%s166 + $0x6c] sm:$0xf]
      %v203 = vld [vmem:[%s166 + $0x70] sm:$0xf]
      %v204 = vld [vmem:[%s166 + $0x74] sm:$0xf]
      %v205 = vld [vmem:[%s166 + $0x78] sm:$0xf]
      %v206 = vld [vmem:[%s166 + $0x7c] sm:$0xf]
      %v207 = vld [vmem:[%s166 + $0x80] sm:$0xf]
      %v208 = vld [vmem:[%s166 + $0x84] sm:$0xf]
      %v209 = vld [vmem:[%s166 + $0x88] sm:$0xf]
      %v210 = vld [vmem:[%s166 + $0x8c] sm:$0xf]
      %v211 = vld [vmem:[%s166 + $0x90] sm:$0xf]
      %v212 = vld [vmem:[%s166 + $0x94] sm:$0xf]
      %v213 = vld [vmem:[%s166 + $0x98] sm:$0xf]
      %v214 = vld [vmem:[%s166 + $0x9c] sm:$0xf]
      %v215 = vld [vmem:[%s166 + $0xa0] sm:$0xf]
      %v216 = vld [vmem:[%s166 + $0xa4] sm:$0xf]
      %v217 = vld [vmem:[%s166 + $0xa8] sm:$0xf]
      %v218 = vld [vmem:[%s166 + $0xac] sm:$0xf]
      %v219 = vld [vmem:[%s166 + $0xb0] sm:$0xf]
      %v220 = vld [vmem:[%s166 + $0xb4] sm:$0xf]
      %v221 = vld [vmem:[%s166 + $0xb8] sm:$0xf]
      %v222 = vld [vmem:[%s166 + $0xbc] sm:$0xf]
      %v223 = vld [vmem:[%s166 + $0xc0] sm:$0xf]
      %v224 = vld [vmem:[%s166 + $0xc4] sm:$0xf]
      %v225 = vld [vmem:[%s166 + $0xc8] sm:$0xf]
      %v226 = vld [vmem:[%s166 + $0xcc] sm:$0xf]
      %v227 = vld [vmem:[%s166 + $0xd0] sm:$0xf]
      %v228 = vld [vmem:[%s166 + $0xd4] sm:$0xf]
      %v229 = vld [vmem:[%s166 + $0xd8] sm:$0xf]
      %v230 = vld [vmem:[%s166 + $0xdc] sm:$0xf]
      %v231 = vld [vmem:[%s166 + $0xe0] sm:$0xf]
      %v232 = vld [vmem:[%s166 + $0xe4] sm:$0xf]
      %v233 = vld [vmem:[%s166 + $0xe8] sm:$0xf]
      %v234 = vld [vmem:[%s166 + $0xec] sm:$0xf]
      %v235 = vld [vmem:[%s166 + $0xf0] sm:$0xf]
      %v236 = vld [vmem:[%s166 + $0xf4] sm:$0xf]
      %v237 = vld [vmem:[%s166 + $0xf8] sm:$0xf]
      %v238 = vld [vmem:[%s166 + $0xfc] sm:$0xf]
      %v239 = vld [vmem:[%s166 + $0x100] sm:$0xf]
      %v240 = vld [vmem:[%s166 + $0x104] sm:$0xf]
      %v241 = vld [vmem:[%s166 + $0x108] sm:$0xf]
      %v242 = vld [vmem:[%s166 + $0x10c] sm:$0xf]
      %v243 = vld [vmem:[%s166 + $0x110] sm:$0xf]
      %v244 = vld [vmem:[%s166 + $0x114] sm:$0xf]
      %v245 = vld [vmem:[%s166 + $0x118] sm:$0xf]
      %v246 = vld [vmem:[%s166 + $0x11c] sm:$0xf]
      %v247 = vld [vmem:[%s166 + $0x120] sm:$0xf]
      %v248 = vld [vmem:[%s166 + $0x124] sm:$0xf]
      %v249 = vld [vmem:[%s166 + $0x128] sm:$0xf]
      %v250 = vld [vmem:[%s166 + $0x12c] sm:$0xf]
      %v251 = vld [vmem:[%s166 + $0x130] sm:$0xf]
      %v252 = vld [vmem:[%s166 + $0x134] sm:$0xf]
      %v253 = vld [vmem:[%s166 + $0x138] sm:$0xf]
      %v254 = vld [vmem:[%s166 + $0x13c] sm:$0xf]
      %v255 = vld [vmem:[%s166 + $0x140] sm:$0xf]
      %v256 = vld [vmem:[%s166 + $0x144] sm:$0xf]
      %v257 = vld [vmem:[%s166 + $0x148] sm:$0xf]
      %v258 = vld [vmem:[%s166 + $0x14c] sm:$0xf]
      %v259 = vld [vmem:[%s166 + $0x150] sm:$0xf]
      %v260 = vld [vmem:[%s166 + $0x154] sm:$0xf]
      %v261 = vld [vmem:[%s166 + $0x158] sm:$0xf]
      %v262 = vld [vmem:[%s166 + $0x15c] sm:$0xf]
      %v263 = vld [vmem:[%s166 + $0x160] sm:$0xf]
      %v264 = vld [vmem:[%s166 + $0x164] sm:$0xf]
      %v265 = vld [vmem:[%s166 + $0x168] sm:$0xf]
      %v266 = vld [vmem:[%s166 + $0x16c] sm:$0xf]
      %v267 = vld [vmem:[%s166 + $0x170] sm:$0xf]
      %v268 = vld [vmem:[%s166 + $0x174] sm:$0xf]
      %v269 = vld [vmem:[%s166 + $0x178] sm:$0xf]
      %v270 = vld [vmem:[%s166 + $0x17c] sm:$0xf]
      %v271 = vld [vmem:[%s166 + $0x180] sm:$0xf]
      %v272 = vld [vmem:[%s166 + $0x184] sm:$0xf]
      %v273 = vld [vmem:[%s166 + $0x188] sm:$0xf]
      %v274 = vld [vmem:[%s166 + $0x18c] sm:$0xf]
      %v275 = vld [vmem:[%s166 + $0x190] sm:$0xf]
      %v276 = vld [vmem:[%s166 + $0x194] sm:$0xf]
      %v277 = vld [vmem:[%s166 + $0x198] sm:$0xf]
      %v278 = vld [vmem:[%s166 + $0x19c] sm:$0xf]
      %v279 = vld [vmem:[%s166 + $0x1a0] sm:$0xf]
      %v280 = vld [vmem:[%s166 + $0x1a4] sm:$0xf]
      %v281 = vld [vmem:[%s166 + $0x1a8] sm:$0xf]
      %v282 = vld [vmem:[%s166 + $0x1ac] sm:$0xf]
      %v283 = vld [vmem:[%s1] sm:$0xff]
      %v284 = vld [vmem:[%s1 + $0x8] sm:$0xff]
      %v285 = vld [vmem:[%s1 + $0x10] sm:$0xff]
      %v286 = vld [vmem:[%s1 + $0x18] sm:$0xff]
      %v287 = vld [vmem:[%s1 + $0x20] sm:$0xff]
      %v288 = vld [vmem:[%s1 + $0x28] sm:$0xff]
      %v289 = vld [vmem:[%s1 + $0x30] sm:$0xff]
      %v290 = vld [vmem:[%s1 + $0x38] sm:$0xff]
      %v291 = vld [vmem:[%s1 + $0x40] sm:$0xff]
      %v292 = vld [vmem:[%s1 + $0x48] sm:$0xff]
      %v293 = vld [vmem:[%s1 + $0x50] sm:$0xff]
      %v294 = vld [vmem:[%s1 + $0x58] sm:$0xff]
      %v295 = vld [vmem:[%s1 + $0x60] sm:$0xff]
      %v296 = vld [vmem:[%s1 + $0x68] sm:$0xff]
      %v297 = vld [vmem:[%s1 + $0x70] sm:$0xff]
      %v298 = vld [vmem:[%s1 + $0x78] sm:$0xff]
      %v299 = vld [vmem:[%s1 + $0x80] sm:$0xff]
      %v300 = vld [vmem:[%s1 + $0x88] sm:$0xff]
      %v301 = vld [vmem:[%s1 + $0x90] sm:$0xff]
      %v302 = vld [vmem:[%s1 + $0x98] sm:$0xff]
      %v303 = vld [vmem:[%s1 + $0xa0] sm:$0xff]
      %v304 = vld [vmem:[%s1 + $0xa8] sm:$0xff]
      %v305 = vld [vmem:[%s1 + $0xb0] sm:$0xff]
      %v306 = vld [vmem:[%s1 + $0xb8] sm:$0xff]
      %v307 = vld [vmem:[%s1 + $0xc0] sm:$0x33]
      %v308 = vld [vmem:[%s1 + $0xc8] sm:$0x33]
      %v417 = vunpack.c.l.b16 %v175
      %v418 = vunpack.c.l.b16 %v176
      %v419 = vunpack.c.l.b16 %v177
      %v420 = vunpack.c.l.b16 %v178
      %v421 = vunpack.c.l.b16 %v179
      %v422 = vunpack.c.l.b16 %v180
      %v423 = vunpack.c.l.b16 %v181
      %v424 = vunpack.c.l.b16 %v182
      %v425 = vunpack.c.l.b16 %v183
      %v426 = vunpack.c.l.b16 %v184
      %v427 = vunpack.c.l.b16 %v185
      %v428 = vunpack.c.l.b16 %v186
      %v429 = vunpack.c.l.b16 %v187
      %v430 = vunpack.c.l.b16 %v188
      %v431 = vunpack.c.l.b16 %v189
      %v432 = vunpack.c.l.b16 %v190
      %v433 = vunpack.c.l.b16 %v191
      %v434 = vunpack.c.l.b16 %v192
      %v435 = vunpack.c.l.b16 %v193
      %v436 = vunpack.c.l.b16 %v194
      %v437 = vunpack.c.l.b16 %v195
      %v438 = vunpack.c.l.b16 %v196
      %v439 = vunpack.c.l.b16 %v197
      %v440 = vunpack.c.l.b16 %v198
      %v441 = vunpack.c.l.b16 %v199
      %v442 = vunpack.c.l.b16 %v200
      %v443 = vunpack.c.l.b16 %v201
      %v444 = vunpack.c.l.b16 %v202
      %v445 = vunpack.c.l.b16 %v203
      %v446 = vunpack.c.l.b16 %v204
      %v447 = vunpack.c.l.b16 %v205
      %v448 = vunpack.c.l.b16 %v206
      %v449 = vunpack.c.l.b16 %v207
      %v450 = vunpack.c.l.b16 %v208
      %v451 = vunpack.c.l.b16 %v209
      %v452 = vunpack.c.l.b16 %v210
      %v453 = vunpack.c.l.b16 %v211
      %v454 = vunpack.c.l.b16 %v212
      %v455 = vunpack.c.l.b16 %v213
      %v456 = vunpack.c.l.b16 %v214
      %v457 = vunpack.c.l.b16 %v215
      %v458 = vunpack.c.l.b16 %v216
      %v459 = vunpack.c.l.b16 %v217
      %v460 = vunpack.c.l.b16 %v218
      %v461 = vunpack.c.l.b16 %v219
      %v462 = vunpack.c.l.b16 %v220
      %v463 = vunpack.c.l.b16 %v221
      %v464 = vunpack.c.l.b16 %v222
      %v465 = vunpack.c.l.b16 %v223
      %v466 = vunpack.c.l.b16 %v224
      %v467 = vunpack.c.l.b16 %v225
      %v468 = vunpack.c.l.b16 %v226
      %v469 = vunpack.c.l.b16 %v227
      %v470 = vunpack.c.l.b16 %v228
      %v471 = vunpack.c.l.b16 %v229
      %v472 = vunpack.c.l.b16 %v230
      %v473 = vunpack.c.l.b16 %v231
      %v474 = vunpack.c.l.b16 %v232
      %v475 = vunpack.c.l.b16 %v233
      %v476 = vunpack.c.l.b16 %v234
      %v477 = vunpack.c.l.b16 %v235
      %v478 = vunpack.c.l.b16 %v236
      %v479 = vunpack.c.l.b16 %v237
      %v480 = vunpack.c.l.b16 %v238
      %v481 = vunpack.c.l.b16 %v239
      %v482 = vunpack.c.l.b16 %v240
      %v483 = vunpack.c.l.b16 %v241
      %v484 = vunpack.c.l.b16 %v242
      %v485 = vunpack.c.l.b16 %v243
      %v486 = vunpack.c.l.b16 %v244
      %v487 = vunpack.c.l.b16 %v245
      %v488 = vunpack.c.l.b16 %v246
      %v489 = vunpack.c.l.b16 %v247
      %v490 = vunpack.c.l.b16 %v248
      %v491 = vunpack.c.l.b16 %v249
      %v492 = vunpack.c.l.b16 %v250
      %v493 = vunpack.c.l.b16 %v251
      %v494 = vunpack.c.l.b16 %v252
      %v495 = vunpack.c.l.b16 %v253
      %v496 = vunpack.c.l.b16 %v254
      %v497 = vunpack.c.l.b16 %v255
      %v498 = vunpack.c.l.b16 %v256
      %v499 = vunpack.c.l.b16 %v257
      %v500 = vunpack.c.l.b16 %v258
      %v501 = vunpack.c.l.b16 %v259
      %v502 = vunpack.c.l.b16 %v260
      %v503 = vunpack.c.l.b16 %v261
      %v504 = vunpack.c.l.b16 %v262
      %v505 = vunpack.c.l.b16 %v263
      %v506 = vunpack.c.l.b16 %v264
      %v507 = vunpack.c.l.b16 %v265
      %v508 = vunpack.c.l.b16 %v266
      %v509 = vunpack.c.l.b16 %v267
      %v510 = vunpack.c.l.b16 %v268
      %v511 = vunpack.c.l.b16 %v269
      %v512 = vunpack.c.l.b16 %v270
      %v513 = vunpack.c.l.b16 %v271
      %v514 = vunpack.c.l.b16 %v272
      %v515 = vunpack.c.l.b16 %v273
      %v516 = vunpack.c.l.b16 %v274
      %v517 = vunpack.c.l.b16 %v275
      %v518 = vunpack.c.l.b16 %v276
      %v519 = vunpack.c.l.b16 %v277
      %v520 = vunpack.c.l.b16 %v278
      %v521 = vunpack.c.l.b16 %v279
      %v522 = vunpack.c.l.b16 %v280
      %v523 = vunpack.c.l.b16 %v281
      %v524 = vunpack.c.l.b16 %v282
      %v525 = vpack.c.b16 %v418, %v417
      %v526 = vpack.c.b16 %v420, %v419
      %v527 = vpack.c.b16 %v422, %v421
      %v528 = vpack.c.b16 %v424, %v423
      %v529 = vpack.c.b16 %v426, %v425
      %v530 = vpack.c.b16 %v428, %v427
      %v531 = vpack.c.b16 %v430, %v429
      %v532 = vpack.c.b16 %v432, %v431
      %v533 = vpack.c.b16 %v434, %v433
      %v534 = vpack.c.b16 %v436, %v435
      %v535 = vpack.c.b16 %v438, %v437
      %v536 = vpack.c.b16 %v440, %v439
      %v537 = vpack.c.b16 %v442, %v441
      %v538 = vpack.c.b16 %v444, %v443
      %v539 = vpack.c.b16 %v446, %v445
      %v540 = vpack.c.b16 %v448, %v447
      %v541 = vpack.c.b16 %v450, %v449
      %v542 = vpack.c.b16 %v452, %v451
      %v543 = vpack.c.b16 %v454, %v453
      %v544 = vpack.c.b16 %v456, %v455
      %v545 = vpack.c.b16 %v458, %v457
      %v546 = vpack.c.b16 %v460, %v459
      %v547 = vpack.c.b16 %v462, %v461
      %v548 = vpack.c.b16 %v464, %v463
      %v549 = vpack.c.b16 %v466, %v465
      %v550 = vpack.c.b16 %v468, %v467
      %v551 = vpack.c.b16 %v470, %v469
      %v552 = vpack.c.b16 %v472, %v471
      %v553 = vpack.c.b16 %v474, %v473
      %v554 = vpack.c.b16 %v476, %v475
      %v555 = vpack.c.b16 %v478, %v477
      %v556 = vpack.c.b16 %v480, %v479
      %v557 = vpack.c.b16 %v482, %v481
      %v558 = vpack.c.b16 %v484, %v483
      %v559 = vpack.c.b16 %v486, %v485
      %v560 = vpack.c.b16 %v488, %v487
      %v561 = vpack.c.b16 %v490, %v489
      %v562 = vpack.c.b16 %v492, %v491
      %v563 = vpack.c.b16 %v494, %v493
      %v564 = vpack.c.b16 %v496, %v495
      %v565 = vpack.c.b16 %v498, %v497
      %v566 = vpack.c.b16 %v500, %v499
      %v567 = vpack.c.b16 %v502, %v501
      %v568 = vpack.c.b16 %v504, %v503
      %v569 = vpack.c.b16 %v506, %v505
      %v570 = vpack.c.b16 %v508, %v507
      %v571 = vpack.c.b16 %v510, %v509
      %v572 = vpack.c.b16 %v512, %v511
      %v573 = vpack.c.b16 %v514, %v513
      %v574 = vpack.c.b16 %v516, %v515
      %v575 = vpack.c.b16 %v518, %v517
      %v576 = vpack.c.b16 %v520, %v519
      %v577 = vpack.c.b16 %v522, %v521
      %v578 = vpack.c.b16 %v524, %v523
      %v605 = vunpack.c.l.b16 %v283
      %v606 = vunpack.c.h.b16 %v283
      %v607 = vunpack.c.l.b16 %v284
      %v608 = vunpack.c.h.b16 %v284
      %v609 = vunpack.c.l.b16 %v285
      %v610 = vunpack.c.h.b16 %v285
      %v611 = vunpack.c.l.b16 %v286
      %v612 = vunpack.c.h.b16 %v286
      %v613 = vunpack.c.l.b16 %v287
      %v614 = vunpack.c.h.b16 %v287
      %v615 = vunpack.c.l.b16 %v288
      %v616 = vunpack.c.h.b16 %v288
      %v617 = vunpack.c.l.b16 %v289
      %v618 = vunpack.c.h.b16 %v289
      %v619 = vunpack.c.l.b16 %v290
      %v620 = vunpack.c.h.b16 %v290
      %v621 = vunpack.c.l.b16 %v291
      %v622 = vunpack.c.h.b16 %v291
      %v623 = vunpack.c.l.b16 %v292
      %v624 = vunpack.c.h.b16 %v292
      %v625 = vunpack.c.l.b16 %v293
      %v626 = vunpack.c.h.b16 %v293
      %v627 = vunpack.c.l.b16 %v294
      %v628 = vunpack.c.h.b16 %v294
      %v629 = vunpack.c.l.b16 %v295
      %v630 = vunpack.c.h.b16 %v295
      %v631 = vunpack.c.l.b16 %v296
      %v632 = vunpack.c.h.b16 %v296
      %v633 = vunpack.c.l.b16 %v297
      %v634 = vunpack.c.h.b16 %v297
      %v635 = vunpack.c.l.b16 %v298
      %v636 = vunpack.c.h.b16 %v298
      %v637 = vunpack.c.l.b16 %v299
      %v638 = vunpack.c.h.b16 %v299
      %v639 = vunpack.c.l.b16 %v300
      %v640 = vunpack.c.h.b16 %v300
      %v641 = vunpack.c.l.b16 %v301
      %v642 = vunpack.c.h.b16 %v301
      %v643 = vunpack.c.l.b16 %v302
      %v644 = vunpack.c.h.b16 %v302
      %v645 = vunpack.c.l.b16 %v303
      %v646 = vunpack.c.h.b16 %v303
      %v647 = vunpack.c.l.b16 %v304
      %v648 = vunpack.c.h.b16 %v304
      %v649 = vunpack.c.l.b16 %v305
      %v650 = vunpack.c.h.b16 %v305
      %v651 = vunpack.c.l.b16 %v306
      %v652 = vunpack.c.h.b16 %v306
      %v653 = vunpack.c.l.b16 %v307
      %v654 = vunpack.c.h.b16 %v307
      %v655 = vunpack.c.l.b16 %v308
      %v656 = vunpack.c.h.b16 %v308
      %v657 = vpack.c.b16 %v609, %v605
      %v658 = vpack.c.b16 %v610, %v606
      %v659 = vpack.c.b16 %v611, %v607
      %v660 = vpack.c.b16 %v612, %v608
      %v661 = vpack.c.b16 %v617, %v613
      %v662 = vpack.c.b16 %v618, %v614
      %v663 = vpack.c.b16 %v619, %v615
      %v664 = vpack.c.b16 %v620, %v616
      %v665 = vpack.c.b16 %v625, %v621
      %v666 = vpack.c.b16 %v626, %v622
      %v667 = vpack.c.b16 %v627, %v623
      %v668 = vpack.c.b16 %v628, %v624
      %v669 = vpack.c.b16 %v633, %v629
      %v670 = vpack.c.b16 %v634, %v630
      %v671 = vpack.c.b16 %v635, %v631
      %v672 = vpack.c.b16 %v636, %v632
      %v673 = vpack.c.b16 %v641, %v637
      %v674 = vpack.c.b16 %v642, %v638
      %v675 = vpack.c.b16 %v643, %v639
      %v676 = vpack.c.b16 %v644, %v640
      %v677 = vpack.c.b16 %v649, %v645
      %v678 = vpack.c.b16 %v650, %v646
      %v679 = vpack.c.b16 %v651, %v647
      %v680 = vpack.c.b16 %v652, %v648
      %v681 = vpack.c.b16 %v653, %v653
      %v682 = vpack.c.b16 %v654, %v654
      %v683 = vpack.c.b16 %v655, %v655
      %v684 = vpack.c.b16 %v656, %v656
      %vm709 = vcmask 818176
      %v711 = vsel %vm709, %v525, 0
      %v714 = vsel %vm709, %v526, 0
      %v717 = vsel %vm709, %v527, 0
      %v720 = vsel %vm709, %v528, 0
      %v723 = vsel %vm709, %v529, 0
      %v726 = vsel %vm709, %v530, 0
      %v729 = vsel %vm709, %v531, 0
      %v732 = vsel %vm709, %v532, 0
      %v735 = vsel %vm709, %v533, 0
      %v738 = vsel %vm709, %v534, 0
      %v741 = vsel %vm709, %v535, 0
      %v744 = vsel %vm709, %v536, 0
      %v747 = vsel %vm709, %v537, 0
      %v750 = vsel %vm709, %v538, 0
      %v753 = vsel %vm709, %v539, 0
      %v756 = vsel %vm709, %v540, 0
      %v759 = vsel %vm709, %v541, 0
      %v762 = vsel %vm709, %v542, 0
      %v765 = vsel %vm709, %v543, 0
      %v768 = vsel %vm709, %v544, 0
      %v771 = vsel %vm709, %v545, 0
      %v774 = vsel %vm709, %v546, 0
      %v777 = vsel %vm709, %v547, 0
      %v780 = vsel %vm709, %v548, 0
      %v783 = vsel %vm709, %v549, 0
      %v786 = vsel %vm709, %v550, 0
      %v789 = vsel %vm709, %v551, 0
      %v792 = vsel %vm709, %v552, 0
      %v795 = vsel %vm709, %v553, 0
      %v798 = vsel %vm709, %v554, 0
      %v801 = vsel %vm709, %v555, 0
      %v804 = vsel %vm709, %v556, 0
      %v807 = vsel %vm709, %v557, 0
      %v810 = vsel %vm709, %v558, 0
      %v813 = vsel %vm709, %v559, 0
      %v816 = vsel %vm709, %v560, 0
      %v819 = vsel %vm709, %v561, 0
      %v822 = vsel %vm709, %v562, 0
      %v825 = vsel %vm709, %v563, 0
      %v828 = vsel %vm709, %v564, 0
      %v831 = vsel %vm709, %v565, 0
      %v834 = vsel %vm709, %v566, 0
      %v837 = vsel %vm709, %v567, 0
      %v840 = vsel %vm709, %v568, 0
      %v843 = vsel %vm709, %v569, 0
      %v846 = vsel %vm709, %v570, 0
      %v849 = vsel %vm709, %v571, 0
      %v852 = vsel %vm709, %v572, 0
      %v855 = vsel %vm709, %v573, 0
      %v858 = vsel %vm709, %v574, 0
      %v861 = vsel %vm709, %v575, 0
      %v864 = vsel %vm709, %v576, 0
      %v867 = vsel %vm709, %v577, 0
      %v870 = vsel %vm709, %v578, 0
      %vm872 = vcmask 1041408
      %v874 = vsel %vm872, %v681, 0
      %v877 = vsel %vm872, %v682, 0
      %v880 = vsel %vm872, %v683, 0
      %v883 = vsel %vm872, %v684, 0
      %885 = vmatprep.subr.bf16.mxu0 %v658
      %886 = vmatpush1.bf16.msra.mxu0 %v657
      %887 = vmatprep.subr.bf16.mxu0 %v662
      %888 = vmatpush1.bf16.msra.mxu0 %v661
      %889 = vmatprep.subr.bf16.mxu0 %v666
      %890 = vmatpush1.bf16.msra.mxu0 %v665
      %891 = vmatprep.subr.bf16.mxu0 %v670
      %892 = vmatpush1.bf16.msra.mxu0 %v669
      %893 = vmatprep.subr.bf16.mxu0 %v674
      %894 = vmatpush1.bf16.msra.mxu0 %v673
      %895 = vmatprep.subr.bf16.mxu0 %v678
      %896 = vmatpush1.bf16.msra.mxu0 %v677
      %897 = vmatprep.subr.bf16.mxu0 %v877
      %898 = vmatpush1.bf16.msra.mxu0 %v874
      %899 = vmatprep.subr.bf16.mxu0 0
      %900 = vmatpush1.bf16.msra.mxu0 0
      %901 = vmatprep.subr.bf16.mxu0 0
      %902 = vmatpush1.bf16.msra.mxu0 0
      %903 = vmatprep.subr.bf16.mxu0 0
      %904 = vmatpush1.bf16.msra.mxu0 0
      %905 = vmatprep.subr.bf16.mxu0 0
      %906 = vmatpush1.bf16.msra.mxu0 0
      %907 = vmatprep.subr.bf16.mxu0 0
      %908 = vmatpush1.bf16.msra.mxu0 0
      %909 = vmatprep.subr.bf16.mxu0 0
      %910 = vmatpush1.bf16.msra.mxu0 0
      %911 = vmatprep.subr.bf16.mxu0 0
      %912 = vmatpush1.bf16.msra.mxu0 0
      %913 = vmatprep.subr.bf16.mxu0 0
      %914 = vmatpush1.bf16.msra.mxu0 0
      %915 = vmatprep.subr.bf16.mxu0 0
      %916 = vmatpush1.bf16.msra.mxu0 0
      %917 = vmatprep.mubr.bf16.mxu0 0
      %918 = vmatmul.mubr.bf16.gmra.mrb[0].mxu0 %v711
      %v919 = vpop.f32.mrb[0].mxu0
      %v920 = vadd.f32 0.0, %v919
      %v921 = vpop.f32.mrb[0].mxu0
      %v922 = vadd.f32 0.0, %v921
      %v923 = vpop.f32.mrb[0].mxu0
      %v924 = vadd.f32 0.0, %v923
      %v925 = vpop.f32.mrb[0].mxu0
      %v926 = vadd.f32 0.0, %v925
      %927 = vmatprep.mubr.bf16.mxu0 0
      %928 = vmatmul.mubr.bf16.gmra.mrb[0].mxu0 %v714
      %v929 = vpop.f32.mrb[0].mxu0
      %v930 = vadd.f32 0.0, %v929
      %v931 = vpop.f32.mrb[0].mxu0
      %v932 = vadd.f32 0.0, %v931
      %v933 = vpop.f32.mrb[0].mxu0
      %v934 = vadd.f32 0.0, %v933
      %v935 = vpop.f32.mrb[0].mxu0
      %v936 = vadd.f32 0.0, %v935
      %937 = vmatprep.mubr.bf16.mxu0 0
      %938 = vmatmul.mubr.bf16.gmra.mrb[0].mxu0 %v717
      %v939 = vpop.f32.mrb[0].mxu0
      %v940 = vadd.f32 0.0, %v939
      %v941 = vpop.f32.mrb[0].mxu0
      %v942 = vadd.f32 0.0, %v941
      %v943 = vpop.f32.mrb[0].mxu0
      %v944 = vadd.f32 0.0, %v943
      %v945 = vpop.f32.mrb[0].mxu0
      %v946 = vadd.f32 0.0, %v945
      %947 = vmatprep.mubr.bf16.mxu0 0
      %948 = vmatmul.mubr.bf16.gmra.mrb[0].mxu0 %v720
      %v949 = vpop.f32.mrb[0].mxu0
      %v950 = vadd.f32 0.0, %v949
      %v951 = vpop.f32.mrb[0].mxu0
      %v952 = vadd.f32 0.0, %v951
      %v953 = vpop.f32.mrb[0].mxu0
      %v954 = vadd.f32 0.0, %v953
      %v955 = vpop.f32.mrb[0].mxu0
      %v956 = vadd.f32 0.0, %v955
      %957 = vmatprep.mubr.bf16.mxu0 0
      %958 = vmatmul.mubr.bf16.gmra.mrb[0].mxu0 %v723
      %v959 = vpop.f32.mrb[0].mxu0
      %v960 = vadd.f32 0.0, %v959
      %v961 = vpop.f32.mrb[0].mxu0
      %v962 = vadd.f32 0.0, %v961
      %v963 = vpop.f32.mrb[0].mxu0
      %v964 = vadd.f32 0.0, %v963
      %v965 = vpop.f32.mrb[0].mxu0
      %v966 = vadd.f32 0.0, %v965
      %967 = vmatprep.mubr.bf16.mxu0 0
      %968 = vmatmul.mubr.bf16.gmra.mrb[0].mxu0 %v726
      %v969 = vpop.f32.mrb[0].mxu0
      %v970 = vadd.f32 0.0, %v969
      %v971 = vpop.f32.mrb[0].mxu0
      %v972 = vadd.f32 0.0, %v971
      %v973 = vpop.f32.mrb[0].mxu0
      %v974 = vadd.f32 0.0, %v973
      %v975 = vpop.f32.mrb[0].mxu0
      %v976 = vadd.f32 0.0, %v975
      %977 = vmatprep.mubr.bf16.mxu0 0
      %978 = vmatmul.mubr.bf16.gmra.mrb[0].mxu0 %v729
      %v979 = vpop.f32.mrb[0].mxu0
      %v980 = vadd.f32 0.0, %v979
      %v981 = vpop.f32.mrb[0].mxu0
      %v982 = vadd.f32 0.0, %v981
      %v983 = vpop.f32.mrb[0].mxu0
      %v984 = vadd.f32 0.0, %v983
      %v985 = vpop.f32.mrb[0].mxu0
      %v986 = vadd.f32 0.0, %v985
      %987 = vmatprep.mubr.bf16.mxu0 0
      %988 = vmatmul.mubr.bf16.gmra.mrb[0].mxu0 %v732
      %v989 = vpop.f32.mrb[0].mxu0
      %v990 = vadd.f32 0.0, %v989
      %v991 = vpop.f32.mrb[0].mxu0
      %v992 = vadd.f32 0.0, %v991
      %v993 = vpop.f32.mrb[0].mxu0
      %v994 = vadd.f32 0.0, %v993
      %v995 = vpop.f32.mrb[0].mxu0
      %v996 = vadd.f32 0.0, %v995
      %997 = vmatprep.mubr.bf16.mxu0 0
      %998 = vmatmul.mubr.bf16.gmra.mrb[0].mxu0 %v735
      %v999 = vpop.f32.mrb[0].mxu0
      %v1000 = vadd.f32 0.0, %v999
      %v1001 = vpop.f32.mrb[0].mxu0
      %v1002 = vadd.f32 0.0, %v1001
      %v1003 = vpop.f32.mrb[0].mxu0
      %v1004 = vadd.f32 0.0, %v1003
      %v1005 = vpop.f32.mrb[0].mxu0
      %v1006 = vadd.f32 0.0, %v1005
      %1007 = vmatprep.mubr.bf16.mxu0 0
      %1008 = vmatmul.mubr.bf16.gmra.mrb[0].mxu0 %v738
      %v1009 = vpop.f32.mrb[0].mxu0
      %v1010 = vadd.f32 0.0, %v1009
      %v1011 = vpop.f32.mrb[0].mxu0
      %v1012 = vadd.f32 0.0, %v1011
      %v1013 = vpop.f32.mrb[0].mxu0
      %v1014 = vadd.f32 0.0, %v1013
      %v1015 = vpop.f32.mrb[0].mxu0
      %v1016 = vadd.f32 0.0, %v1015
      %1017 = vmatprep.mubr.bf16.mxu0 0
      %1018 = vmatmul.mubr.bf16.gmra.mrb[0].mxu0 %v741
      %v1019 = vpop.f32.mrb[0].mxu0
      %v1020 = vadd.f32 0.0, %v1019
      %v1021 = vpop.f32.mrb[0].mxu0
      %v1022 = vadd.f32 0.0, %v1021
      %v1023 = vpop.f32.mrb[0].mxu0
      %v1024 = vadd.f32 0.0, %v1023
      %v1025 = vpop.f32.mrb[0].mxu0
      %v1026 = vadd.f32 0.0, %v1025
      %1027 = vmatprep.mubr.bf16.mxu0 0
      %1028 = vmatmul.mubr.bf16.gmra.mrb[0].mxu0 %v744
      %v1029 = vpop.f32.mrb[0].mxu0
      %v1030 = vadd.f32 0.0, %v1029
      %v1031 = vpop.f32.mrb[0].mxu0
      %v1032 = vadd.f32 0.0, %v1031
      %v1033 = vpop.f32.mrb[0].mxu0
      %v1034 = vadd.f32 0.0, %v1033
      %v1035 = vpop.f32.mrb[0].mxu0
      %v1036 = vadd.f32 0.0, %v1035
      %1037 = vmatprep.mubr.bf16.mxu0 0
      %1038 = vmatmul.mubr.bf16.gmra.mrb[0].mxu0 %v747
      %v1039 = vpop.f32.mrb[0].mxu0
      %v1040 = vadd.f32 0.0, %v1039
      %v1041 = vpop.f32.mrb[0].mxu0
      %v1042 = vadd.f32 0.0, %v1041
      %v1043 = vpop.f32.mrb[0].mxu0
      %v1044 = vadd.f32 0.0, %v1043
      %v1045 = vpop.f32.mrb[0].mxu0
      %v1046 = vadd.f32 0.0, %v1045
      %1047 = vmatprep.mubr.bf16.mxu0 0
      %1048 = vmatmul.mubr.bf16.gmra.mrb[0].mxu0 %v750
      %v1049 = vpop.f32.mrb[0].mxu0
      %v1050 = vadd.f32 0.0, %v1049
      %v1051 = vpop.f32.mrb[0].mxu0
      %v1052 = vadd.f32 0.0, %v1051
      %v1053 = vpop.f32.mrb[0].mxu0
      %v1054 = vadd.f32 0.0, %v1053
      %v1055 = vpop.f32.mrb[0].mxu0
      %v1056 = vadd.f32 0.0, %v1055
      %1057 = vmatprep.mubr.bf16.mxu0 0
      %1058 = vmatmul.mubr.bf16.gmra.mrb[0].mxu0 %v753
      %v1059 = vpop.f32.mrb[0].mxu0
      %v1060 = vadd.f32 0.0, %v1059
      %v1061 = vpop.f32.mrb[0].mxu0
      %v1062 = vadd.f32 0.0, %v1061
      %v1063 = vpop.f32.mrb[0].mxu0
      %v1064 = vadd.f32 0.0, %v1063
      %v1065 = vpop.f32.mrb[0].mxu0
      %v1066 = vadd.f32 0.0, %v1065
      %1067 = vmatprep.mubr.bf16.mxu0 0
      %1068 = vmatmul.mubr.bf16.gmra.mrb[0].mxu0 %v756
      %v1069 = vpop.f32.mrb[0].mxu0
      %v1070 = vadd.f32 0.0, %v1069
      %v1071 = vpop.f32.mrb[0].mxu0
      %v1072 = vadd.f32 0.0, %v1071
      %v1073 = vpop.f32.mrb[0].mxu0
      %v1074 = vadd.f32 0.0, %v1073
      %v1075 = vpop.f32.mrb[0].mxu0
      %v1076 = vadd.f32 0.0, %v1075
      %1077 = vmatprep.mubr.bf16.mxu0 0
      %1078 = vmatmul.mubr.bf16.gmra.mrb[0].mxu0 %v759
      %v1079 = vpop.f32.mrb[0].mxu0
      %v1080 = vadd.f32 0.0, %v1079
      %v1081 = vpop.f32.mrb[0].mxu0
      %v1082 = vadd.f32 0.0, %v1081
      %v1083 = vpop.f32.mrb[0].mxu0
      %v1084 = vadd.f32 0.0, %v1083
      %v1085 = vpop.f32.mrb[0].mxu0
      %v1086 = vadd.f32 0.0, %v1085
      %1087 = vmatprep.mubr.bf16.mxu0 0
      %1088 = vmatmul.mubr.bf16.gmra.mrb[0].mxu0 %v762
      %v1089 = vpop.f32.mrb[0].mxu0
      %v1090 = vadd.f32 0.0, %v1089
      %v1091 = vpop.f32.mrb[0].mxu0
      %v1092 = vadd.f32 0.0, %v1091
      %v1093 = vpop.f32.mrb[0].mxu0
      %v1094 = vadd.f32 0.0, %v1093
      %v1095 = vpop.f32.mrb[0].mxu0
      %v1096 = vadd.f32 0.0, %v1095
      %1097 = vmatprep.mubr.bf16.mxu0 0
      %1098 = vmatmul.mubr.bf16.gmra.mrb[0].mxu0 %v765
      %v1099 = vpop.f32.mrb[0].mxu0
      %v1100 = vadd.f32 0.0, %v1099
      %v1101 = vpop.f32.mrb[0].mxu0
      %v1102 = vadd.f32 0.0, %v1101
      %v1103 = vpop.f32.mrb[0].mxu0
      %v1104 = vadd.f32 0.0, %v1103
      %v1105 = vpop.f32.mrb[0].mxu0
      %v1106 = vadd.f32 0.0, %v1105
      %1107 = vmatprep.mubr.bf16.mxu0 0
      %1108 = vmatmul.mubr.bf16.gmra.mrb[0].mxu0 %v768
      %v1109 = vpop.f32.mrb[0].mxu0
      %v1110 = vadd.f32 0.0, %v1109
      %v1111 = vpop.f32.mrb[0].mxu0
      %v1112 = vadd.f32 0.0, %v1111
      %v1113 = vpop.f32.mrb[0].mxu0
      %v1114 = vadd.f32 0.0, %v1113
      %v1115 = vpop.f32.mrb[0].mxu0
      %v1116 = vadd.f32 0.0, %v1115
      %1117 = vmatprep.mubr.bf16.mxu0 0
      %1118 = vmatmul.mubr.bf16.gmra.mrb[0].mxu0 %v771
      %v1119 = vpop.f32.mrb[0].mxu0
      %v1120 = vadd.f32 0.0, %v1119
      %v1121 = vpop.f32.mrb[0].mxu0
      %v1122 = vadd.f32 0.0, %v1121
      %v1123 = vpop.f32.mrb[0].mxu0
      %v1124 = vadd.f32 0.0, %v1123
      %v1125 = vpop.f32.mrb[0].mxu0
      %v1126 = vadd.f32 0.0, %v1125
      %1127 = vmatprep.mubr.bf16.mxu0 0
      %1128 = vmatmul.mubr.bf16.gmra.mrb[0].mxu0 %v774
      %v1129 = vpop.f32.mrb[0].mxu0
      %v1130 = vadd.f32 0.0, %v1129
      %v1131 = vpop.f32.mrb[0].mxu0
      %v1132 = vadd.f32 0.0, %v1131
      %v1133 = vpop.f32.mrb[0].mxu0
      %v1134 = vadd.f32 0.0, %v1133
      %v1135 = vpop.f32.mrb[0].mxu0
      %v1136 = vadd.f32 0.0, %v1135
      %1137 = vmatprep.mubr.bf16.mxu0 0
      %1138 = vmatmul.mubr.bf16.gmra.mrb[0].mxu0 %v777
      %v1139 = vpop.f32.mrb[0].mxu0
      %v1140 = vadd.f32 0.0, %v1139
      %v1141 = vpop.f32.mrb[0].mxu0
      %v1142 = vadd.f32 0.0, %v1141
      %v1143 = vpop.f32.mrb[0].mxu0
      %v1144 = vadd.f32 0.0, %v1143
      %v1145 = vpop.f32.mrb[0].mxu0
      %v1146 = vadd.f32 0.0, %v1145
      %1147 = vmatprep.mubr.bf16.mxu0 0
      %1148 = vmatmul.mubr.bf16.gmra.mrb[0].mxu0 %v780
      %v1149 = vpop.f32.mrb[0].mxu0
      %v1150 = vadd.f32 0.0, %v1149
      %v1151 = vpop.f32.mrb[0].mxu0
      %v1152 = vadd.f32 0.0, %v1151
      %v1153 = vpop.f32.mrb[0].mxu0
      %v1154 = vadd.f32 0.0, %v1153
      %v1155 = vpop.f32.mrb[0].mxu0
      %v1156 = vadd.f32 0.0, %v1155
      %1157 = vmatprep.mubr.bf16.mxu0 0
      %1158 = vmatmul.mubr.bf16.gmra.mrb[0].mxu0 %v783
      %v1159 = vpop.f32.mrb[0].mxu0
      %v1160 = vadd.f32 0.0, %v1159
      %v1161 = vpop.f32.mrb[0].mxu0
      %v1162 = vadd.f32 0.0, %v1161
      %v1163 = vpop.f32.mrb[0].mxu0
      %v1164 = vadd.f32 0.0, %v1163
      %v1165 = vpop.f32.mrb[0].mxu0
      %v1166 = vadd.f32 0.0, %v1165
      %1167 = vmatprep.mubr.bf16.mxu0 0
      %1168 = vmatmul.mubr.bf16.gmra.mrb[0].mxu0 %v786
      %v1169 = vpop.f32.mrb[0].mxu0
      %v1170 = vadd.f32 0.0, %v1169
      %v1171 = vpop.f32.mrb[0].mxu0
      %v1172 = vadd.f32 0.0, %v1171
      %v1173 = vpop.f32.mrb[0].mxu0
      %v1174 = vadd.f32 0.0, %v1173
      %v1175 = vpop.f32.mrb[0].mxu0
      %v1176 = vadd.f32 0.0, %v1175
      %1177 = vmatprep.mubr.bf16.mxu0 0
      %1178 = vmatmul.mubr.bf16.gmra.mrb[0].mxu0 %v789
      %v1179 = vpop.f32.mrb[0].mxu0
      %v1180 = vadd.f32 0.0, %v1179
      %v1181 = vpop.f32.mrb[0].mxu0
      %v1182 = vadd.f32 0.0, %v1181
      %v1183 = vpop.f32.mrb[0].mxu0
      %v1184 = vadd.f32 0.0, %v1183
      %v1185 = vpop.f32.mrb[0].mxu0
      %v1186 = vadd.f32 0.0, %v1185
      %1187 = vmatprep.mubr.bf16.mxu0 0
      %1188 = vmatmul.mubr.bf16.gmra.mrb[0].mxu0 %v792
      %v1189 = vpop.f32.mrb[0].mxu0
      %v1190 = vadd.f32 0.0, %v1189
      %v1191 = vpop.f32.mrb[0].mxu0
      %v1192 = vadd.f32 0.0, %v1191
      %v1193 = vpop.f32.mrb[0].mxu0
      %v1194 = vadd.f32 0.0, %v1193
      %v1195 = vpop.f32.mrb[0].mxu0
      %v1196 = vadd.f32 0.0, %v1195
      %1197 = vmatprep.mubr.bf16.mxu0 0
      %1198 = vmatmul.mubr.bf16.gmra.mrb[0].mxu0 %v795
      %v1199 = vpop.f32.mrb[0].mxu0
      %v1200 = vadd.f32 0.0, %v1199
      %v1201 = vpop.f32.mrb[0].mxu0
      %v1202 = vadd.f32 0.0, %v1201
      %v1203 = vpop.f32.mrb[0].mxu0
      %v1204 = vadd.f32 0.0, %v1203
      %v1205 = vpop.f32.mrb[0].mxu0
      %v1206 = vadd.f32 0.0, %v1205
      %1207 = vmatprep.mubr.bf16.mxu0 0
      %1208 = vmatmul.mubr.bf16.gmra.mrb[0].mxu0 %v798
      %v1209 = vpop.f32.mrb[0].mxu0
      %v1210 = vadd.f32 0.0, %v1209
      %v1211 = vpop.f32.mrb[0].mxu0
      %v1212 = vadd.f32 0.0, %v1211
      %v1213 = vpop.f32.mrb[0].mxu0
      %v1214 = vadd.f32 0.0, %v1213
      %v1215 = vpop.f32.mrb[0].mxu0
      %v1216 = vadd.f32 0.0, %v1215
      %1217 = vmatprep.mubr.bf16.mxu0 0
      %1218 = vmatmul.mubr.bf16.gmra.mrb[0].mxu0 %v801
      %v1219 = vpop.f32.mrb[0].mxu0
      %v1220 = vadd.f32 0.0, %v1219
      %v1221 = vpop.f32.mrb[0].mxu0
      %v1222 = vadd.f32 0.0, %v1221
      %v1223 = vpop.f32.mrb[0].mxu0
      %v1224 = vadd.f32 0.0, %v1223
      %v1225 = vpop.f32.mrb[0].mxu0
      %v1226 = vadd.f32 0.0, %v1225
      %1227 = vmatprep.mubr.bf16.mxu0 0
      %1228 = vmatmul.mubr.bf16.gmra.mrb[0].mxu0 %v804
      %v1229 = vpop.f32.mrb[0].mxu0
      %v1230 = vadd.f32 0.0, %v1229
      %v1231 = vpop.f32.mrb[0].mxu0
      %v1232 = vadd.f32 0.0, %v1231
      %v1233 = vpop.f32.mrb[0].mxu0
      %v1234 = vadd.f32 0.0, %v1233
      %v1235 = vpop.f32.mrb[0].mxu0
      %v1236 = vadd.f32 0.0, %v1235
      %1237 = vmatprep.mubr.bf16.mxu0 0
      %1238 = vmatmul.mubr.bf16.gmra.mrb[0].mxu0 %v807
      %v1239 = vpop.f32.mrb[0].mxu0
      %v1240 = vadd.f32 0.0, %v1239
      %v1241 = vpop.f32.mrb[0].mxu0
      %v1242 = vadd.f32 0.0, %v1241
      %v1243 = vpop.f32.mrb[0].mxu0
      %v1244 = vadd.f32 0.0, %v1243
      %v1245 = vpop.f32.mrb[0].mxu0
      %v1246 = vadd.f32 0.0, %v1245
      %1247 = vmatprep.mubr.bf16.mxu0 0
      %1248 = vmatmul.mubr.bf16.gmra.mrb[0].mxu0 %v810
      %v1249 = vpop.f32.mrb[0].mxu0
      %v1250 = vadd.f32 0.0, %v1249
      %v1251 = vpop.f32.mrb[0].mxu0
      %v1252 = vadd.f32 0.0, %v1251
      %v1253 = vpop.f32.mrb[0].mxu0
      %v1254 = vadd.f32 0.0, %v1253
      %v1255 = vpop.f32.mrb[0].mxu0
      %v1256 = vadd.f32 0.0, %v1255
      %1257 = vmatprep.mubr.bf16.mxu0 0
      %1258 = vmatmul.mubr.bf16.gmra.mrb[0].mxu0 %v813
      %v1259 = vpop.f32.mrb[0].mxu0
      %v1260 = vadd.f32 0.0, %v1259
      %v1261 = vpop.f32.mrb[0].mxu0
      %v1262 = vadd.f32 0.0, %v1261
      %v1263 = vpop.f32.mrb[0].mxu0
      %v1264 = vadd.f32 0.0, %v1263
      %v1265 = vpop.f32.mrb[0].mxu0
      %v1266 = vadd.f32 0.0, %v1265
      %1267 = vmatprep.mubr.bf16.mxu0 0
      %1268 = vmatmul.mubr.bf16.gmra.mrb[0].mxu0 %v816
      %v1269 = vpop.f32.mrb[0].mxu0
      %v1270 = vadd.f32 0.0, %v1269
      %v1271 = vpop.f32.mrb[0].mxu0
      %v1272 = vadd.f32 0.0, %v1271
      %v1273 = vpop.f32.mrb[0].mxu0
      %v1274 = vadd.f32 0.0, %v1273
      %v1275 = vpop.f32.mrb[0].mxu0
      %v1276 = vadd.f32 0.0, %v1275
      %1277 = vmatprep.mubr.bf16.mxu0 0
      %1278 = vmatmul.mubr.bf16.gmra.mrb[0].mxu0 %v819
      %v1279 = vpop.f32.mrb[0].mxu0
      %v1280 = vadd.f32 0.0, %v1279
      %v1281 = vpop.f32.mrb[0].mxu0
      %v1282 = vadd.f32 0.0, %v1281
      %v1283 = vpop.f32.mrb[0].mxu0
      %v1284 = vadd.f32 0.0, %v1283
      %v1285 = vpop.f32.mrb[0].mxu0
      %v1286 = vadd.f32 0.0, %v1285
      %1287 = vmatprep.mubr.bf16.mxu0 0
      %1288 = vmatmul.mubr.bf16.gmra.mrb[0].mxu0 %v822
      %v1289 = vpop.f32.mrb[0].mxu0
      %v1290 = vadd.f32 0.0, %v1289
      %v1291 = vpop.f32.mrb[0].mxu0
      %v1292 = vadd.f32 0.0, %v1291
      %v1293 = vpop.f32.mrb[0].mxu0
      %v1294 = vadd.f32 0.0, %v1293
      %v1295 = vpop.f32.mrb[0].mxu0
      %v1296 = vadd.f32 0.0, %v1295
      %1297 = vmatprep.mubr.bf16.mxu0 0
      %1298 = vmatmul.mubr.bf16.gmra.mrb[0].mxu0 %v825
      %v1299 = vpop.f32.mrb[0].mxu0
      %v1300 = vadd.f32 0.0, %v1299
      %v1301 = vpop.f32.mrb[0].mxu0
      %v1302 = vadd.f32 0.0, %v1301
      %v1303 = vpop.f32.mrb[0].mxu0
      %v1304 = vadd.f32 0.0, %v1303
      %v1305 = vpop.f32.mrb[0].mxu0
      %v1306 = vadd.f32 0.0, %v1305
      %1307 = vmatprep.mubr.bf16.mxu0 0
      %1308 = vmatmul.mubr.bf16.gmra.mrb[0].mxu0 %v828
      %v1309 = vpop.f32.mrb[0].mxu0
      %v1310 = vadd.f32 0.0, %v1309
      %v1311 = vpop.f32.mrb[0].mxu0
      %v1312 = vadd.f32 0.0, %v1311
      %v1313 = vpop.f32.mrb[0].mxu0
      %v1314 = vadd.f32 0.0, %v1313
      %v1315 = vpop.f32.mrb[0].mxu0
      %v1316 = vadd.f32 0.0, %v1315
      %1317 = vmatprep.mubr.bf16.mxu0 0
      %1318 = vmatmul.mubr.bf16.gmra.mrb[0].mxu0 %v831
      %v1319 = vpop.f32.mrb[0].mxu0
      %v1320 = vadd.f32 0.0, %v1319
      %v1321 = vpop.f32.mrb[0].mxu0
      %v1322 = vadd.f32 0.0, %v1321
      %v1323 = vpop.f32.mrb[0].mxu0
      %v1324 = vadd.f32 0.0, %v1323
      %v1325 = vpop.f32.mrb[0].mxu0
      %v1326 = vadd.f32 0.0, %v1325
      %1327 = vmatprep.mubr.bf16.mxu0 0
      %1328 = vmatmul.mubr.bf16.gmra.mrb[0].mxu0 %v834
      %v1329 = vpop.f32.mrb[0].mxu0
      %v1330 = vadd.f32 0.0, %v1329
      %v1331 = vpop.f32.mrb[0].mxu0
      %v1332 = vadd.f32 0.0, %v1331
      %v1333 = vpop.f32.mrb[0].mxu0
      %v1334 = vadd.f32 0.0, %v1333
      %v1335 = vpop.f32.mrb[0].mxu0
      %v1336 = vadd.f32 0.0, %v1335
      %1337 = vmatprep.mubr.bf16.mxu0 0
      %1338 = vmatmul.mubr.bf16.gmra.mrb[0].mxu0 %v837
      %v1339 = vpop.f32.mrb[0].mxu0
      %v1340 = vadd.f32 0.0, %v1339
      %v1341 = vpop.f32.mrb[0].mxu0
      %v1342 = vadd.f32 0.0, %v1341
      %v1343 = vpop.f32.mrb[0].mxu0
      %v1344 = vadd.f32 0.0, %v1343
      %v1345 = vpop.f32.mrb[0].mxu0
      %v1346 = vadd.f32 0.0, %v1345
      %1347 = vmatprep.mubr.bf16.mxu0 0
      %1348 = vmatmul.mubr.bf16.gmra.mrb[0].mxu0 %v840
      %v1349 = vpop.f32.mrb[0].mxu0
      %v1350 = vadd.f32 0.0, %v1349
      %v1351 = vpop.f32.mrb[0].mxu0
      %v1352 = vadd.f32 0.0, %v1351
      %v1353 = vpop.f32.mrb[0].mxu0
      %v1354 = vadd.f32 0.0, %v1353
      %v1355 = vpop.f32.mrb[0].mxu0
      %v1356 = vadd.f32 0.0, %v1355
      %1357 = vmatprep.mubr.bf16.mxu0 0
      %1358 = vmatmul.mubr.bf16.gmra.mrb[0].mxu0 %v843
      %v1359 = vpop.f32.mrb[0].mxu0
      %v1360 = vadd.f32 0.0, %v1359
      %v1361 = vpop.f32.mrb[0].mxu0
      %v1362 = vadd.f32 0.0, %v1361
      %v1363 = vpop.f32.mrb[0].mxu0
      %v1364 = vadd.f32 0.0, %v1363
      %v1365 = vpop.f32.mrb[0].mxu0
      %v1366 = vadd.f32 0.0, %v1365
      %1367 = vmatprep.mubr.bf16.mxu0 0
      %1368 = vmatmul.mubr.bf16.gmra.mrb[0].mxu0 %v846
      %v1369 = vpop.f32.mrb[0].mxu0
      %v1370 = vadd.f32 0.0, %v1369
      %v1371 = vpop.f32.mrb[0].mxu0
      %v1372 = vadd.f32 0.0, %v1371
      %v1373 = vpop.f32.mrb[0].mxu0
      %v1374 = vadd.f32 0.0, %v1373
      %v1375 = vpop.f32.mrb[0].mxu0
      %v1376 = vadd.f32 0.0, %v1375
      %1377 = vmatprep.mubr.bf16.mxu0 0
      %1378 = vmatmul.mubr.bf16.gmra.mrb[0].mxu0 %v849
      %v1379 = vpop.f32.mrb[0].mxu0
      %v1380 = vadd.f32 0.0, %v1379
      %v1381 = vpop.f32.mrb[0].mxu0
      %v1382 = vadd.f32 0.0, %v1381
      %v1383 = vpop.f32.mrb[0].mxu0
      %v1384 = vadd.f32 0.0, %v1383
      %v1385 = vpop.f32.mrb[0].mxu0
      %v1386 = vadd.f32 0.0, %v1385
      %1387 = vmatprep.mubr.bf16.mxu0 0
      %1388 = vmatmul.mubr.bf16.gmra.mrb[0].mxu0 %v852
      %v1389 = vpop.f32.mrb[0].mxu0
      %v1390 = vadd.f32 0.0, %v1389
      %v1391 = vpop.f32.mrb[0].mxu0
      %v1392 = vadd.f32 0.0, %v1391
      %v1393 = vpop.f32.mrb[0].mxu0
      %v1394 = vadd.f32 0.0, %v1393
      %v1395 = vpop.f32.mrb[0].mxu0
      %v1396 = vadd.f32 0.0, %v1395
      %1397 = vmatprep.mubr.bf16.mxu0 0
      %1398 = vmatmul.mubr.bf16.gmra.mrb[0].mxu0 %v855
      %v1399 = vpop.f32.mrb[0].mxu0
      %v1400 = vadd.f32 0.0, %v1399
      %v1401 = vpop.f32.mrb[0].mxu0
      %v1402 = vadd.f32 0.0, %v1401
      %v1403 = vpop.f32.mrb[0].mxu0
      %v1404 = vadd.f32 0.0, %v1403
      %v1405 = vpop.f32.mrb[0].mxu0
      %v1406 = vadd.f32 0.0, %v1405
      %1407 = vmatprep.mubr.bf16.mxu0 0
      %1408 = vmatmul.mubr.bf16.gmra.mrb[0].mxu0 %v858
      %v1409 = vpop.f32.mrb[0].mxu0
      %v1410 = vadd.f32 0.0, %v1409
      %v1411 = vpop.f32.mrb[0].mxu0
      %v1412 = vadd.f32 0.0, %v1411
      %v1413 = vpop.f32.mrb[0].mxu0
      %v1414 = vadd.f32 0.0, %v1413
      %v1415 = vpop.f32.mrb[0].mxu0
      %v1416 = vadd.f32 0.0, %v1415
      %1417 = vmatprep.mubr.bf16.mxu0 0
      %1418 = vmatmul.mubr.bf16.gmra.mrb[0].mxu0 %v861
      %v1419 = vpop.f32.mrb[0].mxu0
      %v1420 = vadd.f32 0.0, %v1419
      %v1421 = vpop.f32.mrb[0].mxu0
      %v1422 = vadd.f32 0.0, %v1421
      %v1423 = vpop.f32.mrb[0].mxu0
      %v1424 = vadd.f32 0.0, %v1423
      %v1425 = vpop.f32.mrb[0].mxu0
      %v1426 = vadd.f32 0.0, %v1425
      %1427 = vmatprep.mubr.bf16.mxu0 0
      %1428 = vmatmul.mubr.bf16.gmra.mrb[0].mxu0 %v864
      %v1429 = vpop.f32.mrb[0].mxu0
      %v1430 = vadd.f32 0.0, %v1429
      %v1431 = vpop.f32.mrb[0].mxu0
      %v1432 = vadd.f32 0.0, %v1431
      %v1433 = vpop.f32.mrb[0].mxu0
      %v1434 = vadd.f32 0.0, %v1433
      %v1435 = vpop.f32.mrb[0].mxu0
      %v1436 = vadd.f32 0.0, %v1435
      %1437 = vmatprep.mubr.bf16.mxu0 0
      %1438 = vmatmul.mubr.bf16.gmra.mrb[0].mxu0 %v867
      %v1439 = vpop.f32.mrb[0].mxu0
      %v1440 = vadd.f32 0.0, %v1439
      %v1441 = vpop.f32.mrb[0].mxu0
      %v1442 = vadd.f32 0.0, %v1441
      %v1443 = vpop.f32.mrb[0].mxu0
      %v1444 = vadd.f32 0.0, %v1443
      %v1445 = vpop.f32.mrb[0].mxu0
      %v1446 = vadd.f32 0.0, %v1445
      %1447 = vmatprep.mubr.bf16.mxu0 0
      %1448 = vmatmul.mubr.bf16.gmra.mrb[0].mxu0 %v870
      %v1449 = vpop.f32.mrb[0].mxu0
      %v1450 = vadd.f32 0.0, %v1449
      %v1451 = vpop.f32.mrb[0].mxu0
      %v1452 = vadd.f32 0.0, %v1451
      %v1453 = vpop.f32.mrb[0].mxu0
      %v1454 = vadd.f32 0.0, %v1453
      %v1455 = vpop.f32.mrb[0].mxu0
      %v1456 = vadd.f32 0.0, %v1455
      %1457 = vdwg.mxu0
      %1458 = vmatprep.subr.bf16.mxu0 %v660
      %1459 = vmatpush1.bf16.msra.mxu0 %v659
      %1460 = vmatprep.subr.bf16.mxu0 %v664
      %1461 = vmatpush1.bf16.msra.mxu0 %v663
      %1462 = vmatprep.subr.bf16.mxu0 %v668
      %1463 = vmatpush1.bf16.msra.mxu0 %v667
      %1464 = vmatprep.subr.bf16.mxu0 %v672
      %1465 = vmatpush1.bf16.msra.mxu0 %v671
      %1466 = vmatprep.subr.bf16.mxu0 %v676
      %1467 = vmatpush1.bf16.msra.mxu0 %v675
      %1468 = vmatprep.subr.bf16.mxu0 %v680
      %1469 = vmatpush1.bf16.msra.mxu0 %v679
      %1470 = vmatprep.subr.bf16.mxu0 %v883
      %1471 = vmatpush1.bf16.msra.mxu0 %v880
      %1472 = vmatprep.subr.bf16.mxu0 0
      %1473 = vmatpush1.bf16.msra.mxu0 0
      %1474 = vmatprep.subr.bf16.mxu0 0
      %1475 = vmatpush1.bf16.msra.mxu0 0
      %1476 = vmatprep.subr.bf16.mxu0 0
      %1477 = vmatpush1.bf16.msra.mxu0 0
      %1478 = vmatprep.subr.bf16.mxu0 0
      %1479 = vmatpush1.bf16.msra.mxu0 0
      %1480 = vmatprep.subr.bf16.mxu0 0
      %1481 = vmatpush1.bf16.msra.mxu0 0
      %1482 = vmatprep.subr.bf16.mxu0 0
      %1483 = vmatpush1.bf16.msra.mxu0 0
      %1484 = vmatprep.subr.bf16.mxu0 0
      %1485 = vmatpush1.bf16.msra.mxu0 0
      %1486 = vmatprep.subr.bf16.mxu0 0
      %1487 = vmatpush1.bf16.msra.mxu0 0
      %1488 = vmatprep.subr.bf16.mxu0 0
      %1489 = vmatpush1.bf16.msra.mxu0 0
      %1490 = vmatprep.mubr.bf16.mxu0 0
      %1491 = vmatmul.mubr.bf16.gmra.mrb[0].mxu0 %v711
      %v1492 = vpop.f32.mrb[0].mxu0
      %v1493 = vadd.f32 0.0, %v1492
      %v1494 = vpop.f32.mrb[0].mxu0
      %v1495 = vadd.f32 0.0, %v1494
      %v1496 = vpop.f32.mrb[0].mxu0
      %v1497 = vadd.f32 0.0, %v1496
      %v1498 = vpop.f32.mrb[0].mxu0
      %v1499 = vadd.f32 0.0, %v1498
      %1500 = vmatprep.mubr.bf16.mxu0 0
      %1501 = vmatmul.mubr.bf16.gmra.mrb[0].mxu0 %v714
      %v1502 = vpop.f32.mrb[0].mxu0
      %v1503 = vadd.f32 0.0, %v1502
      %v1504 = vpop.f32.mrb[0].mxu0
      %v1505 = vadd.f32 0.0, %v1504
      %v1506 = vpop.f32.mrb[0].mxu0
      %v1507 = vadd.f32 0.0, %v1506
      %v1508 = vpop.f32.mrb[0].mxu0
      %v1509 = vadd.f32 0.0, %v1508
      %1510 = vmatprep.mubr.bf16.mxu0 0
      %1511 = vmatmul.mubr.bf16.gmra.mrb[0].mxu0 %v717
      %v1512 = vpop.f32.mrb[0].mxu0
      %v1513 = vadd.f32 0.0, %v1512
      %v1514 = vpop.f32.mrb[0].mxu0
      %v1515 = vadd.f32 0.0, %v1514
      %v1516 = vpop.f32.mrb[0].mxu0
      %v1517 = vadd.f32 0.0, %v1516
      %v1518 = vpop.f32.mrb[0].mxu0
      %v1519 = vadd.f32 0.0, %v1518
      %1520 = vmatprep.mubr.bf16.mxu0 0
      %1521 = vmatmul.mubr.bf16.gmra.mrb[0].mxu0 %v720
      %v1522 = vpop.f32.mrb[0].mxu0
      %v1523 = vadd.f32 0.0, %v1522
      %v1524 = vpop.f32.mrb[0].mxu0
      %v1525 = vadd.f32 0.0, %v1524
      %v1526 = vpop.f32.mrb[0].mxu0
      %v1527 = vadd.f32 0.0, %v1526
      %v1528 = vpop.f32.mrb[0].mxu0
      %v1529 = vadd.f32 0.0, %v1528
      %1530 = vmatprep.mubr.bf16.mxu0 0
      %1531 = vmatmul.mubr.bf16.gmra.mrb[0].mxu0 %v723
      %v1532 = vpop.f32.mrb[0].mxu0
      %v1533 = vadd.f32 0.0, %v1532
      %v1534 = vpop.f32.mrb[0].mxu0
      %v1535 = vadd.f32 0.0, %v1534
      %v1536 = vpop.f32.mrb[0].mxu0
      %v1537 = vadd.f32 0.0, %v1536
      %v1538 = vpop.f32.mrb[0].mxu0
      %v1539 = vadd.f32 0.0, %v1538
      %1540 = vmatprep.mubr.bf16.mxu0 0
      %1541 = vmatmul.mubr.bf16.gmra.mrb[0].mxu0 %v726
      %v1542 = vpop.f32.mrb[0].mxu0
      %v1543 = vadd.f32 0.0, %v1542
      %v1544 = vpop.f32.mrb[0].mxu0
      %v1545 = vadd.f32 0.0, %v1544
      %v1546 = vpop.f32.mrb[0].mxu0
      %v1547 = vadd.f32 0.0, %v1546
      %v1548 = vpop.f32.mrb[0].mxu0
      %v1549 = vadd.f32 0.0, %v1548
      %1550 = vmatprep.mubr.bf16.mxu0 0
      %1551 = vmatmul.mubr.bf16.gmra.mrb[0].mxu0 %v729
      %v1552 = vpop.f32.mrb[0].mxu0
      %v1553 = vadd.f32 0.0, %v1552
      %v1554 = vpop.f32.mrb[0].mxu0
      %v1555 = vadd.f32 0.0, %v1554
      %v1556 = vpop.f32.mrb[0].mxu0
      %v1557 = vadd.f32 0.0, %v1556
      %v1558 = vpop.f32.mrb[0].mxu0
      %v1559 = vadd.f32 0.0, %v1558
      %1560 = vmatprep.mubr.bf16.mxu0 0
      %1561 = vmatmul.mubr.bf16.gmra.mrb[0].mxu0 %v732
      %v1562 = vpop.f32.mrb[0].mxu0
      %v1563 = vadd.f32 0.0, %v1562
      %v1564 = vpop.f32.mrb[0].mxu0
      %v1565 = vadd.f32 0.0, %v1564
      %v1566 = vpop.f32.mrb[0].mxu0
      %v1567 = vadd.f32 0.0, %v1566
      %v1568 = vpop.f32.mrb[0].mxu0
      %v1569 = vadd.f32 0.0, %v1568
      %1570 = vmatprep.mubr.bf16.mxu0 0
      %1571 = vmatmul.mubr.bf16.gmra.mrb[0].mxu0 %v735
      %v1572 = vpop.f32.mrb[0].mxu0
      %v1573 = vadd.f32 0.0, %v1572
      %v1574 = vpop.f32.mrb[0].mxu0
      %v1575 = vadd.f32 0.0, %v1574
      %v1576 = vpop.f32.mrb[0].mxu0
      %v1577 = vadd.f32 0.0, %v1576
      %v1578 = vpop.f32.mrb[0].mxu0
      %v1579 = vadd.f32 0.0, %v1578
      %1580 = vmatprep.mubr.bf16.mxu0 0
      %1581 = vmatmul.mubr.bf16.gmra.mrb[0].mxu0 %v738
      %v1582 = vpop.f32.mrb[0].mxu0
      %v1583 = vadd.f32 0.0, %v1582
      %v1584 = vpop.f32.mrb[0].mxu0
      %v1585 = vadd.f32 0.0, %v1584
      %v1586 = vpop.f32.mrb[0].mxu0
      %v1587 = vadd.f32 0.0, %v1586
      %v1588 = vpop.f32.mrb[0].mxu0
      %v1589 = vadd.f32 0.0, %v1588
      %1590 = vmatprep.mubr.bf16.mxu0 0
      %1591 = vmatmul.mubr.bf16.gmra.mrb[0].mxu0 %v741
      %v1592 = vpop.f32.mrb[0].mxu0
      %v1593 = vadd.f32 0.0, %v1592
      %v1594 = vpop.f32.mrb[0].mxu0
      %v1595 = vadd.f32 0.0, %v1594
      %v1596 = vpop.f32.mrb[0].mxu0
      %v1597 = vadd.f32 0.0, %v1596
      %v1598 = vpop.f32.mrb[0].mxu0
      %v1599 = vadd.f32 0.0, %v1598
      %1600 = vmatprep.mubr.bf16.mxu0 0
      %1601 = vmatmul.mubr.bf16.gmra.mrb[0].mxu0 %v744
      %v1602 = vpop.f32.mrb[0].mxu0
      %v1603 = vadd.f32 0.0, %v1602
      %v1604 = vpop.f32.mrb[0].mxu0
      %v1605 = vadd.f32 0.0, %v1604
      %v1606 = vpop.f32.mrb[0].mxu0
      %v1607 = vadd.f32 0.0, %v1606
      %v1608 = vpop.f32.mrb[0].mxu0
      %v1609 = vadd.f32 0.0, %v1608
      %1610 = vmatprep.mubr.bf16.mxu0 0
      %1611 = vmatmul.mubr.bf16.gmra.mrb[0].mxu0 %v747
      %v1612 = vpop.f32.mrb[0].mxu0
      %v1613 = vadd.f32 0.0, %v1612
      %v1614 = vpop.f32.mrb[0].mxu0
      %v1615 = vadd.f32 0.0, %v1614
      %v1616 = vpop.f32.mrb[0].mxu0
      %v1617 = vadd.f32 0.0, %v1616
      %v1618 = vpop.f32.mrb[0].mxu0
      %v1619 = vadd.f32 0.0, %v1618
      %1620 = vmatprep.mubr.bf16.mxu0 0
      %1621 = vmatmul.mubr.bf16.gmra.mrb[0].mxu0 %v750
      %v1622 = vpop.f32.mrb[0].mxu0
      %v1623 = vadd.f32 0.0, %v1622
      %v1624 = vpop.f32.mrb[0].mxu0
      %v1625 = vadd.f32 0.0, %v1624
      %v1626 = vpop.f32.mrb[0].mxu0
      %v1627 = vadd.f32 0.0, %v1626
      %v1628 = vpop.f32.mrb[0].mxu0
      %v1629 = vadd.f32 0.0, %v1628
      %1630 = vmatprep.mubr.bf16.mxu0 0
      %1631 = vmatmul.mubr.bf16.gmra.mrb[0].mxu0 %v753
      %v1632 = vpop.f32.mrb[0].mxu0
      %v1633 = vadd.f32 0.0, %v1632
      %v1634 = vpop.f32.mrb[0].mxu0
      %v1635 = vadd.f32 0.0, %v1634
      %v1636 = vpop.f32.mrb[0].mxu0
      %v1637 = vadd.f32 0.0, %v1636
      %v1638 = vpop.f32.mrb[0].mxu0
      %v1639 = vadd.f32 0.0, %v1638
      %1640 = vmatprep.mubr.bf16.mxu0 0
      %1641 = vmatmul.mubr.bf16.gmra.mrb[0].mxu0 %v756
      %v1642 = vpop.f32.mrb[0].mxu0
      %v1643 = vadd.f32 0.0, %v1642
      %v1644 = vpop.f32.mrb[0].mxu0
      %v1645 = vadd.f32 0.0, %v1644
      %v1646 = vpop.f32.mrb[0].mxu0
      %v1647 = vadd.f32 0.0, %v1646
      %v1648 = vpop.f32.mrb[0].mxu0
      %v1649 = vadd.f32 0.0, %v1648
      %1650 = vmatprep.mubr.bf16.mxu0 0
      %1651 = vmatmul.mubr.bf16.gmra.mrb[0].mxu0 %v759
      %v1652 = vpop.f32.mrb[0].mxu0
      %v1653 = vadd.f32 0.0, %v1652
      %v1654 = vpop.f32.mrb[0].mxu0
      %v1655 = vadd.f32 0.0, %v1654
      %v1656 = vpop.f32.mrb[0].mxu0
      %v1657 = vadd.f32 0.0, %v1656
      %v1658 = vpop.f32.mrb[0].mxu0
      %v1659 = vadd.f32 0.0, %v1658
      %1660 = vmatprep.mubr.bf16.mxu0 0
      %1661 = vmatmul.mubr.bf16.gmra.mrb[0].mxu0 %v762
      %v1662 = vpop.f32.mrb[0].mxu0
      %v1663 = vadd.f32 0.0, %v1662
      %v1664 = vpop.f32.mrb[0].mxu0
      %v1665 = vadd.f32 0.0, %v1664
      %v1666 = vpop.f32.mrb[0].mxu0
      %v1667 = vadd.f32 0.0, %v1666
      %v1668 = vpop.f32.mrb[0].mxu0
      %v1669 = vadd.f32 0.0, %v1668
      %1670 = vmatprep.mubr.bf16.mxu0 0
      %1671 = vmatmul.mubr.bf16.gmra.mrb[0].mxu0 %v765
      %v1672 = vpop.f32.mrb[0].mxu0
      %v1673 = vadd.f32 0.0, %v1672
      %v1674 = vpop.f32.mrb[0].mxu0
      %v1675 = vadd.f32 0.0, %v1674
      %v1676 = vpop.f32.mrb[0].mxu0
      %v1677 = vadd.f32 0.0, %v1676
      %v1678 = vpop.f32.mrb[0].mxu0
      %v1679 = vadd.f32 0.0, %v1678
      %1680 = vmatprep.mubr.bf16.mxu0 0
      %1681 = vmatmul.mubr.bf16.gmra.mrb[0].mxu0 %v768
      %v1682 = vpop.f32.mrb[0].mxu0
      %v1683 = vadd.f32 0.0, %v1682
      %v1684 = vpop.f32.mrb[0].mxu0
      %v1685 = vadd.f32 0.0, %v1684
      %v1686 = vpop.f32.mrb[0].mxu0
      %v1687 = vadd.f32 0.0, %v1686
      %v1688 = vpop.f32.mrb[0].mxu0
      %v1689 = vadd.f32 0.0, %v1688
      %1690 = vmatprep.mubr.bf16.mxu0 0
      %1691 = vmatmul.mubr.bf16.gmra.mrb[0].mxu0 %v771
      %v1692 = vpop.f32.mrb[0].mxu0
      %v1693 = vadd.f32 0.0, %v1692
      %v1694 = vpop.f32.mrb[0].mxu0
      %v1695 = vadd.f32 0.0, %v1694
      %v1696 = vpop.f32.mrb[0].mxu0
      %v1697 = vadd.f32 0.0, %v1696
      %v1698 = vpop.f32.mrb[0].mxu0
      %v1699 = vadd.f32 0.0, %v1698
      %1700 = vmatprep.mubr.bf16.mxu0 0
      %1701 = vmatmul.mubr.bf16.gmra.mrb[0].mxu0 %v774
      %v1702 = vpop.f32.mrb[0].mxu0
      %v1703 = vadd.f32 0.0, %v1702
      %v1704 = vpop.f32.mrb[0].mxu0
      %v1705 = vadd.f32 0.0, %v1704
      %v1706 = vpop.f32.mrb[0].mxu0
      %v1707 = vadd.f32 0.0, %v1706
      %v1708 = vpop.f32.mrb[0].mxu0
      %v1709 = vadd.f32 0.0, %v1708
      %1710 = vmatprep.mubr.bf16.mxu0 0
      %1711 = vmatmul.mubr.bf16.gmra.mrb[0].mxu0 %v777
      %v1712 = vpop.f32.mrb[0].mxu0
      %v1713 = vadd.f32 0.0, %v1712
      %v1714 = vpop.f32.mrb[0].mxu0
      %v1715 = vadd.f32 0.0, %v1714
      %v1716 = vpop.f32.mrb[0].mxu0
      %v1717 = vadd.f32 0.0, %v1716
      %v1718 = vpop.f32.mrb[0].mxu0
      %v1719 = vadd.f32 0.0, %v1718
      %1720 = vmatprep.mubr.bf16.mxu0 0
      %1721 = vmatmul.mubr.bf16.gmra.mrb[0].mxu0 %v780
      %v1722 = vpop.f32.mrb[0].mxu0
      %v1723 = vadd.f32 0.0, %v1722
      %v1724 = vpop.f32.mrb[0].mxu0
      %v1725 = vadd.f32 0.0, %v1724
      %v1726 = vpop.f32.mrb[0].mxu0
      %v1727 = vadd.f32 0.0, %v1726
      %v1728 = vpop.f32.mrb[0].mxu0
      %v1729 = vadd.f32 0.0, %v1728
      %1730 = vmatprep.mubr.bf16.mxu0 0
      %1731 = vmatmul.mubr.bf16.gmra.mrb[0].mxu0 %v783
      %v1732 = vpop.f32.mrb[0].mxu0
      %v1733 = vadd.f32 0.0, %v1732
      %v1734 = vpop.f32.mrb[0].mxu0
      %v1735 = vadd.f32 0.0, %v1734
      %v1736 = vpop.f32.mrb[0].mxu0
      %v1737 = vadd.f32 0.0, %v1736
      %v1738 = vpop.f32.mrb[0].mxu0
      %v1739 = vadd.f32 0.0, %v1738
      %1740 = vmatprep.mubr.bf16.mxu0 0
      %1741 = vmatmul.mubr.bf16.gmra.mrb[0].mxu0 %v786
      %v1742 = vpop.f32.mrb[0].mxu0
      %v1743 = vadd.f32 0.0, %v1742
      %v1744 = vpop.f32.mrb[0].mxu0
      %v1745 = vadd.f32 0.0, %v1744
      %v1746 = vpop.f32.mrb[0].mxu0
      %v1747 = vadd.f32 0.0, %v1746
      %v1748 = vpop.f32.mrb[0].mxu0
      %v1749 = vadd.f32 0.0, %v1748
      %1750 = vmatprep.mubr.bf16.mxu0 0
      %1751 = vmatmul.mubr.bf16.gmra.mrb[0].mxu0 %v789
      %v1752 = vpop.f32.mrb[0].mxu0
      %v1753 = vadd.f32 0.0, %v1752
      %v1754 = vpop.f32.mrb[0].mxu0
      %v1755 = vadd.f32 0.0, %v1754
      %v1756 = vpop.f32.mrb[0].mxu0
      %v1757 = vadd.f32 0.0, %v1756
      %v1758 = vpop.f32.mrb[0].mxu0
      %v1759 = vadd.f32 0.0, %v1758
      %1760 = vmatprep.mubr.bf16.mxu0 0
      %1761 = vmatmul.mubr.bf16.gmra.mrb[0].mxu0 %v792
      %v1762 = vpop.f32.mrb[0].mxu0
      %v1763 = vadd.f32 0.0, %v1762
      %v1764 = vpop.f32.mrb[0].mxu0
      %v1765 = vadd.f32 0.0, %v1764
      %v1766 = vpop.f32.mrb[0].mxu0
      %v1767 = vadd.f32 0.0, %v1766
      %v1768 = vpop.f32.mrb[0].mxu0
      %v1769 = vadd.f32 0.0, %v1768
      %1770 = vmatprep.mubr.bf16.mxu0 0
      %1771 = vmatmul.mubr.bf16.gmra.mrb[0].mxu0 %v795
      %v1772 = vpop.f32.mrb[0].mxu0
      %v1773 = vadd.f32 0.0, %v1772
      %v1774 = vpop.f32.mrb[0].mxu0
      %v1775 = vadd.f32 0.0, %v1774
      %v1776 = vpop.f32.mrb[0].mxu0
      %v1777 = vadd.f32 0.0, %v1776
      %v1778 = vpop.f32.mrb[0].mxu0
      %v1779 = vadd.f32 0.0, %v1778
      %1780 = vmatprep.mubr.bf16.mxu0 0
      %1781 = vmatmul.mubr.bf16.gmra.mrb[0].mxu0 %v798
      %v1782 = vpop.f32.mrb[0].mxu0
      %v1783 = vadd.f32 0.0, %v1782
      %v1784 = vpop.f32.mrb[0].mxu0
      %v1785 = vadd.f32 0.0, %v1784
      %v1786 = vpop.f32.mrb[0].mxu0
      %v1787 = vadd.f32 0.0, %v1786
      %v1788 = vpop.f32.mrb[0].mxu0
      %v1789 = vadd.f32 0.0, %v1788
      %1790 = vmatprep.mubr.bf16.mxu0 0
      %1791 = vmatmul.mubr.bf16.gmra.mrb[0].mxu0 %v801
      %v1792 = vpop.f32.mrb[0].mxu0
      %v1793 = vadd.f32 0.0, %v1792
      %v1794 = vpop.f32.mrb[0].mxu0
      %v1795 = vadd.f32 0.0, %v1794
      %v1796 = vpop.f32.mrb[0].mxu0
      %v1797 = vadd.f32 0.0, %v1796
      %v1798 = vpop.f32.mrb[0].mxu0
      %v1799 = vadd.f32 0.0, %v1798
      %1800 = vmatprep.mubr.bf16.mxu0 0
      %1801 = vmatmul.mubr.bf16.gmra.mrb[0].mxu0 %v804
      %v1802 = vpop.f32.mrb[0].mxu0
      %v1803 = vadd.f32 0.0, %v1802
      %v1804 = vpop.f32.mrb[0].mxu0
      %v1805 = vadd.f32 0.0, %v1804
      %v1806 = vpop.f32.mrb[0].mxu0
      %v1807 = vadd.f32 0.0, %v1806
      %v1808 = vpop.f32.mrb[0].mxu0
      %v1809 = vadd.f32 0.0, %v1808
      %1810 = vmatprep.mubr.bf16.mxu0 0
      %1811 = vmatmul.mubr.bf16.gmra.mrb[0].mxu0 %v807
      %v1812 = vpop.f32.mrb[0].mxu0
      %v1813 = vadd.f32 0.0, %v1812
      %v1814 = vpop.f32.mrb[0].mxu0
      %v1815 = vadd.f32 0.0, %v1814
      %v1816 = vpop.f32.mrb[0].mxu0
      %v1817 = vadd.f32 0.0, %v1816
      %v1818 = vpop.f32.mrb[0].mxu0
      %v1819 = vadd.f32 0.0, %v1818
      %1820 = vmatprep.mubr.bf16.mxu0 0
      %1821 = vmatmul.mubr.bf16.gmra.mrb[0].mxu0 %v810
      %v1822 = vpop.f32.mrb[0].mxu0
      %v1823 = vadd.f32 0.0, %v1822
      %v1824 = vpop.f32.mrb[0].mxu0
      %v1825 = vadd.f32 0.0, %v1824
      %v1826 = vpop.f32.mrb[0].mxu0
      %v1827 = vadd.f32 0.0, %v1826
      %v1828 = vpop.f32.mrb[0].mxu0
      %v1829 = vadd.f32 0.0, %v1828
      %1830 = vmatprep.mubr.bf16.mxu0 0
      %1831 = vmatmul.mubr.bf16.gmra.mrb[0].mxu0 %v813
      %v1832 = vpop.f32.mrb[0].mxu0
      %v1833 = vadd.f32 0.0, %v1832
      %v1834 = vpop.f32.mrb[0].mxu0
      %v1835 = vadd.f32 0.0, %v1834
      %v1836 = vpop.f32.mrb[0].mxu0
      %v1837 = vadd.f32 0.0, %v1836
      %v1838 = vpop.f32.mrb[0].mxu0
      %v1839 = vadd.f32 0.0, %v1838
      %1840 = vmatprep.mubr.bf16.mxu0 0
      %1841 = vmatmul.mubr.bf16.gmra.mrb[0].mxu0 %v816
      %v1842 = vpop.f32.mrb[0].mxu0
      %v1843 = vadd.f32 0.0, %v1842
      %v1844 = vpop.f32.mrb[0].mxu0
      %v1845 = vadd.f32 0.0, %v1844
      %v1846 = vpop.f32.mrb[0].mxu0
      %v1847 = vadd.f32 0.0, %v1846
      %v1848 = vpop.f32.mrb[0].mxu0
      %v1849 = vadd.f32 0.0, %v1848
      %1850 = vmatprep.mubr.bf16.mxu0 0
      %1851 = vmatmul.mubr.bf16.gmra.mrb[0].mxu0 %v819
      %v1852 = vpop.f32.mrb[0].mxu0
      %v1853 = vadd.f32 0.0, %v1852
      %v1854 = vpop.f32.mrb[0].mxu0
      %v1855 = vadd.f32 0.0, %v1854
      %v1856 = vpop.f32.mrb[0].mxu0
      %v1857 = vadd.f32 0.0, %v1856
      %v1858 = vpop.f32.mrb[0].mxu0
      %v1859 = vadd.f32 0.0, %v1858
      %1860 = vmatprep.mubr.bf16.mxu0 0
      %1861 = vmatmul.mubr.bf16.gmra.mrb[0].mxu0 %v822
      %v1862 = vpop.f32.mrb[0].mxu0
      %v1863 = vadd.f32 0.0, %v1862
      %v1864 = vpop.f32.mrb[0].mxu0
      %v1865 = vadd.f32 0.0, %v1864
      %v1866 = vpop.f32.mrb[0].mxu0
      %v1867 = vadd.f32 0.0, %v1866
      %v1868 = vpop.f32.mrb[0].mxu0
      %v1869 = vadd.f32 0.0, %v1868
      %1870 = vmatprep.mubr.bf16.mxu0 0
      %1871 = vmatmul.mubr.bf16.gmra.mrb[0].mxu0 %v825
      %v1872 = vpop.f32.mrb[0].mxu0
      %v1873 = vadd.f32 0.0, %v1872
      %v1874 = vpop.f32.mrb[0].mxu0
      %v1875 = vadd.f32 0.0, %v1874
      %v1876 = vpop.f32.mrb[0].mxu0
      %v1877 = vadd.f32 0.0, %v1876
      %v1878 = vpop.f32.mrb[0].mxu0
      %v1879 = vadd.f32 0.0, %v1878
      %1880 = vmatprep.mubr.bf16.mxu0 0
      %1881 = vmatmul.mubr.bf16.gmra.mrb[0].mxu0 %v828
      %v1882 = vpop.f32.mrb[0].mxu0
      %v1883 = vadd.f32 0.0, %v1882
      %v1884 = vpop.f32.mrb[0].mxu0
      %v1885 = vadd.f32 0.0, %v1884
      %v1886 = vpop.f32.mrb[0].mxu0
      %v1887 = vadd.f32 0.0, %v1886
      %v1888 = vpop.f32.mrb[0].mxu0
      %v1889 = vadd.f32 0.0, %v1888
      %1890 = vmatprep.mubr.bf16.mxu0 0
      %1891 = vmatmul.mubr.bf16.gmra.mrb[0].mxu0 %v831
      %v1892 = vpop.f32.mrb[0].mxu0
      %v1893 = vadd.f32 0.0, %v1892
      %v1894 = vpop.f32.mrb[0].mxu0
      %v1895 = vadd.f32 0.0, %v1894
      %v1896 = vpop.f32.mrb[0].mxu0
      %v1897 = vadd.f32 0.0, %v1896
      %v1898 = vpop.f32.mrb[0].mxu0
      %v1899 = vadd.f32 0.0, %v1898
      %1900 = vmatprep.mubr.bf16.mxu0 0
      %1901 = vmatmul.mubr.bf16.gmra.mrb[0].mxu0 %v834
      %v1902 = vpop.f32.mrb[0].mxu0
      %v1903 = vadd.f32 0.0, %v1902
      %v1904 = vpop.f32.mrb[0].mxu0
      %v1905 = vadd.f32 0.0, %v1904
      %v1906 = vpop.f32.mrb[0].mxu0
      %v1907 = vadd.f32 0.0, %v1906
      %v1908 = vpop.f32.mrb[0].mxu0
      %v1909 = vadd.f32 0.0, %v1908
      %1910 = vmatprep.mubr.bf16.mxu0 0
      %1911 = vmatmul.mubr.bf16.gmra.mrb[0].mxu0 %v837
      %v1912 = vpop.f32.mrb[0].mxu0
      %v1913 = vadd.f32 0.0, %v1912
      %v1914 = vpop.f32.mrb[0].mxu0
      %v1915 = vadd.f32 0.0, %v1914
      %v1916 = vpop.f32.mrb[0].mxu0
      %v1917 = vadd.f32 0.0, %v1916
      %v1918 = vpop.f32.mrb[0].mxu0
      %v1919 = vadd.f32 0.0, %v1918
      %1920 = vmatprep.mubr.bf16.mxu0 0
      %1921 = vmatmul.mubr.bf16.gmra.mrb[0].mxu0 %v840
      %v1922 = vpop.f32.mrb[0].mxu0
      %v1923 = vadd.f32 0.0, %v1922
      %v1924 = vpop.f32.mrb[0].mxu0
      %v1925 = vadd.f32 0.0, %v1924
      %v1926 = vpop.f32.mrb[0].mxu0
      %v1927 = vadd.f32 0.0, %v1926
      %v1928 = vpop.f32.mrb[0].mxu0
      %v1929 = vadd.f32 0.0, %v1928
      %1930 = vmatprep.mubr.bf16.mxu0 0
      %1931 = vmatmul.mubr.bf16.gmra.mrb[0].mxu0 %v843
      %v1932 = vpop.f32.mrb[0].mxu0
      %v1933 = vadd.f32 0.0, %v1932
      %v1934 = vpop.f32.mrb[0].mxu0
      %v1935 = vadd.f32 0.0, %v1934
      %v1936 = vpop.f32.mrb[0].mxu0
      %v1937 = vadd.f32 0.0, %v1936
      %v1938 = vpop.f32.mrb[0].mxu0
      %v1939 = vadd.f32 0.0, %v1938
      %1940 = vmatprep.mubr.bf16.mxu0 0
      %1941 = vmatmul.mubr.bf16.gmra.mrb[0].mxu0 %v846
      %v1942 = vpop.f32.mrb[0].mxu0
      %v1943 = vadd.f32 0.0, %v1942
      %v1944 = vpop.f32.mrb[0].mxu0
      %v1945 = vadd.f32 0.0, %v1944
      %v1946 = vpop.f32.mrb[0].mxu0
      %v1947 = vadd.f32 0.0, %v1946
      %v1948 = vpop.f32.mrb[0].mxu0
      %v1949 = vadd.f32 0.0, %v1948
      %1950 = vmatprep.mubr.bf16.mxu0 0
      %1951 = vmatmul.mubr.bf16.gmra.mrb[0].mxu0 %v849
      %v1952 = vpop.f32.mrb[0].mxu0
      %v1953 = vadd.f32 0.0, %v1952
      %v1954 = vpop.f32.mrb[0].mxu0
      %v1955 = vadd.f32 0.0, %v1954
      %v1956 = vpop.f32.mrb[0].mxu0
      %v1957 = vadd.f32 0.0, %v1956
      %v1958 = vpop.f32.mrb[0].mxu0
      %v1959 = vadd.f32 0.0, %v1958
      %1960 = vmatprep.mubr.bf16.mxu0 0
      %1961 = vmatmul.mubr.bf16.gmra.mrb[0].mxu0 %v852
      %v1962 = vpop.f32.mrb[0].mxu0
      %v1963 = vadd.f32 0.0, %v1962
      %v1964 = vpop.f32.mrb[0].mxu0
      %v1965 = vadd.f32 0.0, %v1964
      %v1966 = vpop.f32.mrb[0].mxu0
      %v1967 = vadd.f32 0.0, %v1966
      %v1968 = vpop.f32.mrb[0].mxu0
      %v1969 = vadd.f32 0.0, %v1968
      %1970 = vmatprep.mubr.bf16.mxu0 0
      %1971 = vmatmul.mubr.bf16.gmra.mrb[0].mxu0 %v855
      %v1972 = vpop.f32.mrb[0].mxu0
      %v1973 = vadd.f32 0.0, %v1972
      %v1974 = vpop.f32.mrb[0].mxu0
      %v1975 = vadd.f32 0.0, %v1974
      %v1976 = vpop.f32.mrb[0].mxu0
      %v1977 = vadd.f32 0.0, %v1976
      %v1978 = vpop.f32.mrb[0].mxu0
      %v1979 = vadd.f32 0.0, %v1978
      %1980 = vmatprep.mubr.bf16.mxu0 0
      %1981 = vmatmul.mubr.bf16.gmra.mrb[0].mxu0 %v858
      %v1982 = vpop.f32.mrb[0].mxu0
      %v1983 = vadd.f32 0.0, %v1982
      %v1984 = vpop.f32.mrb[0].mxu0
      %v1985 = vadd.f32 0.0, %v1984
      %v1986 = vpop.f32.mrb[0].mxu0
      %v1987 = vadd.f32 0.0, %v1986
      %v1988 = vpop.f32.mrb[0].mxu0
      %v1989 = vadd.f32 0.0, %v1988
      %1990 = vmatprep.mubr.bf16.mxu0 0
      %1991 = vmatmul.mubr.bf16.gmra.mrb[0].mxu0 %v861
      %v1992 = vpop.f32.mrb[0].mxu0
      %v1993 = vadd.f32 0.0, %v1992
      %v1994 = vpop.f32.mrb[0].mxu0
      %v1995 = vadd.f32 0.0, %v1994
      %v1996 = vpop.f32.mrb[0].mxu0
      %v1997 = vadd.f32 0.0, %v1996
      %v1998 = vpop.f32.mrb[0].mxu0
      %v1999 = vadd.f32 0.0, %v1998
      %2000 = vmatprep.mubr.bf16.mxu0 0
      %2001 = vmatmul.mubr.bf16.gmra.mrb[0].mxu0 %v864
      %v2002 = vpop.f32.mrb[0].mxu0
      %v2003 = vadd.f32 0.0, %v2002
      %v2004 = vpop.f32.mrb[0].mxu0
      %v2005 = vadd.f32 0.0, %v2004
      %v2006 = vpop.f32.mrb[0].mxu0
      %v2007 = vadd.f32 0.0, %v2006
      %v2008 = vpop.f32.mrb[0].mxu0
      %v2009 = vadd.f32 0.0, %v2008
      %2010 = vmatprep.mubr.bf16.mxu0 0
      %2011 = vmatmul.mubr.bf16.gmra.mrb[0].mxu0 %v867
      %v2012 = vpop.f32.mrb[0].mxu0
      %v2013 = vadd.f32 0.0, %v2012
      %v2014 = vpop.f32.mrb[0].mxu0
      %v2015 = vadd.f32 0.0, %v2014
      %v2016 = vpop.f32.mrb[0].mxu0
      %v2017 = vadd.f32 0.0, %v2016
      %v2018 = vpop.f32.mrb[0].mxu0
      %v2019 = vadd.f32 0.0, %v2018
      %2020 = vmatprep.mubr.bf16.mxu0 0
      %2021 = vmatmul.mubr.bf16.gmra.mrb[0].mxu0 %v870
      %v2022 = vpop.f32.mrb[0].mxu0
      %v2023 = vadd.f32 0.0, %v2022
      %v2024 = vpop.f32.mrb[0].mxu0
      %v2025 = vadd.f32 0.0, %v2024
      %v2026 = vpop.f32.mrb[0].mxu0
      %v2027 = vadd.f32 0.0, %v2026
      %v2028 = vpop.f32.mrb[0].mxu0
      %v2029 = vadd.f32 0.0, %v2028
      %2030 = vdwg.mxu0
      %v2031 = vmax.f32 %v920, %v922
      %v2032 = vmax.f32 %v924, %v926
      %v2033 = vmax.f32 %v930, %v932
      %v2034 = vmax.f32 %v934, %v936
      %v2035 = vmax.f32 %v940, %v942
      %v2036 = vmax.f32 %v944, %v946
      %v2037 = vmax.f32 %v950, %v952
      %v2038 = vmax.f32 %v954, %v956
      %v2039 = vmax.f32 %v960, %v962
      %v2040 = vmax.f32 %v964, %v966
      %v2041 = vmax.f32 %v970, %v972
      %v2042 = vmax.f32 %v974, %v976
      %v2043 = vmax.f32 %v980, %v982
      %v2044 = vmax.f32 %v984, %v986
      %v2045 = vmax.f32 %v990, %v992
      %v2046 = vmax.f32 %v994, %v996
      %v2047 = vmax.f32 %v1000, %v1002
      %v2048 = vmax.f32 %v1004, %v1006
      %v2049 = vmax.f32 %v1010, %v1012
      %v2050 = vmax.f32 %v1014, %v1016
      %v2051 = vmax.f32 %v1020, %v1022
      %v2052 = vmax.f32 %v1024, %v1026
      %v2053 = vmax.f32 %v1030, %v1032
      %v2054 = vmax.f32 %v1034, %v1036
      %v2055 = vmax.f32 %v1040, %v1042
      %v2056 = vmax.f32 %v1044, %v1046
      %v2057 = vmax.f32 %v1050, %v1052
      %v2058 = vmax.f32 %v1054, %v1056
      %v2059 = vmax.f32 %v1060, %v1062
      %v2060 = vmax.f32 %v1064, %v1066
      %v2061 = vmax.f32 %v1070, %v1072
      %v2062 = vmax.f32 %v1074, %v1076
      %v2063 = vmax.f32 %v1080, %v1082
      %v2064 = vmax.f32 %v1084, %v1086
      %v2065 = vmax.f32 %v1090, %v1092
      %v2066 = vmax.f32 %v1094, %v1096
      %v2067 = vmax.f32 %v1100, %v1102
      %v2068 = vmax.f32 %v1104, %v1106
      %v2069 = vmax.f32 %v1110, %v1112
      %v2070 = vmax.f32 %v1114, %v1116
      %v2071 = vmax.f32 %v1120, %v1122
      %v2072 = vmax.f32 %v1124, %v1126
      %v2073 = vmax.f32 %v1130, %v1132
      %v2074 = vmax.f32 %v1134, %v1136
      %v2075 = vmax.f32 %v1140, %v1142
      %v2076 = vmax.f32 %v1144, %v1146
      %v2077 = vmax.f32 %v1150, %v1152
      %v2078 = vmax.f32 %v1154, %v1156
      %v2079 = vmax.f32 %v1160, %v1162
      %v2080 = vmax.f32 %v1164, %v1166
      %v2081 = vmax.f32 %v1170, %v1172
      %v2082 = vmax.f32 %v1174, %v1176
      %v2083 = vmax.f32 %v1180, %v1182
      %v2084 = vmax.f32 %v1184, %v1186
      %v2085 = vmax.f32 %v1190, %v1192
      %v2086 = vmax.f32 %v1194, %v1196
      %v2087 = vmax.f32 %v1200, %v1202
      %v2088 = vmax.f32 %v1204, %v1206
      %v2089 = vmax.f32 %v1210, %v1212
      %v2090 = vmax.f32 %v1214, %v1216
      %v2091 = vmax.f32 %v1220, %v1222
      %v2092 = vmax.f32 %v1224, %v1226
      %v2093 = vmax.f32 %v1230, %v1232
      %v2094 = vmax.f32 %v1234, %v1236
      %v2095 = vmax.f32 %v1240, %v1242
      %v2096 = vmax.f32 %v1244, %v1246
      %v2097 = vmax.f32 %v1250, %v1252
      %v2098 = vmax.f32 %v1254, %v1256
      %v2099 = vmax.f32 %v1260, %v1262
      %v2100 = vmax.f32 %v1264, %v1266
      %v2101 = vmax.f32 %v1270, %v1272
      %v2102 = vmax.f32 %v1274, %v1276
      %v2103 = vmax.f32 %v1280, %v1282
      %v2104 = vmax.f32 %v1284, %v1286
      %v2105 = vmax.f32 %v1290, %v1292
      %v2106 = vmax.f32 %v1294, %v1296
      %v2107 = vmax.f32 %v1300, %v1302
      %v2108 = vmax.f32 %v1304, %v1306
      %v2109 = vmax.f32 %v1310, %v1312
      %v2110 = vmax.f32 %v1314, %v1316
      %v2111 = vmax.f32 %v1320, %v1322
      %v2112 = vmax.f32 %v1324, %v1326
      %v2113 = vmax.f32 %v1330, %v1332
      %v2114 = vmax.f32 %v1334, %v1336
      %v2115 = vmax.f32 %v1340, %v1342
      %v2116 = vmax.f32 %v1344, %v1346
      %v2117 = vmax.f32 %v1350, %v1352
      %v2118 = vmax.f32 %v1354, %v1356
      %v2119 = vmax.f32 %v1360, %v1362
      %v2120 = vmax.f32 %v1364, %v1366
      %v2121 = vmax.f32 %v1370, %v1372
      %v2122 = vmax.f32 %v1374, %v1376
      %v2123 = vmax.f32 %v1380, %v1382
      %v2124 = vmax.f32 %v1384, %v1386
      %v2125 = vmax.f32 %v1390, %v1392
      %v2126 = vmax.f32 %v1394, %v1396
      %v2127 = vmax.f32 %v1400, %v1402
      %v2128 = vmax.f32 %v1404, %v1406
      %v2129 = vmax.f32 %v1410, %v1412
      %v2130 = vmax.f32 %v1414, %v1416
      %v2131 = vmax.f32 %v1420, %v1422
      %v2132 = vmax.f32 %v1424, %v1426
      %v2133 = vmax.f32 %v1430, %v1432
      %v2134 = vmax.f32 %v1434, %v1436
      %v2135 = vmax.f32 %v1440, %v1442
      %v2136 = vmax.f32 %v1444, %v1446
      %v2137 = vmax.f32 %v1450, %v1452
      %v2138 = vmax.f32 %v1454, %v1456
      %v2139 = vmax.f32 %v1493, %v1495
      %v2140 = vmax.f32 %v1497, %v1499
      %v2141 = vmax.f32 %v1503, %v1505
      %v2142 = vmax.f32 %v1507, %v1509
      %v2143 = vmax.f32 %v1513, %v1515
      %v2144 = vmax.f32 %v1517, %v1519
      %v2145 = vmax.f32 %v1523, %v1525
      %v2146 = vmax.f32 %v1527, %v1529
      %v2147 = vmax.f32 %v1533, %v1535
      %v2148 = vmax.f32 %v1537, %v1539
      %v2149 = vmax.f32 %v1543, %v1545
      %v2150 = vmax.f32 %v1547, %v1549
      %v2151 = vmax.f32 %v1553, %v1555
      %v2152 = vmax.f32 %v1557, %v1559
      %v2153 = vmax.f32 %v1563, %v1565
      %v2154 = vmax.f32 %v1567, %v1569
      %v2155 = vmax.f32 %v1573, %v1575
      %v2156 = vmax.f32 %v1577, %v1579
      %v2157 = vmax.f32 %v1583, %v1585
      %v2158 = vmax.f32 %v1587, %v1589
      %v2159 = vmax.f32 %v1593, %v1595
      %v2160 = vmax.f32 %v1597, %v1599
      %v2161 = vmax.f32 %v1603, %v1605
      %v2162 = vmax.f32 %v1607, %v1609
      %v2163 = vmax.f32 %v1613, %v1615
      %v2164 = vmax.f32 %v1617, %v1619
      %v2165 = vmax.f32 %v1623, %v1625
      %v2166 = vmax.f32 %v1627, %v1629
      %v2167 = vmax.f32 %v1633, %v1635
      %v2168 = vmax.f32 %v1637, %v1639
      %v2169 = vmax.f32 %v1643, %v1645
      %v2170 = vmax.f32 %v1647, %v1649
      %v2171 = vmax.f32 %v1653, %v1655
      %v2172 = vmax.f32 %v1657, %v1659
      %v2173 = vmax.f32 %v1663, %v1665
      %v2174 = vmax.f32 %v1667, %v1669
      %v2175 = vmax.f32 %v1673, %v1675
      %v2176 = vmax.f32 %v1677, %v1679
      %v2177 = vmax.f32 %v1683, %v1685
      %v2178 = vmax.f32 %v1687, %v1689
      %v2179 = vmax.f32 %v1693, %v1695
      %v2180 = vmax.f32 %v1697, %v1699
      %v2181 = vmax.f32 %v1703, %v1705
      %v2182 = vmax.f32 %v1707, %v1709
      %v2183 = vmax.f32 %v1713, %v1715
      %v2184 = vmax.f32 %v1717, %v1719
      %v2185 = vmax.f32 %v1723, %v1725
      %v2186 = vmax.f32 %v1727, %v1729
      %v2187 = vmax.f32 %v1733, %v1735
      %v2188 = vmax.f32 %v1737, %v1739
      %v2189 = vmax.f32 %v1743, %v1745
      %v2190 = vmax.f32 %v1747, %v1749
      %v2191 = vmax.f32 %v1753, %v1755
      %v2192 = vmax.f32 %v1757, %v1759
      %v2193 = vmax.f32 %v1763, %v1765
      %v2194 = vmax.f32 %v1767, %v1769
      %v2195 = vmax.f32 %v1773, %v1775
      %v2196 = vmax.f32 %v1777, %v1779
      %v2197 = vmax.f32 %v1783, %v1785
      %v2198 = vmax.f32 %v1787, %v1789
      %v2199 = vmax.f32 %v1793, %v1795
      %v2200 = vmax.f32 %v1797, %v1799
      %v2201 = vmax.f32 %v1803, %v1805
      %v2202 = vmax.f32 %v1807, %v1809
      %v2203 = vmax.f32 %v1813, %v1815
      %v2204 = vmax.f32 %v1817, %v1819
      %v2205 = vmax.f32 %v1823, %v1825
      %v2206 = vmax.f32 %v1827, %v1829
      %v2207 = vmax.f32 %v1833, %v1835
      %v2208 = vmax.f32 %v1837, %v1839
      %v2209 = vmax.f32 %v1843, %v1845
      %v2210 = vmax.f32 %v1847, %v1849
      %v2211 = vmax.f32 %v1853, %v1855
      %v2212 = vmax.f32 %v1857, %v1859
      %v2213 = vmax.f32 %v1863, %v1865
      %v2214 = vmax.f32 %v1867, %v1869
      %v2215 = vmax.f32 %v1873, %v1875
      %v2216 = vmax.f32 %v1877, %v1879
      %v2217 = vmax.f32 %v1883, %v1885
      %v2218 = vmax.f32 %v1887, %v1889
      %v2219 = vmax.f32 %v1893, %v1895
      %v2220 = vmax.f32 %v1897, %v1899
      %v2221 = vmax.f32 %v1903, %v1905
      %v2222 = vmax.f32 %v1907, %v1909
      %v2223 = vmax.f32 %v1913, %v1915
      %v2224 = vmax.f32 %v1917, %v1919
      %v2225 = vmax.f32 %v1923, %v1925
      %v2226 = vmax.f32 %v1927, %v1929
      %v2227 = vmax.f32 %v1933, %v1935
      %v2228 = vmax.f32 %v1937, %v1939
      %v2229 = vmax.f32 %v1943, %v1945
      %v2230 = vmax.f32 %v1947, %v1949
      %v2231 = vmax.f32 %v1953, %v1955
      %v2232 = vmax.f32 %v1957, %v1959
      %v2233 = vmax.f32 %v1963, %v1965
      %v2234 = vmax.f32 %v1967, %v1969
      %v2235 = vmax.f32 %v1973, %v1975
      %v2236 = vmax.f32 %v1977, %v1979
      %v2237 = vmax.f32 %v1983, %v1985
      %v2238 = vmax.f32 %v1987, %v1989
      %v2239 = vmax.f32 %v1993, %v1995
      %v2240 = vmax.f32 %v1997, %v1999
      %v2241 = vmax.f32 %v2003, %v2005
      %v2242 = vmax.f32 %v2007, %v2009
      %v2243 = vmax.f32 %v2013, %v2015
      %v2244 = vmax.f32 %v2017, %v2019
      %v2245 = vmax.f32 %v2023, %v2025
      %v2246 = vmax.f32 %v2027, %v2029
      %v2247 = vmax.f32 %v2031, %v2139
      %v2248 = vmax.f32 %v2032, %v2140
      %v2249 = vmax.f32 %v2033, %v2141
      %v2250 = vmax.f32 %v2034, %v2142
      %v2251 = vmax.f32 %v2035, %v2143
      %v2252 = vmax.f32 %v2036, %v2144
      %v2253 = vmax.f32 %v2037, %v2145
      %v2254 = vmax.f32 %v2038, %v2146
      %v2255 = vmax.f32 %v2039, %v2147
      %v2256 = vmax.f32 %v2040, %v2148
      %v2257 = vmax.f32 %v2041, %v2149
      %v2258 = vmax.f32 %v2042, %v2150
      %v2259 = vmax.f32 %v2043, %v2151
      %v2260 = vmax.f32 %v2044, %v2152
      %v2261 = vmax.f32 %v2045, %v2153
      %v2262 = vmax.f32 %v2046, %v2154
      %v2263 = vmax.f32 %v2047, %v2155
      %v2264 = vmax.f32 %v2048, %v2156
      %v2265 = vmax.f32 %v2049, %v2157
      %v2266 = vmax.f32 %v2050, %v2158
      %v2267 = vmax.f32 %v2051, %v2159
      %v2268 = vmax.f32 %v2052, %v2160
      %v2269 = vmax.f32 %v2053, %v2161
      %v2270 = vmax.f32 %v2054, %v2162
      %v2271 = vmax.f32 %v2055, %v2163
      %v2272 = vmax.f32 %v2056, %v2164
      %v2273 = vmax.f32 %v2057, %v2165
      %v2274 = vmax.f32 %v2058, %v2166
      %v2275 = vmax.f32 %v2059, %v2167
      %v2276 = vmax.f32 %v2060, %v2168
      %v2277 = vmax.f32 %v2061, %v2169
      %v2278 = vmax.f32 %v2062, %v2170
      %v2279 = vmax.f32 %v2063, %v2171
      %v2280 = vmax.f32 %v2064, %v2172
      %v2281 = vmax.f32 %v2065, %v2173
      %v2282 = vmax.f32 %v2066, %v2174
      %v2283 = vmax.f32 %v2067, %v2175
      %v2284 = vmax.f32 %v2068, %v2176
      %v2285 = vmax.f32 %v2069, %v2177
      %v2286 = vmax.f32 %v2070, %v2178
      %v2287 = vmax.f32 %v2071, %v2179
      %v2288 = vmax.f32 %v2072, %v2180
      %v2289 = vmax.f32 %v2073, %v2181
      %v2290 = vmax.f32 %v2074, %v2182
      %v2291 = vmax.f32 %v2075, %v2183
      %v2292 = vmax.f32 %v2076, %v2184
      %v2293 = vmax.f32 %v2077, %v2185
      %v2294 = vmax.f32 %v2078, %v2186
      %v2295 = vmax.f32 %v2079, %v2187
      %v2296 = vmax.f32 %v2080, %v2188
      %v2297 = vmax.f32 %v2081, %v2189
      %v2298 = vmax.f32 %v2082, %v2190
      %v2299 = vmax.f32 %v2083, %v2191
      %v2300 = vmax.f32 %v2084, %v2192
      %v2301 = vmax.f32 %v2085, %v2193
      %v2302 = vmax.f32 %v2086, %v2194
      %v2303 = vmax.f32 %v2087, %v2195
      %v2304 = vmax.f32 %v2088, %v2196
      %v2305 = vmax.f32 %v2089, %v2197
      %v2306 = vmax.f32 %v2090, %v2198
      %v2307 = vmax.f32 %v2091, %v2199
      %v2308 = vmax.f32 %v2092, %v2200
      %v2309 = vmax.f32 %v2093, %v2201
      %v2310 = vmax.f32 %v2094, %v2202
      %v2311 = vmax.f32 %v2095, %v2203
      %v2312 = vmax.f32 %v2096, %v2204
      %v2313 = vmax.f32 %v2097, %v2205
      %v2314 = vmax.f32 %v2098, %v2206
      %v2315 = vmax.f32 %v2099, %v2207
      %v2316 = vmax.f32 %v2100, %v2208
      %v2317 = vmax.f32 %v2101, %v2209
      %v2318 = vmax.f32 %v2102, %v2210
      %v2319 = vmax.f32 %v2103, %v2211
      %v2320 = vmax.f32 %v2104, %v2212
      %v2321 = vmax.f32 %v2105, %v2213
      %v2322 = vmax.f32 %v2106, %v2214
      %v2323 = vmax.f32 %v2107, %v2215
      %v2324 = vmax.f32 %v2108, %v2216
      %v2325 = vmax.f32 %v2109, %v2217
      %v2326 = vmax.f32 %v2110, %v2218
      %v2327 = vmax.f32 %v2111, %v2219
      %v2328 = vmax.f32 %v2112, %v2220
      %v2329 = vmax.f32 %v2113, %v2221
      %v2330 = vmax.f32 %v2114, %v2222
      %v2331 = vmax.f32 %v2115, %v2223
      %v2332 = vmax.f32 %v2116, %v2224
      %v2333 = vmax.f32 %v2117, %v2225
      %v2334 = vmax.f32 %v2118, %v2226
      %v2335 = vmax.f32 %v2119, %v2227
      %v2336 = vmax.f32 %v2120, %v2228
      %v2337 = vmax.f32 %v2121, %v2229
      %v2338 = vmax.f32 %v2122, %v2230
      %v2339 = vmax.f32 %v2123, %v2231
      %v2340 = vmax.f32 %v2124, %v2232
      %v2341 = vmax.f32 %v2125, %v2233
      %v2342 = vmax.f32 %v2126, %v2234
      %v2343 = vmax.f32 %v2127, %v2235
      %v2344 = vmax.f32 %v2128, %v2236
      %v2345 = vmax.f32 %v2129, %v2237
      %v2346 = vmax.f32 %v2130, %v2238
      %v2347 = vmax.f32 %v2131, %v2239
      %v2348 = vmax.f32 %v2132, %v2240
      %v2349 = vmax.f32 %v2133, %v2241
      %v2350 = vmax.f32 %v2134, %v2242
      %v2351 = vmax.f32 %v2135, %v2243
      %v2352 = vmax.f32 %v2136, %v2244
      %v2353 = vmax.f32 %v2137, %v2245
      %v2354 = vmax.f32 %v2138, %v2246
      %v2355 = vld [vmem:[%s2] sm:$0x1]
      %v2357 = vlaneseq
      %v2358 = vshrl.u32 %v2357, 7
      %v2359 = vsub.s32 0, %v2358
      %v2360 = vrot.slane %v2355, %v2359
      %v2362 = vadd.f32 %v2247, %v2360
      %v2363 = vadd.f32 %v2248, %v2360
      %v2364 = vadd.f32 %v2249, %v2360
      %v2365 = vadd.f32 %v2250, %v2360
      %v2366 = vadd.f32 %v2251, %v2360
      %v2367 = vadd.f32 %v2252, %v2360
      %v2368 = vadd.f32 %v2253, %v2360
      %v2369 = vadd.f32 %v2254, %v2360
      %v2370 = vadd.f32 %v2255, %v2360
      %v2371 = vadd.f32 %v2256, %v2360
      %v2372 = vadd.f32 %v2257, %v2360
      %v2373 = vadd.f32 %v2258, %v2360
      %v2374 = vadd.f32 %v2259, %v2360
      %v2375 = vadd.f32 %v2260, %v2360
      %v2376 = vadd.f32 %v2261, %v2360
      %v2377 = vadd.f32 %v2262, %v2360
      %v2378 = vadd.f32 %v2263, %v2360
      %v2379 = vadd.f32 %v2264, %v2360
      %v2380 = vadd.f32 %v2265, %v2360
      %v2381 = vadd.f32 %v2266, %v2360
      %v2382 = vadd.f32 %v2267, %v2360
      %v2383 = vadd.f32 %v2268, %v2360
      %v2384 = vadd.f32 %v2269, %v2360
      %v2385 = vadd.f32 %v2270, %v2360
      %v2386 = vadd.f32 %v2271, %v2360
      %v2387 = vadd.f32 %v2272, %v2360
      %v2388 = vadd.f32 %v2273, %v2360
      %v2389 = vadd.f32 %v2274, %v2360
      %v2390 = vadd.f32 %v2275, %v2360
      %v2391 = vadd.f32 %v2276, %v2360
      %v2392 = vadd.f32 %v2277, %v2360
      %v2393 = vadd.f32 %v2278, %v2360
      %v2394 = vadd.f32 %v2279, %v2360
      %v2395 = vadd.f32 %v2280, %v2360
      %v2396 = vadd.f32 %v2281, %v2360
      %v2397 = vadd.f32 %v2282, %v2360
      %v2398 = vadd.f32 %v2283, %v2360
      %v2399 = vadd.f32 %v2284, %v2360
      %v2400 = vadd.f32 %v2285, %v2360
      %v2401 = vadd.f32 %v2286, %v2360
      %v2402 = vadd.f32 %v2287, %v2360
      %v2403 = vadd.f32 %v2288, %v2360
      %v2404 = vadd.f32 %v2289, %v2360
      %v2405 = vadd.f32 %v2290, %v2360
      %v2406 = vadd.f32 %v2291, %v2360
      %v2407 = vadd.f32 %v2292, %v2360
      %v2408 = vadd.f32 %v2293, %v2360
      %v2409 = vadd.f32 %v2294, %v2360
      %v2410 = vadd.f32 %v2295, %v2360
      %v2411 = vadd.f32 %v2296, %v2360
      %v2412 = vadd.f32 %v2297, %v2360
      %v2413 = vadd.f32 %v2298, %v2360
      %v2414 = vadd.f32 %v2299, %v2360
      %v2415 = vadd.f32 %v2300, %v2360
      %v2416 = vadd.f32 %v2301, %v2360
      %v2417 = vadd.f32 %v2302, %v2360
      %v2418 = vadd.f32 %v2303, %v2360
      %v2419 = vadd.f32 %v2304, %v2360
      %v2420 = vadd.f32 %v2305, %v2360
      %v2421 = vadd.f32 %v2306, %v2360
      %v2422 = vadd.f32 %v2307, %v2360
      %v2423 = vadd.f32 %v2308, %v2360
      %v2424 = vadd.f32 %v2309, %v2360
      %v2425 = vadd.f32 %v2310, %v2360
      %v2426 = vadd.f32 %v2311, %v2360
      %v2427 = vadd.f32 %v2312, %v2360
      %v2428 = vadd.f32 %v2313, %v2360
      %v2429 = vadd.f32 %v2314, %v2360
      %v2430 = vadd.f32 %v2315, %v2360
      %v2431 = vadd.f32 %v2316, %v2360
      %v2432 = vadd.f32 %v2317, %v2360
      %v2433 = vadd.f32 %v2318, %v2360
      %v2434 = vadd.f32 %v2319, %v2360
      %v2435 = vadd.f32 %v2320, %v2360
      %v2436 = vadd.f32 %v2321, %v2360
      %v2437 = vadd.f32 %v2322, %v2360
      %v2438 = vadd.f32 %v2323, %v2360
      %v2439 = vadd.f32 %v2324, %v2360
      %v2440 = vadd.f32 %v2325, %v2360
      %v2441 = vadd.f32 %v2326, %v2360
      %v2442 = vadd.f32 %v2327, %v2360
      %v2443 = vadd.f32 %v2328, %v2360
      %v2444 = vadd.f32 %v2329, %v2360
      %v2445 = vadd.f32 %v2330, %v2360
      %v2446 = vadd.f32 %v2331, %v2360
      %v2447 = vadd.f32 %v2332, %v2360
      %v2448 = vadd.f32 %v2333, %v2360
      %v2449 = vadd.f32 %v2334, %v2360
      %v2450 = vadd.f32 %v2335, %v2360
      %v2451 = vadd.f32 %v2336, %v2360
      %v2452 = vadd.f32 %v2337, %v2360
      %v2453 = vadd.f32 %v2338, %v2360
      %v2454 = vadd.f32 %v2339, %v2360
      %v2455 = vadd.f32 %v2340, %v2360
      %v2456 = vadd.f32 %v2341, %v2360
      %v2457 = vadd.f32 %v2342, %v2360
      %v2458 = vadd.f32 %v2343, %v2360
      %v2459 = vadd.f32 %v2344, %v2360
      %v2460 = vadd.f32 %v2345, %v2360
      %v2461 = vadd.f32 %v2346, %v2360
      %v2462 = vadd.f32 %v2347, %v2360
      %v2463 = vadd.f32 %v2348, %v2360
      %v2464 = vadd.f32 %v2349, %v2360
      %v2465 = vadd.f32 %v2350, %v2360
      %v2466 = vadd.f32 %v2351, %v2360
      %v2467 = vadd.f32 %v2352, %v2360
      %v2468 = vadd.f32 %v2353, %v2360
      %v2469 = vadd.f32 %v2354, %v2360
      %v2470 = vmax.f32 %v2362, 0.0
      %v2471 = vmax.f32 %v2363, 0.0
      %v2472 = vmax.f32 %v2364, 0.0
      %v2473 = vmax.f32 %v2365, 0.0
      %v2474 = vmax.f32 %v2366, 0.0
      %v2475 = vmax.f32 %v2367, 0.0
      %v2476 = vmax.f32 %v2368, 0.0
      %v2477 = vmax.f32 %v2369, 0.0
      %v2478 = vmax.f32 %v2370, 0.0
      %v2479 = vmax.f32 %v2371, 0.0
      %v2480 = vmax.f32 %v2372, 0.0
      %v2481 = vmax.f32 %v2373, 0.0
      %v2482 = vmax.f32 %v2374, 0.0
      %v2483 = vmax.f32 %v2375, 0.0
      %v2484 = vmax.f32 %v2376, 0.0
      %v2485 = vmax.f32 %v2377, 0.0
      %v2486 = vmax.f32 %v2378, 0.0
      %v2487 = vmax.f32 %v2379, 0.0
      %v2488 = vmax.f32 %v2380, 0.0
      %v2489 = vmax.f32 %v2381, 0.0
      %v2490 = vmax.f32 %v2382, 0.0
      %v2491 = vmax.f32 %v2383, 0.0
      %v2492 = vmax.f32 %v2384, 0.0
      %v2493 = vmax.f32 %v2385, 0.0
      %v2494 = vmax.f32 %v2386, 0.0
      %v2495 = vmax.f32 %v2387, 0.0
      %v2496 = vmax.f32 %v2388, 0.0
      %v2497 = vmax.f32 %v2389, 0.0
      %v2498 = vmax.f32 %v2390, 0.0
      %v2499 = vmax.f32 %v2391, 0.0
      %v2500 = vmax.f32 %v2392, 0.0
      %v2501 = vmax.f32 %v2393, 0.0
      %v2502 = vmax.f32 %v2394, 0.0
      %v2503 = vmax.f32 %v2395, 0.0
      %v2504 = vmax.f32 %v2396, 0.0
      %v2505 = vmax.f32 %v2397, 0.0
      %v2506 = vmax.f32 %v2398, 0.0
      %v2507 = vmax.f32 %v2399, 0.0
      %v2508 = vmax.f32 %v2400, 0.0
      %v2509 = vmax.f32 %v2401, 0.0
      %v2510 = vmax.f32 %v2402, 0.0
      %v2511 = vmax.f32 %v2403, 0.0
      %v2512 = vmax.f32 %v2404, 0.0
      %v2513 = vmax.f32 %v2405, 0.0
      %v2514 = vmax.f32 %v2406, 0.0
      %v2515 = vmax.f32 %v2407, 0.0
      %v2516 = vmax.f32 %v2408, 0.0
      %v2517 = vmax.f32 %v2409, 0.0
      %v2518 = vmax.f32 %v2410, 0.0
      %v2519 = vmax.f32 %v2411, 0.0
      %v2520 = vmax.f32 %v2412, 0.0
      %v2521 = vmax.f32 %v2413, 0.0
      %v2522 = vmax.f32 %v2414, 0.0
      %v2523 = vmax.f32 %v2415, 0.0
      %v2524 = vmax.f32 %v2416, 0.0
      %v2525 = vmax.f32 %v2417, 0.0
      %v2526 = vmax.f32 %v2418, 0.0
      %v2527 = vmax.f32 %v2419, 0.0
      %v2528 = vmax.f32 %v2420, 0.0
      %v2529 = vmax.f32 %v2421, 0.0
      %v2530 = vmax.f32 %v2422, 0.0
      %v2531 = vmax.f32 %v2423, 0.0
      %v2532 = vmax.f32 %v2424, 0.0
      %v2533 = vmax.f32 %v2425, 0.0
      %v2534 = vmax.f32 %v2426, 0.0
      %v2535 = vmax.f32 %v2427, 0.0
      %v2536 = vmax.f32 %v2428, 0.0
      %v2537 = vmax.f32 %v2429, 0.0
      %v2538 = vmax.f32 %v2430, 0.0
      %v2539 = vmax.f32 %v2431, 0.0
      %v2540 = vmax.f32 %v2432, 0.0
      %v2541 = vmax.f32 %v2433, 0.0
      %v2542 = vmax.f32 %v2434, 0.0
      %v2543 = vmax.f32 %v2435, 0.0
      %v2544 = vmax.f32 %v2436, 0.0
      %v2545 = vmax.f32 %v2437, 0.0
      %v2546 = vmax.f32 %v2438, 0.0
      %v2547 = vmax.f32 %v2439, 0.0
      %v2548 = vmax.f32 %v2440, 0.0
      %v2549 = vmax.f32 %v2441, 0.0
      %v2550 = vmax.f32 %v2442, 0.0
      %v2551 = vmax.f32 %v2443, 0.0
      %v2552 = vmax.f32 %v2444, 0.0
      %v2553 = vmax.f32 %v2445, 0.0
      %v2554 = vmax.f32 %v2446, 0.0
      %v2555 = vmax.f32 %v2447, 0.0
      %v2556 = vmax.f32 %v2448, 0.0
      %v2557 = vmax.f32 %v2449, 0.0
      %v2558 = vmax.f32 %v2450, 0.0
      %v2559 = vmax.f32 %v2451, 0.0
      %v2560 = vmax.f32 %v2452, 0.0
      %v2561 = vmax.f32 %v2453, 0.0
      %v2562 = vmax.f32 %v2454, 0.0
      %v2563 = vmax.f32 %v2455, 0.0
      %v2564 = vmax.f32 %v2456, 0.0
      %v2565 = vmax.f32 %v2457, 0.0
      %v2566 = vmax.f32 %v2458, 0.0
      %v2567 = vmax.f32 %v2459, 0.0
      %v2568 = vmax.f32 %v2460, 0.0
      %v2569 = vmax.f32 %v2461, 0.0
      %v2570 = vmax.f32 %v2462, 0.0
      %v2571 = vmax.f32 %v2463, 0.0
      %v2572 = vmax.f32 %v2464, 0.0
      %v2573 = vmax.f32 %v2465, 0.0
      %v2574 = vmax.f32 %v2466, 0.0
      %v2575 = vmax.f32 %v2467, 0.0
      %v2576 = vmax.f32 %v2468, 0.0
      %v2577 = vmax.f32 %v2469, 0.0
      %v2578 = vpack.c.bf16 %v2471, %v2470
      %v2579 = vpack.c.bf16 %v2473, %v2472
      %v2580 = vpack.c.bf16 %v2475, %v2474
      %v2581 = vpack.c.bf16 %v2477, %v2476
      %v2582 = vpack.c.bf16 %v2479, %v2478
      %v2583 = vpack.c.bf16 %v2481, %v2480
      %v2584 = vpack.c.bf16 %v2483, %v2482
      %v2585 = vpack.c.bf16 %v2485, %v2484
      %v2586 = vpack.c.bf16 %v2487, %v2486
      %v2587 = vpack.c.bf16 %v2489, %v2488
      %v2588 = vpack.c.bf16 %v2491, %v2490
      %v2589 = vpack.c.bf16 %v2493, %v2492
      %v2590 = vpack.c.bf16 %v2495, %v2494
      %v2591 = vpack.c.bf16 %v2497, %v2496
      %v2592 = vpack.c.bf16 %v2499, %v2498
      %v2593 = vpack.c.bf16 %v2501, %v2500
      %v2594 = vpack.c.bf16 %v2503, %v2502
      %v2595 = vpack.c.bf16 %v2505, %v2504
      %v2596 = vpack.c.bf16 %v2507, %v2506
      %v2597 = vpack.c.bf16 %v2509, %v2508
      %v2598 = vpack.c.bf16 %v2511, %v2510
      %v2599 = vpack.c.bf16 %v2513, %v2512
      %v2600 = vpack.c.bf16 %v2515, %v2514
      %v2601 = vpack.c.bf16 %v2517, %v2516
      %v2602 = vpack.c.bf16 %v2519, %v2518
      %v2603 = vpack.c.bf16 %v2521, %v2520
      %v2604 = vpack.c.bf16 %v2523, %v2522
      %v2605 = vpack.c.bf16 %v2525, %v2524
      %v2606 = vpack.c.bf16 %v2527, %v2526
      %v2607 = vpack.c.bf16 %v2529, %v2528
      %v2608 = vpack.c.bf16 %v2531, %v2530
      %v2609 = vpack.c.bf16 %v2533, %v2532
      %v2610 = vpack.c.bf16 %v2535, %v2534
      %v2611 = vpack.c.bf16 %v2537, %v2536
      %v2612 = vpack.c.bf16 %v2539, %v2538
      %v2613 = vpack.c.bf16 %v2541, %v2540
      %v2614 = vpack.c.bf16 %v2543, %v2542
      %v2615 = vpack.c.bf16 %v2545, %v2544
      %v2616 = vpack.c.bf16 %v2547, %v2546
      %v2617 = vpack.c.bf16 %v2549, %v2548
      %v2618 = vpack.c.bf16 %v2551, %v2550
      %v2619 = vpack.c.bf16 %v2553, %v2552
      %v2620 = vpack.c.bf16 %v2555, %v2554
      %v2621 = vpack.c.bf16 %v2557, %v2556
      %v2622 = vpack.c.bf16 %v2559, %v2558
      %v2623 = vpack.c.bf16 %v2561, %v2560
      %v2624 = vpack.c.bf16 %v2563, %v2562
      %v2625 = vpack.c.bf16 %v2565, %v2564
      %v2626 = vpack.c.bf16 %v2567, %v2566
      %v2627 = vpack.c.bf16 %v2569, %v2568
      %v2628 = vpack.c.bf16 %v2571, %v2570
      %v2629 = vpack.c.bf16 %v2573, %v2572
      %v2630 = vpack.c.bf16 %v2575, %v2574
      %v2631 = vpack.c.bf16 %v2577, %v2576
      %v2686 = vunpack.c.l.b16 %v2578
      %v2687 = vunpack.c.h.b16 %v2578
      %v2688 = vunpack.c.l.b16 %v2579
      %v2689 = vunpack.c.h.b16 %v2579
      %v2690 = vunpack.c.l.b16 %v2580
      %v2691 = vunpack.c.h.b16 %v2580
      %v2692 = vunpack.c.l.b16 %v2581
      %v2693 = vunpack.c.h.b16 %v2581
      %v2694 = vunpack.c.l.b16 %v2582
      %v2695 = vunpack.c.h.b16 %v2582
      %v2696 = vunpack.c.l.b16 %v2583
      %v2697 = vunpack.c.h.b16 %v2583
      %v2698 = vunpack.c.l.b16 %v2584
      %v2699 = vunpack.c.h.b16 %v2584
      %v2700 = vunpack.c.l.b16 %v2585
      %v2701 = vunpack.c.h.b16 %v2585
      %v2702 = vunpack.c.l.b16 %v2586
      %v2703 = vunpack.c.h.b16 %v2586
      %v2704 = vunpack.c.l.b16 %v2587
      %v2705 = vunpack.c.h.b16 %v2587
      %v2706 = vunpack.c.l.b16 %v2588
      %v2707 = vunpack.c.h.b16 %v2588
      %v2708 = vunpack.c.l.b16 %v2589
      %v2709 = vunpack.c.h.b16 %v2589
      %v2710 = vunpack.c.l.b16 %v2590
      %v2711 = vunpack.c.h.b16 %v2590
      %v2712 = vunpack.c.l.b16 %v2591
      %v2713 = vunpack.c.h.b16 %v2591
      %v2714 = vunpack.c.l.b16 %v2592
      %v2715 = vunpack.c.h.b16 %v2592
      %v2716 = vunpack.c.l.b16 %v2593
      %v2717 = vunpack.c.h.b16 %v2593
      %v2718 = vunpack.c.l.b16 %v2594
      %v2719 = vunpack.c.h.b16 %v2594
      %v2720 = vunpack.c.l.b16 %v2595
      %v2721 = vunpack.c.h.b16 %v2595
      %v2722 = vunpack.c.l.b16 %v2596
      %v2723 = vunpack.c.h.b16 %v2596
      %v2724 = vunpack.c.l.b16 %v2597
      %v2725 = vunpack.c.h.b16 %v2597
      %v2726 = vunpack.c.l.b16 %v2598
      %v2727 = vunpack.c.h.b16 %v2598
      %v2728 = vunpack.c.l.b16 %v2599
      %v2729 = vunpack.c.h.b16 %v2599
      %v2730 = vunpack.c.l.b16 %v2600
      %v2731 = vunpack.c.h.b16 %v2600
      %v2732 = vunpack.c.l.b16 %v2601
      %v2733 = vunpack.c.h.b16 %v2601
      %v2734 = vunpack.c.l.b16 %v2602
      %v2735 = vunpack.c.h.b16 %v2602
      %v2736 = vunpack.c.l.b16 %v2603
      %v2737 = vunpack.c.h.b16 %v2603
      %v2738 = vunpack.c.l.b16 %v2604
      %v2739 = vunpack.c.h.b16 %v2604
      %v2740 = vunpack.c.l.b16 %v2605
      %v2741 = vunpack.c.h.b16 %v2605
      %v2742 = vunpack.c.l.b16 %v2606
      %v2743 = vunpack.c.h.b16 %v2606
      %v2744 = vunpack.c.l.b16 %v2607
      %v2745 = vunpack.c.h.b16 %v2607
      %v2746 = vunpack.c.l.b16 %v2608
      %v2747 = vunpack.c.h.b16 %v2608
      %v2748 = vunpack.c.l.b16 %v2609
      %v2749 = vunpack.c.h.b16 %v2609
      %v2750 = vunpack.c.l.b16 %v2610
      %v2751 = vunpack.c.h.b16 %v2610
      %v2752 = vunpack.c.l.b16 %v2611
      %v2753 = vunpack.c.h.b16 %v2611
      %v2754 = vunpack.c.l.b16 %v2612
      %v2755 = vunpack.c.h.b16 %v2612
      %v2756 = vunpack.c.l.b16 %v2613
      %v2757 = vunpack.c.h.b16 %v2613
      %v2758 = vunpack.c.l.b16 %v2614
      %v2759 = vunpack.c.h.b16 %v2614
      %v2760 = vunpack.c.l.b16 %v2615
      %v2761 = vunpack.c.h.b16 %v2615
      %v2762 = vunpack.c.l.b16 %v2616
      %v2763 = vunpack.c.h.b16 %v2616
      %v2764 = vunpack.c.l.b16 %v2617
      %v2765 = vunpack.c.h.b16 %v2617
      %v2766 = vunpack.c.l.b16 %v2618
      %v2767 = vunpack.c.h.b16 %v2618
      %v2768 = vunpack.c.l.b16 %v2619
      %v2769 = vunpack.c.h.b16 %v2619
      %v2770 = vunpack.c.l.b16 %v2620
      %v2771 = vunpack.c.h.b16 %v2620
      %v2772 = vunpack.c.l.b16 %v2621
      %v2773 = vunpack.c.h.b16 %v2621
      %v2774 = vunpack.c.l.b16 %v2622
      %v2775 = vunpack.c.h.b16 %v2622
      %v2776 = vunpack.c.l.b16 %v2623
      %v2777 = vunpack.c.h.b16 %v2623
      %v2778 = vunpack.c.l.b16 %v2624
      %v2779 = vunpack.c.h.b16 %v2624
      %v2780 = vunpack.c.l.b16 %v2625
      %v2781 = vunpack.c.h.b16 %v2625
      %v2782 = vunpack.c.l.b16 %v2626
      %v2783 = vunpack.c.h.b16 %v2626
      %v2784 = vunpack.c.l.b16 %v2627
      %v2785 = vunpack.c.h.b16 %v2627
      %v2786 = vunpack.c.l.b16 %v2628
      %v2787 = vunpack.c.h.b16 %v2628
      %v2788 = vunpack.c.l.b16 %v2629
      %v2789 = vunpack.c.h.b16 %v2629
      %v2790 = vunpack.c.l.b16 %v2630
      %v2791 = vunpack.c.h.b16 %v2630
      %v2792 = vunpack.c.l.b16 %v2631
      %v2793 = vunpack.c.h.b16 %v2631
      %v2794 = vpack.c.b16 %v2686, %v2686
      %v2795 = vpack.c.b16 %v2687, %v2687
      %v2796 = vpack.c.b16 %v2688, %v2688
      %v2797 = vpack.c.b16 %v2689, %v2689
      %v2798 = vpack.c.b16 %v2690, %v2690
      %v2799 = vpack.c.b16 %v2691, %v2691
      %v2800 = vpack.c.b16 %v2692, %v2692
      %v2801 = vpack.c.b16 %v2693, %v2693
      %v2802 = vpack.c.b16 %v2694, %v2694
      %v2803 = vpack.c.b16 %v2695, %v2695
      %v2804 = vpack.c.b16 %v2696, %v2696
      %v2805 = vpack.c.b16 %v2697, %v2697
      %v2806 = vpack.c.b16 %v2698, %v2698
      %v2807 = vpack.c.b16 %v2699, %v2699
      %v2808 = vpack.c.b16 %v2700, %v2700
      %v2809 = vpack.c.b16 %v2701, %v2701
      %v2810 = vpack.c.b16 %v2702, %v2702
      %v2811 = vpack.c.b16 %v2703, %v2703
      %v2812 = vpack.c.b16 %v2704, %v2704
      %v2813 = vpack.c.b16 %v2705, %v2705
      %v2814 = vpack.c.b16 %v2706, %v2706
      %v2815 = vpack.c.b16 %v2707, %v2707
      %v2816 = vpack.c.b16 %v2708, %v2708
      %v2817 = vpack.c.b16 %v2709, %v2709
      %v2818 = vpack.c.b16 %v2710, %v2710
      %v2819 = vpack.c.b16 %v2711, %v2711
      %v2820 = vpack.c.b16 %v2712, %v2712
      %v2821 = vpack.c.b16 %v2713, %v2713
      %v2822 = vpack.c.b16 %v2714, %v2714
      %v2823 = vpack.c.b16 %v2715, %v2715
      %v2824 = vpack.c.b16 %v2716, %v2716
      %v2825 = vpack.c.b16 %v2717, %v2717
      %v2826 = vpack.c.b16 %v2718, %v2718
      %v2827 = vpack.c.b16 %v2719, %v2719
      %v2828 = vpack.c.b16 %v2720, %v2720
      %v2829 = vpack.c.b16 %v2721, %v2721
      %v2830 = vpack.c.b16 %v2722, %v2722
      %v2831 = vpack.c.b16 %v2723, %v2723
      %v2832 = vpack.c.b16 %v2724, %v2724
      %v2833 = vpack.c.b16 %v2725, %v2725
      %v2834 = vpack.c.b16 %v2726, %v2726
      %v2835 = vpack.c.b16 %v2727, %v2727
      %v2836 = vpack.c.b16 %v2728, %v2728
      %v2837 = vpack.c.b16 %v2729, %v2729
      %v2838 = vpack.c.b16 %v2730, %v2730
      %v2839 = vpack.c.b16 %v2731, %v2731
      %v2840 = vpack.c.b16 %v2732, %v2732
      %v2841 = vpack.c.b16 %v2733, %v2733
      %v2842 = vpack.c.b16 %v2734, %v2734
      %v2843 = vpack.c.b16 %v2735, %v2735
      %v2844 = vpack.c.b16 %v2736, %v2736
      %v2845 = vpack.c.b16 %v2737, %v2737
      %v2846 = vpack.c.b16 %v2738, %v2738
      %v2847 = vpack.c.b16 %v2739, %v2739
      %v2848 = vpack.c.b16 %v2740, %v2740
      %v2849 = vpack.c.b16 %v2741, %v2741
      %v2850 = vpack.c.b16 %v2742, %v2742
      %v2851 = vpack.c.b16 %v2743, %v2743
      %v2852 = vpack.c.b16 %v2744, %v2744
      %v2853 = vpack.c.b16 %v2745, %v2745
      %v2854 = vpack.c.b16 %v2746, %v2746
      %v2855 = vpack.c.b16 %v2747, %v2747
      %v2856 = vpack.c.b16 %v2748, %v2748
      %v2857 = vpack.c.b16 %v2749, %v2749
      %v2858 = vpack.c.b16 %v2750, %v2750
      %v2859 = vpack.c.b16 %v2751, %v2751
      %v2860 = vpack.c.b16 %v2752, %v2752
      %v2861 = vpack.c.b16 %v2753, %v2753
      %v2862 = vpack.c.b16 %v2754, %v2754
      %v2863 = vpack.c.b16 %v2755, %v2755
      %v2864 = vpack.c.b16 %v2756, %v2756
      %v2865 = vpack.c.b16 %v2757, %v2757
      %v2866 = vpack.c.b16 %v2758, %v2758
      %v2867 = vpack.c.b16 %v2759, %v2759
      %v2868 = vpack.c.b16 %v2760, %v2760
      %v2869 = vpack.c.b16 %v2761, %v2761
      %v2870 = vpack.c.b16 %v2762, %v2762
      %v2871 = vpack.c.b16 %v2763, %v2763
      %v2872 = vpack.c.b16 %v2764, %v2764
      %v2873 = vpack.c.b16 %v2765, %v2765
      %v2874 = vpack.c.b16 %v2766, %v2766
      %v2875 = vpack.c.b16 %v2767, %v2767
      %v2876 = vpack.c.b16 %v2768, %v2768
      %v2877 = vpack.c.b16 %v2769, %v2769
      %v2878 = vpack.c.b16 %v2770, %v2770
      %v2879 = vpack.c.b16 %v2771, %v2771
      %v2880 = vpack.c.b16 %v2772, %v2772
      %v2881 = vpack.c.b16 %v2773, %v2773
      %v2882 = vpack.c.b16 %v2774, %v2774
      %v2883 = vpack.c.b16 %v2775, %v2775
      %v2884 = vpack.c.b16 %v2776, %v2776
      %v2885 = vpack.c.b16 %v2777, %v2777
      %v2886 = vpack.c.b16 %v2778, %v2778
      %v2887 = vpack.c.b16 %v2779, %v2779
      %v2888 = vpack.c.b16 %v2780, %v2780
      %v2889 = vpack.c.b16 %v2781, %v2781
      %v2890 = vpack.c.b16 %v2782, %v2782
      %v2891 = vpack.c.b16 %v2783, %v2783
      %v2892 = vpack.c.b16 %v2784, %v2784
      %v2893 = vpack.c.b16 %v2785, %v2785
      %v2894 = vpack.c.b16 %v2786, %v2786
      %v2895 = vpack.c.b16 %v2787, %v2787
      %v2896 = vpack.c.b16 %v2788, %v2788
      %v2897 = vpack.c.b16 %v2789, %v2789
      %v2898 = vpack.c.b16 %v2790, %v2790
      %v2899 = vpack.c.b16 %v2791, %v2791
      %v2900 = vpack.c.b16 %v2792, %v2792
      %v2901 = vpack.c.b16 %v2793, %v2793
      %3010 = vst [vmem:[%s172] sm:$0xf] %v2794
      %3011 = vst [vmem:[%s172 + $0x4] sm:$0xf] %v2795
      %3012 = vst [vmem:[%s172 + $0x8] sm:$0xf] %v2796
      %3013 = vst [vmem:[%s172 + $0xc] sm:$0xf] %v2797
      %3014 = vst [vmem:[%s172 + $0x10] sm:$0xf] %v2798
      %3015 = vst [vmem:[%s172 + $0x14] sm:$0xf] %v2799
      %3016 = vst [vmem:[%s172 + $0x18] sm:$0xf] %v2800
      %3017 = vst [vmem:[%s172 + $0x1c] sm:$0xf] %v2801
      %3018 = vst [vmem:[%s172 + $0x20] sm:$0xf] %v2802
      %3019 = vst [vmem:[%s172 + $0x24] sm:$0xf] %v2803
      %3020 = vst [vmem:[%s172 + $0x28] sm:$0xf] %v2804
      %3021 = vst [vmem:[%s172 + $0x2c] sm:$0xf] %v2805
      %3022 = vst [vmem:[%s172 + $0x30] sm:$0xf] %v2806
      %3023 = vst [vmem:[%s172 + $0x34] sm:$0xf] %v2807
      %3024 = vst [vmem:[%s172 + $0x38] sm:$0xf] %v2808
      %3025 = vst [vmem:[%s172 + $0x3c] sm:$0xf] %v2809
      %3026 = vst [vmem:[%s172 + $0x40] sm:$0xf] %v2810
      %3027 = vst [vmem:[%s172 + $0x44] sm:$0xf] %v2811
      %3028 = vst [vmem:[%s172 + $0x48] sm:$0xf] %v2812
      %3029 = vst [vmem:[%s172 + $0x4c] sm:$0xf] %v2813
      %3030 = vst [vmem:[%s172 + $0x50] sm:$0xf] %v2814
      %3031 = vst [vmem:[%s172 + $0x54] sm:$0xf] %v2815
      %3032 = vst [vmem:[%s172 + $0x58] sm:$0xf] %v2816
      %3033 = vst [vmem:[%s172 + $0x5c] sm:$0xf] %v2817
      %3034 = vst [vmem:[%s172 + $0x60] sm:$0xf] %v2818
      %3035 = vst [vmem:[%s172 + $0x64] sm:$0xf] %v2819
      %3036 = vst [vmem:[%s172 + $0x68] sm:$0xf] %v2820
      %3037 = vst [vmem:[%s172 + $0x6c] sm:$0xf] %v2821
      %3038 = vst [vmem:[%s172 + $0x70] sm:$0xf] %v2822
      %3039 = vst [vmem:[%s172 + $0x74] sm:$0xf] %v2823
      %3040 = vst [vmem:[%s172 + $0x78] sm:$0xf] %v2824
      %3041 = vst [vmem:[%s172 + $0x7c] sm:$0xf] %v2825
      %3042 = vst [vmem:[%s172 + $0x80] sm:$0xf] %v2826
      %3043 = vst [vmem:[%s172 + $0x84] sm:$0xf] %v2827
      %3044 = vst [vmem:[%s172 + $0x88] sm:$0xf] %v2828
      %3045 = vst [vmem:[%s172 + $0x8c] sm:$0xf] %v2829
      %3046 = vst [vmem:[%s172 + $0x90] sm:$0xf] %v2830
      %3047 = vst [vmem:[%s172 + $0x94] sm:$0xf] %v2831
      %3048 = vst [vmem:[%s172 + $0x98] sm:$0xf] %v2832
      %3049 = vst [vmem:[%s172 + $0x9c] sm:$0xf] %v2833
      %3050 = vst [vmem:[%s172 + $0xa0] sm:$0xf] %v2834
      %3051 = vst [vmem:[%s172 + $0xa4] sm:$0xf] %v2835
      %3052 = vst [vmem:[%s172 + $0xa8] sm:$0xf] %v2836
      %3053 = vst [vmem:[%s172 + $0xac] sm:$0xf] %v2837
      %3054 = vst [vmem:[%s172 + $0xb0] sm:$0xf] %v2838
      %3055 = vst [vmem:[%s172 + $0xb4] sm:$0xf] %v2839
      %3056 = vst [vmem:[%s172 + $0xb8] sm:$0xf] %v2840
      %3057 = vst [vmem:[%s172 + $0xbc] sm:$0xf] %v2841
      %3058 = vst [vmem:[%s172 + $0xc0] sm:$0xf] %v2842
      %3059 = vst [vmem:[%s172 + $0xc4] sm:$0xf] %v2843
      %3060 = vst [vmem:[%s172 + $0xc8] sm:$0xf] %v2844
      %3061 = vst [vmem:[%s172 + $0xcc] sm:$0xf] %v2845
      %3062 = vst [vmem:[%s172 + $0xd0] sm:$0xf] %v2846
      %3063 = vst [vmem:[%s172 + $0xd4] sm:$0xf] %v2847
      %3064 = vst [vmem:[%s172 + $0xd8] sm:$0xf] %v2848
      %3065 = vst [vmem:[%s172 + $0xdc] sm:$0xf] %v2849
      %3066 = vst [vmem:[%s172 + $0xe0] sm:$0xf] %v2850
      %3067 = vst [vmem:[%s172 + $0xe4] sm:$0xf] %v2851
      %3068 = vst [vmem:[%s172 + $0xe8] sm:$0xf] %v2852
      %3069 = vst [vmem:[%s172 + $0xec] sm:$0xf] %v2853
      %3070 = vst [vmem:[%s172 + $0xf0] sm:$0xf] %v2854
      %3071 = vst [vmem:[%s172 + $0xf4] sm:$0xf] %v2855
      %3072 = vst [vmem:[%s172 + $0xf8] sm:$0xf] %v2856
      %3073 = vst [vmem:[%s172 + $0xfc] sm:$0xf] %v2857
      %3074 = vst [vmem:[%s172 + $0x100] sm:$0xf] %v2858
      %3075 = vst [vmem:[%s172 + $0x104] sm:$0xf] %v2859
      %3076 = vst [vmem:[%s172 + $0x108] sm:$0xf] %v2860
      %3077 = vst [vmem:[%s172 + $0x10c] sm:$0xf] %v2861
      %3078 = vst [vmem:[%s172 + $0x110] sm:$0xf] %v2862
      %3079 = vst [vmem:[%s172 + $0x114] sm:$0xf] %v2863
      %3080 = vst [vmem:[%s172 + $0x118] sm:$0xf] %v2864
      %3081 = vst [vmem:[%s172 + $0x11c] sm:$0xf] %v2865
      %3082 = vst [vmem:[%s172 + $0x120] sm:$0xf] %v2866
      %3083 = vst [vmem:[%s172 + $0x124] sm:$0xf] %v2867
      %3084 = vst [vmem:[%s172 + $0x128] sm:$0xf] %v2868
      %3085 = vst [vmem:[%s172 + $0x12c] sm:$0xf] %v2869
      %3086 = vst [vmem:[%s172 + $0x130] sm:$0xf] %v2870
      %3087 = vst [vmem:[%s172 + $0x134] sm:$0xf] %v2871
      %3088 = vst [vmem:[%s172 + $0x138] sm:$0xf] %v2872
      %3089 = vst [vmem:[%s172 + $0x13c] sm:$0xf] %v2873
      %3090 = vst [vmem:[%s172 + $0x140] sm:$0xf] %v2874
      %3091 = vst [vmem:[%s172 + $0x144] sm:$0xf] %v2875
      %3092 = vst [vmem:[%s172 + $0x148] sm:$0xf] %v2876
      %3093 = vst [vmem:[%s172 + $0x14c] sm:$0xf] %v2877
      %3094 = vst [vmem:[%s172 + $0x150] sm:$0xf] %v2878
      %3095 = vst [vmem:[%s172 + $0x154] sm:$0xf] %v2879
      %3096 = vst [vmem:[%s172 + $0x158] sm:$0xf] %v2880
      %3097 = vst [vmem:[%s172 + $0x15c] sm:$0xf] %v2881
      %3098 = vst [vmem:[%s172 + $0x160] sm:$0xf] %v2882
      %3099 = vst [vmem:[%s172 + $0x164] sm:$0xf] %v2883
      %3100 = vst [vmem:[%s172 + $0x168] sm:$0xf] %v2884
      %3101 = vst [vmem:[%s172 + $0x16c] sm:$0xf] %v2885
      %3102 = vst [vmem:[%s172 + $0x170] sm:$0xf] %v2886
      %3103 = vst [vmem:[%s172 + $0x174] sm:$0xf] %v2887
      %3104 = vst [vmem:[%s172 + $0x178] sm:$0xf] %v2888
      %3105 = vst [vmem:[%s172 + $0x17c] sm:$0xf] %v2889
      %3106 = vst [vmem:[%s172 + $0x180] sm:$0xf] %v2890
      %3107 = vst [vmem:[%s172 + $0x184] sm:$0xf] %v2891
      %3108 = vst [vmem:[%s172 + $0x188] sm:$0xf] %v2892
      %3109 = vst [vmem:[%s172 + $0x18c] sm:$0xf] %v2893
      %3110 = vst [vmem:[%s172 + $0x190] sm:$0xf] %v2894
      %3111 = vst [vmem:[%s172 + $0x194] sm:$0xf] %v2895
      %3112 = vst [vmem:[%s172 + $0x198] sm:$0xf] %v2896
      %3113 = vst [vmem:[%s172 + $0x19c] sm:$0xf] %v2897
      %3114 = vst [vmem:[%s172 + $0x1a0] sm:$0xf] %v2898
      %3115 = vst [vmem:[%s172 + $0x1a4] sm:$0xf] %v2899
      %3116 = vst [vmem:[%s172 + $0x1a8] sm:$0xf] %v2900
      %3117 = vst [vmem:[%s172 + $0x1ac] sm:$0xf] %v2901
      %s3118 = smul.u32 108, %s14
      %p3119 = scmp.lt.s32.totalorder %s3118, 215
      %s3120 = scalar_select %p3119, %s3118, 215
      %s3121 = smul.addr %s3120, 4
      %s3122 = scalar_lea.vmem %s3, %s3121
      // Predicated region
      $region33: #{mnist_sum_double2_forward.3} parent=31 // pred_check
        %p3123 = pneg %p100
      $region34: #{mnist_sum_double2_forward.3} parent=31 // pred_check_branch
        %3125 = sbr.rel (%p3123) target = $region36
      $region35: #{mnist_sum_double2_forward.3} parent=31 // pred_region
        %s3126 = smul.u32 108, %s14
      $region36: #{mnist_sum_double2_forward.3} parent=31 // pred_fallthru
        _
    $region32: #{mnist_sum_double2_forward.3} parent=5 // pred_fallthru
      _
    %p3127 = scmp.le.s32.totalorder 2, %s9
    // Predicated region
    $region37: #{mnist_sum_double2_forward.3} parent=5 // pred_check
      %p3128 = pneg %p3127
    $region38: #{mnist_sum_double2_forward.3} parent=5 // pred_check_branch
      %3130 = sbr.rel (%p3128) target = $region40
    $region39: #{mnist_sum_double2_forward.3} parent=5 // pred_region
      %s3131 = ssub.s32 %s9, 2
      // Predicated region
      $region41: #{mnist_sum_double2_forward.3} parent=39 // pred_check
        %p3132 = pneg %p106
      $region42: #{mnist_sum_double2_forward.3} parent=39 // pred_check_branch
        %3134 = sbr.rel (%p3132) target = $region44
      $region43: #{mnist_sum_double2_forward.3} parent=39 // pred_region
        %s3135 = smul.u32 108, %s15
        %p3136 = scmp.lt.s32.totalorder %s3135, 215
        %s3137 = scalar_select %p3136, %s3135, 215
        %s3138 = smul.addr %s3137, 4
        %s3139 = scalar_lea.vmem %s3, %s3138
      $region44: #{mnist_sum_double2_forward.3} parent=39 // pred_fallthru
        _
    $region40: #{mnist_sum_double2_forward.3} parent=5 // pred_fallthru
      _
  $region6: #{mnist_sum_double2_forward.3} parent=0 // loop_footer
    %s13 = sadd.s32 1, %s9
  $region7: #{mnist_sum_double2_forward.3} parent=0 // loop_footer_branch
    %8 = sbr.rel target = $region3
  $region8: #{mnist_sum_double2_forward.3} parent=0 // loop_exit
    _

// kernel: mnist_sum_double2_forward.4
$region0: #{mnist_sum_double2_forward.4}
  #allocation0 [shape = 'u32[]', space=smem, size = 0x4, offset = 0x4, fixed_abs, tag = 'smem constant byte address 0x4 - core index']
  #allocation1 [shape = 'u32[144,128]{1,0:T(1,128)}', space=vmem, size = 0x12000, scoped, tag = 'internal scratch']
  %s0 = inlined_call_operand.vmem [shape: bf16[192,600], index: 0, kind: input, shape index: {}]
  %s1 = inlined_call_operand.vmem [shape: bf16[600,512], index: 1, kind: input, shape index: {}]
  %s2 = inlined_call_operand.vmem [shape: f32[1,128], index: 2, kind: input, shape index: {}]
  %s3 = inlined_call_operand.vmem [shape: bf16[192,128], index: 3, kind: output, shape index: {}]
  %s4 = sld [smem:[#allocation0]]
  $region45: #{mnist_sum_double2_forward.4} parent=0
    _
  %s6 = ssub.s32 1, %s4
  %s7 = scalar_select 0, %s6, %s4
  loop: start=0, step=1, limit=4
  $region2: #{mnist_sum_double2_forward.4} parent=0 // loop_pre_header
    _
  $region3: #{mnist_sum_double2_forward.4} parent=0 // loop_header
    %s9 = sphi 0, %s13
    %p10 = scmp.ge.s32.totalorder %s9, 4
    %s19 = sphi 0, %s21
    %s22 = sphi 0, %s19
    %s23 = sphi 0, %s22
    %s39 = sphi 0, %s23
    %s43 = sphi 0, %s43
    %s45 = sphi 0, %s43
    %s46 = sphi 0, %s45
    %s60 = sphi 0, %s46
    %s64 = sphi 0, %s64
    %s66 = sphi 0, %s64
    %s67 = sphi 0, %s66
    %s81 = sphi 0, %s67
    %s87 = sphi 0, %s89
    %s90 = sphi 0, %s87
    %s91 = sphi 0, %s90
    %s107 = sphi 0, %s91
  $region4: #{mnist_sum_double2_forward.4} parent=0 // loop_header_branch
    %12 = sbr.rel (%p10) target = $region8
  $region5: #{mnist_sum_double2_forward.4} parent=0 // loop_body
    %s14 = ssub.s32 %s9, 1
    %s15 = ssub.s32 %s9, 2
    %s16 = sadd.s32 %s9, 1
    %s17 = ssub.s32 %s9, %s16
    %p18 = scmp.eq.s32.totalorder %s17, 0
    %s20 = sadd.s32 %s19, 1
    %s21 = scalar_select %p18, %s19, %s20
    %p24 = pneg %p18
    %p25 = scmp.eq.s32.totalorder %s9, 1
    %p26 = por %p24, %p25
    %p27 = scmp.ne.s32.totalorder %s19, %s22
    %p28 = scmp.eq.s32.totalorder %s9, 0
    %p29 = por %p27, %p28
    %p30 = scmp.ne.s32.totalorder %s19, %s22
    %p31 = scmp.eq.s32.totalorder %s14, 1
    %p32 = por %p30, %p31
    %p33 = scmp.ne.s32.totalorder %s22, %s23
    %p34 = scmp.eq.s32.totalorder %s14, 0
    %p35 = por %p33, %p34
    %p36 = scmp.ne.s32.totalorder %s22, %s23
    %p37 = scmp.eq.s32.totalorder %s15, 1
    %p38 = por %p36, %p37
    %p40 = scmp.ne.s32.totalorder %s23, %s39
    %p41 = scmp.eq.s32.totalorder %s15, 0
    %p42 = por %p40, %p41
    %s44 = sadd.s32 %s43, 1
    %p47 = scmp.eq.s32.totalorder %s9, 1
    %p48 = scmp.ne.s32.totalorder %s43, %s45
    %p49 = scmp.eq.s32.totalorder %s9, 0
    %p50 = por %p48, %p49
    %p51 = scmp.ne.s32.totalorder %s43, %s45
    %p52 = scmp.eq.s32.totalorder %s14, 1
    %p53 = por %p51, %p52
    %p54 = scmp.ne.s32.totalorder %s45, %s46
    %p55 = scmp.eq.s32.totalorder %s14, 0
    %p56 = por %p54, %p55
    %p57 = scmp.ne.s32.totalorder %s45, %s46
    %p58 = scmp.eq.s32.totalorder %s15, 1
    %p59 = por %p57, %p58
    %p61 = scmp.ne.s32.totalorder %s46, %s60
    %p62 = scmp.eq.s32.totalorder %s15, 0
    %p63 = por %p61, %p62
    %s65 = sadd.s32 %s64, 1
    %p68 = scmp.eq.s32.totalorder %s9, 1
    %p69 = scmp.ne.s32.totalorder %s64, %s66
    %p70 = scmp.eq.s32.totalorder %s9, 0
    %p71 = por %p69, %p70
    %p72 = scmp.ne.s32.totalorder %s64, %s66
    %p73 = scmp.eq.s32.totalorder %s14, 1
    %p74 = por %p72, %p73
    %p75 = scmp.ne.s32.totalorder %s66, %s67
    %p76 = scmp.eq.s32.totalorder %s14, 0
    %p77 = por %p75, %p76
    %p78 = scmp.ne.s32.totalorder %s66, %s67
    %p79 = scmp.eq.s32.totalorder %s15, 1
    %p80 = por %p78, %p79
    %p82 = scmp.ne.s32.totalorder %s67, %s81
    %p83 = scmp.eq.s32.totalorder %s15, 0
    %p84 = por %p82, %p83
    %s85 = ssub.s32 %s9, %s16
    %p86 = scmp.eq.s32.totalorder %s85, 0
    %s88 = sadd.s32 %s87, 1
    %s89 = scalar_select %p86, %s87, %s88
    %p92 = pneg %p86
    %p93 = scmp.eq.s32.totalorder %s9, 1
    %p94 = por %p92, %p93
    %p95 = scmp.ne.s32.totalorder %s87, %s90
    %p96 = scmp.eq.s32.totalorder %s9, 0
    %p97 = por %p95, %p96
    %p98 = scmp.ne.s32.totalorder %s87, %s90
    %p99 = scmp.eq.s32.totalorder %s14, 1
    %p100 = por %p98, %p99
    %p101 = scmp.ne.s32.totalorder %s90, %s91
    %p102 = scmp.eq.s32.totalorder %s14, 0
    %p103 = por %p101, %p102
    %p104 = scmp.ne.s32.totalorder %s90, %s91
    %p105 = scmp.eq.s32.totalorder %s15, 1
    %p106 = por %p104, %p105
    %p108 = scmp.ne.s32.totalorder %s91, %s107
    %p109 = scmp.eq.s32.totalorder %s15, 0
    %p110 = por %p108, %p109
    %p111 = scmp.le.s32.totalorder 1, %s9
    %p112 = scmp.lt.s32.totalorder %s9, 3
    %p113 = pnand %p111, %p112
    %p114 = pneg %p113
    // Predicated region
    $region9: #{mnist_sum_double2_forward.4} parent=5 // pred_check
      _
    $region10: #{mnist_sum_double2_forward.4} parent=5 // pred_check_branch
      %116 = sbr.rel (%p113) target = $region12
    $region11: #{mnist_sum_double2_forward.4} parent=5 // pred_region
      %s117 = ssub.s32 %s9, 1
      // Predicated region
      $region13: #{mnist_sum_double2_forward.4} parent=11 // pred_check
        %p118 = pneg %p56
      $region14: #{mnist_sum_double2_forward.4} parent=11 // pred_check_branch
        %120 = sbr.rel (%p118) target = $region16
      $region15: #{mnist_sum_double2_forward.4} parent=11 // pred_region
        _
      $region16: #{mnist_sum_double2_forward.4} parent=11 // pred_fallthru
        _
      // Predicated region
      $region17: #{mnist_sum_double2_forward.4} parent=11 // pred_check
        %p121 = pneg %p77
      $region18: #{mnist_sum_double2_forward.4} parent=11 // pred_check_branch
        %123 = sbr.rel (%p121) target = $region20
      $region19: #{mnist_sum_double2_forward.4} parent=11 // pred_region
        _
      $region20: #{mnist_sum_double2_forward.4} parent=11 // pred_fallthru
        _
    $region12: #{mnist_sum_double2_forward.4} parent=5 // pred_fallthru
      _
    %p124 = scmp.lt.s32.totalorder %s9, 2
    // Predicated region
    $region21: #{mnist_sum_double2_forward.4} parent=5 // pred_check
      %p125 = pneg %p124
    $region22: #{mnist_sum_double2_forward.4} parent=5 // pred_check_branch
      %127 = sbr.rel (%p125) target = $region24
    $region23: #{mnist_sum_double2_forward.4} parent=5 // pred_region
      // Predicated region
      $region25: #{mnist_sum_double2_forward.4} parent=23 // pred_check
        %p128 = pneg %p29
      $region26: #{mnist_sum_double2_forward.4} parent=23 // pred_check_branch
        %130 = sbr.rel (%p128) target = $region28
      $region27: #{mnist_sum_double2_forward.4} parent=23 // pred_region
        %s131 = smul.u32 12, %s9
        %p132 = scmp.lt.s32.totalorder %s131, 23
        %s133 = scalar_select %p132, %s131, 23
        %s134 = smul.addr %s133, 5
        %s135 = smul.addr %s134, 4
        %s136 = scalar_lea.vmem %s0, %s135
        %s137 = smul.u32 12, %s9
      $region28: #{mnist_sum_double2_forward.4} parent=23 // pred_fallthru
        _
    $region24: #{mnist_sum_double2_forward.4} parent=5 // pred_fallthru
      _
    %p138 = scmp.le.s32.totalorder 1, %s9
    %p139 = scmp.lt.s32.totalorder %s9, 3
    %p140 = pnand %p138, %p139
    %p141 = pneg %p140
    // Predicated region
    $region29: #{mnist_sum_double2_forward.4} parent=5 // pred_check
      _
    $region30: #{mnist_sum_double2_forward.4} parent=5 // pred_check_branch
      %143 = sbr.rel (%p140) target = $region32
    $region31: #{mnist_sum_double2_forward.4} parent=5 // pred_region
      %s144 = ssub.s32 %s9, 1
      %s145 = smul.u32 12, %s14
      %p146 = scmp.lt.s32.totalorder %s145, 23
      %s147 = scalar_select %p146, %s145, 23
      %s148 = smul.addr %s147, 5
      %s149 = smul.addr %s148, 4
      %s150 = scalar_lea.vmem %s0, %s149
      %p151 = pneg %p35
      %p152 = pneg %p32
      %p153 = pneg %p56
      %p154 = pneg %p53
      %p155 = pneg %p77
      %p156 = pneg %p74
      %p157 = pneg %p103
      %p158 = pneg %p100
      %s159 = smul.u32 12, %s14
      %p160 = scmp.lt.s32.totalorder %s159, 23
      %s161 = scalar_select %p160, %s159, 23
      %s162 = smul.addr %s161, 4
      %s163 = scalar_lea.vmem %s3, %s162
      %s164 = smul.u32 12, %s14
      %p165 = scmp.lt.s32.totalorder %s164, 23
      %s166 = scalar_select %p165, %s164, 23
      %s167 = smul.addr %s166, 5
      %s168 = smul.addr %s167, 4
      %s169 = scalar_lea.vmem %s0, %s168
      %s170 = smul.u32 12, %s14
      %s171 = smul.u32 12, %s14
      %p172 = scmp.lt.s32.totalorder %s171, 23
      %s173 = scalar_select %p172, %s171, 23
      %s174 = smul.addr %s173, 4
      %s175 = scalar_lea.vmem %s3, %s174
      %s176 = smul.u32 12, %s14
      %v178 = vld [vmem:[%s169] sm:$0xff]
      %v179 = vld [vmem:[%s169 + $0x8] sm:$0xff]
      %v180 = vld [vmem:[%s169 + $0x10] sm:$0xf]
      %v181 = vld [vmem:[%s169 + $0x14] sm:$0xff]
      %v182 = vld [vmem:[%s169 + $0x1c] sm:$0xff]
      %v183 = vld [vmem:[%s169 + $0x24] sm:$0xf]
      %v184 = vld [vmem:[%s169 + $0x28] sm:$0xff]
      %v185 = vld [vmem:[%s169 + $0x30] sm:$0xff]
      %v186 = vld [vmem:[%s169 + $0x38] sm:$0xf]
      %v187 = vld [vmem:[%s169 + $0x3c] sm:$0xff]
      %v188 = vld [vmem:[%s169 + $0x44] sm:$0xff]
      %v189 = vld [vmem:[%s169 + $0x4c] sm:$0xf]
      %v190 = vld [vmem:[%s169 + $0x50] sm:$0xff]
      %v191 = vld [vmem:[%s169 + $0x58] sm:$0xff]
      %v192 = vld [vmem:[%s169 + $0x60] sm:$0xf]
      %v193 = vld [vmem:[%s169 + $0x64] sm:$0xff]
      %v194 = vld [vmem:[%s169 + $0x6c] sm:$0xff]
      %v195 = vld [vmem:[%s169 + $0x74] sm:$0xf]
      %v196 = vld [vmem:[%s169 + $0x78] sm:$0xff]
      %v197 = vld [vmem:[%s169 + $0x80] sm:$0xff]
      %v198 = vld [vmem:[%s169 + $0x88] sm:$0xf]
      %v199 = vld [vmem:[%s169 + $0x8c] sm:$0xff]
      %v200 = vld [vmem:[%s169 + $0x94] sm:$0xff]
      %v201 = vld [vmem:[%s169 + $0x9c] sm:$0xf]
      %v202 = vld [vmem:[%s169 + $0xa0] sm:$0xff]
      %v203 = vld [vmem:[%s169 + $0xa8] sm:$0xff]
      %v204 = vld [vmem:[%s169 + $0xb0] sm:$0xf]
      %v205 = vld [vmem:[%s169 + $0xb4] sm:$0xff]
      %v206 = vld [vmem:[%s169 + $0xbc] sm:$0xff]
      %v207 = vld [vmem:[%s169 + $0xc4] sm:$0xf]
      %v208 = vld [vmem:[%s169 + $0xc8] sm:$0xff]
      %v209 = vld [vmem:[%s169 + $0xd0] sm:$0xff]
      %v210 = vld [vmem:[%s169 + $0xd8] sm:$0xf]
      %v211 = vld [vmem:[%s169 + $0xdc] sm:$0xff]
      %v212 = vld [vmem:[%s169 + $0xe4] sm:$0xff]
      %v213 = vld [vmem:[%s169 + $0xec] sm:$0xf]
      %v214 = vld [vmem:[%s1] sm:$0xff]
      %v215 = vld [vmem:[%s1 + $0x8] sm:$0xff]
      %v216 = vld [vmem:[%s1 + $0x10] sm:$0xff]
      %v217 = vld [vmem:[%s1 + $0x18] sm:$0xff]
      %v218 = vld [vmem:[%s1 + $0x20] sm:$0xff]
      %v219 = vld [vmem:[%s1 + $0x28] sm:$0xff]
      %v220 = vld [vmem:[%s1 + $0x30] sm:$0xff]
      %v221 = vld [vmem:[%s1 + $0x38] sm:$0xff]
      %v222 = vld [vmem:[%s1 + $0x40] sm:$0xff]
      %v223 = vld [vmem:[%s1 + $0x48] sm:$0xff]
      %v224 = vld [vmem:[%s1 + $0x50] sm:$0xff]
      %v225 = vld [vmem:[%s1 + $0x58] sm:$0xff]
      %v226 = vld [vmem:[%s1 + $0x60] sm:$0xff]
      %v227 = vld [vmem:[%s1 + $0x68] sm:$0xff]
      %v228 = vld [vmem:[%s1 + $0x70] sm:$0xff]
      %v229 = vld [vmem:[%s1 + $0x78] sm:$0xff]
      %v230 = vld [vmem:[%s1 + $0x80] sm:$0xff]
      %v231 = vld [vmem:[%s1 + $0x88] sm:$0xff]
      %v232 = vld [vmem:[%s1 + $0x90] sm:$0xff]
      %v233 = vld [vmem:[%s1 + $0x98] sm:$0xff]
      %v234 = vld [vmem:[%s1 + $0xa0] sm:$0xff]
      %v235 = vld [vmem:[%s1 + $0xa8] sm:$0xff]
      %v236 = vld [vmem:[%s1 + $0xb0] sm:$0xff]
      %v237 = vld [vmem:[%s1 + $0xb8] sm:$0xff]
      %v238 = vld [vmem:[%s1 + $0xc0] sm:$0xff]
      %v239 = vld [vmem:[%s1 + $0xc8] sm:$0xff]
      %v240 = vld [vmem:[%s1 + $0xd0] sm:$0xff]
      %v241 = vld [vmem:[%s1 + $0xd8] sm:$0xff]
      %v242 = vld [vmem:[%s1 + $0xe0] sm:$0xff]
      %v243 = vld [vmem:[%s1 + $0xe8] sm:$0xff]
      %v244 = vld [vmem:[%s1 + $0xf0] sm:$0xff]
      %v245 = vld [vmem:[%s1 + $0xf8] sm:$0xff]
      %v246 = vld [vmem:[%s1 + $0x100] sm:$0xff]
      %v247 = vld [vmem:[%s1 + $0x108] sm:$0xff]
      %v248 = vld [vmem:[%s1 + $0x110] sm:$0xff]
      %v249 = vld [vmem:[%s1 + $0x118] sm:$0xff]
      %v250 = vld [vmem:[%s1 + $0x120] sm:$0xff]
      %v251 = vld [vmem:[%s1 + $0x128] sm:$0xff]
      %v252 = vld [vmem:[%s1 + $0x130] sm:$0xff]
      %v253 = vld [vmem:[%s1 + $0x138] sm:$0xff]
      %v254 = vld [vmem:[%s1 + $0x140] sm:$0xff]
      %v255 = vld [vmem:[%s1 + $0x148] sm:$0xff]
      %v256 = vld [vmem:[%s1 + $0x150] sm:$0xff]
      %v257 = vld [vmem:[%s1 + $0x158] sm:$0xff]
      %v258 = vld [vmem:[%s1 + $0x160] sm:$0xff]
      %v259 = vld [vmem:[%s1 + $0x168] sm:$0xff]
      %v260 = vld [vmem:[%s1 + $0x170] sm:$0xff]
      %v261 = vld [vmem:[%s1 + $0x178] sm:$0xff]
      %v262 = vld [vmem:[%s1 + $0x180] sm:$0xff]
      %v263 = vld [vmem:[%s1 + $0x188] sm:$0xff]
      %v264 = vld [vmem:[%s1 + $0x190] sm:$0xff]
      %v265 = vld [vmem:[%s1 + $0x198] sm:$0xff]
      %v266 = vld [vmem:[%s1 + $0x1a0] sm:$0xff]
      %v267 = vld [vmem:[%s1 + $0x1a8] sm:$0xff]
      %v268 = vld [vmem:[%s1 + $0x1b0] sm:$0xff]
      %v269 = vld [vmem:[%s1 + $0x1b8] sm:$0xff]
      %v270 = vld [vmem:[%s1 + $0x1c0] sm:$0xff]
      %v271 = vld [vmem:[%s1 + $0x1c8] sm:$0xff]
      %v272 = vld [vmem:[%s1 + $0x1d0] sm:$0xff]
      %v273 = vld [vmem:[%s1 + $0x1d8] sm:$0xff]
      %v274 = vld [vmem:[%s1 + $0x1e0] sm:$0xff]
      %v275 = vld [vmem:[%s1 + $0x1e8] sm:$0xff]
      %v276 = vld [vmem:[%s1 + $0x1f0] sm:$0xff]
      %v277 = vld [vmem:[%s1 + $0x1f8] sm:$0xff]
      %v278 = vld [vmem:[%s1 + $0x200] sm:$0xff]
      %v279 = vld [vmem:[%s1 + $0x208] sm:$0xff]
      %v280 = vld [vmem:[%s1 + $0x210] sm:$0xff]
      %v281 = vld [vmem:[%s1 + $0x218] sm:$0xff]
      %v282 = vld [vmem:[%s1 + $0x220] sm:$0xff]
      %v283 = vld [vmem:[%s1 + $0x228] sm:$0xff]
      %v284 = vld [vmem:[%s1 + $0x230] sm:$0xff]
      %v285 = vld [vmem:[%s1 + $0x238] sm:$0xff]
      %v286 = vld [vmem:[%s1 + $0x240] sm:$0xff]
      %v287 = vld [vmem:[%s1 + $0x248] sm:$0xff]
      %v288 = vld [vmem:[%s1 + $0x250] sm:$0xff]
      %v289 = vld [vmem:[%s1 + $0x258] sm:$0xff]
      %v290 = vld [vmem:[%s1 + $0x260] sm:$0xff]
      %v291 = vld [vmem:[%s1 + $0x268] sm:$0xff]
      %v292 = vld [vmem:[%s1 + $0x270] sm:$0xff]
      %v293 = vld [vmem:[%s1 + $0x278] sm:$0xff]
      %v294 = vld [vmem:[%s1 + $0x280] sm:$0xff]
      %v295 = vld [vmem:[%s1 + $0x288] sm:$0xff]
      %v296 = vld [vmem:[%s1 + $0x290] sm:$0xff]
      %v297 = vld [vmem:[%s1 + $0x298] sm:$0xff]
      %v298 = vld [vmem:[%s1 + $0x2a0] sm:$0xff]
      %v299 = vld [vmem:[%s1 + $0x2a8] sm:$0xff]
      %v300 = vld [vmem:[%s1 + $0x2b0] sm:$0xff]
      %v301 = vld [vmem:[%s1 + $0x2b8] sm:$0xff]
      %v302 = vld [vmem:[%s1 + $0x2c0] sm:$0xff]
      %v303 = vld [vmem:[%s1 + $0x2c8] sm:$0xff]
      %v304 = vld [vmem:[%s1 + $0x2d0] sm:$0xff]
      %v305 = vld [vmem:[%s1 + $0x2d8] sm:$0xff]
      %v306 = vld [vmem:[%s1 + $0x2e0] sm:$0xff]
      %v307 = vld [vmem:[%s1 + $0x2e8] sm:$0xff]
      %v308 = vld [vmem:[%s1 + $0x2f0] sm:$0xff]
      %v309 = vld [vmem:[%s1 + $0x2f8] sm:$0xff]
      %v310 = vld [vmem:[%s1 + $0x300] sm:$0xff]
      %v311 = vld [vmem:[%s1 + $0x308] sm:$0xff]
      %v312 = vld [vmem:[%s1 + $0x310] sm:$0xff]
      %v313 = vld [vmem:[%s1 + $0x318] sm:$0xff]
      %v314 = vld [vmem:[%s1 + $0x320] sm:$0xff]
      %v315 = vld [vmem:[%s1 + $0x328] sm:$0xff]
      %v316 = vld [vmem:[%s1 + $0x330] sm:$0xff]
      %v317 = vld [vmem:[%s1 + $0x338] sm:$0xff]
      %v318 = vld [vmem:[%s1 + $0x340] sm:$0xff]
      %v319 = vld [vmem:[%s1 + $0x348] sm:$0xff]
      %v320 = vld [vmem:[%s1 + $0x350] sm:$0xff]
      %v321 = vld [vmem:[%s1 + $0x358] sm:$0xff]
      %v322 = vld [vmem:[%s1 + $0x360] sm:$0xff]
      %v323 = vld [vmem:[%s1 + $0x368] sm:$0xff]
      %v324 = vld [vmem:[%s1 + $0x370] sm:$0xff]
      %v325 = vld [vmem:[%s1 + $0x378] sm:$0xff]
      %v326 = vld [vmem:[%s1 + $0x380] sm:$0xff]
      %v327 = vld [vmem:[%s1 + $0x388] sm:$0xff]
      %v328 = vld [vmem:[%s1 + $0x390] sm:$0xff]
      %v329 = vld [vmem:[%s1 + $0x398] sm:$0xff]
      %v330 = vld [vmem:[%s1 + $0x3a0] sm:$0xff]
      %v331 = vld [vmem:[%s1 + $0x3a8] sm:$0xff]
      %v332 = vld [vmem:[%s1 + $0x3b0] sm:$0xff]
      %v333 = vld [vmem:[%s1 + $0x3b8] sm:$0xff]
      %v334 = vld [vmem:[%s1 + $0x3c0] sm:$0xff]
      %v335 = vld [vmem:[%s1 + $0x3c8] sm:$0xff]
      %v336 = vld [vmem:[%s1 + $0x3d0] sm:$0xff]
      %v337 = vld [vmem:[%s1 + $0x3d8] sm:$0xff]
      %v338 = vld [vmem:[%s1 + $0x3e0] sm:$0xff]
      %v339 = vld [vmem:[%s1 + $0x3e8] sm:$0xff]
      %v340 = vld [vmem:[%s1 + $0x3f0] sm:$0xff]
      %v341 = vld [vmem:[%s1 + $0x3f8] sm:$0xff]
      %v342 = vld [vmem:[%s1 + $0x400] sm:$0xff]
      %v343 = vld [vmem:[%s1 + $0x408] sm:$0xff]
      %v344 = vld [vmem:[%s1 + $0x410] sm:$0xff]
      %v345 = vld [vmem:[%s1 + $0x418] sm:$0xff]
      %v346 = vld [vmem:[%s1 + $0x420] sm:$0xff]
      %v347 = vld [vmem:[%s1 + $0x428] sm:$0xff]
      %v348 = vld [vmem:[%s1 + $0x430] sm:$0xff]
      %v349 = vld [vmem:[%s1 + $0x438] sm:$0xff]
      %v350 = vld [vmem:[%s1 + $0x440] sm:$0xff]
      %v351 = vld [vmem:[%s1 + $0x448] sm:$0xff]
      %v352 = vld [vmem:[%s1 + $0x450] sm:$0xff]
      %v353 = vld [vmem:[%s1 + $0x458] sm:$0xff]
      %v354 = vld [vmem:[%s1 + $0x460] sm:$0xff]
      %v355 = vld [vmem:[%s1 + $0x468] sm:$0xff]
      %v356 = vld [vmem:[%s1 + $0x470] sm:$0xff]
      %v357 = vld [vmem:[%s1 + $0x478] sm:$0xff]
      %v358 = vld [vmem:[%s1 + $0x480] sm:$0xff]
      %v359 = vld [vmem:[%s1 + $0x488] sm:$0xff]
      %v360 = vld [vmem:[%s1 + $0x490] sm:$0xff]
      %v361 = vld [vmem:[%s1 + $0x498] sm:$0xff]
      %v362 = vld [vmem:[%s1 + $0x4a0] sm:$0xff]
      %v363 = vld [vmem:[%s1 + $0x4a8] sm:$0xff]
      %v400 = vunpack.c.l.b16 %v178
      %v401 = vunpack.c.h.b16 %v178
      %v402 = vunpack.c.l.b16 %v179
      %v403 = vunpack.c.h.b16 %v179
      %v404 = vunpack.c.l.b16 %v180
      %v405 = vunpack.c.l.b16 %v181
      %v406 = vunpack.c.h.b16 %v181
      %v407 = vunpack.c.l.b16 %v182
      %v408 = vunpack.c.h.b16 %v182
      %v409 = vunpack.c.l.b16 %v183
      %v410 = vunpack.c.l.b16 %v184
      %v411 = vunpack.c.h.b16 %v184
      %v412 = vunpack.c.l.b16 %v185
      %v413 = vunpack.c.h.b16 %v185
      %v414 = vunpack.c.l.b16 %v186
      %v415 = vunpack.c.l.b16 %v187
      %v416 = vunpack.c.h.b16 %v187
      %v417 = vunpack.c.l.b16 %v188
      %v418 = vunpack.c.h.b16 %v188
      %v419 = vunpack.c.l.b16 %v189
      %v420 = vunpack.c.l.b16 %v190
      %v421 = vunpack.c.h.b16 %v190
      %v422 = vunpack.c.l.b16 %v191
      %v423 = vunpack.c.h.b16 %v191
      %v424 = vunpack.c.l.b16 %v192
      %v425 = vunpack.c.l.b16 %v193
      %v426 = vunpack.c.h.b16 %v193
      %v427 = vunpack.c.l.b16 %v194
      %v428 = vunpack.c.h.b16 %v194
      %v429 = vunpack.c.l.b16 %v195
      %v430 = vunpack.c.l.b16 %v196
      %v431 = vunpack.c.h.b16 %v196
      %v432 = vunpack.c.l.b16 %v197
      %v433 = vunpack.c.h.b16 %v197
      %v434 = vunpack.c.l.b16 %v198
      %v435 = vunpack.c.l.b16 %v199
      %v436 = vunpack.c.h.b16 %v199
      %v437 = vunpack.c.l.b16 %v200
      %v438 = vunpack.c.h.b16 %v200
      %v439 = vunpack.c.l.b16 %v201
      %v440 = vunpack.c.l.b16 %v202
      %v441 = vunpack.c.h.b16 %v202
      %v442 = vunpack.c.l.b16 %v203
      %v443 = vunpack.c.h.b16 %v203
      %v444 = vunpack.c.l.b16 %v204
      %v445 = vunpack.c.l.b16 %v205
      %v446 = vunpack.c.h.b16 %v205
      %v447 = vunpack.c.l.b16 %v206
      %v448 = vunpack.c.h.b16 %v206
      %v449 = vunpack.c.l.b16 %v207
      %v450 = vunpack.c.l.b16 %v208
      %v451 = vunpack.c.h.b16 %v208
      %v452 = vunpack.c.l.b16 %v209
      %v453 = vunpack.c.h.b16 %v209
      %v454 = vunpack.c.l.b16 %v210
      %v455 = vunpack.c.l.b16 %v211
      %v456 = vunpack.c.h.b16 %v211
      %v457 = vunpack.c.l.b16 %v212
      %v458 = vunpack.c.h.b16 %v212
      %v459 = vunpack.c.l.b16 %v213
      %v460 = vpack.c.b16 %v405, %v400
      %v461 = vpack.c.b16 %v406, %v401
      %v462 = vpack.c.b16 %v407, %v402
      %v463 = vpack.c.b16 %v408, %v403
      %v464 = vpack.c.b16 %v409, %v404
      %v465 = vpack.c.b16 %v415, %v410
      %v466 = vpack.c.b16 %v416, %v411
      %v467 = vpack.c.b16 %v417, %v412
      %v468 = vpack.c.b16 %v418, %v413
      %v469 = vpack.c.b16 %v419, %v414
      %v470 = vpack.c.b16 %v425, %v420
      %v471 = vpack.c.b16 %v426, %v421
      %v472 = vpack.c.b16 %v427, %v422
      %v473 = vpack.c.b16 %v428, %v423
      %v474 = vpack.c.b16 %v429, %v424
      %v475 = vpack.c.b16 %v435, %v430
      %v476 = vpack.c.b16 %v436, %v431
      %v477 = vpack.c.b16 %v437, %v432
      %v478 = vpack.c.b16 %v438, %v433
      %v479 = vpack.c.b16 %v439, %v434
      %v480 = vpack.c.b16 %v445, %v440
      %v481 = vpack.c.b16 %v446, %v441
      %v482 = vpack.c.b16 %v447, %v442
      %v483 = vpack.c.b16 %v448, %v443
      %v484 = vpack.c.b16 %v449, %v444
      %v485 = vpack.c.b16 %v455, %v450
      %v486 = vpack.c.b16 %v456, %v451
      %v487 = vpack.c.b16 %v457, %v452
      %v488 = vpack.c.b16 %v458, %v453
      %v489 = vpack.c.b16 %v459, %v454
      %v664 = vunpack.c.l.b16 %v214
      %v665 = vunpack.c.h.b16 %v214
      %v666 = vunpack.c.l.b16 %v215
      %v667 = vunpack.c.h.b16 %v215
      %v668 = vunpack.c.l.b16 %v216
      %v669 = vunpack.c.h.b16 %v216
      %v670 = vunpack.c.l.b16 %v217
      %v671 = vunpack.c.h.b16 %v217
      %v672 = vunpack.c.l.b16 %v218
      %v673 = vunpack.c.h.b16 %v218
      %v674 = vunpack.c.l.b16 %v219
      %v675 = vunpack.c.h.b16 %v219
      %v676 = vunpack.c.l.b16 %v220
      %v677 = vunpack.c.h.b16 %v220
      %v678 = vunpack.c.l.b16 %v221
      %v679 = vunpack.c.h.b16 %v221
      %v680 = vunpack.c.l.b16 %v222
      %v681 = vunpack.c.h.b16 %v222
      %v682 = vunpack.c.l.b16 %v223
      %v683 = vunpack.c.h.b16 %v223
      %v684 = vunpack.c.l.b16 %v224
      %v685 = vunpack.c.h.b16 %v224
      %v686 = vunpack.c.l.b16 %v225
      %v687 = vunpack.c.h.b16 %v225
      %v688 = vunpack.c.l.b16 %v226
      %v689 = vunpack.c.h.b16 %v226
      %v690 = vunpack.c.l.b16 %v227
      %v691 = vunpack.c.h.b16 %v227
      %v692 = vunpack.c.l.b16 %v228
      %v693 = vunpack.c.h.b16 %v228
      %v694 = vunpack.c.l.b16 %v229
      %v695 = vunpack.c.h.b16 %v229
      %v696 = vunpack.c.l.b16 %v230
      %v697 = vunpack.c.h.b16 %v230
      %v698 = vunpack.c.l.b16 %v231
      %v699 = vunpack.c.h.b16 %v231
      %v700 = vunpack.c.l.b16 %v232
      %v701 = vunpack.c.h.b16 %v232
      %v702 = vunpack.c.l.b16 %v233
      %v703 = vunpack.c.h.b16 %v233
      %v704 = vunpack.c.l.b16 %v234
      %v705 = vunpack.c.h.b16 %v234
      %v706 = vunpack.c.l.b16 %v235
      %v707 = vunpack.c.h.b16 %v235
      %v708 = vunpack.c.l.b16 %v236
      %v709 = vunpack.c.h.b16 %v236
      %v710 = vunpack.c.l.b16 %v237
      %v711 = vunpack.c.h.b16 %v237
      %v712 = vunpack.c.l.b16 %v238
      %v713 = vunpack.c.h.b16 %v238
      %v714 = vunpack.c.l.b16 %v239
      %v715 = vunpack.c.h.b16 %v239
      %v716 = vunpack.c.l.b16 %v240
      %v717 = vunpack.c.h.b16 %v240
      %v718 = vunpack.c.l.b16 %v241
      %v719 = vunpack.c.h.b16 %v241
      %v720 = vunpack.c.l.b16 %v242
      %v721 = vunpack.c.h.b16 %v242
      %v722 = vunpack.c.l.b16 %v243
      %v723 = vunpack.c.h.b16 %v243
      %v724 = vunpack.c.l.b16 %v244
      %v725 = vunpack.c.h.b16 %v244
      %v726 = vunpack.c.l.b16 %v245
      %v727 = vunpack.c.h.b16 %v245
      %v728 = vunpack.c.l.b16 %v246
      %v729 = vunpack.c.h.b16 %v246
      %v730 = vunpack.c.l.b16 %v247
      %v731 = vunpack.c.h.b16 %v247
      %v732 = vunpack.c.l.b16 %v248
      %v733 = vunpack.c.h.b16 %v248
      %v734 = vunpack.c.l.b16 %v249
      %v735 = vunpack.c.h.b16 %v249
      %v736 = vunpack.c.l.b16 %v250
      %v737 = vunpack.c.h.b16 %v250
      %v738 = vunpack.c.l.b16 %v251
      %v739 = vunpack.c.h.b16 %v251
      %v740 = vunpack.c.l.b16 %v252
      %v741 = vunpack.c.h.b16 %v252
      %v742 = vunpack.c.l.b16 %v253
      %v743 = vunpack.c.h.b16 %v253
      %v744 = vunpack.c.l.b16 %v254
      %v745 = vunpack.c.h.b16 %v254
      %v746 = vunpack.c.l.b16 %v255
      %v747 = vunpack.c.h.b16 %v255
      %v748 = vunpack.c.l.b16 %v256
      %v749 = vunpack.c.h.b16 %v256
      %v750 = vunpack.c.l.b16 %v257
      %v751 = vunpack.c.h.b16 %v257
      %v752 = vunpack.c.l.b16 %v258
      %v753 = vunpack.c.h.b16 %v258
      %v754 = vunpack.c.l.b16 %v259
      %v755 = vunpack.c.h.b16 %v259
      %v756 = vunpack.c.l.b16 %v260
      %v757 = vunpack.c.h.b16 %v260
      %v758 = vunpack.c.l.b16 %v261
      %v759 = vunpack.c.h.b16 %v261
      %v760 = vunpack.c.l.b16 %v262
      %v761 = vunpack.c.h.b16 %v262
      %v762 = vunpack.c.l.b16 %v263
      %v763 = vunpack.c.h.b16 %v263
      %v764 = vunpack.c.l.b16 %v264
      %v765 = vunpack.c.h.b16 %v264
      %v766 = vunpack.c.l.b16 %v265
      %v767 = vunpack.c.h.b16 %v265
      %v768 = vunpack.c.l.b16 %v266
      %v769 = vunpack.c.h.b16 %v266
      %v770 = vunpack.c.l.b16 %v267
      %v771 = vunpack.c.h.b16 %v267
      %v772 = vunpack.c.l.b16 %v268
      %v773 = vunpack.c.h.b16 %v268
      %v774 = vunpack.c.l.b16 %v269
      %v775 = vunpack.c.h.b16 %v269
      %v776 = vunpack.c.l.b16 %v270
      %v777 = vunpack.c.h.b16 %v270
      %v778 = vunpack.c.l.b16 %v271
      %v779 = vunpack.c.h.b16 %v271
      %v780 = vunpack.c.l.b16 %v272
      %v781 = vunpack.c.h.b16 %v272
      %v782 = vunpack.c.l.b16 %v273
      %v783 = vunpack.c.h.b16 %v273
      %v784 = vunpack.c.l.b16 %v274
      %v785 = vunpack.c.h.b16 %v274
      %v786 = vunpack.c.l.b16 %v275
      %v787 = vunpack.c.h.b16 %v275
      %v788 = vunpack.c.l.b16 %v276
      %v789 = vunpack.c.h.b16 %v276
      %v790 = vunpack.c.l.b16 %v277
      %v791 = vunpack.c.h.b16 %v277
      %v792 = vunpack.c.l.b16 %v278
      %v793 = vunpack.c.h.b16 %v278
      %v794 = vunpack.c.l.b16 %v279
      %v795 = vunpack.c.h.b16 %v279
      %v796 = vunpack.c.l.b16 %v280
      %v797 = vunpack.c.h.b16 %v280
      %v798 = vunpack.c.l.b16 %v281
      %v799 = vunpack.c.h.b16 %v281
      %v800 = vunpack.c.l.b16 %v282
      %v801 = vunpack.c.h.b16 %v282
      %v802 = vunpack.c.l.b16 %v283
      %v803 = vunpack.c.h.b16 %v283
      %v804 = vunpack.c.l.b16 %v284
      %v805 = vunpack.c.h.b16 %v284
      %v806 = vunpack.c.l.b16 %v285
      %v807 = vunpack.c.h.b16 %v285
      %v808 = vunpack.c.l.b16 %v286
      %v809 = vunpack.c.h.b16 %v286
      %v810 = vunpack.c.l.b16 %v287
      %v811 = vunpack.c.h.b16 %v287
      %v812 = vunpack.c.l.b16 %v288
      %v813 = vunpack.c.h.b16 %v288
      %v814 = vunpack.c.l.b16 %v289
      %v815 = vunpack.c.h.b16 %v289
      %v816 = vunpack.c.l.b16 %v290
      %v817 = vunpack.c.h.b16 %v290
      %v818 = vunpack.c.l.b16 %v291
      %v819 = vunpack.c.h.b16 %v291
      %v820 = vunpack.c.l.b16 %v292
      %v821 = vunpack.c.h.b16 %v292
      %v822 = vunpack.c.l.b16 %v293
      %v823 = vunpack.c.h.b16 %v293
      %v824 = vunpack.c.l.b16 %v294
      %v825 = vunpack.c.h.b16 %v294
      %v826 = vunpack.c.l.b16 %v295
      %v827 = vunpack.c.h.b16 %v295
      %v828 = vunpack.c.l.b16 %v296
      %v829 = vunpack.c.h.b16 %v296
      %v830 = vunpack.c.l.b16 %v297
      %v831 = vunpack.c.h.b16 %v297
      %v832 = vunpack.c.l.b16 %v298
      %v833 = vunpack.c.h.b16 %v298
      %v834 = vunpack.c.l.b16 %v299
      %v835 = vunpack.c.h.b16 %v299
      %v836 = vunpack.c.l.b16 %v300
      %v837 = vunpack.c.h.b16 %v300
      %v838 = vunpack.c.l.b16 %v301
      %v839 = vunpack.c.h.b16 %v301
      %v840 = vunpack.c.l.b16 %v302
      %v841 = vunpack.c.h.b16 %v302
      %v842 = vunpack.c.l.b16 %v303
      %v843 = vunpack.c.h.b16 %v303
      %v844 = vunpack.c.l.b16 %v304
      %v845 = vunpack.c.h.b16 %v304
      %v846 = vunpack.c.l.b16 %v305
      %v847 = vunpack.c.h.b16 %v305
      %v848 = vunpack.c.l.b16 %v306
      %v849 = vunpack.c.h.b16 %v306
      %v850 = vunpack.c.l.b16 %v307
      %v851 = vunpack.c.h.b16 %v307
      %v852 = vunpack.c.l.b16 %v308
      %v853 = vunpack.c.h.b16 %v308
      %v854 = vunpack.c.l.b16 %v309
      %v855 = vunpack.c.h.b16 %v309
      %v856 = vunpack.c.l.b16 %v310
      %v857 = vunpack.c.h.b16 %v310
      %v858 = vunpack.c.l.b16 %v311
      %v859 = vunpack.c.h.b16 %v311
      %v860 = vunpack.c.l.b16 %v312
      %v861 = vunpack.c.h.b16 %v312
      %v862 = vunpack.c.l.b16 %v313
      %v863 = vunpack.c.h.b16 %v313
      %v864 = vunpack.c.l.b16 %v314
      %v865 = vunpack.c.h.b16 %v314
      %v866 = vunpack.c.l.b16 %v315
      %v867 = vunpack.c.h.b16 %v315
      %v868 = vunpack.c.l.b16 %v316
      %v869 = vunpack.c.h.b16 %v316
      %v870 = vunpack.c.l.b16 %v317
      %v871 = vunpack.c.h.b16 %v317
      %v872 = vunpack.c.l.b16 %v318
      %v873 = vunpack.c.h.b16 %v318
      %v874 = vunpack.c.l.b16 %v319
      %v875 = vunpack.c.h.b16 %v319
      %v876 = vunpack.c.l.b16 %v320
      %v877 = vunpack.c.h.b16 %v320
      %v878 = vunpack.c.l.b16 %v321
      %v879 = vunpack.c.h.b16 %v321
      %v880 = vunpack.c.l.b16 %v322
      %v881 = vunpack.c.h.b16 %v322
      %v882 = vunpack.c.l.b16 %v323
      %v883 = vunpack.c.h.b16 %v323
      %v884 = vunpack.c.l.b16 %v324
      %v885 = vunpack.c.h.b16 %v324
      %v886 = vunpack.c.l.b16 %v325
      %v887 = vunpack.c.h.b16 %v325
      %v888 = vunpack.c.l.b16 %v326
      %v889 = vunpack.c.h.b16 %v326
      %v890 = vunpack.c.l.b16 %v327
      %v891 = vunpack.c.h.b16 %v327
      %v892 = vunpack.c.l.b16 %v328
      %v893 = vunpack.c.h.b16 %v328
      %v894 = vunpack.c.l.b16 %v329
      %v895 = vunpack.c.h.b16 %v329
      %v896 = vunpack.c.l.b16 %v330
      %v897 = vunpack.c.h.b16 %v330
      %v898 = vunpack.c.l.b16 %v331
      %v899 = vunpack.c.h.b16 %v331
      %v900 = vunpack.c.l.b16 %v332
      %v901 = vunpack.c.h.b16 %v332
      %v902 = vunpack.c.l.b16 %v333
      %v903 = vunpack.c.h.b16 %v333
      %v904 = vunpack.c.l.b16 %v334
      %v905 = vunpack.c.h.b16 %v334
      %v906 = vunpack.c.l.b16 %v335
      %v907 = vunpack.c.h.b16 %v335
      %v908 = vunpack.c.l.b16 %v336
      %v909 = vunpack.c.h.b16 %v336
      %v910 = vunpack.c.l.b16 %v337
      %v911 = vunpack.c.h.b16 %v337
      %v912 = vunpack.c.l.b16 %v338
      %v913 = vunpack.c.h.b16 %v338
      %v914 = vunpack.c.l.b16 %v339
      %v915 = vunpack.c.h.b16 %v339
      %v916 = vunpack.c.l.b16 %v340
      %v917 = vunpack.c.h.b16 %v340
      %v918 = vunpack.c.l.b16 %v341
      %v919 = vunpack.c.h.b16 %v341
      %v920 = vunpack.c.l.b16 %v342
      %v921 = vunpack.c.h.b16 %v342
      %v922 = vunpack.c.l.b16 %v343
      %v923 = vunpack.c.h.b16 %v343
      %v924 = vunpack.c.l.b16 %v344
      %v925 = vunpack.c.h.b16 %v344
      %v926 = vunpack.c.l.b16 %v345
      %v927 = vunpack.c.h.b16 %v345
      %v928 = vunpack.c.l.b16 %v346
      %v929 = vunpack.c.h.b16 %v346
      %v930 = vunpack.c.l.b16 %v347
      %v931 = vunpack.c.h.b16 %v347
      %v932 = vunpack.c.l.b16 %v348
      %v933 = vunpack.c.h.b16 %v348
      %v934 = vunpack.c.l.b16 %v349
      %v935 = vunpack.c.h.b16 %v349
      %v936 = vunpack.c.l.b16 %v350
      %v937 = vunpack.c.h.b16 %v350
      %v938 = vunpack.c.l.b16 %v351
      %v939 = vunpack.c.h.b16 %v351
      %v940 = vunpack.c.l.b16 %v352
      %v941 = vunpack.c.h.b16 %v352
      %v942 = vunpack.c.l.b16 %v353
      %v943 = vunpack.c.h.b16 %v353
      %v944 = vunpack.c.l.b16 %v354
      %v945 = vunpack.c.h.b16 %v354
      %v946 = vunpack.c.l.b16 %v355
      %v947 = vunpack.c.h.b16 %v355
      %v948 = vunpack.c.l.b16 %v356
      %v949 = vunpack.c.h.b16 %v356
      %v950 = vunpack.c.l.b16 %v357
      %v951 = vunpack.c.h.b16 %v357
      %v952 = vunpack.c.l.b16 %v358
      %v953 = vunpack.c.h.b16 %v358
      %v954 = vunpack.c.l.b16 %v359
      %v955 = vunpack.c.h.b16 %v359
      %v956 = vunpack.c.l.b16 %v360
      %v957 = vunpack.c.h.b16 %v360
      %v958 = vunpack.c.l.b16 %v361
      %v959 = vunpack.c.h.b16 %v361
      %v960 = vunpack.c.l.b16 %v362
      %v961 = vunpack.c.h.b16 %v362
      %v962 = vunpack.c.l.b16 %v363
      %v963 = vunpack.c.h.b16 %v363
      %v964 = vpack.c.b16 %v668, %v664
      %v965 = vpack.c.b16 %v669, %v665
      %v966 = vpack.c.b16 %v670, %v666
      %v967 = vpack.c.b16 %v671, %v667
      %v968 = vpack.c.b16 %v676, %v672
      %v969 = vpack.c.b16 %v677, %v673
      %v970 = vpack.c.b16 %v678, %v674
      %v971 = vpack.c.b16 %v679, %v675
      %v972 = vpack.c.b16 %v684, %v680
      %v973 = vpack.c.b16 %v685, %v681
      %v974 = vpack.c.b16 %v686, %v682
      %v975 = vpack.c.b16 %v687, %v683
      %v976 = vpack.c.b16 %v692, %v688
      %v977 = vpack.c.b16 %v693, %v689
      %v978 = vpack.c.b16 %v694, %v690
      %v979 = vpack.c.b16 %v695, %v691
      %v980 = vpack.c.b16 %v700, %v696
      %v981 = vpack.c.b16 %v701, %v697
      %v982 = vpack.c.b16 %v702, %v698
      %v983 = vpack.c.b16 %v703, %v699
      %v984 = vpack.c.b16 %v708, %v704
      %v985 = vpack.c.b16 %v709, %v705
      %v986 = vpack.c.b16 %v710, %v706
      %v987 = vpack.c.b16 %v711, %v707
      %v988 = vpack.c.b16 %v716, %v712
      %v989 = vpack.c.b16 %v717, %v713
      %v990 = vpack.c.b16 %v718, %v714
      %v991 = vpack.c.b16 %v719, %v715
      %v992 = vpack.c.b16 %v724, %v720
      %v993 = vpack.c.b16 %v725, %v721
      %v994 = vpack.c.b16 %v726, %v722
      %v995 = vpack.c.b16 %v727, %v723
      %v996 = vpack.c.b16 %v732, %v728
      %v997 = vpack.c.b16 %v733, %v729
      %v998 = vpack.c.b16 %v734, %v730
      %v999 = vpack.c.b16 %v735, %v731
      %v1000 = vpack.c.b16 %v740, %v736
      %v1001 = vpack.c.b16 %v741, %v737
      %v1002 = vpack.c.b16 %v742, %v738
      %v1003 = vpack.c.b16 %v743, %v739
      %v1004 = vpack.c.b16 %v748, %v744
      %v1005 = vpack.c.b16 %v749, %v745
      %v1006 = vpack.c.b16 %v750, %v746
      %v1007 = vpack.c.b16 %v751, %v747
      %v1008 = vpack.c.b16 %v756, %v752
      %v1009 = vpack.c.b16 %v757, %v753
      %v1010 = vpack.c.b16 %v758, %v754
      %v1011 = vpack.c.b16 %v759, %v755
      %v1012 = vpack.c.b16 %v764, %v760
      %v1013 = vpack.c.b16 %v765, %v761
      %v1014 = vpack.c.b16 %v766, %v762
      %v1015 = vpack.c.b16 %v767, %v763
      %v1016 = vpack.c.b16 %v772, %v768
      %v1017 = vpack.c.b16 %v773, %v769
      %v1018 = vpack.c.b16 %v774, %v770
      %v1019 = vpack.c.b16 %v775, %v771
      %v1020 = vpack.c.b16 %v780, %v776
      %v1021 = vpack.c.b16 %v781, %v777
      %v1022 = vpack.c.b16 %v782, %v778
      %v1023 = vpack.c.b16 %v783, %v779
      %v1024 = vpack.c.b16 %v788, %v784
      %v1025 = vpack.c.b16 %v789, %v785
      %v1026 = vpack.c.b16 %v790, %v786
      %v1027 = vpack.c.b16 %v791, %v787
      %v1028 = vpack.c.b16 %v796, %v792
      %v1029 = vpack.c.b16 %v797, %v793
      %v1030 = vpack.c.b16 %v798, %v794
      %v1031 = vpack.c.b16 %v799, %v795
      %v1032 = vpack.c.b16 %v804, %v800
      %v1033 = vpack.c.b16 %v805, %v801
      %v1034 = vpack.c.b16 %v806, %v802
      %v1035 = vpack.c.b16 %v807, %v803
      %v1036 = vpack.c.b16 %v812, %v808
      %v1037 = vpack.c.b16 %v813, %v809
      %v1038 = vpack.c.b16 %v814, %v810
      %v1039 = vpack.c.b16 %v815, %v811
      %v1040 = vpack.c.b16 %v820, %v816
      %v1041 = vpack.c.b16 %v821, %v817
      %v1042 = vpack.c.b16 %v822, %v818
      %v1043 = vpack.c.b16 %v823, %v819
      %v1044 = vpack.c.b16 %v828, %v824
      %v1045 = vpack.c.b16 %v829, %v825
      %v1046 = vpack.c.b16 %v830, %v826
      %v1047 = vpack.c.b16 %v831, %v827
      %v1048 = vpack.c.b16 %v836, %v832
      %v1049 = vpack.c.b16 %v837, %v833
      %v1050 = vpack.c.b16 %v838, %v834
      %v1051 = vpack.c.b16 %v839, %v835
      %v1052 = vpack.c.b16 %v844, %v840
      %v1053 = vpack.c.b16 %v845, %v841
      %v1054 = vpack.c.b16 %v846, %v842
      %v1055 = vpack.c.b16 %v847, %v843
      %v1056 = vpack.c.b16 %v852, %v848
      %v1057 = vpack.c.b16 %v853, %v849
      %v1058 = vpack.c.b16 %v854, %v850
      %v1059 = vpack.c.b16 %v855, %v851
      %v1060 = vpack.c.b16 %v860, %v856
      %v1061 = vpack.c.b16 %v861, %v857
      %v1062 = vpack.c.b16 %v862, %v858
      %v1063 = vpack.c.b16 %v863, %v859
      %v1064 = vpack.c.b16 %v868, %v864
      %v1065 = vpack.c.b16 %v869, %v865
      %v1066 = vpack.c.b16 %v870, %v866
      %v1067 = vpack.c.b16 %v871, %v867
      %v1068 = vpack.c.b16 %v876, %v872
      %v1069 = vpack.c.b16 %v877, %v873
      %v1070 = vpack.c.b16 %v878, %v874
      %v1071 = vpack.c.b16 %v879, %v875
      %v1072 = vpack.c.b16 %v884, %v880
      %v1073 = vpack.c.b16 %v885, %v881
      %v1074 = vpack.c.b16 %v886, %v882
      %v1075 = vpack.c.b16 %v887, %v883
      %v1076 = vpack.c.b16 %v892, %v888
      %v1077 = vpack.c.b16 %v893, %v889
      %v1078 = vpack.c.b16 %v894, %v890
      %v1079 = vpack.c.b16 %v895, %v891
      %v1080 = vpack.c.b16 %v900, %v896
      %v1081 = vpack.c.b16 %v901, %v897
      %v1082 = vpack.c.b16 %v902, %v898
      %v1083 = vpack.c.b16 %v903, %v899
      %v1084 = vpack.c.b16 %v908, %v904
      %v1085 = vpack.c.b16 %v909, %v905
      %v1086 = vpack.c.b16 %v910, %v906
      %v1087 = vpack.c.b16 %v911, %v907
      %v1088 = vpack.c.b16 %v916, %v912
      %v1089 = vpack.c.b16 %v917, %v913
      %v1090 = vpack.c.b16 %v918, %v914
      %v1091 = vpack.c.b16 %v919, %v915
      %v1092 = vpack.c.b16 %v924, %v920
      %v1093 = vpack.c.b16 %v925, %v921
      %v1094 = vpack.c.b16 %v926, %v922
      %v1095 = vpack.c.b16 %v927, %v923
      %v1096 = vpack.c.b16 %v932, %v928
      %v1097 = vpack.c.b16 %v933, %v929
      %v1098 = vpack.c.b16 %v934, %v930
      %v1099 = vpack.c.b16 %v935, %v931
      %v1100 = vpack.c.b16 %v940, %v936
      %v1101 = vpack.c.b16 %v941, %v937
      %v1102 = vpack.c.b16 %v942, %v938
      %v1103 = vpack.c.b16 %v943, %v939
      %v1104 = vpack.c.b16 %v948, %v944
      %v1105 = vpack.c.b16 %v949, %v945
      %v1106 = vpack.c.b16 %v950, %v946
      %v1107 = vpack.c.b16 %v951, %v947
      %v1108 = vpack.c.b16 %v956, %v952
      %v1109 = vpack.c.b16 %v957, %v953
      %v1110 = vpack.c.b16 %v958, %v954
      %v1111 = vpack.c.b16 %v959, %v955
      %v1112 = vpack.c.b16 %v960, %v960
      %v1113 = vpack.c.b16 %v961, %v961
      %v1114 = vpack.c.b16 %v962, %v962
      %v1115 = vpack.c.b16 %v963, %v963
      %vm1264 = vcmask 719872
      %v1266 = vsel %vm1264, %v464, 0
      %v1269 = vsel %vm1264, %v469, 0
      %v1272 = vsel %vm1264, %v474, 0
      %v1275 = vsel %vm1264, %v479, 0
      %v1278 = vsel %vm1264, %v484, 0
      %v1281 = vsel %vm1264, %v489, 0
      %vm1283 = vcmask 1043456
      %v1285 = vsel %vm1283, %v1112, 0
      %v1288 = vsel %vm1283, %v1113, 0
      %v1291 = vsel %vm1283, %v1114, 0
      %v1294 = vsel %vm1283, %v1115, 0
      %1296 = vmatprep.subr.bf16.mxu0 %v965
      %1297 = vmatpush1.bf16.msra.mxu0 %v964
      %1298 = vmatprep.subr.bf16.mxu0 %v969
      %1299 = vmatpush1.bf16.msra.mxu0 %v968
      %1300 = vmatprep.subr.bf16.mxu0 %v973
      %1301 = vmatpush1.bf16.msra.mxu0 %v972
      %1302 = vmatprep.subr.bf16.mxu0 %v977
      %1303 = vmatpush1.bf16.msra.mxu0 %v976
      %1304 = vmatprep.subr.bf16.mxu0 %v981
      %1305 = vmatpush1.bf16.msra.mxu0 %v980
      %1306 = vmatprep.subr.bf16.mxu0 %v985
      %1307 = vmatpush1.bf16.msra.mxu0 %v984
      %1308 = vmatprep.subr.bf16.mxu0 %v989
      %1309 = vmatpush1.bf16.msra.mxu0 %v988
      %1310 = vmatprep.subr.bf16.mxu0 %v993
      %1311 = vmatpush1.bf16.msra.mxu0 %v992
      %1312 = vmatprep.subr.bf16.mxu0 %v997
      %1313 = vmatpush1.bf16.msra.mxu0 %v996
      %1314 = vmatprep.subr.bf16.mxu0 %v1001
      %1315 = vmatpush1.bf16.msra.mxu0 %v1000
      %1316 = vmatprep.subr.bf16.mxu0 %v1005
      %1317 = vmatpush1.bf16.msra.mxu0 %v1004
      %1318 = vmatprep.subr.bf16.mxu0 %v1009
      %1319 = vmatpush1.bf16.msra.mxu0 %v1008
      %1320 = vmatprep.subr.bf16.mxu0 %v1013
      %1321 = vmatpush1.bf16.msra.mxu0 %v1012
      %1322 = vmatprep.subr.bf16.mxu0 %v1017
      %1323 = vmatpush1.bf16.msra.mxu0 %v1016
      %1324 = vmatprep.subr.bf16.mxu0 %v1021
      %1325 = vmatpush1.bf16.msra.mxu0 %v1020
      %1326 = vmatprep.subr.bf16.mxu0 %v1025
      %1327 = vmatpush1.bf16.msra.mxu0 %v1024
      %1328 = vmatprep.mubr.bf16.mxu0 %v461
      %1329 = vmatmul.mubr.bf16.gmra.mrb[0].mxu0 %v460
      %v1330 = vpop.f32.mrb[0].mxu0
      %v1331 = vadd.f32 0.0, %v1330
      %v1332 = vpop.f32.mrb[0].mxu0
      %v1333 = vadd.f32 0.0, %v1332
      %v1334 = vpop.f32.mrb[0].mxu0
      %v1335 = vadd.f32 0.0, %v1334
      %v1336 = vpop.f32.mrb[0].mxu0
      %v1337 = vadd.f32 0.0, %v1336
      %1338 = vmatprep.mubr.bf16.mxu0 %v466
      %1339 = vmatmul.mubr.bf16.gmra.mrb[0].mxu0 %v465
      %v1340 = vpop.f32.mrb[0].mxu0
      %v1341 = vadd.f32 0.0, %v1340
      %v1342 = vpop.f32.mrb[0].mxu0
      %v1343 = vadd.f32 0.0, %v1342
      %v1344 = vpop.f32.mrb[0].mxu0
      %v1345 = vadd.f32 0.0, %v1344
      %v1346 = vpop.f32.mrb[0].mxu0
      %v1347 = vadd.f32 0.0, %v1346
      %1348 = vmatprep.mubr.bf16.mxu0 %v471
      %1349 = vmatmul.mubr.bf16.gmra.mrb[0].mxu0 %v470
      %v1350 = vpop.f32.mrb[0].mxu0
      %v1351 = vadd.f32 0.0, %v1350
      %v1352 = vpop.f32.mrb[0].mxu0
      %v1353 = vadd.f32 0.0, %v1352
      %v1354 = vpop.f32.mrb[0].mxu0
      %v1355 = vadd.f32 0.0, %v1354
      %v1356 = vpop.f32.mrb[0].mxu0
      %v1357 = vadd.f32 0.0, %v1356
      %1358 = vmatprep.mubr.bf16.mxu0 %v476
      %1359 = vmatmul.mubr.bf16.gmra.mrb[0].mxu0 %v475
      %v1360 = vpop.f32.mrb[0].mxu0
      %v1361 = vadd.f32 0.0, %v1360
      %v1362 = vpop.f32.mrb[0].mxu0
      %v1363 = vadd.f32 0.0, %v1362
      %v1364 = vpop.f32.mrb[0].mxu0
      %v1365 = vadd.f32 0.0, %v1364
      %v1366 = vpop.f32.mrb[0].mxu0
      %v1367 = vadd.f32 0.0, %v1366
      %1368 = vmatprep.mubr.bf16.mxu0 %v481
      %1369 = vmatmul.mubr.bf16.gmra.mrb[0].mxu0 %v480
      %v1370 = vpop.f32.mrb[0].mxu0
      %v1371 = vadd.f32 0.0, %v1370
      %v1372 = vpop.f32.mrb[0].mxu0
      %v1373 = vadd.f32 0.0, %v1372
      %v1374 = vpop.f32.mrb[0].mxu0
      %v1375 = vadd.f32 0.0, %v1374
      %v1376 = vpop.f32.mrb[0].mxu0
      %v1377 = vadd.f32 0.0, %v1376
      %1378 = vmatprep.mubr.bf16.mxu0 %v486
      %1379 = vmatmul.mubr.bf16.gmra.mrb[0].mxu0 %v485
      %v1380 = vpop.f32.mrb[0].mxu0
      %v1381 = vadd.f32 0.0, %v1380
      %v1382 = vpop.f32.mrb[0].mxu0
      %v1383 = vadd.f32 0.0, %v1382
      %v1384 = vpop.f32.mrb[0].mxu0
      %v1385 = vadd.f32 0.0, %v1384
      %v1386 = vpop.f32.mrb[0].mxu0
      %v1387 = vadd.f32 0.0, %v1386
      %1388 = vdwg.mxu0
      %1389 = vmatprep.subr.bf16.mxu0 %v1029
      %1390 = vmatpush1.bf16.msra.mxu0 %v1028
      %1391 = vmatprep.subr.bf16.mxu0 %v1033
      %1392 = vmatpush1.bf16.msra.mxu0 %v1032
      %1393 = vmatprep.subr.bf16.mxu0 %v1037
      %1394 = vmatpush1.bf16.msra.mxu0 %v1036
      %1395 = vmatprep.subr.bf16.mxu0 %v1041
      %1396 = vmatpush1.bf16.msra.mxu0 %v1040
      %1397 = vmatprep.subr.bf16.mxu0 %v1045
      %1398 = vmatpush1.bf16.msra.mxu0 %v1044
      %1399 = vmatprep.subr.bf16.mxu0 %v1049
      %1400 = vmatpush1.bf16.msra.mxu0 %v1048
      %1401 = vmatprep.subr.bf16.mxu0 %v1053
      %1402 = vmatpush1.bf16.msra.mxu0 %v1052
      %1403 = vmatprep.subr.bf16.mxu0 %v1057
      %1404 = vmatpush1.bf16.msra.mxu0 %v1056
      %1405 = vmatprep.subr.bf16.mxu0 %v1061
      %1406 = vmatpush1.bf16.msra.mxu0 %v1060
      %1407 = vmatprep.subr.bf16.mxu0 %v1065
      %1408 = vmatpush1.bf16.msra.mxu0 %v1064
      %1409 = vmatprep.subr.bf16.mxu0 %v1069
      %1410 = vmatpush1.bf16.msra.mxu0 %v1068
      %1411 = vmatprep.subr.bf16.mxu0 %v1073
      %1412 = vmatpush1.bf16.msra.mxu0 %v1072
      %1413 = vmatprep.subr.bf16.mxu0 %v1077
      %1414 = vmatpush1.bf16.msra.mxu0 %v1076
      %1415 = vmatprep.subr.bf16.mxu0 %v1081
      %1416 = vmatpush1.bf16.msra.mxu0 %v1080
      %1417 = vmatprep.subr.bf16.mxu0 %v1085
      %1418 = vmatpush1.bf16.msra.mxu0 %v1084
      %1419 = vmatprep.subr.bf16.mxu0 %v1089
      %1420 = vmatpush1.bf16.msra.mxu0 %v1088
      %1421 = vmatprep.mubr.bf16.mxu0 %v463
      %1422 = vmatmul.mubr.bf16.gmra.mrb[0].mxu0 %v462
      %v1423 = vpop.f32.mrb[0].mxu0
      %v1424 = vadd.f32 %v1331, %v1423
      %v1425 = vpop.f32.mrb[0].mxu0
      %v1426 = vadd.f32 %v1333, %v1425
      %v1427 = vpop.f32.mrb[0].mxu0
      %v1428 = vadd.f32 %v1335, %v1427
      %v1429 = vpop.f32.mrb[0].mxu0
      %v1430 = vadd.f32 %v1337, %v1429
      %1431 = vmatprep.mubr.bf16.mxu0 %v468
      %1432 = vmatmul.mubr.bf16.gmra.mrb[0].mxu0 %v467
      %v1433 = vpop.f32.mrb[0].mxu0
      %v1434 = vadd.f32 %v1341, %v1433
      %v1435 = vpop.f32.mrb[0].mxu0
      %v1436 = vadd.f32 %v1343, %v1435
      %v1437 = vpop.f32.mrb[0].mxu0
      %v1438 = vadd.f32 %v1345, %v1437
      %v1439 = vpop.f32.mrb[0].mxu0
      %v1440 = vadd.f32 %v1347, %v1439
      %1441 = vmatprep.mubr.bf16.mxu0 %v473
      %1442 = vmatmul.mubr.bf16.gmra.mrb[0].mxu0 %v472
      %v1443 = vpop.f32.mrb[0].mxu0
      %v1444 = vadd.f32 %v1351, %v1443
      %v1445 = vpop.f32.mrb[0].mxu0
      %v1446 = vadd.f32 %v1353, %v1445
      %v1447 = vpop.f32.mrb[0].mxu0
      %v1448 = vadd.f32 %v1355, %v1447
      %v1449 = vpop.f32.mrb[0].mxu0
      %v1450 = vadd.f32 %v1357, %v1449
      %1451 = vmatprep.mubr.bf16.mxu0 %v478
      %1452 = vmatmul.mubr.bf16.gmra.mrb[0].mxu0 %v477
      %v1453 = vpop.f32.mrb[0].mxu0
      %v1454 = vadd.f32 %v1361, %v1453
      %v1455 = vpop.f32.mrb[0].mxu0
      %v1456 = vadd.f32 %v1363, %v1455
      %v1457 = vpop.f32.mrb[0].mxu0
      %v1458 = vadd.f32 %v1365, %v1457
      %v1459 = vpop.f32.mrb[0].mxu0
      %v1460 = vadd.f32 %v1367, %v1459
      %1461 = vmatprep.mubr.bf16.mxu0 %v483
      %1462 = vmatmul.mubr.bf16.gmra.mrb[0].mxu0 %v482
      %v1463 = vpop.f32.mrb[0].mxu0
      %v1464 = vadd.f32 %v1371, %v1463
      %v1465 = vpop.f32.mrb[0].mxu0
      %v1466 = vadd.f32 %v1373, %v1465
      %v1467 = vpop.f32.mrb[0].mxu0
      %v1468 = vadd.f32 %v1375, %v1467
      %v1469 = vpop.f32.mrb[0].mxu0
      %v1470 = vadd.f32 %v1377, %v1469
      %1471 = vmatprep.mubr.bf16.mxu0 %v488
      %1472 = vmatmul.mubr.bf16.gmra.mrb[0].mxu0 %v487
      %v1473 = vpop.f32.mrb[0].mxu0
      %v1474 = vadd.f32 %v1381, %v1473
      %v1475 = vpop.f32.mrb[0].mxu0
      %v1476 = vadd.f32 %v1383, %v1475
      %v1477 = vpop.f32.mrb[0].mxu0
      %v1478 = vadd.f32 %v1385, %v1477
      %v1479 = vpop.f32.mrb[0].mxu0
      %v1480 = vadd.f32 %v1387, %v1479
      %1481 = vdwg.mxu0
      %1482 = vmatprep.subr.bf16.mxu0 %v1093
      %1483 = vmatpush1.bf16.msra.mxu0 %v1092
      %1484 = vmatprep.subr.bf16.mxu0 %v1097
      %1485 = vmatpush1.bf16.msra.mxu0 %v1096
      %1486 = vmatprep.subr.bf16.mxu0 %v1101
      %1487 = vmatpush1.bf16.msra.mxu0 %v1100
      %1488 = vmatprep.subr.bf16.mxu0 %v1105
      %1489 = vmatpush1.bf16.msra.mxu0 %v1104
      %1490 = vmatprep.subr.bf16.mxu0 %v1109
      %1491 = vmatpush1.bf16.msra.mxu0 %v1108
      %1492 = vmatprep.subr.bf16.mxu0 %v1288
      %1493 = vmatpush1.bf16.msra.mxu0 %v1285
      %1494 = vmatprep.subr.bf16.mxu0 0
      %1495 = vmatpush1.bf16.msra.mxu0 0
      %1496 = vmatprep.subr.bf16.mxu0 0
      %1497 = vmatpush1.bf16.msra.mxu0 0
      %1498 = vmatprep.subr.bf16.mxu0 0
      %1499 = vmatpush1.bf16.msra.mxu0 0
      %1500 = vmatprep.subr.bf16.mxu0 0
      %1501 = vmatpush1.bf16.msra.mxu0 0
      %1502 = vmatprep.subr.bf16.mxu0 0
      %1503 = vmatpush1.bf16.msra.mxu0 0
      %1504 = vmatprep.subr.bf16.mxu0 0
      %1505 = vmatpush1.bf16.msra.mxu0 0
      %1506 = vmatprep.subr.bf16.mxu0 0
      %1507 = vmatpush1.bf16.msra.mxu0 0
      %1508 = vmatprep.subr.bf16.mxu0 0
      %1509 = vmatpush1.bf16.msra.mxu0 0
      %1510 = vmatprep.subr.bf16.mxu0 0
      %1511 = vmatpush1.bf16.msra.mxu0 0
      %1512 = vmatprep.subr.bf16.mxu0 0
      %1513 = vmatpush1.bf16.msra.mxu0 0
      %1514 = vmatprep.mubr.bf16.mxu0 0
      %1515 = vmatmul.mubr.bf16.gmra.mrb[0].mxu0 %v1266
      %v1516 = vpop.f32.mrb[0].mxu0
      %v1517 = vadd.f32 %v1424, %v1516
      %v1518 = vpop.f32.mrb[0].mxu0
      %v1519 = vadd.f32 %v1426, %v1518
      %v1520 = vpop.f32.mrb[0].mxu0
      %v1521 = vadd.f32 %v1428, %v1520
      %v1522 = vpop.f32.mrb[0].mxu0
      %v1523 = vadd.f32 %v1430, %v1522
      %1524 = vmatprep.mubr.bf16.mxu0 0
      %1525 = vmatmul.mubr.bf16.gmra.mrb[0].mxu0 %v1269
      %v1526 = vpop.f32.mrb[0].mxu0
      %v1527 = vadd.f32 %v1434, %v1526
      %v1528 = vpop.f32.mrb[0].mxu0
      %v1529 = vadd.f32 %v1436, %v1528
      %v1530 = vpop.f32.mrb[0].mxu0
      %v1531 = vadd.f32 %v1438, %v1530
      %v1532 = vpop.f32.mrb[0].mxu0
      %v1533 = vadd.f32 %v1440, %v1532
      %1534 = vmatprep.mubr.bf16.mxu0 0
      %1535 = vmatmul.mubr.bf16.gmra.mrb[0].mxu0 %v1272
      %v1536 = vpop.f32.mrb[0].mxu0
      %v1537 = vadd.f32 %v1444, %v1536
      %v1538 = vpop.f32.mrb[0].mxu0
      %v1539 = vadd.f32 %v1446, %v1538
      %v1540 = vpop.f32.mrb[0].mxu0
      %v1541 = vadd.f32 %v1448, %v1540
      %v1542 = vpop.f32.mrb[0].mxu0
      %v1543 = vadd.f32 %v1450, %v1542
      %1544 = vmatprep.mubr.bf16.mxu0 0
      %1545 = vmatmul.mubr.bf16.gmra.mrb[0].mxu0 %v1275
      %v1546 = vpop.f32.mrb[0].mxu0
      %v1547 = vadd.f32 %v1454, %v1546
      %v1548 = vpop.f32.mrb[0].mxu0
      %v1549 = vadd.f32 %v1456, %v1548
      %v1550 = vpop.f32.mrb[0].mxu0
      %v1551 = vadd.f32 %v1458, %v1550
      %v1552 = vpop.f32.mrb[0].mxu0
      %v1553 = vadd.f32 %v1460, %v1552
      %1554 = vmatprep.mubr.bf16.mxu0 0
      %1555 = vmatmul.mubr.bf16.gmra.mrb[0].mxu0 %v1278
      %v1556 = vpop.f32.mrb[0].mxu0
      %v1557 = vadd.f32 %v1464, %v1556
      %v1558 = vpop.f32.mrb[0].mxu0
      %v1559 = vadd.f32 %v1466, %v1558
      %v1560 = vpop.f32.mrb[0].mxu0
      %v1561 = vadd.f32 %v1468, %v1560
      %v1562 = vpop.f32.mrb[0].mxu0
      %v1563 = vadd.f32 %v1470, %v1562
      %1564 = vmatprep.mubr.bf16.mxu0 0
      %1565 = vmatmul.mubr.bf16.gmra.mrb[0].mxu0 %v1281
      %v1566 = vpop.f32.mrb[0].mxu0
      %v1567 = vadd.f32 %v1474, %v1566
      %v1568 = vpop.f32.mrb[0].mxu0
      %v1569 = vadd.f32 %v1476, %v1568
      %v1570 = vpop.f32.mrb[0].mxu0
      %v1571 = vadd.f32 %v1478, %v1570
      %v1572 = vpop.f32.mrb[0].mxu0
      %v1573 = vadd.f32 %v1480, %v1572
      %1574 = vdwg.mxu0
      %1575 = vmatprep.subr.bf16.mxu0 %v967
      %1576 = vmatpush1.bf16.msra.mxu0 %v966
      %1577 = vmatprep.subr.bf16.mxu0 %v971
      %1578 = vmatpush1.bf16.msra.mxu0 %v970
      %1579 = vmatprep.subr.bf16.mxu0 %v975
      %1580 = vmatpush1.bf16.msra.mxu0 %v974
      %1581 = vmatprep.subr.bf16.mxu0 %v979
      %1582 = vmatpush1.bf16.msra.mxu0 %v978
      %1583 = vmatprep.subr.bf16.mxu0 %v983
      %1584 = vmatpush1.bf16.msra.mxu0 %v982
      %1585 = vmatprep.subr.bf16.mxu0 %v987
      %1586 = vmatpush1.bf16.msra.mxu0 %v986
      %1587 = vmatprep.subr.bf16.mxu0 %v991
      %1588 = vmatpush1.bf16.msra.mxu0 %v990
      %1589 = vmatprep.subr.bf16.mxu0 %v995
      %1590 = vmatpush1.bf16.msra.mxu0 %v994
      %1591 = vmatprep.subr.bf16.mxu0 %v999
      %1592 = vmatpush1.bf16.msra.mxu0 %v998
      %1593 = vmatprep.subr.bf16.mxu0 %v1003
      %1594 = vmatpush1.bf16.msra.mxu0 %v1002
      %1595 = vmatprep.subr.bf16.mxu0 %v1007
      %1596 = vmatpush1.bf16.msra.mxu0 %v1006
      %1597 = vmatprep.subr.bf16.mxu0 %v1011
      %1598 = vmatpush1.bf16.msra.mxu0 %v1010
      %1599 = vmatprep.subr.bf16.mxu0 %v1015
      %1600 = vmatpush1.bf16.msra.mxu0 %v1014
      %1601 = vmatprep.subr.bf16.mxu0 %v1019
      %1602 = vmatpush1.bf16.msra.mxu0 %v1018
      %1603 = vmatprep.subr.bf16.mxu0 %v1023
      %1604 = vmatpush1.bf16.msra.mxu0 %v1022
      %1605 = vmatprep.subr.bf16.mxu0 %v1027
      %1606 = vmatpush1.bf16.msra.mxu0 %v1026
      %1607 = vmatprep.mubr.bf16.mxu0 %v461
      %1608 = vmatmul.mubr.bf16.gmra.mrb[0].mxu0 %v460
      %v1609 = vpop.f32.mrb[0].mxu0
      %v1610 = vadd.f32 0.0, %v1609
      %v1611 = vpop.f32.mrb[0].mxu0
      %v1612 = vadd.f32 0.0, %v1611
      %v1613 = vpop.f32.mrb[0].mxu0
      %v1614 = vadd.f32 0.0, %v1613
      %v1615 = vpop.f32.mrb[0].mxu0
      %v1616 = vadd.f32 0.0, %v1615
      %1617 = vmatprep.mubr.bf16.mxu0 %v466
      %1618 = vmatmul.mubr.bf16.gmra.mrb[0].mxu0 %v465
      %v1619 = vpop.f32.mrb[0].mxu0
      %v1620 = vadd.f32 0.0, %v1619
      %v1621 = vpop.f32.mrb[0].mxu0
      %v1622 = vadd.f32 0.0, %v1621
      %v1623 = vpop.f32.mrb[0].mxu0
      %v1624 = vadd.f32 0.0, %v1623
      %v1625 = vpop.f32.mrb[0].mxu0
      %v1626 = vadd.f32 0.0, %v1625
      %1627 = vmatprep.mubr.bf16.mxu0 %v471
      %1628 = vmatmul.mubr.bf16.gmra.mrb[0].mxu0 %v470
      %v1629 = vpop.f32.mrb[0].mxu0
      %v1630 = vadd.f32 0.0, %v1629
      %v1631 = vpop.f32.mrb[0].mxu0
      %v1632 = vadd.f32 0.0, %v1631
      %v1633 = vpop.f32.mrb[0].mxu0
      %v1634 = vadd.f32 0.0, %v1633
      %v1635 = vpop.f32.mrb[0].mxu0
      %v1636 = vadd.f32 0.0, %v1635
      %1637 = vmatprep.mubr.bf16.mxu0 %v476
      %1638 = vmatmul.mubr.bf16.gmra.mrb[0].mxu0 %v475
      %v1639 = vpop.f32.mrb[0].mxu0
      %v1640 = vadd.f32 0.0, %v1639
      %v1641 = vpop.f32.mrb[0].mxu0
      %v1642 = vadd.f32 0.0, %v1641
      %v1643 = vpop.f32.mrb[0].mxu0
      %v1644 = vadd.f32 0.0, %v1643
      %v1645 = vpop.f32.mrb[0].mxu0
      %v1646 = vadd.f32 0.0, %v1645
      %1647 = vmatprep.mubr.bf16.mxu0 %v481
      %1648 = vmatmul.mubr.bf16.gmra.mrb[0].mxu0 %v480
      %v1649 = vpop.f32.mrb[0].mxu0
      %v1650 = vadd.f32 0.0, %v1649
      %v1651 = vpop.f32.mrb[0].mxu0
      %v1652 = vadd.f32 0.0, %v1651
      %v1653 = vpop.f32.mrb[0].mxu0
      %v1654 = vadd.f32 0.0, %v1653
      %v1655 = vpop.f32.mrb[0].mxu0
      %v1656 = vadd.f32 0.0, %v1655
      %1657 = vmatprep.mubr.bf16.mxu0 %v486
      %1658 = vmatmul.mubr.bf16.gmra.mrb[0].mxu0 %v485
      %v1659 = vpop.f32.mrb[0].mxu0
      %v1660 = vadd.f32 0.0, %v1659
      %v1661 = vpop.f32.mrb[0].mxu0
      %v1662 = vadd.f32 0.0, %v1661
      %v1663 = vpop.f32.mrb[0].mxu0
      %v1664 = vadd.f32 0.0, %v1663
      %v1665 = vpop.f32.mrb[0].mxu0
      %v1666 = vadd.f32 0.0, %v1665
      %1667 = vdwg.mxu0
      %1668 = vmatprep.subr.bf16.mxu0 %v1031
      %1669 = vmatpush1.bf16.msra.mxu0 %v1030
      %1670 = vmatprep.subr.bf16.mxu0 %v1035
      %1671 = vmatpush1.bf16.msra.mxu0 %v1034
      %1672 = vmatprep.subr.bf16.mxu0 %v1039
      %1673 = vmatpush1.bf16.msra.mxu0 %v1038
      %1674 = vmatprep.subr.bf16.mxu0 %v1043
      %1675 = vmatpush1.bf16.msra.mxu0 %v1042
      %1676 = vmatprep.subr.bf16.mxu0 %v1047
      %1677 = vmatpush1.bf16.msra.mxu0 %v1046
      %1678 = vmatprep.subr.bf16.mxu0 %v1051
      %1679 = vmatpush1.bf16.msra.mxu0 %v1050
      %1680 = vmatprep.subr.bf16.mxu0 %v1055
      %1681 = vmatpush1.bf16.msra.mxu0 %v1054
      %1682 = vmatprep.subr.bf16.mxu0 %v1059
      %1683 = vmatpush1.bf16.msra.mxu0 %v1058
      %1684 = vmatprep.subr.bf16.mxu0 %v1063
      %1685 = vmatpush1.bf16.msra.mxu0 %v1062
      %1686 = vmatprep.subr.bf16.mxu0 %v1067
      %1687 = vmatpush1.bf16.msra.mxu0 %v1066
      %1688 = vmatprep.subr.bf16.mxu0 %v1071
      %1689 = vmatpush1.bf16.msra.mxu0 %v1070
      %1690 = vmatprep.subr.bf16.mxu0 %v1075
      %1691 = vmatpush1.bf16.msra.mxu0 %v1074
      %1692 = vmatprep.subr.bf16.mxu0 %v1079
      %1693 = vmatpush1.bf16.msra.mxu0 %v1078
      %1694 = vmatprep.subr.bf16.mxu0 %v1083
      %1695 = vmatpush1.bf16.msra.mxu0 %v1082
      %1696 = vmatprep.subr.bf16.mxu0 %v1087
      %1697 = vmatpush1.bf16.msra.mxu0 %v1086
      %1698 = vmatprep.subr.bf16.mxu0 %v1091
      %1699 = vmatpush1.bf16.msra.mxu0 %v1090
      %1700 = vmatprep.mubr.bf16.mxu0 %v463
      %1701 = vmatmul.mubr.bf16.gmra.mrb[0].mxu0 %v462
      %v1702 = vpop.f32.mrb[0].mxu0
      %v1703 = vadd.f32 %v1610, %v1702
      %v1704 = vpop.f32.mrb[0].mxu0
      %v1705 = vadd.f32 %v1612, %v1704
      %v1706 = vpop.f32.mrb[0].mxu0
      %v1707 = vadd.f32 %v1614, %v1706
      %v1708 = vpop.f32.mrb[0].mxu0
      %v1709 = vadd.f32 %v1616, %v1708
      %1710 = vmatprep.mubr.bf16.mxu0 %v468
      %1711 = vmatmul.mubr.bf16.gmra.mrb[0].mxu0 %v467
      %v1712 = vpop.f32.mrb[0].mxu0
      %v1713 = vadd.f32 %v1620, %v1712
      %v1714 = vpop.f32.mrb[0].mxu0
      %v1715 = vadd.f32 %v1622, %v1714
      %v1716 = vpop.f32.mrb[0].mxu0
      %v1717 = vadd.f32 %v1624, %v1716
      %v1718 = vpop.f32.mrb[0].mxu0
      %v1719 = vadd.f32 %v1626, %v1718
      %1720 = vmatprep.mubr.bf16.mxu0 %v473
      %1721 = vmatmul.mubr.bf16.gmra.mrb[0].mxu0 %v472
      %v1722 = vpop.f32.mrb[0].mxu0
      %v1723 = vadd.f32 %v1630, %v1722
      %v1724 = vpop.f32.mrb[0].mxu0
      %v1725 = vadd.f32 %v1632, %v1724
      %v1726 = vpop.f32.mrb[0].mxu0
      %v1727 = vadd.f32 %v1634, %v1726
      %v1728 = vpop.f32.mrb[0].mxu0
      %v1729 = vadd.f32 %v1636, %v1728
      %1730 = vmatprep.mubr.bf16.mxu0 %v478
      %1731 = vmatmul.mubr.bf16.gmra.mrb[0].mxu0 %v477
      %v1732 = vpop.f32.mrb[0].mxu0
      %v1733 = vadd.f32 %v1640, %v1732
      %v1734 = vpop.f32.mrb[0].mxu0
      %v1735 = vadd.f32 %v1642, %v1734
      %v1736 = vpop.f32.mrb[0].mxu0
      %v1737 = vadd.f32 %v1644, %v1736
      %v1738 = vpop.f32.mrb[0].mxu0
      %v1739 = vadd.f32 %v1646, %v1738
      %1740 = vmatprep.mubr.bf16.mxu0 %v483
      %1741 = vmatmul.mubr.bf16.gmra.mrb[0].mxu0 %v482
      %v1742 = vpop.f32.mrb[0].mxu0
      %v1743 = vadd.f32 %v1650, %v1742
      %v1744 = vpop.f32.mrb[0].mxu0
      %v1745 = vadd.f32 %v1652, %v1744
      %v1746 = vpop.f32.mrb[0].mxu0
      %v1747 = vadd.f32 %v1654, %v1746
      %v1748 = vpop.f32.mrb[0].mxu0
      %v1749 = vadd.f32 %v1656, %v1748
      %1750 = vmatprep.mubr.bf16.mxu0 %v488
      %1751 = vmatmul.mubr.bf16.gmra.mrb[0].mxu0 %v487
      %v1752 = vpop.f32.mrb[0].mxu0
      %v1753 = vadd.f32 %v1660, %v1752
      %v1754 = vpop.f32.mrb[0].mxu0
      %v1755 = vadd.f32 %v1662, %v1754
      %v1756 = vpop.f32.mrb[0].mxu0
      %v1757 = vadd.f32 %v1664, %v1756
      %v1758 = vpop.f32.mrb[0].mxu0
      %v1759 = vadd.f32 %v1666, %v1758
      %1760 = vdwg.mxu0
      %1761 = vmatprep.subr.bf16.mxu0 %v1095
      %1762 = vmatpush1.bf16.msra.mxu0 %v1094
      %1763 = vmatprep.subr.bf16.mxu0 %v1099
      %1764 = vmatpush1.bf16.msra.mxu0 %v1098
      %1765 = vmatprep.subr.bf16.mxu0 %v1103
      %1766 = vmatpush1.bf16.msra.mxu0 %v1102
      %1767 = vmatprep.subr.bf16.mxu0 %v1107
      %1768 = vmatpush1.bf16.msra.mxu0 %v1106
      %1769 = vmatprep.subr.bf16.mxu0 %v1111
      %1770 = vmatpush1.bf16.msra.mxu0 %v1110
      %1771 = vmatprep.subr.bf16.mxu0 %v1294
      %1772 = vmatpush1.bf16.msra.mxu0 %v1291
      %1773 = vmatprep.subr.bf16.mxu0 0
      %1774 = vmatpush1.bf16.msra.mxu0 0
      %1775 = vmatprep.subr.bf16.mxu0 0
      %1776 = vmatpush1.bf16.msra.mxu0 0
      %1777 = vmatprep.subr.bf16.mxu0 0
      %1778 = vmatpush1.bf16.msra.mxu0 0
      %1779 = vmatprep.subr.bf16.mxu0 0
      %1780 = vmatpush1.bf16.msra.mxu0 0
      %1781 = vmatprep.subr.bf16.mxu0 0
      %1782 = vmatpush1.bf16.msra.mxu0 0
      %1783 = vmatprep.subr.bf16.mxu0 0
      %1784 = vmatpush1.bf16.msra.mxu0 0
      %1785 = vmatprep.subr.bf16.mxu0 0
      %1786 = vmatpush1.bf16.msra.mxu0 0
      %1787 = vmatprep.subr.bf16.mxu0 0
      %1788 = vmatpush1.bf16.msra.mxu0 0
      %1789 = vmatprep.subr.bf16.mxu0 0
      %1790 = vmatpush1.bf16.msra.mxu0 0
      %1791 = vmatprep.subr.bf16.mxu0 0
      %1792 = vmatpush1.bf16.msra.mxu0 0
      %1793 = vmatprep.mubr.bf16.mxu0 0
      %1794 = vmatmul.mubr.bf16.gmra.mrb[0].mxu0 %v1266
      %v1795 = vpop.f32.mrb[0].mxu0
      %v1796 = vadd.f32 %v1703, %v1795
      %v1797 = vpop.f32.mrb[0].mxu0
      %v1798 = vadd.f32 %v1705, %v1797
      %v1799 = vpop.f32.mrb[0].mxu0
      %v1800 = vadd.f32 %v1707, %v1799
      %v1801 = vpop.f32.mrb[0].mxu0
      %v1802 = vadd.f32 %v1709, %v1801
      %1803 = vmatprep.mubr.bf16.mxu0 0
      %1804 = vmatmul.mubr.bf16.gmra.mrb[0].mxu0 %v1269
      %v1805 = vpop.f32.mrb[0].mxu0
      %v1806 = vadd.f32 %v1713, %v1805
      %v1807 = vpop.f32.mrb[0].mxu0
      %v1808 = vadd.f32 %v1715, %v1807
      %v1809 = vpop.f32.mrb[0].mxu0
      %v1810 = vadd.f32 %v1717, %v1809
      %v1811 = vpop.f32.mrb[0].mxu0
      %v1812 = vadd.f32 %v1719, %v1811
      %1813 = vmatprep.mubr.bf16.mxu0 0
      %1814 = vmatmul.mubr.bf16.gmra.mrb[0].mxu0 %v1272
      %v1815 = vpop.f32.mrb[0].mxu0
      %v1816 = vadd.f32 %v1723, %v1815
      %v1817 = vpop.f32.mrb[0].mxu0
      %v1818 = vadd.f32 %v1725, %v1817
      %v1819 = vpop.f32.mrb[0].mxu0
      %v1820 = vadd.f32 %v1727, %v1819
      %v1821 = vpop.f32.mrb[0].mxu0
      %v1822 = vadd.f32 %v1729, %v1821
      %1823 = vmatprep.mubr.bf16.mxu0 0
      %1824 = vmatmul.mubr.bf16.gmra.mrb[0].mxu0 %v1275
      %v1825 = vpop.f32.mrb[0].mxu0
      %v1826 = vadd.f32 %v1733, %v1825
      %v1827 = vpop.f32.mrb[0].mxu0
      %v1828 = vadd.f32 %v1735, %v1827
      %v1829 = vpop.f32.mrb[0].mxu0
      %v1830 = vadd.f32 %v1737, %v1829
      %v1831 = vpop.f32.mrb[0].mxu0
      %v1832 = vadd.f32 %v1739, %v1831
      %1833 = vmatprep.mubr.bf16.mxu0 0
      %1834 = vmatmul.mubr.bf16.gmra.mrb[0].mxu0 %v1278
      %v1835 = vpop.f32.mrb[0].mxu0
      %v1836 = vadd.f32 %v1743, %v1835
      %v1837 = vpop.f32.mrb[0].mxu0
      %v1838 = vadd.f32 %v1745, %v1837
      %v1839 = vpop.f32.mrb[0].mxu0
      %v1840 = vadd.f32 %v1747, %v1839
      %v1841 = vpop.f32.mrb[0].mxu0
      %v1842 = vadd.f32 %v1749, %v1841
      %1843 = vmatprep.mubr.bf16.mxu0 0
      %1844 = vmatmul.mubr.bf16.gmra.mrb[0].mxu0 %v1281
      %v1845 = vpop.f32.mrb[0].mxu0
      %v1846 = vadd.f32 %v1753, %v1845
      %v1847 = vpop.f32.mrb[0].mxu0
      %v1848 = vadd.f32 %v1755, %v1847
      %v1849 = vpop.f32.mrb[0].mxu0
      %v1850 = vadd.f32 %v1757, %v1849
      %v1851 = vpop.f32.mrb[0].mxu0
      %v1852 = vadd.f32 %v1759, %v1851
      %1853 = vdwg.mxu0
      %v1854 = vmax.f32 %v1517, %v1519
      %v1855 = vmax.f32 %v1521, %v1523
      %v1856 = vmax.f32 %v1527, %v1529
      %v1857 = vmax.f32 %v1531, %v1533
      %v1858 = vmax.f32 %v1537, %v1539
      %v1859 = vmax.f32 %v1541, %v1543
      %v1860 = vmax.f32 %v1547, %v1549
      %v1861 = vmax.f32 %v1551, %v1553
      %v1862 = vmax.f32 %v1557, %v1559
      %v1863 = vmax.f32 %v1561, %v1563
      %v1864 = vmax.f32 %v1567, %v1569
      %v1865 = vmax.f32 %v1571, %v1573
      %v1866 = vmax.f32 %v1796, %v1798
      %v1867 = vmax.f32 %v1800, %v1802
      %v1868 = vmax.f32 %v1806, %v1808
      %v1869 = vmax.f32 %v1810, %v1812
      %v1870 = vmax.f32 %v1816, %v1818
      %v1871 = vmax.f32 %v1820, %v1822
      %v1872 = vmax.f32 %v1826, %v1828
      %v1873 = vmax.f32 %v1830, %v1832
      %v1874 = vmax.f32 %v1836, %v1838
      %v1875 = vmax.f32 %v1840, %v1842
      %v1876 = vmax.f32 %v1846, %v1848
      %v1877 = vmax.f32 %v1850, %v1852
      %v1878 = vmax.f32 %v1854, %v1866
      %v1879 = vmax.f32 %v1855, %v1867
      %v1880 = vmax.f32 %v1856, %v1868
      %v1881 = vmax.f32 %v1857, %v1869
      %v1882 = vmax.f32 %v1858, %v1870
      %v1883 = vmax.f32 %v1859, %v1871
      %v1884 = vmax.f32 %v1860, %v1872
      %v1885 = vmax.f32 %v1861, %v1873
      %v1886 = vmax.f32 %v1862, %v1874
      %v1887 = vmax.f32 %v1863, %v1875
      %v1888 = vmax.f32 %v1864, %v1876
      %v1889 = vmax.f32 %v1865, %v1877
      %v1890 = vld [vmem:[%s2] sm:$0x1]
      %v1892 = vlaneseq
      %v1893 = vshrl.u32 %v1892, 7
      %v1894 = vsub.s32 0, %v1893
      %v1895 = vrot.slane %v1890, %v1894
      %v1897 = vadd.f32 %v1878, %v1895
      %v1898 = vadd.f32 %v1879, %v1895
      %v1899 = vadd.f32 %v1880, %v1895
      %v1900 = vadd.f32 %v1881, %v1895
      %v1901 = vadd.f32 %v1882, %v1895
      %v1902 = vadd.f32 %v1883, %v1895
      %v1903 = vadd.f32 %v1884, %v1895
      %v1904 = vadd.f32 %v1885, %v1895
      %v1905 = vadd.f32 %v1886, %v1895
      %v1906 = vadd.f32 %v1887, %v1895
      %v1907 = vadd.f32 %v1888, %v1895
      %v1908 = vadd.f32 %v1889, %v1895
      %v1909 = vmax.f32 %v1897, 0.0
      %v1910 = vmax.f32 %v1898, 0.0
      %v1911 = vmax.f32 %v1899, 0.0
      %v1912 = vmax.f32 %v1900, 0.0
      %v1913 = vmax.f32 %v1901, 0.0
      %v1914 = vmax.f32 %v1902, 0.0
      %v1915 = vmax.f32 %v1903, 0.0
      %v1916 = vmax.f32 %v1904, 0.0
      %v1917 = vmax.f32 %v1905, 0.0
      %v1918 = vmax.f32 %v1906, 0.0
      %v1919 = vmax.f32 %v1907, 0.0
      %v1920 = vmax.f32 %v1908, 0.0
      %v1921 = vpack.c.bf16 %v1910, %v1909
      %v1922 = vpack.c.bf16 %v1912, %v1911
      %v1923 = vpack.c.bf16 %v1914, %v1913
      %v1924 = vpack.c.bf16 %v1916, %v1915
      %v1925 = vpack.c.bf16 %v1918, %v1917
      %v1926 = vpack.c.bf16 %v1920, %v1919
      %v1933 = vunpack.c.l.b16 %v1921
      %v1934 = vunpack.c.h.b16 %v1921
      %v1935 = vunpack.c.l.b16 %v1922
      %v1936 = vunpack.c.h.b16 %v1922
      %v1937 = vunpack.c.l.b16 %v1923
      %v1938 = vunpack.c.h.b16 %v1923
      %v1939 = vunpack.c.l.b16 %v1924
      %v1940 = vunpack.c.h.b16 %v1924
      %v1941 = vunpack.c.l.b16 %v1925
      %v1942 = vunpack.c.h.b16 %v1925
      %v1943 = vunpack.c.l.b16 %v1926
      %v1944 = vunpack.c.h.b16 %v1926
      %v1945 = vpack.c.b16 %v1933, %v1933
      %v1946 = vpack.c.b16 %v1934, %v1934
      %v1947 = vpack.c.b16 %v1935, %v1935
      %v1948 = vpack.c.b16 %v1936, %v1936
      %v1949 = vpack.c.b16 %v1937, %v1937
      %v1950 = vpack.c.b16 %v1938, %v1938
      %v1951 = vpack.c.b16 %v1939, %v1939
      %v1952 = vpack.c.b16 %v1940, %v1940
      %v1953 = vpack.c.b16 %v1941, %v1941
      %v1954 = vpack.c.b16 %v1942, %v1942
      %v1955 = vpack.c.b16 %v1943, %v1943
      %v1956 = vpack.c.b16 %v1944, %v1944
      %1969 = vst [vmem:[%s175] sm:$0xf] %v1945
      %1970 = vst [vmem:[%s175 + $0x4] sm:$0xf] %v1946
      %1971 = vst [vmem:[%s175 + $0x8] sm:$0xf] %v1947
      %1972 = vst [vmem:[%s175 + $0xc] sm:$0xf] %v1948
      %1973 = vst [vmem:[%s175 + $0x10] sm:$0xf] %v1949
      %1974 = vst [vmem:[%s175 + $0x14] sm:$0xf] %v1950
      %1975 = vst [vmem:[%s175 + $0x18] sm:$0xf] %v1951
      %1976 = vst [vmem:[%s175 + $0x1c] sm:$0xf] %v1952
      %1977 = vst [vmem:[%s175 + $0x20] sm:$0xf] %v1953
      %1978 = vst [vmem:[%s175 + $0x24] sm:$0xf] %v1954
      %1979 = vst [vmem:[%s175 + $0x28] sm:$0xf] %v1955
      %1980 = vst [vmem:[%s175 + $0x2c] sm:$0xf] %v1956
      %s1981 = smul.u32 12, %s14
      %p1982 = scmp.lt.s32.totalorder %s1981, 23
      %s1983 = scalar_select %p1982, %s1981, 23
      %s1984 = smul.addr %s1983, 4
      %s1985 = scalar_lea.vmem %s3, %s1984
      // Predicated region
      $region33: #{mnist_sum_double2_forward.4} parent=31 // pred_check
        %p1986 = pneg %p100
      $region34: #{mnist_sum_double2_forward.4} parent=31 // pred_check_branch
        %1988 = sbr.rel (%p1986) target = $region36
      $region35: #{mnist_sum_double2_forward.4} parent=31 // pred_region
        %s1989 = smul.u32 12, %s14
      $region36: #{mnist_sum_double2_forward.4} parent=31 // pred_fallthru
        _
    $region32: #{mnist_sum_double2_forward.4} parent=5 // pred_fallthru
      _
    %p1990 = scmp.le.s32.totalorder 2, %s9
    // Predicated region
    $region37: #{mnist_sum_double2_forward.4} parent=5 // pred_check
      %p1991 = pneg %p1990
    $region38: #{mnist_sum_double2_forward.4} parent=5 // pred_check_branch
      %1993 = sbr.rel (%p1991) target = $region40
    $region39: #{mnist_sum_double2_forward.4} parent=5 // pred_region
      %s1994 = ssub.s32 %s9, 2
      // Predicated region
      $region41: #{mnist_sum_double2_forward.4} parent=39 // pred_check
        %p1995 = pneg %p106
      $region42: #{mnist_sum_double2_forward.4} parent=39 // pred_check_branch
        %1997 = sbr.rel (%p1995) target = $region44
      $region43: #{mnist_sum_double2_forward.4} parent=39 // pred_region
        %s1998 = smul.u32 12, %s15
        %p1999 = scmp.lt.s32.totalorder %s1998, 23
        %s2000 = scalar_select %p1999, %s1998, 23
        %s2001 = smul.addr %s2000, 4
        %s2002 = scalar_lea.vmem %s3, %s2001
      $region44: #{mnist_sum_double2_forward.4} parent=39 // pred_fallthru
        _
    $region40: #{mnist_sum_double2_forward.4} parent=5 // pred_fallthru
      _
  $region6: #{mnist_sum_double2_forward.4} parent=0 // loop_footer
    %s13 = sadd.s32 1, %s9
  $region7: #{mnist_sum_double2_forward.4} parent=0 // loop_footer_branch
    %8 = sbr.rel target = $region3
  $region8: #{mnist_sum_double2_forward.4} parent=0 // loop_exit
    _

// kernel: mnist_sum_double2_forward.5
$region0: #{mnist_sum_double2_forward.5}
  #allocation0 [shape = 'u32[]', space=smem, size = 0x4, offset = 0x4, fixed_abs, tag = 'smem constant byte address 0x4 - core index']
  #allocation1 [shape = 'u32[144,128]{1,0:T(1,128)}', space=vmem, size = 0x12000, scoped, tag = 'internal scratch']
  %s0 = inlined_call_operand.vmem [shape: bf16[96,256], index: 0, kind: input, shape index: {}]
  %s1 = inlined_call_operand.vmem [shape: bf16[256,128], index: 1, kind: input, shape index: {}]
  %s2 = inlined_call_operand.vmem [shape: f32[1,128], index: 2, kind: input, shape index: {}]
  %s3 = inlined_call_operand.vmem [shape: bf16[128,128], index: 3, kind: input, shape index: {}]
  %s4 = inlined_call_operand.vmem [shape: f32[1,128], index: 4, kind: input, shape index: {}]
  %s5 = inlined_call_operand.vmem [shape: bf16[128,128], index: 5, kind: input, shape index: {}]
  %s6 = inlined_call_operand.vmem [shape: f32[1,128], index: 6, kind: input, shape index: {}]
  %s7 = inlined_call_operand.vmem [shape: bf16[128,100], index: 7, kind: input, shape index: {}]
  %s8 = inlined_call_operand.vmem [shape: bf16[128,100], index: 8, kind: input, shape index: {}]
  %s9 = inlined_call_operand.vmem [shape: bf16[100,19], index: 9, kind: input, shape index: {}]
  %s10 = inlined_call_operand.vmem [shape: bf16[19,361], index: 10, kind: input, shape index: {}]
  %s11 = inlined_call_operand.vmem [shape: bf16[19,361], index: 11, kind: input, shape index: {}]
  %s12 = inlined_call_operand.vmem [shape: bf16[361,512], index: 12, kind: input, shape index: {}]
  %s13 = inlined_call_operand.vmem [shape: f32[16,256], index: 13, kind: output, shape index: {}]
  %s14 = sld [smem:[#allocation0]]
  $region62: #{mnist_sum_double2_forward.5} parent=0
    _
  %s16 = ssub.s32 1, %s14
  %s17 = scalar_select 0, %s16, %s14
  // Predicated region
  $region2: #{mnist_sum_double2_forward.5} parent=0 // pred_check
    _
  $region3: #{mnist_sum_double2_forward.5} parent=0 // pred_check_branch
    %19 = sbr.rel (0) target = $region5
  $region4: #{mnist_sum_double2_forward.5} parent=0 // pred_region
    _
  $region5: #{mnist_sum_double2_forward.5} parent=0 // pred_fallthru
    _
  // Predicated region
  $region6: #{mnist_sum_double2_forward.5} parent=0 // pred_check
    _
  $region7: #{mnist_sum_double2_forward.5} parent=0 // pred_check_branch
    %21 = sbr.rel (0) target = $region9
  $region8: #{mnist_sum_double2_forward.5} parent=0 // pred_region
    _
  $region9: #{mnist_sum_double2_forward.5} parent=0 // pred_fallthru
    _
  // Predicated region
  $region10: #{mnist_sum_double2_forward.5} parent=0 // pred_check
    _
  $region11: #{mnist_sum_double2_forward.5} parent=0 // pred_check_branch
    %23 = sbr.rel (0) target = $region13
  $region12: #{mnist_sum_double2_forward.5} parent=0 // pred_region
    _
  $region13: #{mnist_sum_double2_forward.5} parent=0 // pred_fallthru
    _
  // Predicated region
  $region14: #{mnist_sum_double2_forward.5} parent=0 // pred_check
    _
  $region15: #{mnist_sum_double2_forward.5} parent=0 // pred_check_branch
    %25 = sbr.rel (0) target = $region17
  $region16: #{mnist_sum_double2_forward.5} parent=0 // pred_region
    _
  $region17: #{mnist_sum_double2_forward.5} parent=0 // pred_fallthru
    _
  // Predicated region
  $region18: #{mnist_sum_double2_forward.5} parent=0 // pred_check
    _
  $region19: #{mnist_sum_double2_forward.5} parent=0 // pred_check_branch
    %27 = sbr.rel (0) target = $region21
  $region20: #{mnist_sum_double2_forward.5} parent=0 // pred_region
    _
  $region21: #{mnist_sum_double2_forward.5} parent=0 // pred_fallthru
    _
  // Predicated region
  $region22: #{mnist_sum_double2_forward.5} parent=0 // pred_check
    _
  $region23: #{mnist_sum_double2_forward.5} parent=0 // pred_check_branch
    %29 = sbr.rel (0) target = $region25
  $region24: #{mnist_sum_double2_forward.5} parent=0 // pred_region
    _
  $region25: #{mnist_sum_double2_forward.5} parent=0 // pred_fallthru
    _
  // Predicated region
  $region26: #{mnist_sum_double2_forward.5} parent=0 // pred_check
    _
  $region27: #{mnist_sum_double2_forward.5} parent=0 // pred_check_branch
    %31 = sbr.rel (0) target = $region29
  $region28: #{mnist_sum_double2_forward.5} parent=0 // pred_region
    _
  $region29: #{mnist_sum_double2_forward.5} parent=0 // pred_fallthru
    _
  // Predicated region
  $region30: #{mnist_sum_double2_forward.5} parent=0 // pred_check
    _
  $region31: #{mnist_sum_double2_forward.5} parent=0 // pred_check_branch
    %33 = sbr.rel (0) target = $region33
  $region32: #{mnist_sum_double2_forward.5} parent=0 // pred_region
    _
  $region33: #{mnist_sum_double2_forward.5} parent=0 // pred_fallthru
    _
  // Predicated region
  $region34: #{mnist_sum_double2_forward.5} parent=0 // pred_check
    _
  $region35: #{mnist_sum_double2_forward.5} parent=0 // pred_check_branch
    %35 = sbr.rel (0) target = $region37
  $region36: #{mnist_sum_double2_forward.5} parent=0 // pred_region
    _
  $region37: #{mnist_sum_double2_forward.5} parent=0 // pred_fallthru
    _
  // Predicated region
  $region38: #{mnist_sum_double2_forward.5} parent=0 // pred_check
    _
  $region39: #{mnist_sum_double2_forward.5} parent=0 // pred_check_branch
    %37 = sbr.rel (0) target = $region41
  $region40: #{mnist_sum_double2_forward.5} parent=0 // pred_region
    _
  $region41: #{mnist_sum_double2_forward.5} parent=0 // pred_fallthru
    _
  // Predicated region
  $region42: #{mnist_sum_double2_forward.5} parent=0 // pred_check
    _
  $region43: #{mnist_sum_double2_forward.5} parent=0 // pred_check_branch
    %39 = sbr.rel (0) target = $region45
  $region44: #{mnist_sum_double2_forward.5} parent=0 // pred_region
    _
  $region45: #{mnist_sum_double2_forward.5} parent=0 // pred_fallthru
    _
  // Predicated region
  $region46: #{mnist_sum_double2_forward.5} parent=0 // pred_check
    _
  $region47: #{mnist_sum_double2_forward.5} parent=0 // pred_check_branch
    %41 = sbr.rel (0) target = $region49
  $region48: #{mnist_sum_double2_forward.5} parent=0 // pred_region
    _
  $region49: #{mnist_sum_double2_forward.5} parent=0 // pred_fallthru
    _
  // Predicated region
  $region50: #{mnist_sum_double2_forward.5} parent=0 // pred_check
    _
  $region51: #{mnist_sum_double2_forward.5} parent=0 // pred_check_branch
    %43 = sbr.rel (0) target = $region53
  $region52: #{mnist_sum_double2_forward.5} parent=0 // pred_region
    _
  $region53: #{mnist_sum_double2_forward.5} parent=0 // pred_fallthru
    _
  %v45 = vld [vmem:[%s0] sm:$0xff]
  %v46 = vld [vmem:[%s0 + $0x8] sm:$0xff]
  %v47 = vld [vmem:[%s0 + $0x10] sm:$0xff]
  %v48 = vld [vmem:[%s0 + $0x18] sm:$0xff]
  %v49 = vld [vmem:[%s0 + $0x20] sm:$0xff]
  %v50 = vld [vmem:[%s0 + $0x28] sm:$0xff]
  %v51 = vld [vmem:[%s0 + $0x30] sm:$0xff]
  %v52 = vld [vmem:[%s0 + $0x38] sm:$0xff]
  %v53 = vld [vmem:[%s0 + $0x40] sm:$0xff]
  %v54 = vld [vmem:[%s0 + $0x48] sm:$0xff]
  %v55 = vld [vmem:[%s0 + $0x50] sm:$0xff]
  %v56 = vld [vmem:[%s0 + $0x58] sm:$0xff]
  %v57 = vld [vmem:[%s1] sm:$0xf]
  %v58 = vld [vmem:[%s1 + $0x4] sm:$0xf]
  %v59 = vld [vmem:[%s1 + $0x8] sm:$0xf]
  %v60 = vld [vmem:[%s1 + $0xc] sm:$0xf]
  %v61 = vld [vmem:[%s1 + $0x10] sm:$0xf]
  %v62 = vld [vmem:[%s1 + $0x14] sm:$0xf]
  %v63 = vld [vmem:[%s1 + $0x18] sm:$0xf]
  %v64 = vld [vmem:[%s1 + $0x1c] sm:$0xf]
  %v65 = vld [vmem:[%s1 + $0x20] sm:$0xf]
  %v66 = vld [vmem:[%s1 + $0x24] sm:$0xf]
  %v67 = vld [vmem:[%s1 + $0x28] sm:$0xf]
  %v68 = vld [vmem:[%s1 + $0x2c] sm:$0xf]
  %v69 = vld [vmem:[%s1 + $0x30] sm:$0xf]
  %v70 = vld [vmem:[%s1 + $0x34] sm:$0xf]
  %v71 = vld [vmem:[%s1 + $0x38] sm:$0xf]
  %v72 = vld [vmem:[%s1 + $0x3c] sm:$0xf]
  %v73 = vld [vmem:[%s1 + $0x40] sm:$0xf]
  %v74 = vld [vmem:[%s1 + $0x44] sm:$0xf]
  %v75 = vld [vmem:[%s1 + $0x48] sm:$0xf]
  %v76 = vld [vmem:[%s1 + $0x4c] sm:$0xf]
  %v77 = vld [vmem:[%s1 + $0x50] sm:$0xf]
  %v78 = vld [vmem:[%s1 + $0x54] sm:$0xf]
  %v79 = vld [vmem:[%s1 + $0x58] sm:$0xf]
  %v80 = vld [vmem:[%s1 + $0x5c] sm:$0xf]
  %v81 = vld [vmem:[%s1 + $0x60] sm:$0xf]
  %v82 = vld [vmem:[%s1 + $0x64] sm:$0xf]
  %v83 = vld [vmem:[%s1 + $0x68] sm:$0xf]
  %v84 = vld [vmem:[%s1 + $0x6c] sm:$0xf]
  %v85 = vld [vmem:[%s1 + $0x70] sm:$0xf]
  %v86 = vld [vmem:[%s1 + $0x74] sm:$0xf]
  %v87 = vld [vmem:[%s1 + $0x78] sm:$0xf]
  %v88 = vld [vmem:[%s1 + $0x7c] sm:$0xf]
  %v89 = vld [vmem:[%s2] sm:$0x1]
  %v91 = vlaneseq
  %v92 = vshrl.u32 %v91, 7
  %v93 = vsub.s32 0, %v92
  %v94 = vrot.slane %v89, %v93
  %v108 = vunpack.c.l.b16 %v45
  %v109 = vunpack.c.h.b16 %v45
  %v110 = vunpack.c.l.b16 %v46
  %v111 = vunpack.c.h.b16 %v46
  %v112 = vunpack.c.l.b16 %v47
  %v113 = vunpack.c.h.b16 %v47
  %v114 = vunpack.c.l.b16 %v48
  %v115 = vunpack.c.h.b16 %v48
  %v116 = vunpack.c.l.b16 %v49
  %v117 = vunpack.c.h.b16 %v49
  %v118 = vunpack.c.l.b16 %v50
  %v119 = vunpack.c.h.b16 %v50
  %v120 = vunpack.c.l.b16 %v51
  %v121 = vunpack.c.h.b16 %v51
  %v122 = vunpack.c.l.b16 %v52
  %v123 = vunpack.c.h.b16 %v52
  %v124 = vunpack.c.l.b16 %v53
  %v125 = vunpack.c.h.b16 %v53
  %v126 = vunpack.c.l.b16 %v54
  %v127 = vunpack.c.h.b16 %v54
  %v128 = vunpack.c.l.b16 %v55
  %v129 = vunpack.c.h.b16 %v55
  %v130 = vunpack.c.l.b16 %v56
  %v131 = vunpack.c.h.b16 %v56
  %v132 = vpack.c.b16 %v110, %v108
  %v133 = vpack.c.b16 %v111, %v109
  %v134 = vpack.c.b16 %v114, %v112
  %v135 = vpack.c.b16 %v115, %v113
  %v136 = vpack.c.b16 %v118, %v116
  %v137 = vpack.c.b16 %v119, %v117
  %v138 = vpack.c.b16 %v122, %v120
  %v139 = vpack.c.b16 %v123, %v121
  %v140 = vpack.c.b16 %v126, %v124
  %v141 = vpack.c.b16 %v127, %v125
  %v142 = vpack.c.b16 %v130, %v128
  %v143 = vpack.c.b16 %v131, %v129
  %v188 = vunpack.c.l.b16 %v57
  %v189 = vunpack.c.l.b16 %v58
  %v190 = vunpack.c.l.b16 %v59
  %v191 = vunpack.c.l.b16 %v60
  %v192 = vunpack.c.l.b16 %v61
  %v193 = vunpack.c.l.b16 %v62
  %v194 = vunpack.c.l.b16 %v63
  %v195 = vunpack.c.l.b16 %v64
  %v196 = vunpack.c.l.b16 %v65
  %v197 = vunpack.c.l.b16 %v66
  %v198 = vunpack.c.l.b16 %v67
  %v199 = vunpack.c.l.b16 %v68
  %v200 = vunpack.c.l.b16 %v69
  %v201 = vunpack.c.l.b16 %v70
  %v202 = vunpack.c.l.b16 %v71
  %v203 = vunpack.c.l.b16 %v72
  %v204 = vunpack.c.l.b16 %v73
  %v205 = vunpack.c.l.b16 %v74
  %v206 = vunpack.c.l.b16 %v75
  %v207 = vunpack.c.l.b16 %v76
  %v208 = vunpack.c.l.b16 %v77
  %v209 = vunpack.c.l.b16 %v78
  %v210 = vunpack.c.l.b16 %v79
  %v211 = vunpack.c.l.b16 %v80
  %v212 = vunpack.c.l.b16 %v81
  %v213 = vunpack.c.l.b16 %v82
  %v214 = vunpack.c.l.b16 %v83
  %v215 = vunpack.c.l.b16 %v84
  %v216 = vunpack.c.l.b16 %v85
  %v217 = vunpack.c.l.b16 %v86
  %v218 = vunpack.c.l.b16 %v87
  %v219 = vunpack.c.l.b16 %v88
  %v220 = vpack.c.b16 %v189, %v188
  %v221 = vpack.c.b16 %v191, %v190
  %v222 = vpack.c.b16 %v193, %v192
  %v223 = vpack.c.b16 %v195, %v194
  %v224 = vpack.c.b16 %v197, %v196
  %v225 = vpack.c.b16 %v199, %v198
  %v226 = vpack.c.b16 %v201, %v200
  %v227 = vpack.c.b16 %v203, %v202
  %v228 = vpack.c.b16 %v205, %v204
  %v229 = vpack.c.b16 %v207, %v206
  %v230 = vpack.c.b16 %v209, %v208
  %v231 = vpack.c.b16 %v211, %v210
  %v232 = vpack.c.b16 %v213, %v212
  %v233 = vpack.c.b16 %v215, %v214
  %v234 = vpack.c.b16 %v217, %v216
  %v235 = vpack.c.b16 %v219, %v218
  %252 = vmatprep.subr.bf16.mxu0 0
  %253 = vmatpush1.bf16.msra.mxu0 %v220
  %254 = vmatprep.subr.bf16.mxu0 0
  %255 = vmatpush1.bf16.msra.mxu0 %v221
  %256 = vmatprep.subr.bf16.mxu0 0
  %257 = vmatpush1.bf16.msra.mxu0 %v222
  %258 = vmatprep.subr.bf16.mxu0 0
  %259 = vmatpush1.bf16.msra.mxu0 %v223
  %260 = vmatprep.subr.bf16.mxu0 0
  %261 = vmatpush1.bf16.msra.mxu0 %v224
  %262 = vmatprep.subr.bf16.mxu0 0
  %263 = vmatpush1.bf16.msra.mxu0 %v225
  %264 = vmatprep.subr.bf16.mxu0 0
  %265 = vmatpush1.bf16.msra.mxu0 %v226
  %266 = vmatprep.subr.bf16.mxu0 0
  %267 = vmatpush1.bf16.msra.mxu0 %v227
  %268 = vmatprep.subr.bf16.mxu0 0
  %269 = vmatpush1.bf16.msra.mxu0 %v228
  %270 = vmatprep.subr.bf16.mxu0 0
  %271 = vmatpush1.bf16.msra.mxu0 %v229
  %272 = vmatprep.subr.bf16.mxu0 0
  %273 = vmatpush1.bf16.msra.mxu0 %v230
  %274 = vmatprep.subr.bf16.mxu0 0
  %275 = vmatpush1.bf16.msra.mxu0 %v231
  %276 = vmatprep.subr.bf16.mxu0 0
  %277 = vmatpush1.bf16.msra.mxu0 %v232
  %278 = vmatprep.subr.bf16.mxu0 0
  %279 = vmatpush1.bf16.msra.mxu0 %v233
  %280 = vmatprep.subr.bf16.mxu0 0
  %281 = vmatpush1.bf16.msra.mxu0 %v234
  %282 = vmatprep.subr.bf16.mxu0 0
  %283 = vmatpush1.bf16.msra.mxu0 %v235
  %284 = vmatprep.mubr.bf16.mxu0 %v133
  %285 = vmatmul.mubr.bf16.gmra.mrb[0].mxu0 %v132
  %v286 = vpop.f32.mrb[0].mxu0
  %v287 = vadd.f32 %v94, %v286
  %v288 = vpop.f32.mrb[0].mxu0
  %v289 = vpop.f32.mrb[0].mxu0
  %v290 = vadd.f32 %v94, %v289
  %v291 = vpop.f32.mrb[0].mxu0
  %292 = vmatprep.mubr.bf16.mxu0 %v135
  %293 = vmatmul.mubr.bf16.gmra.mrb[0].mxu0 %v134
  %v294 = vpop.f32.mrb[0].mxu0
  %v295 = vadd.f32 %v94, %v294
  %v296 = vpop.f32.mrb[0].mxu0
  %v297 = vpop.f32.mrb[0].mxu0
  %v298 = vadd.f32 %v94, %v297
  %v299 = vpop.f32.mrb[0].mxu0
  %300 = vmatprep.mubr.bf16.mxu0 %v137
  %301 = vmatmul.mubr.bf16.gmra.mrb[0].mxu0 %v136
  %v302 = vpop.f32.mrb[0].mxu0
  %v303 = vadd.f32 %v94, %v302
  %v304 = vpop.f32.mrb[0].mxu0
  %v305 = vpop.f32.mrb[0].mxu0
  %v306 = vadd.f32 %v94, %v305
  %v307 = vpop.f32.mrb[0].mxu0
  %308 = vmatprep.mubr.bf16.mxu0 %v139
  %309 = vmatmul.mubr.bf16.gmra.mrb[0].mxu0 %v138
  %v310 = vpop.f32.mrb[0].mxu0
  %v311 = vadd.f32 %v94, %v310
  %v312 = vpop.f32.mrb[0].mxu0
  %v313 = vpop.f32.mrb[0].mxu0
  %v314 = vadd.f32 %v94, %v313
  %v315 = vpop.f32.mrb[0].mxu0
  %316 = vmatprep.mubr.bf16.mxu0 %v141
  %317 = vmatmul.mubr.bf16.gmra.mrb[0].mxu0 %v140
  %v318 = vpop.f32.mrb[0].mxu0
  %v319 = vadd.f32 %v94, %v318
  %v320 = vpop.f32.mrb[0].mxu0
  %v321 = vpop.f32.mrb[0].mxu0
  %v322 = vadd.f32 %v94, %v321
  %v323 = vpop.f32.mrb[0].mxu0
  %324 = vmatprep.mubr.bf16.mxu0 %v143
  %325 = vmatmul.mubr.bf16.gmra.mrb[0].mxu0 %v142
  %v326 = vpop.f32.mrb[0].mxu0
  %v327 = vadd.f32 %v94, %v326
  %v328 = vpop.f32.mrb[0].mxu0
  %v329 = vpop.f32.mrb[0].mxu0
  %v330 = vadd.f32 %v94, %v329
  %v331 = vpop.f32.mrb[0].mxu0
  %332 = vdwg.mxu0
  %v333 = vmax.f32 %v287, 0.0
  %v334 = vmax.f32 %v290, 0.0
  %v335 = vmax.f32 %v295, 0.0
  %v336 = vmax.f32 %v298, 0.0
  %v337 = vmax.f32 %v303, 0.0
  %v338 = vmax.f32 %v306, 0.0
  %v339 = vmax.f32 %v311, 0.0
  %v340 = vmax.f32 %v314, 0.0
  %v341 = vmax.f32 %v319, 0.0
  %v342 = vmax.f32 %v322, 0.0
  %v343 = vmax.f32 %v327, 0.0
  %v344 = vmax.f32 %v330, 0.0
  %v345 = vpack.c.bf16 %v334, %v333
  %v346 = vpack.c.bf16 %v336, %v335
  %v347 = vpack.c.bf16 %v338, %v337
  %v348 = vpack.c.bf16 %v340, %v339
  %v349 = vpack.c.bf16 %v342, %v341
  %v350 = vpack.c.bf16 %v344, %v343
  %v351 = vld [vmem:[%s3] sm:$0xf]
  %v352 = vld [vmem:[%s3 + $0x4] sm:$0xf]
  %v353 = vld [vmem:[%s3 + $0x8] sm:$0xf]
  %v354 = vld [vmem:[%s3 + $0xc] sm:$0xf]
  %v355 = vld [vmem:[%s3 + $0x10] sm:$0xf]
  %v356 = vld [vmem:[%s3 + $0x14] sm:$0xf]
  %v357 = vld [vmem:[%s3 + $0x18] sm:$0xf]
  %v358 = vld [vmem:[%s3 + $0x1c] sm:$0xf]
  %v359 = vld [vmem:[%s3 + $0x20] sm:$0xf]
  %v360 = vld [vmem:[%s3 + $0x24] sm:$0xf]
  %v361 = vld [vmem:[%s3 + $0x28] sm:$0xf]
  %v362 = vld [vmem:[%s3 + $0x2c] sm:$0xf]
  %v363 = vld [vmem:[%s3 + $0x30] sm:$0xf]
  %v364 = vld [vmem:[%s3 + $0x34] sm:$0xf]
  %v365 = vld [vmem:[%s3 + $0x38] sm:$0xf]
  %v366 = vld [vmem:[%s3 + $0x3c] sm:$0xf]
  %v367 = vld [vmem:[%s4] sm:$0x1]
  %v369 = vlaneseq
  %v370 = vshrl.u32 %v369, 7
  %v371 = vsub.s32 0, %v370
  %v372 = vrot.slane %v367, %v371
  %v390 = vunpack.c.l.b16 %v351
  %v391 = vunpack.c.l.b16 %v352
  %v392 = vunpack.c.l.b16 %v353
  %v393 = vunpack.c.l.b16 %v354
  %v394 = vunpack.c.l.b16 %v355
  %v395 = vunpack.c.l.b16 %v356
  %v396 = vunpack.c.l.b16 %v357
  %v397 = vunpack.c.l.b16 %v358
  %v398 = vunpack.c.l.b16 %v359
  %v399 = vunpack.c.l.b16 %v360
  %v400 = vunpack.c.l.b16 %v361
  %v401 = vunpack.c.l.b16 %v362
  %v402 = vunpack.c.l.b16 %v363
  %v403 = vunpack.c.l.b16 %v364
  %v404 = vunpack.c.l.b16 %v365
  %v405 = vunpack.c.l.b16 %v366
  %v406 = vpack.c.b16 %v391, %v390
  %v407 = vpack.c.b16 %v393, %v392
  %v408 = vpack.c.b16 %v395, %v394
  %v409 = vpack.c.b16 %v397, %v396
  %v410 = vpack.c.b16 %v399, %v398
  %v411 = vpack.c.b16 %v401, %v400
  %v412 = vpack.c.b16 %v403, %v402
  %v413 = vpack.c.b16 %v405, %v404
  %422 = vmatprep.subr.bf16.mxu0 0
  %423 = vmatpush1.bf16.msra.mxu0 %v406
  %424 = vmatprep.subr.bf16.mxu0 0
  %425 = vmatpush1.bf16.msra.mxu0 %v407
  %426 = vmatprep.subr.bf16.mxu0 0
  %427 = vmatpush1.bf16.msra.mxu0 %v408
  %428 = vmatprep.subr.bf16.mxu0 0
  %429 = vmatpush1.bf16.msra.mxu0 %v409
  %430 = vmatprep.subr.bf16.mxu0 0
  %431 = vmatpush1.bf16.msra.mxu0 %v410
  %432 = vmatprep.subr.bf16.mxu0 0
  %433 = vmatpush1.bf16.msra.mxu0 %v411
  %434 = vmatprep.subr.bf16.mxu0 0
  %435 = vmatpush1.bf16.msra.mxu0 %v412
  %436 = vmatprep.subr.bf16.mxu0 0
  %437 = vmatpush1.bf16.msra.mxu0 %v413
  %438 = vmatprep.subr.bf16.mxu0 0
  %439 = vmatpush1.bf16.msra.mxu0 0
  %440 = vmatprep.subr.bf16.mxu0 0
  %441 = vmatpush1.bf16.msra.mxu0 0
  %442 = vmatprep.subr.bf16.mxu0 0
  %443 = vmatpush1.bf16.msra.mxu0 0
  %444 = vmatprep.subr.bf16.mxu0 0
  %445 = vmatpush1.bf16.msra.mxu0 0
  %446 = vmatprep.subr.bf16.mxu0 0
  %447 = vmatpush1.bf16.msra.mxu0 0
  %448 = vmatprep.subr.bf16.mxu0 0
  %449 = vmatpush1.bf16.msra.mxu0 0
  %450 = vmatprep.subr.bf16.mxu0 0
  %451 = vmatpush1.bf16.msra.mxu0 0
  %452 = vmatprep.subr.bf16.mxu0 0
  %453 = vmatpush1.bf16.msra.mxu0 0
  %454 = vmatprep.mubr.bf16.mxu0 0
  %455 = vmatmul.mubr.bf16.gmra.mrb[0].mxu0 %v345
  %v456 = vpop.f32.mrb[0].mxu0
  %v457 = vadd.f32 %v372, %v456
  %v458 = vpop.f32.mrb[0].mxu0
  %v459 = vpop.f32.mrb[0].mxu0
  %v460 = vadd.f32 %v372, %v459
  %v461 = vpop.f32.mrb[0].mxu0
  %462 = vmatprep.mubr.bf16.mxu0 0
  %463 = vmatmul.mubr.bf16.gmra.mrb[0].mxu0 %v346
  %v464 = vpop.f32.mrb[0].mxu0
  %v465 = vadd.f32 %v372, %v464
  %v466 = vpop.f32.mrb[0].mxu0
  %v467 = vpop.f32.mrb[0].mxu0
  %v468 = vadd.f32 %v372, %v467
  %v469 = vpop.f32.mrb[0].mxu0
  %470 = vmatprep.mubr.bf16.mxu0 0
  %471 = vmatmul.mubr.bf16.gmra.mrb[0].mxu0 %v347
  %v472 = vpop.f32.mrb[0].mxu0
  %v473 = vadd.f32 %v372, %v472
  %v474 = vpop.f32.mrb[0].mxu0
  %v475 = vpop.f32.mrb[0].mxu0
  %v476 = vadd.f32 %v372, %v475
  %v477 = vpop.f32.mrb[0].mxu0
  %478 = vmatprep.mubr.bf16.mxu0 0
  %479 = vmatmul.mubr.bf16.gmra.mrb[0].mxu0 %v348
  %v480 = vpop.f32.mrb[0].mxu0
  %v481 = vadd.f32 %v372, %v480
  %v482 = vpop.f32.mrb[0].mxu0
  %v483 = vpop.f32.mrb[0].mxu0
  %v484 = vadd.f32 %v372, %v483
  %v485 = vpop.f32.mrb[0].mxu0
  %486 = vmatprep.mubr.bf16.mxu0 0
  %487 = vmatmul.mubr.bf16.gmra.mrb[0].mxu0 %v349
  %v488 = vpop.f32.mrb[0].mxu0
  %v489 = vadd.f32 %v372, %v488
  %v490 = vpop.f32.mrb[0].mxu0
  %v491 = vpop.f32.mrb[0].mxu0
  %v492 = vadd.f32 %v372, %v491
  %v493 = vpop.f32.mrb[0].mxu0
  %494 = vmatprep.mubr.bf16.mxu0 0
  %495 = vmatmul.mubr.bf16.gmra.mrb[0].mxu0 %v350
  %v496 = vpop.f32.mrb[0].mxu0
  %v497 = vadd.f32 %v372, %v496
  %v498 = vpop.f32.mrb[0].mxu0
  %v499 = vpop.f32.mrb[0].mxu0
  %v500 = vadd.f32 %v372, %v499
  %v501 = vpop.f32.mrb[0].mxu0
  %502 = vdwg.mxu0
  %v503 = vmax.f32 %v457, 0.0
  %v504 = vmax.f32 %v460, 0.0
  %v505 = vmax.f32 %v465, 0.0
  %v506 = vmax.f32 %v468, 0.0
  %v507 = vmax.f32 %v473, 0.0
  %v508 = vmax.f32 %v476, 0.0
  %v509 = vmax.f32 %v481, 0.0
  %v510 = vmax.f32 %v484, 0.0
  %v511 = vmax.f32 %v489, 0.0
  %v512 = vmax.f32 %v492, 0.0
  %v513 = vmax.f32 %v497, 0.0
  %v514 = vmax.f32 %v500, 0.0
  %v515 = vpack.c.bf16 %v504, %v503
  %v516 = vpack.c.bf16 %v506, %v505
  %v517 = vpack.c.bf16 %v508, %v507
  %v518 = vpack.c.bf16 %v510, %v509
  %v519 = vpack.c.bf16 %v512, %v511
  %v520 = vpack.c.bf16 %v514, %v513
  %v521 = vld [vmem:[%s5] sm:$0xf]
  %v522 = vld [vmem:[%s5 + $0x4] sm:$0xf]
  %v523 = vld [vmem:[%s5 + $0x8] sm:$0xf]
  %v524 = vld [vmem:[%s5 + $0xc] sm:$0xf]
  %v525 = vld [vmem:[%s5 + $0x10] sm:$0xf]
  %v526 = vld [vmem:[%s5 + $0x14] sm:$0xf]
  %v527 = vld [vmem:[%s5 + $0x18] sm:$0xf]
  %v528 = vld [vmem:[%s5 + $0x1c] sm:$0xf]
  %v529 = vld [vmem:[%s5 + $0x20] sm:$0xf]
  %v530 = vld [vmem:[%s5 + $0x24] sm:$0xf]
  %v531 = vld [vmem:[%s5 + $0x28] sm:$0xf]
  %v532 = vld [vmem:[%s5 + $0x2c] sm:$0xf]
  %v533 = vld [vmem:[%s5 + $0x30] sm:$0xf]
  %v534 = vld [vmem:[%s5 + $0x34] sm:$0xf]
  %v535 = vld [vmem:[%s5 + $0x38] sm:$0xf]
  %v536 = vld [vmem:[%s5 + $0x3c] sm:$0xf]
  %v537 = vld [vmem:[%s6] sm:$0x1]
  %v539 = vlaneseq
  %v540 = vshrl.u32 %v539, 7
  %v541 = vsub.s32 0, %v540
  %v542 = vrot.slane %v537, %v541
  %v560 = vunpack.c.l.b16 %v521
  %v561 = vunpack.c.l.b16 %v522
  %v562 = vunpack.c.l.b16 %v523
  %v563 = vunpack.c.l.b16 %v524
  %v564 = vunpack.c.l.b16 %v525
  %v565 = vunpack.c.l.b16 %v526
  %v566 = vunpack.c.l.b16 %v527
  %v567 = vunpack.c.l.b16 %v528
  %v568 = vunpack.c.l.b16 %v529
  %v569 = vunpack.c.l.b16 %v530
  %v570 = vunpack.c.l.b16 %v531
  %v571 = vunpack.c.l.b16 %v532
  %v572 = vunpack.c.l.b16 %v533
  %v573 = vunpack.c.l.b16 %v534
  %v574 = vunpack.c.l.b16 %v535
  %v575 = vunpack.c.l.b16 %v536
  %v576 = vpack.c.b16 %v561, %v560
  %v577 = vpack.c.b16 %v563, %v562
  %v578 = vpack.c.b16 %v565, %v564
  %v579 = vpack.c.b16 %v567, %v566
  %v580 = vpack.c.b16 %v569, %v568
  %v581 = vpack.c.b16 %v571, %v570
  %v582 = vpack.c.b16 %v573, %v572
  %v583 = vpack.c.b16 %v575, %v574
  %592 = vmatprep.subr.bf16.mxu0 0
  %593 = vmatpush1.bf16.msra.mxu0 %v576
  %594 = vmatprep.subr.bf16.mxu0 0
  %595 = vmatpush1.bf16.msra.mxu0 %v577
  %596 = vmatprep.subr.bf16.mxu0 0
  %597 = vmatpush1.bf16.msra.mxu0 %v578
  %598 = vmatprep.subr.bf16.mxu0 0
  %599 = vmatpush1.bf16.msra.mxu0 %v579
  %600 = vmatprep.subr.bf16.mxu0 0
  %601 = vmatpush1.bf16.msra.mxu0 %v580
  %602 = vmatprep.subr.bf16.mxu0 0
  %603 = vmatpush1.bf16.msra.mxu0 %v581
  %604 = vmatprep.subr.bf16.mxu0 0
  %605 = vmatpush1.bf16.msra.mxu0 %v582
  %606 = vmatprep.subr.bf16.mxu0 0
  %607 = vmatpush1.bf16.msra.mxu0 %v583
  %608 = vmatprep.subr.bf16.mxu0 0
  %609 = vmatpush1.bf16.msra.mxu0 0
  %610 = vmatprep.subr.bf16.mxu0 0
  %611 = vmatpush1.bf16.msra.mxu0 0
  %612 = vmatprep.subr.bf16.mxu0 0
  %613 = vmatpush1.bf16.msra.mxu0 0
  %614 = vmatprep.subr.bf16.mxu0 0
  %615 = vmatpush1.bf16.msra.mxu0 0
  %616 = vmatprep.subr.bf16.mxu0 0
  %617 = vmatpush1.bf16.msra.mxu0 0
  %618 = vmatprep.subr.bf16.mxu0 0
  %619 = vmatpush1.bf16.msra.mxu0 0
  %620 = vmatprep.subr.bf16.mxu0 0
  %621 = vmatpush1.bf16.msra.mxu0 0
  %622 = vmatprep.subr.bf16.mxu0 0
  %623 = vmatpush1.bf16.msra.mxu0 0
  %624 = vmatprep.mubr.bf16.mxu0 0
  %625 = vmatmul.mubr.bf16.gmra.mrb[0].mxu0 %v515
  %v626 = vpop.f32.mrb[0].mxu0
  %v627 = vadd.f32 %v542, %v626
  %v628 = vpop.f32.mrb[0].mxu0
  %v629 = vpop.f32.mrb[0].mxu0
  %v630 = vadd.f32 %v542, %v629
  %v631 = vpop.f32.mrb[0].mxu0
  %632 = vmatprep.mubr.bf16.mxu0 0
  %633 = vmatmul.mubr.bf16.gmra.mrb[0].mxu0 %v516
  %v634 = vpop.f32.mrb[0].mxu0
  %v635 = vadd.f32 %v542, %v634
  %v636 = vpop.f32.mrb[0].mxu0
  %v637 = vpop.f32.mrb[0].mxu0
  %v638 = vadd.f32 %v542, %v637
  %v639 = vpop.f32.mrb[0].mxu0
  %640 = vmatprep.mubr.bf16.mxu0 0
  %641 = vmatmul.mubr.bf16.gmra.mrb[0].mxu0 %v517
  %v642 = vpop.f32.mrb[0].mxu0
  %v643 = vadd.f32 %v542, %v642
  %v644 = vpop.f32.mrb[0].mxu0
  %v645 = vpop.f32.mrb[0].mxu0
  %v646 = vadd.f32 %v542, %v645
  %v647 = vpop.f32.mrb[0].mxu0
  %648 = vmatprep.mubr.bf16.mxu0 0
  %649 = vmatmul.mubr.bf16.gmra.mrb[0].mxu0 %v518
  %v650 = vpop.f32.mrb[0].mxu0
  %v651 = vadd.f32 %v542, %v650
  %v652 = vpop.f32.mrb[0].mxu0
  %v653 = vpop.f32.mrb[0].mxu0
  %v654 = vadd.f32 %v542, %v653
  %v655 = vpop.f32.mrb[0].mxu0
  %656 = vmatprep.mubr.bf16.mxu0 0
  %657 = vmatmul.mubr.bf16.gmra.mrb[0].mxu0 %v519
  %v658 = vpop.f32.mrb[0].mxu0
  %v659 = vadd.f32 %v542, %v658
  %v660 = vpop.f32.mrb[0].mxu0
  %v661 = vpop.f32.mrb[0].mxu0
  %v662 = vadd.f32 %v542, %v661
  %v663 = vpop.f32.mrb[0].mxu0
  %664 = vmatprep.mubr.bf16.mxu0 0
  %665 = vmatmul.mubr.bf16.gmra.mrb[0].mxu0 %v520
  %v666 = vpop.f32.mrb[0].mxu0
  %v667 = vadd.f32 %v542, %v666
  %v668 = vpop.f32.mrb[0].mxu0
  %v669 = vpop.f32.mrb[0].mxu0
  %v670 = vadd.f32 %v542, %v669
  %v671 = vpop.f32.mrb[0].mxu0
  %672 = vdwg.mxu0
  %673 = vmax.xlane.f32.xlu0 %v627
  %v674 = vpop.xlane.xlu0 %673
  %675 = vmax.xlane.f32.xlu0 %v630
  %v676 = vpop.xlane.xlu0 %675
  %677 = vmax.xlane.f32.xlu0 %v635
  %v678 = vpop.xlane.xlu0 %677
  %679 = vmax.xlane.f32.xlu0 %v638
  %v680 = vpop.xlane.xlu0 %679
  %681 = vmax.xlane.f32.xlu0 %v643
  %v682 = vpop.xlane.xlu0 %681
  %683 = vmax.xlane.f32.xlu0 %v646
  %v684 = vpop.xlane.xlu0 %683
  %685 = vmax.xlane.f32.xlu0 %v651
  %v686 = vpop.xlane.xlu0 %685
  %687 = vmax.xlane.f32.xlu0 %v654
  %v688 = vpop.xlane.xlu0 %687
  %689 = vmax.xlane.f32.xlu0 %v659
  %v690 = vpop.xlane.xlu0 %689
  %691 = vmax.xlane.f32.xlu0 %v662
  %v692 = vpop.xlane.xlu0 %691
  %693 = vmax.xlane.f32.xlu0 %v667
  %v694 = vpop.xlane.xlu0 %693
  %695 = vmax.xlane.f32.xlu0 %v670
  %v696 = vpop.xlane.xlu0 %695
  %v697 = vsub.f32 %v627, %v674
  %v698 = vsub.f32 %v630, %v676
  %v699 = vsub.f32 %v635, %v678
  %v700 = vsub.f32 %v638, %v680
  %v701 = vsub.f32 %v643, %v682
  %v702 = vsub.f32 %v646, %v684
  %v703 = vsub.f32 %v651, %v686
  %v704 = vsub.f32 %v654, %v688
  %v705 = vsub.f32 %v659, %v690
  %v706 = vsub.f32 %v662, %v692
  %v707 = vsub.f32 %v667, %v694
  %v708 = vsub.f32 %v670, %v696
  %v709 = vmul.f32 %v697, 1.442695
  %v710 = vpow.pop %v709
  %v711 = vmul.f32 %v698, 1.442695
  %v712 = vpow.pop %v711
  %v713 = vmul.f32 %v699, 1.442695
  %v714 = vpow.pop %v713
  %v715 = vmul.f32 %v700, 1.442695
  %v716 = vpow.pop %v715
  %v717 = vmul.f32 %v701, 1.442695
  %v718 = vpow.pop %v717
  %v719 = vmul.f32 %v702, 1.442695
  %v720 = vpow.pop %v719
  %v721 = vmul.f32 %v703, 1.442695
  %v722 = vpow.pop %v721
  %v723 = vmul.f32 %v704, 1.442695
  %v724 = vpow.pop %v723
  %v725 = vmul.f32 %v705, 1.442695
  %v726 = vpow.pop %v725
  %v727 = vmul.f32 %v706, 1.442695
  %v728 = vpow.pop %v727
  %v729 = vmul.f32 %v707, 1.442695
  %v730 = vpow.pop %v729
  %v731 = vmul.f32 %v708, 1.442695
  %v732 = vpow.pop %v731
  %733 = vadd.xlane.f32.xlu0 %v710
  %v734 = vpop.xlane.xlu0 %733
  %735 = vadd.xlane.f32.xlu0 %v712
  %v736 = vpop.xlane.xlu0 %735
  %737 = vadd.xlane.f32.xlu0 %v714
  %v738 = vpop.xlane.xlu0 %737
  %739 = vadd.xlane.f32.xlu0 %v716
  %v740 = vpop.xlane.xlu0 %739
  %741 = vadd.xlane.f32.xlu0 %v718
  %v742 = vpop.xlane.xlu0 %741
  %743 = vadd.xlane.f32.xlu0 %v720
  %v744 = vpop.xlane.xlu0 %743
  %745 = vadd.xlane.f32.xlu0 %v722
  %v746 = vpop.xlane.xlu0 %745
  %747 = vadd.xlane.f32.xlu0 %v724
  %v748 = vpop.xlane.xlu0 %747
  %749 = vadd.xlane.f32.xlu0 %v726
  %v750 = vpop.xlane.xlu0 %749
  %751 = vadd.xlane.f32.xlu0 %v728
  %v752 = vpop.xlane.xlu0 %751
  %753 = vadd.xlane.f32.xlu0 %v730
  %v754 = vpop.xlane.xlu0 %753
  %755 = vadd.xlane.f32.xlu0 %v732
  %v756 = vpop.xlane.xlu0 %755
  %v757 = vrcp.pop %v734
  %v758 = vrcp.pop %v736
  %v759 = vrcp.pop %v738
  %v760 = vrcp.pop %v740
  %v761 = vrcp.pop %v742
  %v762 = vrcp.pop %v744
  %v763 = vrcp.pop %v746
  %v764 = vrcp.pop %v748
  %v765 = vrcp.pop %v750
  %v766 = vrcp.pop %v752
  %v767 = vrcp.pop %v754
  %v768 = vrcp.pop %v756
  %v769 = vmul.f32 %v710, %v757
  %v770 = vmul.f32 %v712, %v758
  %v771 = vmul.f32 %v714, %v759
  %v772 = vmul.f32 %v716, %v760
  %v773 = vmul.f32 %v718, %v761
  %v774 = vmul.f32 %v720, %v762
  %v775 = vmul.f32 %v722, %v763
  %v776 = vmul.f32 %v724, %v764
  %v777 = vmul.f32 %v726, %v765
  %v778 = vmul.f32 %v728, %v766
  %v779 = vmul.f32 %v730, %v767
  %v780 = vmul.f32 %v732, %v768
  %v781 = vpack.c.bf16 %v770, %v769
  %v782 = vpack.c.bf16 %v772, %v771
  %v783 = vpack.c.bf16 %v774, %v773
  %v784 = vpack.c.bf16 %v776, %v775
  %v785 = vpack.c.bf16 %v778, %v777
  %v786 = vpack.c.bf16 %v780, %v779
  %v787 = vld [vmem:[%s7] sm:$0xf]
  %v788 = vld [vmem:[%s7 + $0x4] sm:$0xf]
  %v789 = vld [vmem:[%s7 + $0x8] sm:$0xf]
  %v790 = vld [vmem:[%s7 + $0xc] sm:$0xf]
  %v791 = vld [vmem:[%s7 + $0x10] sm:$0xf]
  %v792 = vld [vmem:[%s7 + $0x14] sm:$0xf]
  %v793 = vld [vmem:[%s7 + $0x18] sm:$0xf]
  %v794 = vld [vmem:[%s7 + $0x1c] sm:$0xf]
  %v795 = vld [vmem:[%s7 + $0x20] sm:$0xf]
  %v796 = vld [vmem:[%s7 + $0x24] sm:$0xf]
  %v797 = vld [vmem:[%s7 + $0x28] sm:$0xf]
  %v798 = vld [vmem:[%s7 + $0x2c] sm:$0xf]
  %v799 = vld [vmem:[%s7 + $0x30] sm:$0xf]
  %v800 = vld [vmem:[%s7 + $0x34] sm:$0xf]
  %v801 = vld [vmem:[%s7 + $0x38] sm:$0xf]
  %v802 = vld [vmem:[%s7 + $0x3c] sm:$0xf]
  %v819 = vunpack.c.l.b16 %v787
  %v820 = vunpack.c.l.b16 %v788
  %v821 = vunpack.c.l.b16 %v789
  %v822 = vunpack.c.l.b16 %v790
  %v823 = vunpack.c.l.b16 %v791
  %v824 = vunpack.c.l.b16 %v792
  %v825 = vunpack.c.l.b16 %v793
  %v826 = vunpack.c.l.b16 %v794
  %v827 = vunpack.c.l.b16 %v795
  %v828 = vunpack.c.l.b16 %v796
  %v829 = vunpack.c.l.b16 %v797
  %v830 = vunpack.c.l.b16 %v798
  %v831 = vunpack.c.l.b16 %v799
  %v832 = vunpack.c.l.b16 %v800
  %v833 = vunpack.c.l.b16 %v801
  %v834 = vunpack.c.l.b16 %v802
  %v835 = vpack.c.b16 %v820, %v819
  %v836 = vpack.c.b16 %v822, %v821
  %v837 = vpack.c.b16 %v824, %v823
  %v838 = vpack.c.b16 %v826, %v825
  %v839 = vpack.c.b16 %v828, %v827
  %v840 = vpack.c.b16 %v830, %v829
  %v841 = vpack.c.b16 %v832, %v831
  %v842 = vpack.c.b16 %v834, %v833
  %851 = vmatprep.subr.bf16.mxu0 0
  %852 = vmatpush1.bf16.msra.mxu0 %v835
  %853 = vmatprep.subr.bf16.mxu0 0
  %854 = vmatpush1.bf16.msra.mxu0 %v836
  %855 = vmatprep.subr.bf16.mxu0 0
  %856 = vmatpush1.bf16.msra.mxu0 %v837
  %857 = vmatprep.subr.bf16.mxu0 0
  %858 = vmatpush1.bf16.msra.mxu0 %v838
  %859 = vmatprep.subr.bf16.mxu0 0
  %860 = vmatpush1.bf16.msra.mxu0 %v839
  %861 = vmatprep.subr.bf16.mxu0 0
  %862 = vmatpush1.bf16.msra.mxu0 %v840
  %863 = vmatprep.subr.bf16.mxu0 0
  %864 = vmatpush1.bf16.msra.mxu0 %v841
  %865 = vmatprep.subr.bf16.mxu0 0
  %866 = vmatpush1.bf16.msra.mxu0 %v842
  %867 = vmatprep.subr.bf16.mxu0 0
  %868 = vmatpush1.bf16.msra.mxu0 0
  %869 = vmatprep.subr.bf16.mxu0 0
  %870 = vmatpush1.bf16.msra.mxu0 0
  %871 = vmatprep.subr.bf16.mxu0 0
  %872 = vmatpush1.bf16.msra.mxu0 0
  %873 = vmatprep.subr.bf16.mxu0 0
  %874 = vmatpush1.bf16.msra.mxu0 0
  %875 = vmatprep.subr.bf16.mxu0 0
  %876 = vmatpush1.bf16.msra.mxu0 0
  %877 = vmatprep.subr.bf16.mxu0 0
  %878 = vmatpush1.bf16.msra.mxu0 0
  %879 = vmatprep.subr.bf16.mxu0 0
  %880 = vmatpush1.bf16.msra.mxu0 0
  %881 = vmatprep.subr.bf16.mxu0 0
  %882 = vmatpush1.bf16.msra.mxu0 0
  %883 = vmatprep.mubr.bf16.mxu0 0
  %884 = vmatmul.mubr.bf16.gmra.mrb[0].mxu0 %v781
  %v885 = vpop.f32.mrb[0].mxu0
  %v886 = vadd.f32 0.0, %v885
  %v887 = vpop.f32.mrb[0].mxu0
  %v888 = vpop.f32.mrb[0].mxu0
  %v889 = vadd.f32 0.0, %v888
  %v890 = vpop.f32.mrb[0].mxu0
  %891 = vmatprep.mubr.bf16.mxu0 0
  %892 = vmatmul.mubr.bf16.gmra.mrb[0].mxu0 %v782
  %v893 = vpop.f32.mrb[0].mxu0
  %v894 = vadd.f32 0.0, %v893
  %v895 = vpop.f32.mrb[0].mxu0
  %v896 = vpop.f32.mrb[0].mxu0
  %v897 = vadd.f32 0.0, %v896
  %v898 = vpop.f32.mrb[0].mxu0
  %899 = vmatprep.mubr.bf16.mxu0 0
  %900 = vmatmul.mubr.bf16.gmra.mrb[0].mxu0 %v783
  %v901 = vpop.f32.mrb[0].mxu0
  %v902 = vadd.f32 0.0, %v901
  %v903 = vpop.f32.mrb[0].mxu0
  %v904 = vpop.f32.mrb[0].mxu0
  %v905 = vadd.f32 0.0, %v904
  %v906 = vpop.f32.mrb[0].mxu0
  %907 = vdwg.mxu0
  %v908 = vld [vmem:[%s8] sm:$0xf]
  %v909 = vld [vmem:[%s8 + $0x4] sm:$0xf]
  %v910 = vld [vmem:[%s8 + $0x8] sm:$0xf]
  %v911 = vld [vmem:[%s8 + $0xc] sm:$0xf]
  %v912 = vld [vmem:[%s8 + $0x10] sm:$0xf]
  %v913 = vld [vmem:[%s8 + $0x14] sm:$0xf]
  %v914 = vld [vmem:[%s8 + $0x18] sm:$0xf]
  %v915 = vld [vmem:[%s8 + $0x1c] sm:$0xf]
  %v916 = vld [vmem:[%s8 + $0x20] sm:$0xf]
  %v917 = vld [vmem:[%s8 + $0x24] sm:$0xf]
  %v918 = vld [vmem:[%s8 + $0x28] sm:$0xf]
  %v919 = vld [vmem:[%s8 + $0x2c] sm:$0xf]
  %v920 = vld [vmem:[%s8 + $0x30] sm:$0xf]
  %v921 = vld [vmem:[%s8 + $0x34] sm:$0xf]
  %v922 = vld [vmem:[%s8 + $0x38] sm:$0xf]
  %v923 = vld [vmem:[%s8 + $0x3c] sm:$0xf]
  %v940 = vunpack.c.l.b16 %v908
  %v941 = vunpack.c.l.b16 %v909
  %v942 = vunpack.c.l.b16 %v910
  %v943 = vunpack.c.l.b16 %v911
  %v944 = vunpack.c.l.b16 %v912
  %v945 = vunpack.c.l.b16 %v913
  %v946 = vunpack.c.l.b16 %v914
  %v947 = vunpack.c.l.b16 %v915
  %v948 = vunpack.c.l.b16 %v916
  %v949 = vunpack.c.l.b16 %v917
  %v950 = vunpack.c.l.b16 %v918
  %v951 = vunpack.c.l.b16 %v919
  %v952 = vunpack.c.l.b16 %v920
  %v953 = vunpack.c.l.b16 %v921
  %v954 = vunpack.c.l.b16 %v922
  %v955 = vunpack.c.l.b16 %v923
  %v956 = vpack.c.b16 %v941, %v940
  %v957 = vpack.c.b16 %v943, %v942
  %v958 = vpack.c.b16 %v945, %v944
  %v959 = vpack.c.b16 %v947, %v946
  %v960 = vpack.c.b16 %v949, %v948
  %v961 = vpack.c.b16 %v951, %v950
  %v962 = vpack.c.b16 %v953, %v952
  %v963 = vpack.c.b16 %v955, %v954
  %972 = vmatprep.subr.bf16.mxu0 0
  %973 = vmatpush1.bf16.msra.mxu0 %v956
  %974 = vmatprep.subr.bf16.mxu0 0
  %975 = vmatpush1.bf16.msra.mxu0 %v957
  %976 = vmatprep.subr.bf16.mxu0 0
  %977 = vmatpush1.bf16.msra.mxu0 %v958
  %978 = vmatprep.subr.bf16.mxu0 0
  %979 = vmatpush1.bf16.msra.mxu0 %v959
  %980 = vmatprep.subr.bf16.mxu0 0
  %981 = vmatpush1.bf16.msra.mxu0 %v960
  %982 = vmatprep.subr.bf16.mxu0 0
  %983 = vmatpush1.bf16.msra.mxu0 %v961
  %984 = vmatprep.subr.bf16.mxu0 0
  %985 = vmatpush1.bf16.msra.mxu0 %v962
  %986 = vmatprep.subr.bf16.mxu0 0
  %987 = vmatpush1.bf16.msra.mxu0 %v963
  %988 = vmatprep.subr.bf16.mxu0 0
  %989 = vmatpush1.bf16.msra.mxu0 0
  %990 = vmatprep.subr.bf16.mxu0 0
  %991 = vmatpush1.bf16.msra.mxu0 0
  %992 = vmatprep.subr.bf16.mxu0 0
  %993 = vmatpush1.bf16.msra.mxu0 0
  %994 = vmatprep.subr.bf16.mxu0 0
  %995 = vmatpush1.bf16.msra.mxu0 0
  %996 = vmatprep.subr.bf16.mxu0 0
  %997 = vmatpush1.bf16.msra.mxu0 0
  %998 = vmatprep.subr.bf16.mxu0 0
  %999 = vmatpush1.bf16.msra.mxu0 0
  %1000 = vmatprep.subr.bf16.mxu0 0
  %1001 = vmatpush1.bf16.msra.mxu0 0
  %1002 = vmatprep.subr.bf16.mxu0 0
  %1003 = vmatpush1.bf16.msra.mxu0 0
  %1004 = vmatprep.mubr.bf16.mxu0 0
  %1005 = vmatmul.mubr.bf16.gmra.mrb[0].mxu0 %v784
  %v1006 = vpop.f32.mrb[0].mxu0
  %v1007 = vadd.f32 0.0, %v1006
  %v1008 = vpop.f32.mrb[0].mxu0
  %v1009 = vpop.f32.mrb[0].mxu0
  %v1010 = vadd.f32 0.0, %v1009
  %v1011 = vpop.f32.mrb[0].mxu0
  %1012 = vmatprep.mubr.bf16.mxu0 0
  %1013 = vmatmul.mubr.bf16.gmra.mrb[0].mxu0 %v785
  %v1014 = vpop.f32.mrb[0].mxu0
  %v1015 = vadd.f32 0.0, %v1014
  %v1016 = vpop.f32.mrb[0].mxu0
  %v1017 = vpop.f32.mrb[0].mxu0
  %v1018 = vadd.f32 0.0, %v1017
  %v1019 = vpop.f32.mrb[0].mxu0
  %1020 = vmatprep.mubr.bf16.mxu0 0
  %1021 = vmatmul.mubr.bf16.gmra.mrb[0].mxu0 %v786
  %v1022 = vpop.f32.mrb[0].mxu0
  %v1023 = vadd.f32 0.0, %v1022
  %v1024 = vpop.f32.mrb[0].mxu0
  %v1025 = vpop.f32.mrb[0].mxu0
  %v1026 = vadd.f32 0.0, %v1025
  %v1027 = vpop.f32.mrb[0].mxu0
  %1028 = vdwg.mxu0
  %v1029 = vmul.f32 %v886, %v1007
  %v1030 = vmul.f32 %v889, %v1010
  %v1031 = vmul.f32 %v894, %v1015
  %v1032 = vmul.f32 %v897, %v1018
  %v1033 = vmul.f32 %v902, %v1023
  %v1034 = vmul.f32 %v905, %v1026
  %v1035 = vpack.c.bf16 %v1030, %v1029
  %v1036 = vpack.c.bf16 %v1032, %v1031
  %v1037 = vpack.c.bf16 %v1034, %v1033
  %v1038 = vld [vmem:[%s9] sm:$0xf]
  %v1039 = vld [vmem:[%s9 + $0x4] sm:$0xf]
  %v1040 = vld [vmem:[%s9 + $0x8] sm:$0xf]
  %v1041 = vld [vmem:[%s9 + $0xc] sm:$0xf]
  %v1042 = vld [vmem:[%s9 + $0x10] sm:$0xf]
  %v1043 = vld [vmem:[%s9 + $0x14] sm:$0xf]
  %v1044 = vld [vmem:[%s9 + $0x18] sm:$0xf]
  %v1045 = vld [vmem:[%s9 + $0x1c] sm:$0xf]
  %v1046 = vld [vmem:[%s9 + $0x20] sm:$0xf]
  %v1047 = vld [vmem:[%s9 + $0x24] sm:$0xf]
  %v1048 = vld [vmem:[%s9 + $0x28] sm:$0xf]
  %v1049 = vld [vmem:[%s9 + $0x2c] sm:$0xf]
  %v1050 = vld [vmem:[%s9 + $0x30] sm:$0x3]
  %v1064 = vunpack.c.l.b16 %v1038
  %v1065 = vunpack.c.l.b16 %v1039
  %v1066 = vunpack.c.l.b16 %v1040
  %v1067 = vunpack.c.l.b16 %v1041
  %v1068 = vunpack.c.l.b16 %v1042
  %v1069 = vunpack.c.l.b16 %v1043
  %v1070 = vunpack.c.l.b16 %v1044
  %v1071 = vunpack.c.l.b16 %v1045
  %v1072 = vunpack.c.l.b16 %v1046
  %v1073 = vunpack.c.l.b16 %v1047
  %v1074 = vunpack.c.l.b16 %v1048
  %v1075 = vunpack.c.l.b16 %v1049
  %v1076 = vunpack.c.l.b16 %v1050
  %v1077 = vpack.c.b16 %v1065, %v1064
  %v1078 = vpack.c.b16 %v1067, %v1066
  %v1079 = vpack.c.b16 %v1069, %v1068
  %v1080 = vpack.c.b16 %v1071, %v1070
  %v1081 = vpack.c.b16 %v1073, %v1072
  %v1082 = vpack.c.b16 %v1075, %v1074
  %v1083 = vpack.c.b16 %v1076, %v1076
  %vm1090 = vcmask 818176
  %v1092 = vsel %vm1090, %v1035, 0
  %v1095 = vsel %vm1090, %v1036, 0
  %v1098 = vsel %vm1090, %v1037, 0
  %vm1100 = vcmask 1041408
  %v1102 = vsel %vm1100, %v1083, 0
  %1104 = vmatprep.subr.bf16.mxu0 0
  %1105 = vmatpush1.bf16.msra.mxu0 %v1077
  %1106 = vmatprep.subr.bf16.mxu0 0
  %1107 = vmatpush1.bf16.msra.mxu0 %v1078
  %1108 = vmatprep.subr.bf16.mxu0 0
  %1109 = vmatpush1.bf16.msra.mxu0 %v1079
  %1110 = vmatprep.subr.bf16.mxu0 0
  %1111 = vmatpush1.bf16.msra.mxu0 %v1080
  %1112 = vmatprep.subr.bf16.mxu0 0
  %1113 = vmatpush1.bf16.msra.mxu0 %v1081
  %1114 = vmatprep.subr.bf16.mxu0 0
  %1115 = vmatpush1.bf16.msra.mxu0 %v1082
  %1116 = vmatprep.subr.bf16.mxu0 0
  %1117 = vmatpush1.bf16.msra.mxu0 %v1102
  %1118 = vmatprep.subr.bf16.mxu0 0
  %1119 = vmatpush1.bf16.msra.mxu0 0
  %1120 = vmatprep.subr.bf16.mxu0 0
  %1121 = vmatpush1.bf16.msra.mxu0 0
  %1122 = vmatprep.subr.bf16.mxu0 0
  %1123 = vmatpush1.bf16.msra.mxu0 0
  %1124 = vmatprep.subr.bf16.mxu0 0
  %1125 = vmatpush1.bf16.msra.mxu0 0
  %1126 = vmatprep.subr.bf16.mxu0 0
  %1127 = vmatpush1.bf16.msra.mxu0 0
  %1128 = vmatprep.subr.bf16.mxu0 0
  %1129 = vmatpush1.bf16.msra.mxu0 0
  %1130 = vmatprep.subr.bf16.mxu0 0
  %1131 = vmatpush1.bf16.msra.mxu0 0
  %1132 = vmatprep.subr.bf16.mxu0 0
  %1133 = vmatpush1.bf16.msra.mxu0 0
  %1134 = vmatprep.subr.bf16.mxu0 0
  %1135 = vmatpush1.bf16.msra.mxu0 0
  %1136 = vmatprep.mubr.bf16.mxu0 0
  %1137 = vmatmul.mubr.bf16.gmra.mrb[0].mxu0 %v1092
  %v1138 = vpop.f32.mrb[0].mxu0
  %v1139 = vadd.f32 0.0, %v1138
  %v1140 = vpop.f32.mrb[0].mxu0
  %v1141 = vpop.f32.mrb[0].mxu0
  %v1142 = vadd.f32 0.0, %v1141
  %v1143 = vpop.f32.mrb[0].mxu0
  %1144 = vmatprep.mubr.bf16.mxu0 0
  %1145 = vmatmul.mubr.bf16.gmra.mrb[0].mxu0 %v1095
  %v1146 = vpop.f32.mrb[0].mxu0
  %v1147 = vadd.f32 0.0, %v1146
  %v1148 = vpop.f32.mrb[0].mxu0
  %v1149 = vpop.f32.mrb[0].mxu0
  %v1150 = vadd.f32 0.0, %v1149
  %v1151 = vpop.f32.mrb[0].mxu0
  %1152 = vmatprep.mubr.bf16.mxu0 0
  %1153 = vmatmul.mubr.bf16.gmra.mrb[0].mxu0 %v1098
  %v1154 = vpop.f32.mrb[0].mxu0
  %v1155 = vadd.f32 0.0, %v1154
  %v1156 = vpop.f32.mrb[0].mxu0
  %v1157 = vpop.f32.mrb[0].mxu0
  %v1158 = vadd.f32 0.0, %v1157
  %v1159 = vpop.f32.mrb[0].mxu0
  %1160 = vdwg.mxu0
  %v1161 = vpack.c.bf16 %v1150, %v1147
  %v1162 = vld [vmem:[%s10] sm:$0xff]
  %v1163 = vld [vmem:[%s10 + $0x8] sm:$0xf]
  %v1164 = vld [vmem:[%s10 + $0xc] sm:$0xff]
  %v1165 = vld [vmem:[%s10 + $0x14] sm:$0xf]
  %v1166 = vld [vmem:[%s10 + $0x18] sm:$0x33]
  %v1167 = vld [vmem:[%s10 + $0x20] sm:$0x3]
  %v1174 = vunpack.c.l.b16 %v1162
  %v1175 = vunpack.c.h.b16 %v1162
  %v1176 = vunpack.c.l.b16 %v1163
  %v1177 = vunpack.c.l.b16 %v1164
  %v1178 = vunpack.c.h.b16 %v1164
  %v1179 = vunpack.c.l.b16 %v1165
  %v1180 = vunpack.c.l.b16 %v1166
  %v1181 = vunpack.c.h.b16 %v1166
  %v1182 = vunpack.c.l.b16 %v1167
  %v1183 = vpack.c.b16 %v1177, %v1174
  %v1184 = vpack.c.b16 %v1178, %v1175
  %v1185 = vpack.c.b16 %v1179, %v1176
  %v1186 = vpack.c.b16 %v1180, %v1180
  %v1187 = vpack.c.b16 %v1181, %v1181
  %v1188 = vpack.c.b16 %v1182, %v1182
  %vm1192 = vcmask 154624
  %v1194 = vsel %vm1192, %v1161, 0
  %vm1196 = vcmask 1040384
  %v1197 = vsel %vm1196, 4294967295, 65535
  %v1198 = vsel %vm1100, %v1197, 0
  %v1200 = vand.u32 %v1186, %v1198
  %v1203 = vand.u32 %v1187, %v1198
  %v1206 = vand.u32 %v1188, %v1198
  %1208 = vmatprep.subr.bf16.mxu0 %v1184
  %1209 = vmatpush1.bf16.msra.mxu0 %v1183
  %1210 = vmatprep.subr.bf16.mxu0 %v1203
  %1211 = vmatpush1.bf16.msra.mxu0 %v1200
  %1212 = vmatprep.subr.bf16.mxu0 0
  %1213 = vmatpush1.bf16.msra.mxu0 0
  %1214 = vmatprep.subr.bf16.mxu0 0
  %1215 = vmatpush1.bf16.msra.mxu0 0
  %1216 = vmatprep.subr.bf16.mxu0 0
  %1217 = vmatpush1.bf16.msra.mxu0 0
  %1218 = vmatprep.subr.bf16.mxu0 0
  %1219 = vmatpush1.bf16.msra.mxu0 0
  %1220 = vmatprep.subr.bf16.mxu0 0
  %1221 = vmatpush1.bf16.msra.mxu0 0
  %1222 = vmatprep.subr.bf16.mxu0 0
  %1223 = vmatpush1.bf16.msra.mxu0 0
  %1224 = vmatprep.subr.bf16.mxu0 0
  %1225 = vmatpush1.bf16.msra.mxu0 0
  %1226 = vmatprep.subr.bf16.mxu0 0
  %1227 = vmatpush1.bf16.msra.mxu0 0
  %1228 = vmatprep.subr.bf16.mxu0 0
  %1229 = vmatpush1.bf16.msra.mxu0 0
  %1230 = vmatprep.subr.bf16.mxu0 0
  %1231 = vmatpush1.bf16.msra.mxu0 0
  %1232 = vmatprep.subr.bf16.mxu0 0
  %1233 = vmatpush1.bf16.msra.mxu0 0
  %1234 = vmatprep.subr.bf16.mxu0 0
  %1235 = vmatpush1.bf16.msra.mxu0 0
  %1236 = vmatprep.subr.bf16.mxu0 0
  %1237 = vmatpush1.bf16.msra.mxu0 0
  %1238 = vmatprep.subr.bf16.mxu0 0
  %1239 = vmatpush1.bf16.msra.mxu0 0
  %1240 = vmatprep.mubr.bf16.mxu0 0
  %1241 = vmatmul.mubr.bf16.gmra.mrb[0].mxu0 %v1194
  %v1242 = vpop.f32.mrb[0].mxu0
  %v1243 = vadd.f32 0.0, %v1242
  %v1244 = vpop.f32.mrb[0].mxu0
  %v1245 = vadd.f32 0.0, %v1244
  %v1246 = vpop.f32.mrb[0].mxu0
  %v1247 = vadd.f32 0.0, %v1246
  %v1248 = vpop.f32.mrb[0].mxu0
  %v1249 = vadd.f32 0.0, %v1248
  %1250 = vdwg.mxu0
  %1251 = vmatprep.subr.bf16.mxu0 0
  %1252 = vmatpush1.bf16.msra.mxu0 %v1185
  %1253 = vmatprep.subr.bf16.mxu0 0
  %1254 = vmatpush1.bf16.msra.mxu0 %v1206
  %1255 = vmatprep.subr.bf16.mxu0 0
  %1256 = vmatpush1.bf16.msra.mxu0 0
  %1257 = vmatprep.subr.bf16.mxu0 0
  %1258 = vmatpush1.bf16.msra.mxu0 0
  %1259 = vmatprep.subr.bf16.mxu0 0
  %1260 = vmatpush1.bf16.msra.mxu0 0
  %1261 = vmatprep.subr.bf16.mxu0 0
  %1262 = vmatpush1.bf16.msra.mxu0 0
  %1263 = vmatprep.subr.bf16.mxu0 0
  %1264 = vmatpush1.bf16.msra.mxu0 0
  %1265 = vmatprep.subr.bf16.mxu0 0
  %1266 = vmatpush1.bf16.msra.mxu0 0
  %1267 = vmatprep.subr.bf16.mxu0 0
  %1268 = vmatpush1.bf16.msra.mxu0 0
  %1269 = vmatprep.subr.bf16.mxu0 0
  %1270 = vmatpush1.bf16.msra.mxu0 0
  %1271 = vmatprep.subr.bf16.mxu0 0
  %1272 = vmatpush1.bf16.msra.mxu0 0
  %1273 = vmatprep.subr.bf16.mxu0 0
  %1274 = vmatpush1.bf16.msra.mxu0 0
  %1275 = vmatprep.subr.bf16.mxu0 0
  %1276 = vmatpush1.bf16.msra.mxu0 0
  %1277 = vmatprep.subr.bf16.mxu0 0
  %1278 = vmatpush1.bf16.msra.mxu0 0
  %1279 = vmatprep.subr.bf16.mxu0 0
  %1280 = vmatpush1.bf16.msra.mxu0 0
  %1281 = vmatprep.subr.bf16.mxu0 0
  %1282 = vmatpush1.bf16.msra.mxu0 0
  %1283 = vmatprep.mubr.bf16.mxu0 0
  %1284 = vmatmul.mubr.bf16.gmra.mrb[0].mxu0 %v1194
  %v1285 = vpop.f32.mrb[0].mxu0
  %v1286 = vadd.f32 0.0, %v1285
  %v1287 = vpop.f32.mrb[0].mxu0
  %v1288 = vpop.f32.mrb[0].mxu0
  %v1289 = vadd.f32 0.0, %v1288
  %v1290 = vpop.f32.mrb[0].mxu0
  %1291 = vdwg.mxu0
  %v1292 = vpack.c.bf16 %v1158, %v1155
  %v1293 = vld [vmem:[%s11] sm:$0xff]
  %v1294 = vld [vmem:[%s11 + $0x8] sm:$0xf]
  %v1295 = vld [vmem:[%s11 + $0xc] sm:$0xff]
  %v1296 = vld [vmem:[%s11 + $0x14] sm:$0xf]
  %v1297 = vld [vmem:[%s11 + $0x18] sm:$0x33]
  %v1298 = vld [vmem:[%s11 + $0x20] sm:$0x3]
  %v1305 = vunpack.c.l.b16 %v1293
  %v1306 = vunpack.c.h.b16 %v1293
  %v1307 = vunpack.c.l.b16 %v1294
  %v1308 = vunpack.c.l.b16 %v1295
  %v1309 = vunpack.c.h.b16 %v1295
  %v1310 = vunpack.c.l.b16 %v1296
  %v1311 = vunpack.c.l.b16 %v1297
  %v1312 = vunpack.c.h.b16 %v1297
  %v1313 = vunpack.c.l.b16 %v1298
  %v1314 = vpack.c.b16 %v1308, %v1305
  %v1315 = vpack.c.b16 %v1309, %v1306
  %v1316 = vpack.c.b16 %v1310, %v1307
  %v1317 = vpack.c.b16 %v1311, %v1311
  %v1318 = vpack.c.b16 %v1312, %v1312
  %v1319 = vpack.c.b16 %v1313, %v1313
  %v1324 = vsel %vm1192, %v1292, 0
  %v1327 = vand.u32 %v1317, %v1198
  %v1330 = vand.u32 %v1318, %v1198
  %v1333 = vand.u32 %v1319, %v1198
  %1335 = vmatprep.subr.bf16.mxu0 %v1315
  %1336 = vmatpush1.bf16.msra.mxu0 %v1314
  %1337 = vmatprep.subr.bf16.mxu0 %v1330
  %1338 = vmatpush1.bf16.msra.mxu0 %v1327
  %1339 = vmatprep.subr.bf16.mxu0 0
  %1340 = vmatpush1.bf16.msra.mxu0 0
  %1341 = vmatprep.subr.bf16.mxu0 0
  %1342 = vmatpush1.bf16.msra.mxu0 0
  %1343 = vmatprep.subr.bf16.mxu0 0
  %1344 = vmatpush1.bf16.msra.mxu0 0
  %1345 = vmatprep.subr.bf16.mxu0 0
  %1346 = vmatpush1.bf16.msra.mxu0 0
  %1347 = vmatprep.subr.bf16.mxu0 0
  %1348 = vmatpush1.bf16.msra.mxu0 0
  %1349 = vmatprep.subr.bf16.mxu0 0
  %1350 = vmatpush1.bf16.msra.mxu0 0
  %1351 = vmatprep.subr.bf16.mxu0 0
  %1352 = vmatpush1.bf16.msra.mxu0 0
  %1353 = vmatprep.subr.bf16.mxu0 0
  %1354 = vmatpush1.bf16.msra.mxu0 0
  %1355 = vmatprep.subr.bf16.mxu0 0
  %1356 = vmatpush1.bf16.msra.mxu0 0
  %1357 = vmatprep.subr.bf16.mxu0 0
  %1358 = vmatpush1.bf16.msra.mxu0 0
  %1359 = vmatprep.subr.bf16.mxu0 0
  %1360 = vmatpush1.bf16.msra.mxu0 0
  %1361 = vmatprep.subr.bf16.mxu0 0
  %1362 = vmatpush1.bf16.msra.mxu0 0
  %1363 = vmatprep.subr.bf16.mxu0 0
  %1364 = vmatpush1.bf16.msra.mxu0 0
  %1365 = vmatprep.subr.bf16.mxu0 0
  %1366 = vmatpush1.bf16.msra.mxu0 0
  %1367 = vmatprep.mubr.bf16.mxu0 0
  %1368 = vmatmul.mubr.bf16.gmra.mrb[0].mxu0 %v1324
  %v1369 = vpop.f32.mrb[0].mxu0
  %v1370 = vadd.f32 0.0, %v1369
  %v1371 = vpop.f32.mrb[0].mxu0
  %v1372 = vadd.f32 0.0, %v1371
  %v1373 = vpop.f32.mrb[0].mxu0
  %v1374 = vadd.f32 0.0, %v1373
  %v1375 = vpop.f32.mrb[0].mxu0
  %v1376 = vadd.f32 0.0, %v1375
  %1377 = vdwg.mxu0
  %1378 = vmatprep.subr.bf16.mxu0 0
  %1379 = vmatpush1.bf16.msra.mxu0 %v1316
  %1380 = vmatprep.subr.bf16.mxu0 0
  %1381 = vmatpush1.bf16.msra.mxu0 %v1333
  %1382 = vmatprep.subr.bf16.mxu0 0
  %1383 = vmatpush1.bf16.msra.mxu0 0
  %1384 = vmatprep.subr.bf16.mxu0 0
  %1385 = vmatpush1.bf16.msra.mxu0 0
  %1386 = vmatprep.subr.bf16.mxu0 0
  %1387 = vmatpush1.bf16.msra.mxu0 0
  %1388 = vmatprep.subr.bf16.mxu0 0
  %1389 = vmatpush1.bf16.msra.mxu0 0
  %1390 = vmatprep.subr.bf16.mxu0 0
  %1391 = vmatpush1.bf16.msra.mxu0 0
  %1392 = vmatprep.subr.bf16.mxu0 0
  %1393 = vmatpush1.bf16.msra.mxu0 0
  %1394 = vmatprep.subr.bf16.mxu0 0
  %1395 = vmatpush1.bf16.msra.mxu0 0
  %1396 = vmatprep.subr.bf16.mxu0 0
  %1397 = vmatpush1.bf16.msra.mxu0 0
  %1398 = vmatprep.subr.bf16.mxu0 0
  %1399 = vmatpush1.bf16.msra.mxu0 0
  %1400 = vmatprep.subr.bf16.mxu0 0
  %1401 = vmatpush1.bf16.msra.mxu0 0
  %1402 = vmatprep.subr.bf16.mxu0 0
  %1403 = vmatpush1.bf16.msra.mxu0 0
  %1404 = vmatprep.subr.bf16.mxu0 0
  %1405 = vmatpush1.bf16.msra.mxu0 0
  %1406 = vmatprep.subr.bf16.mxu0 0
  %1407 = vmatpush1.bf16.msra.mxu0 0
  %1408 = vmatprep.subr.bf16.mxu0 0
  %1409 = vmatpush1.bf16.msra.mxu0 0
  %1410 = vmatprep.mubr.bf16.mxu0 0
  %1411 = vmatmul.mubr.bf16.gmra.mrb[0].mxu0 %v1324
  %v1412 = vpop.f32.mrb[0].mxu0
  %v1413 = vadd.f32 0.0, %v1412
  %v1414 = vpop.f32.mrb[0].mxu0
  %v1415 = vpop.f32.mrb[0].mxu0
  %v1416 = vadd.f32 0.0, %v1415
  %v1417 = vpop.f32.mrb[0].mxu0
  %1418 = vdwg.mxu0
  %v1419 = vmul.f32 %v1243, %v1370
  %v1420 = vmul.f32 %v1245, %v1372
  %v1421 = vmul.f32 %v1286, %v1413
  %v1422 = vmul.f32 %v1247, %v1374
  %v1423 = vmul.f32 %v1249, %v1376
  %v1424 = vmul.f32 %v1289, %v1416
  %v1425 = vpack.c.bf16 %v1422, %v1419
  %v1426 = vpack.c.bf16 %v1423, %v1420
  %v1427 = vpack.c.bf16 %v1424, %v1421
  %v1428 = vld [vmem:[%s12] sm:$0xff]
  %v1429 = vld [vmem:[%s12 + $0x8] sm:$0xff]
  %v1430 = vld [vmem:[%s12 + $0x10] sm:$0xff]
  %v1431 = vld [vmem:[%s12 + $0x18] sm:$0xff]
  %v1432 = vld [vmem:[%s12 + $0x20] sm:$0xff]
  %v1433 = vld [vmem:[%s12 + $0x28] sm:$0xff]
  %v1434 = vld [vmem:[%s12 + $0x30] sm:$0xff]
  %v1435 = vld [vmem:[%s12 + $0x38] sm:$0xff]
  %v1436 = vld [vmem:[%s12 + $0x40] sm:$0xff]
  %v1437 = vld [vmem:[%s12 + $0x48] sm:$0xff]
  %v1438 = vld [vmem:[%s12 + $0x50] sm:$0xff]
  %v1439 = vld [vmem:[%s12 + $0x58] sm:$0xff]
  %v1440 = vld [vmem:[%s12 + $0x60] sm:$0xff]
  %v1441 = vld [vmem:[%s12 + $0x68] sm:$0xff]
  %v1442 = vld [vmem:[%s12 + $0x70] sm:$0xff]
  %v1443 = vld [vmem:[%s12 + $0x78] sm:$0xff]
  %v1444 = vld [vmem:[%s12 + $0x80] sm:$0xff]
  %v1445 = vld [vmem:[%s12 + $0x88] sm:$0xff]
  %v1446 = vld [vmem:[%s12 + $0x90] sm:$0xff]
  %v1447 = vld [vmem:[%s12 + $0x98] sm:$0xff]
  %v1448 = vld [vmem:[%s12 + $0xa0] sm:$0xff]
  %v1449 = vld [vmem:[%s12 + $0xa8] sm:$0xff]
  %v1450 = vld [vmem:[%s12 + $0xb0] sm:$0xff]
  %v1451 = vld [vmem:[%s12 + $0xb8] sm:$0xff]
  %v1452 = vld [vmem:[%s12 + $0xc0] sm:$0xff]
  %v1453 = vld [vmem:[%s12 + $0xc8] sm:$0xff]
  %v1454 = vld [vmem:[%s12 + $0xd0] sm:$0xff]
  %v1455 = vld [vmem:[%s12 + $0xd8] sm:$0xff]
  %v1456 = vld [vmem:[%s12 + $0xe0] sm:$0xff]
  %v1457 = vld [vmem:[%s12 + $0xe8] sm:$0xff]
  %v1458 = vld [vmem:[%s12 + $0xf0] sm:$0xff]
  %v1459 = vld [vmem:[%s12 + $0xf8] sm:$0xff]
  %v1460 = vld [vmem:[%s12 + $0x100] sm:$0xff]
  %v1461 = vld [vmem:[%s12 + $0x108] sm:$0xff]
  %v1462 = vld [vmem:[%s12 + $0x110] sm:$0xff]
  %v1463 = vld [vmem:[%s12 + $0x118] sm:$0xff]
  %v1464 = vld [vmem:[%s12 + $0x120] sm:$0xff]
  %v1465 = vld [vmem:[%s12 + $0x128] sm:$0xff]
  %v1466 = vld [vmem:[%s12 + $0x130] sm:$0xff]
  %v1467 = vld [vmem:[%s12 + $0x138] sm:$0xff]
  %v1468 = vld [vmem:[%s12 + $0x140] sm:$0xff]
  %v1469 = vld [vmem:[%s12 + $0x148] sm:$0xff]
  %v1470 = vld [vmem:[%s12 + $0x150] sm:$0xff]
  %v1471 = vld [vmem:[%s12 + $0x158] sm:$0xff]
  %v1472 = vld [vmem:[%s12 + $0x160] sm:$0xff]
  %v1473 = vld [vmem:[%s12 + $0x168] sm:$0xff]
  %v1474 = vld [vmem:[%s12 + $0x170] sm:$0xff]
  %v1475 = vld [vmem:[%s12 + $0x178] sm:$0xff]
  %v1476 = vld [vmem:[%s12 + $0x180] sm:$0xff]
  %v1477 = vld [vmem:[%s12 + $0x188] sm:$0xff]
  %v1478 = vld [vmem:[%s12 + $0x190] sm:$0xff]
  %v1479 = vld [vmem:[%s12 + $0x198] sm:$0xff]
  %v1480 = vld [vmem:[%s12 + $0x1a0] sm:$0xff]
  %v1481 = vld [vmem:[%s12 + $0x1a8] sm:$0xff]
  %v1482 = vld [vmem:[%s12 + $0x1b0] sm:$0xff]
  %v1483 = vld [vmem:[%s12 + $0x1b8] sm:$0xff]
  %v1484 = vld [vmem:[%s12 + $0x1c0] sm:$0xff]
  %v1485 = vld [vmem:[%s12 + $0x1c8] sm:$0xff]
  %v1486 = vld [vmem:[%s12 + $0x1d0] sm:$0xff]
  %v1487 = vld [vmem:[%s12 + $0x1d8] sm:$0xff]
  %v1488 = vld [vmem:[%s12 + $0x1e0] sm:$0xff]
  %v1489 = vld [vmem:[%s12 + $0x1e8] sm:$0xff]
  %v1490 = vld [vmem:[%s12 + $0x1f0] sm:$0xff]
  %v1491 = vld [vmem:[%s12 + $0x1f8] sm:$0xff]
  %v1492 = vld [vmem:[%s12 + $0x200] sm:$0xff]
  %v1493 = vld [vmem:[%s12 + $0x208] sm:$0xff]
  %v1494 = vld [vmem:[%s12 + $0x210] sm:$0xff]
  %v1495 = vld [vmem:[%s12 + $0x218] sm:$0xff]
  %v1496 = vld [vmem:[%s12 + $0x220] sm:$0xff]
  %v1497 = vld [vmem:[%s12 + $0x228] sm:$0xff]
  %v1498 = vld [vmem:[%s12 + $0x230] sm:$0xff]
  %v1499 = vld [vmem:[%s12 + $0x238] sm:$0xff]
  %v1500 = vld [vmem:[%s12 + $0x240] sm:$0xff]
  %v1501 = vld [vmem:[%s12 + $0x248] sm:$0xff]
  %v1502 = vld [vmem:[%s12 + $0x250] sm:$0xff]
  %v1503 = vld [vmem:[%s12 + $0x258] sm:$0xff]
  %v1504 = vld [vmem:[%s12 + $0x260] sm:$0xff]
  %v1505 = vld [vmem:[%s12 + $0x268] sm:$0xff]
  %v1506 = vld [vmem:[%s12 + $0x270] sm:$0xff]
  %v1507 = vld [vmem:[%s12 + $0x278] sm:$0xff]
  %v1508 = vld [vmem:[%s12 + $0x280] sm:$0xff]
  %v1509 = vld [vmem:[%s12 + $0x288] sm:$0xff]
  %v1510 = vld [vmem:[%s12 + $0x290] sm:$0xff]
  %v1511 = vld [vmem:[%s12 + $0x298] sm:$0xff]
  %v1512 = vld [vmem:[%s12 + $0x2a0] sm:$0xff]
  %v1513 = vld [vmem:[%s12 + $0x2a8] sm:$0xff]
  %v1514 = vld [vmem:[%s12 + $0x2b0] sm:$0xff]
  %v1515 = vld [vmem:[%s12 + $0x2b8] sm:$0xff]
  %v1516 = vld [vmem:[%s12 + $0x2c0] sm:$0xff]
  %v1517 = vld [vmem:[%s12 + $0x2c8] sm:$0xff]
  %v1518 = vld [vmem:[%s12 + $0x2d0] sm:$0x11]
  %v1519 = vld [vmem:[%s12 + $0x2d8] sm:$0x11]
  %v1612 = vunpack.c.l.b16 %v1428
  %v1613 = vunpack.c.h.b16 %v1428
  %v1614 = vunpack.c.l.b16 %v1429
  %v1615 = vunpack.c.h.b16 %v1429
  %v1616 = vunpack.c.l.b16 %v1430
  %v1617 = vunpack.c.h.b16 %v1430
  %v1618 = vunpack.c.l.b16 %v1431
  %v1619 = vunpack.c.h.b16 %v1431
  %v1620 = vunpack.c.l.b16 %v1432
  %v1621 = vunpack.c.h.b16 %v1432
  %v1622 = vunpack.c.l.b16 %v1433
  %v1623 = vunpack.c.h.b16 %v1433
  %v1624 = vunpack.c.l.b16 %v1434
  %v1625 = vunpack.c.h.b16 %v1434
  %v1626 = vunpack.c.l.b16 %v1435
  %v1627 = vunpack.c.h.b16 %v1435
  %v1628 = vunpack.c.l.b16 %v1436
  %v1629 = vunpack.c.h.b16 %v1436
  %v1630 = vunpack.c.l.b16 %v1437
  %v1631 = vunpack.c.h.b16 %v1437
  %v1632 = vunpack.c.l.b16 %v1438
  %v1633 = vunpack.c.h.b16 %v1438
  %v1634 = vunpack.c.l.b16 %v1439
  %v1635 = vunpack.c.h.b16 %v1439
  %v1636 = vunpack.c.l.b16 %v1440
  %v1637 = vunpack.c.h.b16 %v1440
  %v1638 = vunpack.c.l.b16 %v1441
  %v1639 = vunpack.c.h.b16 %v1441
  %v1640 = vunpack.c.l.b16 %v1442
  %v1641 = vunpack.c.h.b16 %v1442
  %v1642 = vunpack.c.l.b16 %v1443
  %v1643 = vunpack.c.h.b16 %v1443
  %v1644 = vunpack.c.l.b16 %v1444
  %v1645 = vunpack.c.h.b16 %v1444
  %v1646 = vunpack.c.l.b16 %v1445
  %v1647 = vunpack.c.h.b16 %v1445
  %v1648 = vunpack.c.l.b16 %v1446
  %v1649 = vunpack.c.h.b16 %v1446
  %v1650 = vunpack.c.l.b16 %v1447
  %v1651 = vunpack.c.h.b16 %v1447
  %v1652 = vunpack.c.l.b16 %v1448
  %v1653 = vunpack.c.h.b16 %v1448
  %v1654 = vunpack.c.l.b16 %v1449
  %v1655 = vunpack.c.h.b16 %v1449
  %v1656 = vunpack.c.l.b16 %v1450
  %v1657 = vunpack.c.h.b16 %v1450
  %v1658 = vunpack.c.l.b16 %v1451
  %v1659 = vunpack.c.h.b16 %v1451
  %v1660 = vunpack.c.l.b16 %v1452
  %v1661 = vunpack.c.h.b16 %v1452
  %v1662 = vunpack.c.l.b16 %v1453
  %v1663 = vunpack.c.h.b16 %v1453
  %v1664 = vunpack.c.l.b16 %v1454
  %v1665 = vunpack.c.h.b16 %v1454
  %v1666 = vunpack.c.l.b16 %v1455
  %v1667 = vunpack.c.h.b16 %v1455
  %v1668 = vunpack.c.l.b16 %v1456
  %v1669 = vunpack.c.h.b16 %v1456
  %v1670 = vunpack.c.l.b16 %v1457
  %v1671 = vunpack.c.h.b16 %v1457
  %v1672 = vunpack.c.l.b16 %v1458
  %v1673 = vunpack.c.h.b16 %v1458
  %v1674 = vunpack.c.l.b16 %v1459
  %v1675 = vunpack.c.h.b16 %v1459
  %v1676 = vunpack.c.l.b16 %v1460
  %v1677 = vunpack.c.h.b16 %v1460
  %v1678 = vunpack.c.l.b16 %v1461
  %v1679 = vunpack.c.h.b16 %v1461
  %v1680 = vunpack.c.l.b16 %v1462
  %v1681 = vunpack.c.h.b16 %v1462
  %v1682 = vunpack.c.l.b16 %v1463
  %v1683 = vunpack.c.h.b16 %v1463
  %v1684 = vunpack.c.l.b16 %v1464
  %v1685 = vunpack.c.h.b16 %v1464
  %v1686 = vunpack.c.l.b16 %v1465
  %v1687 = vunpack.c.h.b16 %v1465
  %v1688 = vunpack.c.l.b16 %v1466
  %v1689 = vunpack.c.h.b16 %v1466
  %v1690 = vunpack.c.l.b16 %v1467
  %v1691 = vunpack.c.h.b16 %v1467
  %v1692 = vunpack.c.l.b16 %v1468
  %v1693 = vunpack.c.h.b16 %v1468
  %v1694 = vunpack.c.l.b16 %v1469
  %v1695 = vunpack.c.h.b16 %v1469
  %v1696 = vunpack.c.l.b16 %v1470
  %v1697 = vunpack.c.h.b16 %v1470
  %v1698 = vunpack.c.l.b16 %v1471
  %v1699 = vunpack.c.h.b16 %v1471
  %v1700 = vunpack.c.l.b16 %v1472
  %v1701 = vunpack.c.h.b16 %v1472
  %v1702 = vunpack.c.l.b16 %v1473
  %v1703 = vunpack.c.h.b16 %v1473
  %v1704 = vunpack.c.l.b16 %v1474
  %v1705 = vunpack.c.h.b16 %v1474
  %v1706 = vunpack.c.l.b16 %v1475
  %v1707 = vunpack.c.h.b16 %v1475
  %v1708 = vunpack.c.l.b16 %v1476
  %v1709 = vunpack.c.h.b16 %v1476
  %v1710 = vunpack.c.l.b16 %v1477
  %v1711 = vunpack.c.h.b16 %v1477
  %v1712 = vunpack.c.l.b16 %v1478
  %v1713 = vunpack.c.h.b16 %v1478
  %v1714 = vunpack.c.l.b16 %v1479
  %v1715 = vunpack.c.h.b16 %v1479
  %v1716 = vunpack.c.l.b16 %v1480
  %v1717 = vunpack.c.h.b16 %v1480
  %v1718 = vunpack.c.l.b16 %v1481
  %v1719 = vunpack.c.h.b16 %v1481
  %v1720 = vunpack.c.l.b16 %v1482
  %v1721 = vunpack.c.h.b16 %v1482
  %v1722 = vunpack.c.l.b16 %v1483
  %v1723 = vunpack.c.h.b16 %v1483
  %v1724 = vunpack.c.l.b16 %v1484
  %v1725 = vunpack.c.h.b16 %v1484
  %v1726 = vunpack.c.l.b16 %v1485
  %v1727 = vunpack.c.h.b16 %v1485
  %v1728 = vunpack.c.l.b16 %v1486
  %v1729 = vunpack.c.h.b16 %v1486
  %v1730 = vunpack.c.l.b16 %v1487
  %v1731 = vunpack.c.h.b16 %v1487
  %v1732 = vunpack.c.l.b16 %v1488
  %v1733 = vunpack.c.h.b16 %v1488
  %v1734 = vunpack.c.l.b16 %v1489
  %v1735 = vunpack.c.h.b16 %v1489
  %v1736 = vunpack.c.l.b16 %v1490
  %v1737 = vunpack.c.h.b16 %v1490
  %v1738 = vunpack.c.l.b16 %v1491
  %v1739 = vunpack.c.h.b16 %v1491
  %v1740 = vunpack.c.l.b16 %v1492
  %v1741 = vunpack.c.h.b16 %v1492
  %v1742 = vunpack.c.l.b16 %v1493
  %v1743 = vunpack.c.h.b16 %v1493
  %v1744 = vunpack.c.l.b16 %v1494
  %v1745 = vunpack.c.h.b16 %v1494
  %v1746 = vunpack.c.l.b16 %v1495
  %v1747 = vunpack.c.h.b16 %v1495
  %v1748 = vunpack.c.l.b16 %v1496
  %v1749 = vunpack.c.h.b16 %v1496
  %v1750 = vunpack.c.l.b16 %v1497
  %v1751 = vunpack.c.h.b16 %v1497
  %v1752 = vunpack.c.l.b16 %v1498
  %v1753 = vunpack.c.h.b16 %v1498
  %v1754 = vunpack.c.l.b16 %v1499
  %v1755 = vunpack.c.h.b16 %v1499
  %v1756 = vunpack.c.l.b16 %v1500
  %v1757 = vunpack.c.h.b16 %v1500
  %v1758 = vunpack.c.l.b16 %v1501
  %v1759 = vunpack.c.h.b16 %v1501
  %v1760 = vunpack.c.l.b16 %v1502
  %v1761 = vunpack.c.h.b16 %v1502
  %v1762 = vunpack.c.l.b16 %v1503
  %v1763 = vunpack.c.h.b16 %v1503
  %v1764 = vunpack.c.l.b16 %v1504
  %v1765 = vunpack.c.h.b16 %v1504
  %v1766 = vunpack.c.l.b16 %v1505
  %v1767 = vunpack.c.h.b16 %v1505
  %v1768 = vunpack.c.l.b16 %v1506
  %v1769 = vunpack.c.h.b16 %v1506
  %v1770 = vunpack.c.l.b16 %v1507
  %v1771 = vunpack.c.h.b16 %v1507
  %v1772 = vunpack.c.l.b16 %v1508
  %v1773 = vunpack.c.h.b16 %v1508
  %v1774 = vunpack.c.l.b16 %v1509
  %v1775 = vunpack.c.h.b16 %v1509
  %v1776 = vunpack.c.l.b16 %v1510
  %v1777 = vunpack.c.h.b16 %v1510
  %v1778 = vunpack.c.l.b16 %v1511
  %v1779 = vunpack.c.h.b16 %v1511
  %v1780 = vunpack.c.l.b16 %v1512
  %v1781 = vunpack.c.h.b16 %v1512
  %v1782 = vunpack.c.l.b16 %v1513
  %v1783 = vunpack.c.h.b16 %v1513
  %v1784 = vunpack.c.l.b16 %v1514
  %v1785 = vunpack.c.h.b16 %v1514
  %v1786 = vunpack.c.l.b16 %v1515
  %v1787 = vunpack.c.h.b16 %v1515
  %v1788 = vunpack.c.l.b16 %v1516
  %v1789 = vunpack.c.h.b16 %v1516
  %v1790 = vunpack.c.l.b16 %v1517
  %v1791 = vunpack.c.h.b16 %v1517
  %v1792 = vunpack.c.l.b16 %v1518
  %v1793 = vunpack.c.h.b16 %v1518
  %v1794 = vunpack.c.l.b16 %v1519
  %v1795 = vunpack.c.h.b16 %v1519
  %v1796 = vpack.c.b16 %v1616, %v1612
  %v1797 = vpack.c.b16 %v1617, %v1613
  %v1798 = vpack.c.b16 %v1618, %v1614
  %v1799 = vpack.c.b16 %v1619, %v1615
  %v1800 = vpack.c.b16 %v1624, %v1620
  %v1801 = vpack.c.b16 %v1625, %v1621
  %v1802 = vpack.c.b16 %v1626, %v1622
  %v1803 = vpack.c.b16 %v1627, %v1623
  %v1804 = vpack.c.b16 %v1632, %v1628
  %v1805 = vpack.c.b16 %v1633, %v1629
  %v1806 = vpack.c.b16 %v1634, %v1630
  %v1807 = vpack.c.b16 %v1635, %v1631
  %v1808 = vpack.c.b16 %v1640, %v1636
  %v1809 = vpack.c.b16 %v1641, %v1637
  %v1810 = vpack.c.b16 %v1642, %v1638
  %v1811 = vpack.c.b16 %v1643, %v1639
  %v1812 = vpack.c.b16 %v1648, %v1644
  %v1813 = vpack.c.b16 %v1649, %v1645
  %v1814 = vpack.c.b16 %v1650, %v1646
  %v1815 = vpack.c.b16 %v1651, %v1647
  %v1816 = vpack.c.b16 %v1656, %v1652
  %v1817 = vpack.c.b16 %v1657, %v1653
  %v1818 = vpack.c.b16 %v1658, %v1654
  %v1819 = vpack.c.b16 %v1659, %v1655
  %v1820 = vpack.c.b16 %v1664, %v1660
  %v1821 = vpack.c.b16 %v1665, %v1661
  %v1822 = vpack.c.b16 %v1666, %v1662
  %v1823 = vpack.c.b16 %v1667, %v1663
  %v1824 = vpack.c.b16 %v1672, %v1668
  %v1825 = vpack.c.b16 %v1673, %v1669
  %v1826 = vpack.c.b16 %v1674, %v1670
  %v1827 = vpack.c.b16 %v1675, %v1671
  %v1828 = vpack.c.b16 %v1680, %v1676
  %v1829 = vpack.c.b16 %v1681, %v1677
  %v1830 = vpack.c.b16 %v1682, %v1678
  %v1831 = vpack.c.b16 %v1683, %v1679
  %v1832 = vpack.c.b16 %v1688, %v1684
  %v1833 = vpack.c.b16 %v1689, %v1685
  %v1834 = vpack.c.b16 %v1690, %v1686
  %v1835 = vpack.c.b16 %v1691, %v1687
  %v1836 = vpack.c.b16 %v1696, %v1692
  %v1837 = vpack.c.b16 %v1697, %v1693
  %v1838 = vpack.c.b16 %v1698, %v1694
  %v1839 = vpack.c.b16 %v1699, %v1695
  %v1840 = vpack.c.b16 %v1704, %v1700
  %v1841 = vpack.c.b16 %v1705, %v1701
  %v1842 = vpack.c.b16 %v1706, %v1702
  %v1843 = vpack.c.b16 %v1707, %v1703
  %v1844 = vpack.c.b16 %v1712, %v1708
  %v1845 = vpack.c.b16 %v1713, %v1709
  %v1846 = vpack.c.b16 %v1714, %v1710
  %v1847 = vpack.c.b16 %v1715, %v1711
  %v1848 = vpack.c.b16 %v1720, %v1716
  %v1849 = vpack.c.b16 %v1721, %v1717
  %v1850 = vpack.c.b16 %v1722, %v1718
  %v1851 = vpack.c.b16 %v1723, %v1719
  %v1852 = vpack.c.b16 %v1728, %v1724
  %v1853 = vpack.c.b16 %v1729, %v1725
  %v1854 = vpack.c.b16 %v1730, %v1726
  %v1855 = vpack.c.b16 %v1731, %v1727
  %v1856 = vpack.c.b16 %v1736, %v1732
  %v1857 = vpack.c.b16 %v1737, %v1733
  %v1858 = vpack.c.b16 %v1738, %v1734
  %v1859 = vpack.c.b16 %v1739, %v1735
  %v1860 = vpack.c.b16 %v1744, %v1740
  %v1861 = vpack.c.b16 %v1745, %v1741
  %v1862 = vpack.c.b16 %v1746, %v1742
  %v1863 = vpack.c.b16 %v1747, %v1743
  %v1864 = vpack.c.b16 %v1752, %v1748
  %v1865 = vpack.c.b16 %v1753, %v1749
  %v1866 = vpack.c.b16 %v1754, %v1750
  %v1867 = vpack.c.b16 %v1755, %v1751
  %v1868 = vpack.c.b16 %v1760, %v1756
  %v1869 = vpack.c.b16 %v1761, %v1757
  %v1870 = vpack.c.b16 %v1762, %v1758
  %v1871 = vpack.c.b16 %v1763, %v1759
  %v1872 = vpack.c.b16 %v1768, %v1764
  %v1873 = vpack.c.b16 %v1769, %v1765
  %v1874 = vpack.c.b16 %v1770, %v1766
  %v1875 = vpack.c.b16 %v1771, %v1767
  %v1876 = vpack.c.b16 %v1776, %v1772
  %v1877 = vpack.c.b16 %v1777, %v1773
  %v1878 = vpack.c.b16 %v1778, %v1774
  %v1879 = vpack.c.b16 %v1779, %v1775
  %v1880 = vpack.c.b16 %v1784, %v1780
  %v1881 = vpack.c.b16 %v1785, %v1781
  %v1882 = vpack.c.b16 %v1786, %v1782
  %v1883 = vpack.c.b16 %v1787, %v1783
  %v1884 = vpack.c.b16 %v1792, %v1788
  %v1885 = vpack.c.b16 %v1793, %v1789
  %v1886 = vpack.c.b16 %v1794, %v1790
  %v1887 = vpack.c.b16 %v1795, %v1791
  %vm1976 = vcmask 859136
  %v1978 = vsel %vm1976, %v1427, 0
  %vm1980 = vcmask 1043456
  %vm1981 = vcmask 1044480
  %v1982 = vsel %vm1980, 4294967295, 65535
  %v1983 = vsel %vm1981, %v1982, 0
  %v1985 = vand.u32 %v1884, %v1983
  %v1988 = vand.u32 %v1885, %v1983
  %v1991 = vand.u32 %v1886, %v1983
  %v1994 = vand.u32 %v1887, %v1983
  %1996 = vmatprep.subr.bf16.mxu0 %v1797
  %1997 = vmatpush1.bf16.msra.mxu0 %v1796
  %1998 = vmatprep.subr.bf16.mxu0 %v1801
  %1999 = vmatpush1.bf16.msra.mxu0 %v1800
  %2000 = vmatprep.subr.bf16.mxu0 %v1805
  %2001 = vmatpush1.bf16.msra.mxu0 %v1804
  %2002 = vmatprep.subr.bf16.mxu0 %v1809
  %2003 = vmatpush1.bf16.msra.mxu0 %v1808
  %2004 = vmatprep.subr.bf16.mxu0 %v1813
  %2005 = vmatpush1.bf16.msra.mxu0 %v1812
  %2006 = vmatprep.subr.bf16.mxu0 %v1817
  %2007 = vmatpush1.bf16.msra.mxu0 %v1816
  %2008 = vmatprep.subr.bf16.mxu0 %v1821
  %2009 = vmatpush1.bf16.msra.mxu0 %v1820
  %2010 = vmatprep.subr.bf16.mxu0 %v1825
  %2011 = vmatpush1.bf16.msra.mxu0 %v1824
  %2012 = vmatprep.subr.bf16.mxu0 %v1829
  %2013 = vmatpush1.bf16.msra.mxu0 %v1828
  %2014 = vmatprep.subr.bf16.mxu0 %v1833
  %2015 = vmatpush1.bf16.msra.mxu0 %v1832
  %2016 = vmatprep.subr.bf16.mxu0 %v1837
  %2017 = vmatpush1.bf16.msra.mxu0 %v1836
  %2018 = vmatprep.subr.bf16.mxu0 %v1841
  %2019 = vmatpush1.bf16.msra.mxu0 %v1840
  %2020 = vmatprep.subr.bf16.mxu0 %v1845
  %2021 = vmatpush1.bf16.msra.mxu0 %v1844
  %2022 = vmatprep.subr.bf16.mxu0 %v1849
  %2023 = vmatpush1.bf16.msra.mxu0 %v1848
  %2024 = vmatprep.subr.bf16.mxu0 %v1853
  %2025 = vmatpush1.bf16.msra.mxu0 %v1852
  %2026 = vmatprep.subr.bf16.mxu0 %v1857
  %2027 = vmatpush1.bf16.msra.mxu0 %v1856
  %2028 = vmatprep.mubr.bf16.mxu0 %v1426
  %2029 = vmatmul.mubr.bf16.gmra.mrb[0].mxu0 %v1425
  %v2030 = vpop.f32.mrb[0].mxu0
  %v2031 = vadd.f32 0.0, %v2030
  %v2032 = vpop.f32.mrb[0].mxu0
  %v2033 = vadd.f32 0.0, %v2032
  %v2034 = vpop.f32.mrb[0].mxu0
  %v2035 = vadd.f32 0.0, %v2034
  %v2036 = vpop.f32.mrb[0].mxu0
  %v2037 = vadd.f32 0.0, %v2036
  %2038 = vdwg.mxu0
  %2039 = vmatprep.subr.bf16.mxu0 %v1861
  %2040 = vmatpush1.bf16.msra.mxu0 %v1860
  %2041 = vmatprep.subr.bf16.mxu0 %v1865
  %2042 = vmatpush1.bf16.msra.mxu0 %v1864
  %2043 = vmatprep.subr.bf16.mxu0 %v1869
  %2044 = vmatpush1.bf16.msra.mxu0 %v1868
  %2045 = vmatprep.subr.bf16.mxu0 %v1873
  %2046 = vmatpush1.bf16.msra.mxu0 %v1872
  %2047 = vmatprep.subr.bf16.mxu0 %v1877
  %2048 = vmatpush1.bf16.msra.mxu0 %v1876
  %2049 = vmatprep.subr.bf16.mxu0 %v1881
  %2050 = vmatpush1.bf16.msra.mxu0 %v1880
  %2051 = vmatprep.subr.bf16.mxu0 %v1988
  %2052 = vmatpush1.bf16.msra.mxu0 %v1985
  %2053 = vmatprep.subr.bf16.mxu0 0
  %2054 = vmatpush1.bf16.msra.mxu0 0
  %2055 = vmatprep.subr.bf16.mxu0 0
  %2056 = vmatpush1.bf16.msra.mxu0 0
  %2057 = vmatprep.subr.bf16.mxu0 0
  %2058 = vmatpush1.bf16.msra.mxu0 0
  %2059 = vmatprep.subr.bf16.mxu0 0
  %2060 = vmatpush1.bf16.msra.mxu0 0
  %2061 = vmatprep.subr.bf16.mxu0 0
  %2062 = vmatpush1.bf16.msra.mxu0 0
  %2063 = vmatprep.subr.bf16.mxu0 0
  %2064 = vmatpush1.bf16.msra.mxu0 0
  %2065 = vmatprep.subr.bf16.mxu0 0
  %2066 = vmatpush1.bf16.msra.mxu0 0
  %2067 = vmatprep.subr.bf16.mxu0 0
  %2068 = vmatpush1.bf16.msra.mxu0 0
  %2069 = vmatprep.subr.bf16.mxu0 0
  %2070 = vmatpush1.bf16.msra.mxu0 0
  %2071 = vmatprep.mubr.bf16.mxu0 0
  %2072 = vmatmul.mubr.bf16.gmra.mrb[0].mxu0 %v1978
  %v2073 = vpop.f32.mrb[0].mxu0
  %v2074 = vadd.f32 %v2031, %v2073
  %v2075 = vpop.f32.mrb[0].mxu0
  %v2076 = vadd.f32 %v2033, %v2075
  %v2077 = vpop.f32.mrb[0].mxu0
  %v2078 = vadd.f32 %v2035, %v2077
  %v2079 = vpop.f32.mrb[0].mxu0
  %v2080 = vadd.f32 %v2037, %v2079
  %2081 = vdwg.mxu0
  %2082 = vmatprep.subr.bf16.mxu0 %v1799
  %2083 = vmatpush1.bf16.msra.mxu0 %v1798
  %2084 = vmatprep.subr.bf16.mxu0 %v1803
  %2085 = vmatpush1.bf16.msra.mxu0 %v1802
  %2086 = vmatprep.subr.bf16.mxu0 %v1807
  %2087 = vmatpush1.bf16.msra.mxu0 %v1806
  %2088 = vmatprep.subr.bf16.mxu0 %v1811
  %2089 = vmatpush1.bf16.msra.mxu0 %v1810
  %2090 = vmatprep.subr.bf16.mxu0 %v1815
  %2091 = vmatpush1.bf16.msra.mxu0 %v1814
  %2092 = vmatprep.subr.bf16.mxu0 %v1819
  %2093 = vmatpush1.bf16.msra.mxu0 %v1818
  %2094 = vmatprep.subr.bf16.mxu0 %v1823
  %2095 = vmatpush1.bf16.msra.mxu0 %v1822
  %2096 = vmatprep.subr.bf16.mxu0 %v1827
  %2097 = vmatpush1.bf16.msra.mxu0 %v1826
  %2098 = vmatprep.subr.bf16.mxu0 %v1831
  %2099 = vmatpush1.bf16.msra.mxu0 %v1830
  %2100 = vmatprep.subr.bf16.mxu0 %v1835
  %2101 = vmatpush1.bf16.msra.mxu0 %v1834
  %2102 = vmatprep.subr.bf16.mxu0 %v1839
  %2103 = vmatpush1.bf16.msra.mxu0 %v1838
  %2104 = vmatprep.subr.bf16.mxu0 %v1843
  %2105 = vmatpush1.bf16.msra.mxu0 %v1842
  %2106 = vmatprep.subr.bf16.mxu0 %v1847
  %2107 = vmatpush1.bf16.msra.mxu0 %v1846
  %2108 = vmatprep.subr.bf16.mxu0 %v1851
  %2109 = vmatpush1.bf16.msra.mxu0 %v1850
  %2110 = vmatprep.subr.bf16.mxu0 %v1855
  %2111 = vmatpush1.bf16.msra.mxu0 %v1854
  %2112 = vmatprep.subr.bf16.mxu0 %v1859
  %2113 = vmatpush1.bf16.msra.mxu0 %v1858
  %2114 = vmatprep.mubr.bf16.mxu0 %v1426
  %2115 = vmatmul.mubr.bf16.gmra.mrb[0].mxu0 %v1425
  %v2116 = vpop.f32.mrb[0].mxu0
  %v2117 = vadd.f32 0.0, %v2116
  %v2118 = vpop.f32.mrb[0].mxu0
  %v2119 = vadd.f32 0.0, %v2118
  %v2120 = vpop.f32.mrb[0].mxu0
  %v2121 = vadd.f32 0.0, %v2120
  %v2122 = vpop.f32.mrb[0].mxu0
  %v2123 = vadd.f32 0.0, %v2122
  %2124 = vdwg.mxu0
  %2125 = vmatprep.subr.bf16.mxu0 %v1863
  %2126 = vmatpush1.bf16.msra.mxu0 %v1862
  %2127 = vmatprep.subr.bf16.mxu0 %v1867
  %2128 = vmatpush1.bf16.msra.mxu0 %v1866
  %2129 = vmatprep.subr.bf16.mxu0 %v1871
  %2130 = vmatpush1.bf16.msra.mxu0 %v1870
  %2131 = vmatprep.subr.bf16.mxu0 %v1875
  %2132 = vmatpush1.bf16.msra.mxu0 %v1874
  %2133 = vmatprep.subr.bf16.mxu0 %v1879
  %2134 = vmatpush1.bf16.msra.mxu0 %v1878
  %2135 = vmatprep.subr.bf16.mxu0 %v1883
  %2136 = vmatpush1.bf16.msra.mxu0 %v1882
  %2137 = vmatprep.subr.bf16.mxu0 %v1994
  %2138 = vmatpush1.bf16.msra.mxu0 %v1991
  %2139 = vmatprep.subr.bf16.mxu0 0
  %2140 = vmatpush1.bf16.msra.mxu0 0
  %2141 = vmatprep.subr.bf16.mxu0 0
  %2142 = vmatpush1.bf16.msra.mxu0 0
  %2143 = vmatprep.subr.bf16.mxu0 0
  %2144 = vmatpush1.bf16.msra.mxu0 0
  %2145 = vmatprep.subr.bf16.mxu0 0
  %2146 = vmatpush1.bf16.msra.mxu0 0
  %2147 = vmatprep.subr.bf16.mxu0 0
  %2148 = vmatpush1.bf16.msra.mxu0 0
  %2149 = vmatprep.subr.bf16.mxu0 0
  %2150 = vmatpush1.bf16.msra.mxu0 0
  %2151 = vmatprep.subr.bf16.mxu0 0
  %2152 = vmatpush1.bf16.msra.mxu0 0
  %2153 = vmatprep.subr.bf16.mxu0 0
  %2154 = vmatpush1.bf16.msra.mxu0 0
  %2155 = vmatprep.subr.bf16.mxu0 0
  %2156 = vmatpush1.bf16.msra.mxu0 0
  %2157 = vmatprep.mubr.bf16.mxu0 0
  %2158 = vmatmul.mubr.bf16.gmra.mrb[0].mxu0 %v1978
  %v2159 = vpop.f32.mrb[0].mxu0
  %v2160 = vadd.f32 %v2117, %v2159
  %v2161 = vpop.f32.mrb[0].mxu0
  %v2162 = vadd.f32 %v2119, %v2161
  %v2163 = vpop.f32.mrb[0].mxu0
  %v2164 = vadd.f32 %v2121, %v2163
  %v2165 = vpop.f32.mrb[0].mxu0
  %v2166 = vadd.f32 %v2123, %v2165
  %2167 = vdwg.mxu0
  %2169 = vset.pattern.permute.xlu0 0
  %2170 = vperm.xlu0 %2169, %v1139
  %v2171 = vpop.permute.xlu0 %2170
  %2174 = vset.pattern.permute.xlu0 0
  %2175 = vperm.xlu0 %2174, %v1142
  %v2176 = vpop.permute.xlu0 %2175
  %v2178 = vmul.f32 %v2171, %v2074
  %v2179 = vmul.f32 %v2171, %v2076
  %v2180 = vmul.f32 %v2176, %v2078
  %v2181 = vmul.f32 %v2176, %v2080
  %2182 = vset.pattern.permute.xlu0 1
  %2183 = vperm.xlu0 %2182, %v1139
  %v2184 = vpop.permute.xlu0 %2183
  %2186 = vset.pattern.permute.xlu0 1
  %2187 = vperm.xlu0 %2186, %v1142
  %v2188 = vpop.permute.xlu0 %2187
  %v2190 = vmul.f32 %v2184, %v2160
  %v2191 = vmul.f32 %v2184, %v2162
  %v2192 = vmul.f32 %v2188, %v2164
  %v2193 = vmul.f32 %v2188, %v2166
  %v2194 = vadd.f32 %v2178, %v2190
  %v2195 = vadd.f32 %v2179, %v2191
  %v2196 = vadd.f32 %v2180, %v2192
  %v2197 = vadd.f32 %v2181, %v2193
  %2198 = vst [vmem:[%s13] sm:$0xff] %v2194
  %2199 = vst [vmem:[%s13 + $0x8] sm:$0xff] %v2195
  %2200 = vst [vmem:[%s13 + $0x10] sm:$0xff] %v2196
  %2201 = vst [vmem:[%s13 + $0x18] sm:$0xff] %v2197
  // Predicated region
  $region54: #{mnist_sum_double2_forward.5} parent=0 // pred_check
    _
  $region55: #{mnist_sum_double2_forward.5} parent=0 // pred_check_branch
    %2203 = sbr.rel (0) target = $region57
  $region56: #{mnist_sum_double2_forward.5} parent=0 // pred_region
    _
  $region57: #{mnist_sum_double2_forward.5} parent=0 // pred_fallthru
    _
  // Predicated region
  $region58: #{mnist_sum_double2_forward.5} parent=0 // pred_check
    _
  $region59: #{mnist_sum_double2_forward.5} parent=0 // pred_check_branch
    %2205 = sbr.rel (0) target = $region61
  $region60: #{mnist_sum_double2_forward.5} parent=0 // pred_region
    _
  $region61: #{mnist_sum_double2_forward.5} parent=0 // pred_fallthru
    _

</llo_original>
